<compile_context>
chip_gen: v6e
topology: v6e:2x2x1
jax: 0.10.0
libtpu: 0.0.40
codegen_flags: <defaults>
</compile_context>

<pallas_src>
import jax
import jax.numpy as jnp
from jax.experimental import pallas as pl
from jax.experimental.pallas import tpu as pltpu

IN_DIM = 3072        # 3 * 32 * 32 (nn.Flatten of NCHW input)
HID = 100
OUT = 10
N_LAYERS = 20        # number of Linear->ELU blocks (first is 3072->100)
PAD = 128            # lane-padded hidden / output width
MAX_TB = 512         # batch tile cap: ~7 MiB VMEM w/ double-buffered x, safe everywhere


def _round_up(x, m):
    return (x + m - 1) // m * m


def _elu(x):
    # ELU alpha=1.0 (PyTorch default); ELU(0) == 0 so zero-padded lanes stay 0.
    return jnp.where(x > 0, x, jnp.exp(jnp.minimum(x, 0.0)) - 1.0)


def dnn_kernel(x_ref, w0_ref, b0_ref, wh_ref, bh_ref, wo_ref, bo_ref, out_ref):
    tb = x_ref.shape[0]                      # static tile size (multiple of 16)
    n_chains = 2 if tb <= 256 else 4         # interleave factor (static)
    chunk = tb // n_chains                   # multiple of 8

    w0 = w0_ref[...]          # (IN_DIM, PAD) bf16
    b0 = b0_ref[...]          # (1, PAD) f32

    # Independent sub-chains interleaved: layer i of the chains are mutually
    # independent, so consecutive MXU issues overlap instead of exposing the
    # push->result latency of a single serial 128-wide chain.
    hs = []
    for c in range(n_chains):
        xs = x_ref[pl.ds(c * chunk, chunk), :]
        a = jnp.dot(xs, w0, preferred_element_type=jnp.float32)
        hs.append(_elu(a + b0))

    for i in range(N_LAYERS - 1):
        w = wh_ref[i]         # (PAD, PAD) bf16
        b = bh_ref[i]         # (1, PAD) f32
        hs = [
            _elu(jnp.dot(h.astype(jnp.bfloat16), w,
                         preferred_element_type=jnp.float32) + b)
            for h in hs
        ]

    wo = wo_ref[...]          # (PAD, PAD) bf16
    bo = bo_ref[...]          # (1, PAD) f32

    for c in range(n_chains):
        logits = jnp.dot(hs[c].astype(jnp.bfloat16), wo,
                         preferred_element_type=jnp.float32) + bo
        m_, p_ = logits.shape
        col = jax.lax.broadcasted_iota(jnp.int32, (m_, p_), 1)
        logits = jnp.where(col < OUT, logits, -jnp.inf)   # mask padded classes
        mx = jnp.max(logits, axis=1, keepdims=True)
        e = jnp.exp(logits - mx)
        s = jnp.sum(e, axis=1, keepdims=True)
        out_ref[pl.ds(c * chunk, chunk), :] = e * pl.reciprocal(s, approx=True)


def prepare_params(w0, b0, wh, bh, wo, bo):
    """One-time: pad to 128 lanes and pre-cast weights to bf16 (hoisted out of
    the per-call jitted path)."""
    w0_p = jnp.zeros((IN_DIM, PAD), jnp.bfloat16).at[:, :HID].set(
        w0.astype(jnp.bfloat16))
    b0_p = jnp.zeros((1, PAD), jnp.float32).at[0, :HID].set(b0)
    wh_p = jnp.zeros((N_LAYERS - 1, PAD, PAD), jnp.bfloat16).at[:, :HID, :HID].set(
        wh.astype(jnp.bfloat16))
    bh_p = jnp.zeros((N_LAYERS - 1, 1, PAD), jnp.float32).at[:, 0, :HID].set(bh)
    wo_p = jnp.zeros((PAD, PAD), jnp.bfloat16).at[:HID, :OUT].set(
        wo.astype(jnp.bfloat16))
    bo_p = jnp.zeros((1, PAD), jnp.float32).at[0, :OUT].set(bo)
    return w0_p, b0_p, wh_p, bh_p, wo_p, bo_p


@jax.jit
def dnn_forward(x_nchw, w0_p, b0_p, wh_p, bh_p, wo_p, bo_p):
    """x_nchw: (B, 3, 32, 32) float32. Returns (B, 10) softmax probabilities."""
    B = x_nchw.shape[0]
    x = x_nchw.reshape(B, -1).astype(jnp.bfloat16)   # nn.Flatten, C*H*W order

    TB = min(MAX_TB, _round_up(B, 16))               # tile: >=16 rows, <=512 rows
    pb = _round_up(B, TB)
    if pb != B:
        x = jnp.pad(x, ((0, pb - B), (0, 0)))

    grid = (pb // TB,)

    flops = 2 * pb * (IN_DIM * PAD + (N_LAYERS - 1) * PAD * PAD + PAD * PAD)
    transcend = pb * (N_LAYERS * PAD + PAD)
    bytes_acc = (pb * IN_DIM * 2 + pb * PAD * 4
                 + IN_DIM * PAD * 2 + (N_LAYERS - 1) * PAD * PAD * 2
                 + PAD * PAD * 2 + (N_LAYERS + 1) * PAD * 4)

    out_padded = pl.pallas_call(
        dnn_kernel,
        out_shape=jax.ShapeDtypeStruct((pb, PAD), jnp.float32),
        grid=grid,
        in_specs=[
            pl.BlockSpec((TB, IN_DIM), lambda i: (i, 0)),                 # x tile
            pl.BlockSpec((IN_DIM, PAD), lambda i: (0, 0)),                # w0 (resident)
            pl.BlockSpec((1, PAD), lambda i: (0, 0)),                     # b0
            pl.BlockSpec((N_LAYERS - 1, PAD, PAD), lambda i: (0, 0, 0)),  # wh (resident)
            pl.BlockSpec((N_LAYERS - 1, 1, PAD), lambda i: (0, 0, 0)),    # bh
            pl.BlockSpec((PAD, PAD), lambda i: (0, 0)),                   # wo
            pl.BlockSpec((1, PAD), lambda i: (0, 0)),                     # bo
        ],
        out_specs=pl.BlockSpec((TB, PAD), lambda i: (i, 0)),
        compiler_params=pltpu.CompilerParams(
            dimension_semantics=("parallel",)),
        cost_estimate=pl.CostEstimate(
            flops=flops, transcendentals=transcend, bytes_accessed=bytes_acc),
    )(x, w0_p, b0_p, wh_p, bh_p, wo_p, bo_p)

    return out_padded[:B, :OUT]


# ----------------------------- references -----------------------------------

def reference_forward_bf16(x_nchw, w0, b0, wh, bh, wo, bo):
    """Same numerics as the kernel (bf16 matmul inputs, f32 accumulation)."""
    x = x_nchw.reshape(x_nchw.shape[0], -1).astype(jnp.bfloat16)
    h = _elu(jnp.dot(x, w0.astype(jnp.bfloat16),
                     preferred_element_type=jnp.float32) + b0)
    for i in range(N_LAYERS - 1):
        h = _elu(jnp.dot(h.astype(jnp.bfloat16), wh[i].astype(jnp.bfloat16),
                         preferred_element_type=jnp.float32) + bh[i])
    logits = jnp.dot(h.astype(jnp.bfloat16), wo.astype(jnp.bfloat16),
                     preferred_element_type=jnp.float32) + bo
    return jax.nn.softmax(logits, axis=1)


def reference_forward_f32(x_nchw, w0, b0, wh, bh, wo, bo):
    """Full f32 reference (module semantics)."""
    prec = jax.lax.Precision.HIGHEST
    x = x_nchw.reshape(x_nchw.shape[0], -1)
    h = _elu(jnp.dot(x, w0, precision=prec) + b0)
    for i in range(N_LAYERS - 1):
        h = _elu(jnp.dot(h, wh[i], precision=prec) + bh[i])
    logits = jnp.dot(h, wo, precision=prec) + bo
    return jax.nn.softmax(logits, axis=1)


if __name__ == "__main__":
    key = jax.random.PRNGKey(0)
    ks = jax.random.split(key, 8)

    B = 2
    x = jax.random.normal(ks[0], (B, 3, 32, 32), jnp.float32)

    # Deterministic synthetic parameters (small scale keeps activations tame).
    w0 = jax.random.normal(ks[1], (IN_DIM, HID), jnp.float32) * 0.02
    b0 = jax.random.normal(ks[2], (HID,), jnp.float32) * 0.01
    wh = jax.random.normal(ks[3], (N_LAYERS - 1, HID, HID), jnp.float32) * 0.1
    bh = jax.random.normal(ks[4], (N_LAYERS - 1, HID), jnp.float32) * 0.01
    wo = jax.random.normal(ks[5], (HID, OUT), jnp.float32) * 0.1
    bo = jax.random.normal(ks[6], (OUT,), jnp.float32) * 0.01

    params = prepare_params(w0, b0, wh, bh, wo, bo)

    out = dnn_forward(x, *params)
    out = jax.block_until_ready(out)

    ref_b = reference_forward_bf16(x, w0, b0, wh, bh, wo, bo)
    ref_f = reference_forward_f32(x, w0, b0, wh, bh, wo, bo)

    assert out.shape == (B, OUT), out.shape
    # Sum-to-one (approx reciprocal allows a tiny slack).
    assert jnp.allclose(jnp.sum(out, axis=1), 1.0, atol=1e-2)
    # Tight check vs. a reference with identical bf16/f32-accum numerics.
    assert jnp.allclose(out, ref_b, atol=5e-3, rtol=5e-3), \
        float(jnp.max(jnp.abs(out - ref_b)))
    # Loose check vs. the full-f32 module semantics (bf16 MXU math diverges slightly
    # across 20 layers — deliberate perf tradeoff).
    assert jnp.allclose(out, ref_f, atol=5e-2), \
        float(jnp.max(jnp.abs(out - ref_f)))

    print("KERNEL_OK")
</pallas_src>

<mosaic_0001>
module attributes {stable_mosaic.version = 11 : i64} {
  func.func @dnn_kernel(%arg0: i32, %arg1: memref<16x3072xbf16, #tpu.memory_space<vmem>>, %arg2: memref<3072x128xbf16, #tpu.memory_space<vmem>>, %arg3: memref<1x128xf32, #tpu.memory_space<vmem>>, %arg4: memref<19x128x128xbf16, #tpu.memory_space<vmem>>, %arg5: memref<19x1x128xf32, #tpu.memory_space<vmem>>, %arg6: memref<128x128xbf16, #tpu.memory_space<vmem>>, %arg7: memref<1x128xf32, #tpu.memory_space<vmem>>, %arg8: memref<16x128xf32, #tpu.memory_space<vmem>>) attributes {dimension_semantics = [#tpu.dimension_semantics<parallel>], iteration_bounds = array<i64: 1>, scalar_prefetch = 0 : i64, scratch_operands = 0 : i64, tpu.core_type = #tpu.core_type<tc>, window_params = [{transform_indices = @transform_0, window_bounds = array<i64: 16, 3072>}, {pipeline_mode = #tpu.pipeline_mode<synchronous>, transform_indices = @transform_1, window_bounds = array<i64: 3072, 128>}, {pipeline_mode = #tpu.pipeline_mode<synchronous>, transform_indices = @transform_2, window_bounds = array<i64: 1, 128>}, {pipeline_mode = #tpu.pipeline_mode<synchronous>, transform_indices = @transform_3, window_bounds = array<i64: 19, 128, 128>}, {pipeline_mode = #tpu.pipeline_mode<synchronous>, transform_indices = @transform_4, window_bounds = array<i64: 19, 1, 128>}, {pipeline_mode = #tpu.pipeline_mode<synchronous>, transform_indices = @transform_5, window_bounds = array<i64: 128, 128>}, {pipeline_mode = #tpu.pipeline_mode<synchronous>, transform_indices = @transform_6, window_bounds = array<i64: 1, 128>}, {transform_indices = @transform_7, window_bounds = array<i64: 16, 128>}]} {
    %c0 = arith.constant 0 : index
    %c0_0 = arith.constant 0 : index
    %0 = vector.load %arg2[%c0, %c0_0] : memref<3072x128xbf16, #tpu.memory_space<vmem>>, vector<3072x128xbf16>
    %c0_1 = arith.constant 0 : index
    %c0_2 = arith.constant 0 : index
    %1 = vector.load %arg3[%c0_1, %c0_2] : memref<1x128xf32, #tpu.memory_space<vmem>>, vector<1x128xf32>
    %c0_3 = arith.constant 0 : index
    %c0_4 = arith.constant 0 : index
    %2 = vector.load %arg1[%c0_3, %c0_4] : memref<16x3072xbf16, #tpu.memory_space<vmem>>, vector<8x3072xbf16>
    %cst = arith.constant dense<0.000000e+00> : vector<8x128xf32>
    %3 = tpu.matmul %2, %0, %cst {dimension_numbers = #tpu.dot_dimension_numbers<[1], [0], [0], [1], [0, 0, 1, 1], [], []>} : vector<8x3072xbf16>, vector<3072x128xbf16>, vector<8x128xf32> -> vector<8x128xf32>
    %4 = vector.broadcast %1 : vector<1x128xf32> to vector<8x128xf32>
    %5 = arith.addf %3, %4 : vector<8x128xf32>
    %cst_5 = arith.constant 0.000000e+00 : f32
    %6 = vector.broadcast %cst_5 : f32 to vector<8x128xf32>
    %7 = arith.cmpf ogt, %5, %6 : vector<8x128xf32>
    %cst_6 = arith.constant 0.000000e+00 : f32
    %8 = vector.broadcast %cst_6 : f32 to vector<8x128xf32>
    %9 = arith.minimumf %5, %8 : vector<8x128xf32>
    %10 = math.exp %9 : vector<8x128xf32>
    %cst_7 = arith.constant 1.000000e+00 : f32
    %11 = vector.broadcast %cst_7 : f32 to vector<8x128xf32>
    %12 = arith.subf %10, %11 : vector<8x128xf32>
    %13 = arith.select %7, %5, %12 : vector<8x128xi1>, vector<8x128xf32>
    %c8 = arith.constant 8 : index
    %c0_8 = arith.constant 0 : index
    %14 = vector.load %arg1[%c8, %c0_8] : memref<16x3072xbf16, #tpu.memory_space<vmem>>, vector<8x3072xbf16>
    %cst_9 = arith.constant dense<0.000000e+00> : vector<8x128xf32>
    %15 = tpu.matmul %14, %0, %cst_9 {dimension_numbers = #tpu.dot_dimension_numbers<[1], [0], [0], [1], [0, 0, 1, 1], [], []>} : vector<8x3072xbf16>, vector<3072x128xbf16>, vector<8x128xf32> -> vector<8x128xf32>
    %16 = vector.broadcast %1 : vector<1x128xf32> to vector<8x128xf32>
    %17 = arith.addf %15, %16 : vector<8x128xf32>
    %cst_10 = arith.constant 0.000000e+00 : f32
    %18 = vector.broadcast %cst_10 : f32 to vector<8x128xf32>
    %19 = arith.cmpf ogt, %17, %18 : vector<8x128xf32>
    %cst_11 = arith.constant 0.000000e+00 : f32
    %20 = vector.broadcast %cst_11 : f32 to vector<8x128xf32>
    %21 = arith.minimumf %17, %20 : vector<8x128xf32>
    %22 = math.exp %21 : vector<8x128xf32>
    %cst_12 = arith.constant 1.000000e+00 : f32
    %23 = vector.broadcast %cst_12 : f32 to vector<8x128xf32>
    %24 = arith.subf %22, %23 : vector<8x128xf32>
    %25 = arith.select %19, %17, %24 : vector<8x128xi1>, vector<8x128xf32>
    %c0_13 = arith.constant 0 : index
    %c0_14 = arith.constant 0 : index
    %c0_15 = arith.constant 0 : index
    %26 = vector.load %arg4[%c0_13, %c0_14, %c0_15] : memref<19x128x128xbf16, #tpu.memory_space<vmem>>, vector<1x128x128xbf16>
    %27 = vector.shape_cast %26 : vector<1x128x128xbf16> to vector<128x128xbf16>
    %c0_16 = arith.constant 0 : index
    %c0_17 = arith.constant 0 : index
    %c0_18 = arith.constant 0 : index
    %28 = vector.load %arg5[%c0_16, %c0_17, %c0_18] : memref<19x1x128xf32, #tpu.memory_space<vmem>>, vector<1x1x128xf32>
    %29 = vector.shape_cast %28 : vector<1x1x128xf32> to vector<1x128xf32>
    %30 = arith.truncf %13 : vector<8x128xf32> to vector<8x128xbf16>
    %cst_19 = arith.constant dense<0.000000e+00> : vector<8x128xf32>
    %31 = tpu.matmul %30, %27, %cst_19 {dimension_numbers = #tpu.dot_dimension_numbers<[1], [0], [0], [1], [0, 0, 1, 1], [], []>} : vector<8x128xbf16>, vector<128x128xbf16>, vector<8x128xf32> -> vector<8x128xf32>
    %32 = vector.broadcast %29 : vector<1x128xf32> to vector<8x128xf32>
    %33 = arith.addf %31, %32 : vector<8x128xf32>
    %cst_20 = arith.constant 0.000000e+00 : f32
    %34 = vector.broadcast %cst_20 : f32 to vector<8x128xf32>
    %35 = arith.cmpf ogt, %33, %34 : vector<8x128xf32>
    %cst_21 = arith.constant 0.000000e+00 : f32
    %36 = vector.broadcast %cst_21 : f32 to vector<8x128xf32>
    %37 = arith.minimumf %33, %36 : vector<8x128xf32>
    %38 = math.exp %37 : vector<8x128xf32>
    %cst_22 = arith.constant 1.000000e+00 : f32
    %39 = vector.broadcast %cst_22 : f32 to vector<8x128xf32>
    %40 = arith.subf %38, %39 : vector<8x128xf32>
    %41 = arith.select %35, %33, %40 : vector<8x128xi1>, vector<8x128xf32>
    %42 = arith.truncf %25 : vector<8x128xf32> to vector<8x128xbf16>
    %cst_23 = arith.constant dense<0.000000e+00> : vector<8x128xf32>
    %43 = tpu.matmul %42, %27, %cst_23 {dimension_numbers = #tpu.dot_dimension_numbers<[1], [0], [0], [1], [0, 0, 1, 1], [], []>} : vector<8x128xbf16>, vector<128x128xbf16>, vector<8x128xf32> -> vector<8x128xf32>
    %44 = vector.broadcast %29 : vector<1x128xf32> to vector<8x128xf32>
    %45 = arith.addf %43, %44 : vector<8x128xf32>
    %cst_24 = arith.constant 0.000000e+00 : f32
    %46 = vector.broadcast %cst_24 : f32 to vector<8x128xf32>
    %47 = arith.cmpf ogt, %45, %46 : vector<8x128xf32>
    %cst_25 = arith.constant 0.000000e+00 : f32
    %48 = vector.broadcast %cst_25 : f32 to vector<8x128xf32>
    %49 = arith.minimumf %45, %48 : vector<8x128xf32>
    %50 = math.exp %49 : vector<8x128xf32>
    %cst_26 = arith.constant 1.000000e+00 : f32
    %51 = vector.broadcast %cst_26 : f32 to vector<8x128xf32>
    %52 = arith.subf %50, %51 : vector<8x128xf32>
    %53 = arith.select %47, %45, %52 : vector<8x128xi1>, vector<8x128xf32>
    %c1 = arith.constant 1 : index
    %c0_27 = arith.constant 0 : index
    %c0_28 = arith.constant 0 : index
    %54 = vector.load %arg4[%c1, %c0_27, %c0_28] : memref<19x128x128xbf16, #tpu.memory_space<vmem>>, vector<1x128x128xbf16>
    %55 = vector.shape_cast %54 : vector<1x128x128xbf16> to vector<128x128xbf16>
    %c1_29 = arith.constant 1 : index
    %c0_30 = arith.constant 0 : index
    %c0_31 = arith.constant 0 : index
    %56 = vector.load %arg5[%c1_29, %c0_30, %c0_31] : memref<19x1x128xf32, #tpu.memory_space<vmem>>, vector<1x1x128xf32>
    %57 = vector.shape_cast %56 : vector<1x1x128xf32> to vector<1x128xf32>
    %58 = arith.truncf %41 : vector<8x128xf32> to vector<8x128xbf16>
    %cst_32 = arith.constant dense<0.000000e+00> : vector<8x128xf32>
    %59 = tpu.matmul %58, %55, %cst_32 {dimension_numbers = #tpu.dot_dimension_numbers<[1], [0], [0], [1], [0, 0, 1, 1], [], []>} : vector<8x128xbf16>, vector<128x128xbf16>, vector<8x128xf32> -> vector<8x128xf32>
    %60 = vector.broadcast %57 : vector<1x128xf32> to vector<8x128xf32>
    %61 = arith.addf %59, %60 : vector<8x128xf32>
    %cst_33 = arith.constant 0.000000e+00 : f32
    %62 = vector.broadcast %cst_33 : f32 to vector<8x128xf32>
    %63 = arith.cmpf ogt, %61, %62 : vector<8x128xf32>
    %cst_34 = arith.constant 0.000000e+00 : f32
    %64 = vector.broadcast %cst_34 : f32 to vector<8x128xf32>
    %65 = arith.minimumf %61, %64 : vector<8x128xf32>
    %66 = math.exp %65 : vector<8x128xf32>
    %cst_35 = arith.constant 1.000000e+00 : f32
    %67 = vector.broadcast %cst_35 : f32 to vector<8x128xf32>
    %68 = arith.subf %66, %67 : vector<8x128xf32>
    %69 = arith.select %63, %61, %68 : vector<8x128xi1>, vector<8x128xf32>
    %70 = arith.truncf %53 : vector<8x128xf32> to vector<8x128xbf16>
    %cst_36 = arith.constant dense<0.000000e+00> : vector<8x128xf32>
    %71 = tpu.matmul %70, %55, %cst_36 {dimension_numbers = #tpu.dot_dimension_numbers<[1], [0], [0], [1], [0, 0, 1, 1], [], []>} : vector<8x128xbf16>, vector<128x128xbf16>, vector<8x128xf32> -> vector<8x128xf32>
    %72 = vector.broadcast %57 : vector<1x128xf32> to vector<8x128xf32>
    %73 = arith.addf %71, %72 : vector<8x128xf32>
    %cst_37 = arith.constant 0.000000e+00 : f32
    %74 = vector.broadcast %cst_37 : f32 to vector<8x128xf32>
    %75 = arith.cmpf ogt, %73, %74 : vector<8x128xf32>
    %cst_38 = arith.constant 0.000000e+00 : f32
    %76 = vector.broadcast %cst_38 : f32 to vector<8x128xf32>
    %77 = arith.minimumf %73, %76 : vector<8x128xf32>
    %78 = math.exp %77 : vector<8x128xf32>
    %cst_39 = arith.constant 1.000000e+00 : f32
    %79 = vector.broadcast %cst_39 : f32 to vector<8x128xf32>
    %80 = arith.subf %78, %79 : vector<8x128xf32>
    %81 = arith.select %75, %73, %80 : vector<8x128xi1>, vector<8x128xf32>
    %c2 = arith.constant 2 : index
    %c0_40 = arith.constant 0 : index
    %c0_41 = arith.constant 0 : index
    %82 = vector.load %arg4[%c2, %c0_40, %c0_41] : memref<19x128x128xbf16, #tpu.memory_space<vmem>>, vector<1x128x128xbf16>
    %83 = vector.shape_cast %82 : vector<1x128x128xbf16> to vector<128x128xbf16>
    %c2_42 = arith.constant 2 : index
    %c0_43 = arith.constant 0 : index
    %c0_44 = arith.constant 0 : index
    %84 = vector.load %arg5[%c2_42, %c0_43, %c0_44] : memref<19x1x128xf32, #tpu.memory_space<vmem>>, vector<1x1x128xf32>
    %85 = vector.shape_cast %84 : vector<1x1x128xf32> to vector<1x128xf32>
    %86 = arith.truncf %69 : vector<8x128xf32> to vector<8x128xbf16>
    %cst_45 = arith.constant dense<0.000000e+00> : vector<8x128xf32>
    %87 = tpu.matmul %86, %83, %cst_45 {dimension_numbers = #tpu.dot_dimension_numbers<[1], [0], [0], [1], [0, 0, 1, 1], [], []>} : vector<8x128xbf16>, vector<128x128xbf16>, vector<8x128xf32> -> vector<8x128xf32>
    %88 = vector.broadcast %85 : vector<1x128xf32> to vector<8x128xf32>
    %89 = arith.addf %87, %88 : vector<8x128xf32>
    %cst_46 = arith.constant 0.000000e+00 : f32
    %90 = vector.broadcast %cst_46 : f32 to vector<8x128xf32>
    %91 = arith.cmpf ogt, %89, %90 : vector<8x128xf32>
    %cst_47 = arith.constant 0.000000e+00 : f32
    %92 = vector.broadcast %cst_47 : f32 to vector<8x128xf32>
    %93 = arith.minimumf %89, %92 : vector<8x128xf32>
    %94 = math.exp %93 : vector<8x128xf32>
    %cst_48 = arith.constant 1.000000e+00 : f32
    %95 = vector.broadcast %cst_48 : f32 to vector<8x128xf32>
    %96 = arith.subf %94, %95 : vector<8x128xf32>
    %97 = arith.select %91, %89, %96 : vector<8x128xi1>, vector<8x128xf32>
    %98 = arith.truncf %81 : vector<8x128xf32> to vector<8x128xbf16>
    %cst_49 = arith.constant dense<0.000000e+00> : vector<8x128xf32>
    %99 = tpu.matmul %98, %83, %cst_49 {dimension_numbers = #tpu.dot_dimension_numbers<[1], [0], [0], [1], [0, 0, 1, 1], [], []>} : vector<8x128xbf16>, vector<128x128xbf16>, vector<8x128xf32> -> vector<8x128xf32>
    %100 = vector.broadcast %85 : vector<1x128xf32> to vector<8x128xf32>
    %101 = arith.addf %99, %100 : vector<8x128xf32>
    %cst_50 = arith.constant 0.000000e+00 : f32
    %102 = vector.broadcast %cst_50 : f32 to vector<8x128xf32>
    %103 = arith.cmpf ogt, %101, %102 : vector<8x128xf32>
    %cst_51 = arith.constant 0.000000e+00 : f32
    %104 = vector.broadcast %cst_51 : f32 to vector<8x128xf32>
    %105 = arith.minimumf %101, %104 : vector<8x128xf32>
    %106 = math.exp %105 : vector<8x128xf32>
    %cst_52 = arith.constant 1.000000e+00 : f32
    %107 = vector.broadcast %cst_52 : f32 to vector<8x128xf32>
    %108 = arith.subf %106, %107 : vector<8x128xf32>
    %109 = arith.select %103, %101, %108 : vector<8x128xi1>, vector<8x128xf32>
    %c3 = arith.constant 3 : index
    %c0_53 = arith.constant 0 : index
    %c0_54 = arith.constant 0 : index
    %110 = vector.load %arg4[%c3, %c0_53, %c0_54] : memref<19x128x128xbf16, #tpu.memory_space<vmem>>, vector<1x128x128xbf16>
    %111 = vector.shape_cast %110 : vector<1x128x128xbf16> to vector<128x128xbf16>
    %c3_55 = arith.constant 3 : index
    %c0_56 = arith.constant 0 : index
    %c0_57 = arith.constant 0 : index
    %112 = vector.load %arg5[%c3_55, %c0_56, %c0_57] : memref<19x1x128xf32, #tpu.memory_space<vmem>>, vector<1x1x128xf32>
    %113 = vector.shape_cast %112 : vector<1x1x128xf32> to vector<1x128xf32>
    %114 = arith.truncf %97 : vector<8x128xf32> to vector<8x128xbf16>
    %cst_58 = arith.constant dense<0.000000e+00> : vector<8x128xf32>
    %115 = tpu.matmul %114, %111, %cst_58 {dimension_numbers = #tpu.dot_dimension_numbers<[1], [0], [0], [1], [0, 0, 1, 1], [], []>} : vector<8x128xbf16>, vector<128x128xbf16>, vector<8x128xf32> -> vector<8x128xf32>
    %116 = vector.broadcast %113 : vector<1x128xf32> to vector<8x128xf32>
    %117 = arith.addf %115, %116 : vector<8x128xf32>
    %cst_59 = arith.constant 0.000000e+00 : f32
    %118 = vector.broadcast %cst_59 : f32 to vector<8x128xf32>
    %119 = arith.cmpf ogt, %117, %118 : vector<8x128xf32>
    %cst_60 = arith.constant 0.000000e+00 : f32
    %120 = vector.broadcast %cst_60 : f32 to vector<8x128xf32>
    %121 = arith.minimumf %117, %120 : vector<8x128xf32>
    %122 = math.exp %121 : vector<8x128xf32>
    %cst_61 = arith.constant 1.000000e+00 : f32
    %123 = vector.broadcast %cst_61 : f32 to vector<8x128xf32>
    %124 = arith.subf %122, %123 : vector<8x128xf32>
    %125 = arith.select %119, %117, %124 : vector<8x128xi1>, vector<8x128xf32>
    %126 = arith.truncf %109 : vector<8x128xf32> to vector<8x128xbf16>
    %cst_62 = arith.constant dense<0.000000e+00> : vector<8x128xf32>
    %127 = tpu.matmul %126, %111, %cst_62 {dimension_numbers = #tpu.dot_dimension_numbers<[1], [0], [0], [1], [0, 0, 1, 1], [], []>} : vector<8x128xbf16>, vector<128x128xbf16>, vector<8x128xf32> -> vector<8x128xf32>
    %128 = vector.broadcast %113 : vector<1x128xf32> to vector<8x128xf32>
    %129 = arith.addf %127, %128 : vector<8x128xf32>
    %cst_63 = arith.constant 0.000000e+00 : f32
    %130 = vector.broadcast %cst_63 : f32 to vector<8x128xf32>
    %131 = arith.cmpf ogt, %129, %130 : vector<8x128xf32>
    %cst_64 = arith.constant 0.000000e+00 : f32
    %132 = vector.broadcast %cst_64 : f32 to vector<8x128xf32>
    %133 = arith.minimumf %129, %132 : vector<8x128xf32>
    %134 = math.exp %133 : vector<8x128xf32>
    %cst_65 = arith.constant 1.000000e+00 : f32
    %135 = vector.broadcast %cst_65 : f32 to vector<8x128xf32>
    %136 = arith.subf %134, %135 : vector<8x128xf32>
    %137 = arith.select %131, %129, %136 : vector<8x128xi1>, vector<8x128xf32>
    %c4 = arith.constant 4 : index
    %c0_66 = arith.constant 0 : index
    %c0_67 = arith.constant 0 : index
    %138 = vector.load %arg4[%c4, %c0_66, %c0_67] : memref<19x128x128xbf16, #tpu.memory_space<vmem>>, vector<1x128x128xbf16>
    %139 = vector.shape_cast %138 : vector<1x128x128xbf16> to vector<128x128xbf16>
    %c4_68 = arith.constant 4 : index
    %c0_69 = arith.constant 0 : index
    %c0_70 = arith.constant 0 : index
    %140 = vector.load %arg5[%c4_68, %c0_69, %c0_70] : memref<19x1x128xf32, #tpu.memory_space<vmem>>, vector<1x1x128xf32>
    %141 = vector.shape_cast %140 : vector<1x1x128xf32> to vector<1x128xf32>
    %142 = arith.truncf %125 : vector<8x128xf32> to vector<8x128xbf16>
    %cst_71 = arith.constant dense<0.000000e+00> : vector<8x128xf32>
    %143 = tpu.matmul %142, %139, %cst_71 {dimension_numbers = #tpu.dot_dimension_numbers<[1], [0], [0], [1], [0, 0, 1, 1], [], []>} : vector<8x128xbf16>, vector<128x128xbf16>, vector<8x128xf32> -> vector<8x128xf32>
    %144 = vector.broadcast %141 : vector<1x128xf32> to vector<8x128xf32>
    %145 = arith.addf %143, %144 : vector<8x128xf32>
    %cst_72 = arith.constant 0.000000e+00 : f32
    %146 = vector.broadcast %cst_72 : f32 to vector<8x128xf32>
    %147 = arith.cmpf ogt, %145, %146 : vector<8x128xf32>
    %cst_73 = arith.constant 0.000000e+00 : f32
    %148 = vector.broadcast %cst_73 : f32 to vector<8x128xf32>
    %149 = arith.minimumf %145, %148 : vector<8x128xf32>
    %150 = math.exp %149 : vector<8x128xf32>
    %cst_74 = arith.constant 1.000000e+00 : f32
    %151 = vector.broadcast %cst_74 : f32 to vector<8x128xf32>
    %152 = arith.subf %150, %151 : vector<8x128xf32>
    %153 = arith.select %147, %145, %152 : vector<8x128xi1>, vector<8x128xf32>
    %154 = arith.truncf %137 : vector<8x128xf32> to vector<8x128xbf16>
    %cst_75 = arith.constant dense<0.000000e+00> : vector<8x128xf32>
    %155 = tpu.matmul %154, %139, %cst_75 {dimension_numbers = #tpu.dot_dimension_numbers<[1], [0], [0], [1], [0, 0, 1, 1], [], []>} : vector<8x128xbf16>, vector<128x128xbf16>, vector<8x128xf32> -> vector<8x128xf32>
    %156 = vector.broadcast %141 : vector<1x128xf32> to vector<8x128xf32>
    %157 = arith.addf %155, %156 : vector<8x128xf32>
    %cst_76 = arith.constant 0.000000e+00 : f32
    %158 = vector.broadcast %cst_76 : f32 to vector<8x128xf32>
    %159 = arith.cmpf ogt, %157, %158 : vector<8x128xf32>
    %cst_77 = arith.constant 0.000000e+00 : f32
    %160 = vector.broadcast %cst_77 : f32 to vector<8x128xf32>
    %161 = arith.minimumf %157, %160 : vector<8x128xf32>
    %162 = math.exp %161 : vector<8x128xf32>
    %cst_78 = arith.constant 1.000000e+00 : f32
    %163 = vector.broadcast %cst_78 : f32 to vector<8x128xf32>
    %164 = arith.subf %162, %163 : vector<8x128xf32>
    %165 = arith.select %159, %157, %164 : vector<8x128xi1>, vector<8x128xf32>
    %c5 = arith.constant 5 : index
    %c0_79 = arith.constant 0 : index
    %c0_80 = arith.constant 0 : index
    %166 = vector.load %arg4[%c5, %c0_79, %c0_80] : memref<19x128x128xbf16, #tpu.memory_space<vmem>>, vector<1x128x128xbf16>
    %167 = vector.shape_cast %166 : vector<1x128x128xbf16> to vector<128x128xbf16>
    %c5_81 = arith.constant 5 : index
    %c0_82 = arith.constant 0 : index
    %c0_83 = arith.constant 0 : index
    %168 = vector.load %arg5[%c5_81, %c0_82, %c0_83] : memref<19x1x128xf32, #tpu.memory_space<vmem>>, vector<1x1x128xf32>
    %169 = vector.shape_cast %168 : vector<1x1x128xf32> to vector<1x128xf32>
    %170 = arith.truncf %153 : vector<8x128xf32> to vector<8x128xbf16>
    %cst_84 = arith.constant dense<0.000000e+00> : vector<8x128xf32>
    %171 = tpu.matmul %170, %167, %cst_84 {dimension_numbers = #tpu.dot_dimension_numbers<[1], [0], [0], [1], [0, 0, 1, 1], [], []>} : vector<8x128xbf16>, vector<128x128xbf16>, vector<8x128xf32> -> vector<8x128xf32>
    %172 = vector.broadcast %169 : vector<1x128xf32> to vector<8x128xf32>
    %173 = arith.addf %171, %172 : vector<8x128xf32>
    %cst_85 = arith.constant 0.000000e+00 : f32
    %174 = vector.broadcast %cst_85 : f32 to vector<8x128xf32>
    %175 = arith.cmpf ogt, %173, %174 : vector<8x128xf32>
    %cst_86 = arith.constant 0.000000e+00 : f32
    %176 = vector.broadcast %cst_86 : f32 to vector<8x128xf32>
    %177 = arith.minimumf %173, %176 : vector<8x128xf32>
    %178 = math.exp %177 : vector<8x128xf32>
    %cst_87 = arith.constant 1.000000e+00 : f32
    %179 = vector.broadcast %cst_87 : f32 to vector<8x128xf32>
    %180 = arith.subf %178, %179 : vector<8x128xf32>
    %181 = arith.select %175, %173, %180 : vector<8x128xi1>, vector<8x128xf32>
    %182 = arith.truncf %165 : vector<8x128xf32> to vector<8x128xbf16>
    %cst_88 = arith.constant dense<0.000000e+00> : vector<8x128xf32>
    %183 = tpu.matmul %182, %167, %cst_88 {dimension_numbers = #tpu.dot_dimension_numbers<[1], [0], [0], [1], [0, 0, 1, 1], [], []>} : vector<8x128xbf16>, vector<128x128xbf16>, vector<8x128xf32> -> vector<8x128xf32>
    %184 = vector.broadcast %169 : vector<1x128xf32> to vector<8x128xf32>
    %185 = arith.addf %183, %184 : vector<8x128xf32>
    %cst_89 = arith.constant 0.000000e+00 : f32
    %186 = vector.broadcast %cst_89 : f32 to vector<8x128xf32>
    %187 = arith.cmpf ogt, %185, %186 : vector<8x128xf32>
    %cst_90 = arith.constant 0.000000e+00 : f32
    %188 = vector.broadcast %cst_90 : f32 to vector<8x128xf32>
    %189 = arith.minimumf %185, %188 : vector<8x128xf32>
    %190 = math.exp %189 : vector<8x128xf32>
    %cst_91 = arith.constant 1.000000e+00 : f32
    %191 = vector.broadcast %cst_91 : f32 to vector<8x128xf32>
    %192 = arith.subf %190, %191 : vector<8x128xf32>
    %193 = arith.select %187, %185, %192 : vector<8x128xi1>, vector<8x128xf32>
    %c6 = arith.constant 6 : index
    %c0_92 = arith.constant 0 : index
    %c0_93 = arith.constant 0 : index
    %194 = vector.load %arg4[%c6, %c0_92, %c0_93] : memref<19x128x128xbf16, #tpu.memory_space<vmem>>, vector<1x128x128xbf16>
    %195 = vector.shape_cast %194 : vector<1x128x128xbf16> to vector<128x128xbf16>
    %c6_94 = arith.constant 6 : index
    %c0_95 = arith.constant 0 : index
    %c0_96 = arith.constant 0 : index
    %196 = vector.load %arg5[%c6_94, %c0_95, %c0_96] : memref<19x1x128xf32, #tpu.memory_space<vmem>>, vector<1x1x128xf32>
    %197 = vector.shape_cast %196 : vector<1x1x128xf32> to vector<1x128xf32>
    %198 = arith.truncf %181 : vector<8x128xf32> to vector<8x128xbf16>
    %cst_97 = arith.constant dense<0.000000e+00> : vector<8x128xf32>
    %199 = tpu.matmul %198, %195, %cst_97 {dimension_numbers = #tpu.dot_dimension_numbers<[1], [0], [0], [1], [0, 0, 1, 1], [], []>} : vector<8x128xbf16>, vector<128x128xbf16>, vector<8x128xf32> -> vector<8x128xf32>
    %200 = vector.broadcast %197 : vector<1x128xf32> to vector<8x128xf32>
    %201 = arith.addf %199, %200 : vector<8x128xf32>
    %cst_98 = arith.constant 0.000000e+00 : f32
    %202 = vector.broadcast %cst_98 : f32 to vector<8x128xf32>
    %203 = arith.cmpf ogt, %201, %202 : vector<8x128xf32>
    %cst_99 = arith.constant 0.000000e+00 : f32
    %204 = vector.broadcast %cst_99 : f32 to vector<8x128xf32>
    %205 = arith.minimumf %201, %204 : vector<8x128xf32>
    %206 = math.exp %205 : vector<8x128xf32>
    %cst_100 = arith.constant 1.000000e+00 : f32
    %207 = vector.broadcast %cst_100 : f32 to vector<8x128xf32>
    %208 = arith.subf %206, %207 : vector<8x128xf32>
    %209 = arith.select %203, %201, %208 : vector<8x128xi1>, vector<8x128xf32>
    %210 = arith.truncf %193 : vector<8x128xf32> to vector<8x128xbf16>
    %cst_101 = arith.constant dense<0.000000e+00> : vector<8x128xf32>
    %211 = tpu.matmul %210, %195, %cst_101 {dimension_numbers = #tpu.dot_dimension_numbers<[1], [0], [0], [1], [0, 0, 1, 1], [], []>} : vector<8x128xbf16>, vector<128x128xbf16>, vector<8x128xf32> -> vector<8x128xf32>
    %212 = vector.broadcast %197 : vector<1x128xf32> to vector<8x128xf32>
    %213 = arith.addf %211, %212 : vector<8x128xf32>
    %cst_102 = arith.constant 0.000000e+00 : f32
    %214 = vector.broadcast %cst_102 : f32 to vector<8x128xf32>
    %215 = arith.cmpf ogt, %213, %214 : vector<8x128xf32>
    %cst_103 = arith.constant 0.000000e+00 : f32
    %216 = vector.broadcast %cst_103 : f32 to vector<8x128xf32>
    %217 = arith.minimumf %213, %216 : vector<8x128xf32>
    %218 = math.exp %217 : vector<8x128xf32>
    %cst_104 = arith.constant 1.000000e+00 : f32
    %219 = vector.broadcast %cst_104 : f32 to vector<8x128xf32>
    %220 = arith.subf %218, %219 : vector<8x128xf32>
    %221 = arith.select %215, %213, %220 : vector<8x128xi1>, vector<8x128xf32>
    %c7 = arith.constant 7 : index
    %c0_105 = arith.constant 0 : index
    %c0_106 = arith.constant 0 : index
    %222 = vector.load %arg4[%c7, %c0_105, %c0_106] : memref<19x128x128xbf16, #tpu.memory_space<vmem>>, vector<1x128x128xbf16>
    %223 = vector.shape_cast %222 : vector<1x128x128xbf16> to vector<128x128xbf16>
    %c7_107 = arith.constant 7 : index
    %c0_108 = arith.constant 0 : index
    %c0_109 = arith.constant 0 : index
    %224 = vector.load %arg5[%c7_107, %c0_108, %c0_109] : memref<19x1x128xf32, #tpu.memory_space<vmem>>, vector<1x1x128xf32>
    %225 = vector.shape_cast %224 : vector<1x1x128xf32> to vector<1x128xf32>
    %226 = arith.truncf %209 : vector<8x128xf32> to vector<8x128xbf16>
    %cst_110 = arith.constant dense<0.000000e+00> : vector<8x128xf32>
    %227 = tpu.matmul %226, %223, %cst_110 {dimension_numbers = #tpu.dot_dimension_numbers<[1], [0], [0], [1], [0, 0, 1, 1], [], []>} : vector<8x128xbf16>, vector<128x128xbf16>, vector<8x128xf32> -> vector<8x128xf32>
    %228 = vector.broadcast %225 : vector<1x128xf32> to vector<8x128xf32>
    %229 = arith.addf %227, %228 : vector<8x128xf32>
    %cst_111 = arith.constant 0.000000e+00 : f32
    %230 = vector.broadcast %cst_111 : f32 to vector<8x128xf32>
    %231 = arith.cmpf ogt, %229, %230 : vector<8x128xf32>
    %cst_112 = arith.constant 0.000000e+00 : f32
    %232 = vector.broadcast %cst_112 : f32 to vector<8x128xf32>
    %233 = arith.minimumf %229, %232 : vector<8x128xf32>
    %234 = math.exp %233 : vector<8x128xf32>
    %cst_113 = arith.constant 1.000000e+00 : f32
    %235 = vector.broadcast %cst_113 : f32 to vector<8x128xf32>
    %236 = arith.subf %234, %235 : vector<8x128xf32>
    %237 = arith.select %231, %229, %236 : vector<8x128xi1>, vector<8x128xf32>
    %238 = arith.truncf %221 : vector<8x128xf32> to vector<8x128xbf16>
    %cst_114 = arith.constant dense<0.000000e+00> : vector<8x128xf32>
    %239 = tpu.matmul %238, %223, %cst_114 {dimension_numbers = #tpu.dot_dimension_numbers<[1], [0], [0], [1], [0, 0, 1, 1], [], []>} : vector<8x128xbf16>, vector<128x128xbf16>, vector<8x128xf32> -> vector<8x128xf32>
    %240 = vector.broadcast %225 : vector<1x128xf32> to vector<8x128xf32>
    %241 = arith.addf %239, %240 : vector<8x128xf32>
    %cst_115 = arith.constant 0.000000e+00 : f32
    %242 = vector.broadcast %cst_115 : f32 to vector<8x128xf32>
    %243 = arith.cmpf ogt, %241, %242 : vector<8x128xf32>
    %cst_116 = arith.constant 0.000000e+00 : f32
    %244 = vector.broadcast %cst_116 : f32 to vector<8x128xf32>
    %245 = arith.minimumf %241, %244 : vector<8x128xf32>
    %246 = math.exp %245 : vector<8x128xf32>
    %cst_117 = arith.constant 1.000000e+00 : f32
    %247 = vector.broadcast %cst_117 : f32 to vector<8x128xf32>
    %248 = arith.subf %246, %247 : vector<8x128xf32>
    %249 = arith.select %243, %241, %248 : vector<8x128xi1>, vector<8x128xf32>
    %c8_118 = arith.constant 8 : index
    %c0_119 = arith.constant 0 : index
    %c0_120 = arith.constant 0 : index
    %250 = vector.load %arg4[%c8_118, %c0_119, %c0_120] : memref<19x128x128xbf16, #tpu.memory_space<vmem>>, vector<1x128x128xbf16>
    %251 = vector.shape_cast %250 : vector<1x128x128xbf16> to vector<128x128xbf16>
    %c8_121 = arith.constant 8 : index
    %c0_122 = arith.constant 0 : index
    %c0_123 = arith.constant 0 : index
    %252 = vector.load %arg5[%c8_121, %c0_122, %c0_123] : memref<19x1x128xf32, #tpu.memory_space<vmem>>, vector<1x1x128xf32>
    %253 = vector.shape_cast %252 : vector<1x1x128xf32> to vector<1x128xf32>
    %254 = arith.truncf %237 : vector<8x128xf32> to vector<8x128xbf16>
    %cst_124 = arith.constant dense<0.000000e+00> : vector<8x128xf32>
    %255 = tpu.matmul %254, %251, %cst_124 {dimension_numbers = #tpu.dot_dimension_numbers<[1], [0], [0], [1], [0, 0, 1, 1], [], []>} : vector<8x128xbf16>, vector<128x128xbf16>, vector<8x128xf32> -> vector<8x128xf32>
    %256 = vector.broadcast %253 : vector<1x128xf32> to vector<8x128xf32>
    %257 = arith.addf %255, %256 : vector<8x128xf32>
    %cst_125 = arith.constant 0.000000e+00 : f32
    %258 = vector.broadcast %cst_125 : f32 to vector<8x128xf32>
    %259 = arith.cmpf ogt, %257, %258 : vector<8x128xf32>
    %cst_126 = arith.constant 0.000000e+00 : f32
    %260 = vector.broadcast %cst_126 : f32 to vector<8x128xf32>
    %261 = arith.minimumf %257, %260 : vector<8x128xf32>
    %262 = math.exp %261 : vector<8x128xf32>
    %cst_127 = arith.constant 1.000000e+00 : f32
    %263 = vector.broadcast %cst_127 : f32 to vector<8x128xf32>
    %264 = arith.subf %262, %263 : vector<8x128xf32>
    %265 = arith.select %259, %257, %264 : vector<8x128xi1>, vector<8x128xf32>
    %266 = arith.truncf %249 : vector<8x128xf32> to vector<8x128xbf16>
    %cst_128 = arith.constant dense<0.000000e+00> : vector<8x128xf32>
    %267 = tpu.matmul %266, %251, %cst_128 {dimension_numbers = #tpu.dot_dimension_numbers<[1], [0], [0], [1], [0, 0, 1, 1], [], []>} : vector<8x128xbf16>, vector<128x128xbf16>, vector<8x128xf32> -> vector<8x128xf32>
    %268 = vector.broadcast %253 : vector<1x128xf32> to vector<8x128xf32>
    %269 = arith.addf %267, %268 : vector<8x128xf32>
    %cst_129 = arith.constant 0.000000e+00 : f32
    %270 = vector.broadcast %cst_129 : f32 to vector<8x128xf32>
    %271 = arith.cmpf ogt, %269, %270 : vector<8x128xf32>
    %cst_130 = arith.constant 0.000000e+00 : f32
    %272 = vector.broadcast %cst_130 : f32 to vector<8x128xf32>
    %273 = arith.minimumf %269, %272 : vector<8x128xf32>
    %274 = math.exp %273 : vector<8x128xf32>
    %cst_131 = arith.constant 1.000000e+00 : f32
    %275 = vector.broadcast %cst_131 : f32 to vector<8x128xf32>
    %276 = arith.subf %274, %275 : vector<8x128xf32>
    %277 = arith.select %271, %269, %276 : vector<8x128xi1>, vector<8x128xf32>
    %c9 = arith.constant 9 : index
    %c0_132 = arith.constant 0 : index
    %c0_133 = arith.constant 0 : index
    %278 = vector.load %arg4[%c9, %c0_132, %c0_133] : memref<19x128x128xbf16, #tpu.memory_space<vmem>>, vector<1x128x128xbf16>
    %279 = vector.shape_cast %278 : vector<1x128x128xbf16> to vector<128x128xbf16>
    %c9_134 = arith.constant 9 : index
    %c0_135 = arith.constant 0 : index
    %c0_136 = arith.constant 0 : index
    %280 = vector.load %arg5[%c9_134, %c0_135, %c0_136] : memref<19x1x128xf32, #tpu.memory_space<vmem>>, vector<1x1x128xf32>
    %281 = vector.shape_cast %280 : vector<1x1x128xf32> to vector<1x128xf32>
    %282 = arith.truncf %265 : vector<8x128xf32> to vector<8x128xbf16>
    %cst_137 = arith.constant dense<0.000000e+00> : vector<8x128xf32>
    %283 = tpu.matmul %282, %279, %cst_137 {dimension_numbers = #tpu.dot_dimension_numbers<[1], [0], [0], [1], [0, 0, 1, 1], [], []>} : vector<8x128xbf16>, vector<128x128xbf16>, vector<8x128xf32> -> vector<8x128xf32>
    %284 = vector.broadcast %281 : vector<1x128xf32> to vector<8x128xf32>
    %285 = arith.addf %283, %284 : vector<8x128xf32>
    %cst_138 = arith.constant 0.000000e+00 : f32
    %286 = vector.broadcast %cst_138 : f32 to vector<8x128xf32>
    %287 = arith.cmpf ogt, %285, %286 : vector<8x128xf32>
    %cst_139 = arith.constant 0.000000e+00 : f32
    %288 = vector.broadcast %cst_139 : f32 to vector<8x128xf32>
    %289 = arith.minimumf %285, %288 : vector<8x128xf32>
    %290 = math.exp %289 : vector<8x128xf32>
    %cst_140 = arith.constant 1.000000e+00 : f32
    %291 = vector.broadcast %cst_140 : f32 to vector<8x128xf32>
    %292 = arith.subf %290, %291 : vector<8x128xf32>
    %293 = arith.select %287, %285, %292 : vector<8x128xi1>, vector<8x128xf32>
    %294 = arith.truncf %277 : vector<8x128xf32> to vector<8x128xbf16>
    %cst_141 = arith.constant dense<0.000000e+00> : vector<8x128xf32>
    %295 = tpu.matmul %294, %279, %cst_141 {dimension_numbers = #tpu.dot_dimension_numbers<[1], [0], [0], [1], [0, 0, 1, 1], [], []>} : vector<8x128xbf16>, vector<128x128xbf16>, vector<8x128xf32> -> vector<8x128xf32>
    %296 = vector.broadcast %281 : vector<1x128xf32> to vector<8x128xf32>
    %297 = arith.addf %295, %296 : vector<8x128xf32>
    %cst_142 = arith.constant 0.000000e+00 : f32
    %298 = vector.broadcast %cst_142 : f32 to vector<8x128xf32>
    %299 = arith.cmpf ogt, %297, %298 : vector<8x128xf32>
    %cst_143 = arith.constant 0.000000e+00 : f32
    %300 = vector.broadcast %cst_143 : f32 to vector<8x128xf32>
    %301 = arith.minimumf %297, %300 : vector<8x128xf32>
    %302 = math.exp %301 : vector<8x128xf32>
    %cst_144 = arith.constant 1.000000e+00 : f32
    %303 = vector.broadcast %cst_144 : f32 to vector<8x128xf32>
    %304 = arith.subf %302, %303 : vector<8x128xf32>
    %305 = arith.select %299, %297, %304 : vector<8x128xi1>, vector<8x128xf32>
    %c10 = arith.constant 10 : index
    %c0_145 = arith.constant 0 : index
    %c0_146 = arith.constant 0 : index
    %306 = vector.load %arg4[%c10, %c0_145, %c0_146] : memref<19x128x128xbf16, #tpu.memory_space<vmem>>, vector<1x128x128xbf16>
    %307 = vector.shape_cast %306 : vector<1x128x128xbf16> to vector<128x128xbf16>
    %c10_147 = arith.constant 10 : index
    %c0_148 = arith.constant 0 : index
    %c0_149 = arith.constant 0 : index
    %308 = vector.load %arg5[%c10_147, %c0_148, %c0_149] : memref<19x1x128xf32, #tpu.memory_space<vmem>>, vector<1x1x128xf32>
    %309 = vector.shape_cast %308 : vector<1x1x128xf32> to vector<1x128xf32>
    %310 = arith.truncf %293 : vector<8x128xf32> to vector<8x128xbf16>
    %cst_150 = arith.constant dense<0.000000e+00> : vector<8x128xf32>
    %311 = tpu.matmul %310, %307, %cst_150 {dimension_numbers = #tpu.dot_dimension_numbers<[1], [0], [0], [1], [0, 0, 1, 1], [], []>} : vector<8x128xbf16>, vector<128x128xbf16>, vector<8x128xf32> -> vector<8x128xf32>
    %312 = vector.broadcast %309 : vector<1x128xf32> to vector<8x128xf32>
    %313 = arith.addf %311, %312 : vector<8x128xf32>
    %cst_151 = arith.constant 0.000000e+00 : f32
    %314 = vector.broadcast %cst_151 : f32 to vector<8x128xf32>
    %315 = arith.cmpf ogt, %313, %314 : vector<8x128xf32>
    %cst_152 = arith.constant 0.000000e+00 : f32
    %316 = vector.broadcast %cst_152 : f32 to vector<8x128xf32>
    %317 = arith.minimumf %313, %316 : vector<8x128xf32>
    %318 = math.exp %317 : vector<8x128xf32>
    %cst_153 = arith.constant 1.000000e+00 : f32
    %319 = vector.broadcast %cst_153 : f32 to vector<8x128xf32>
    %320 = arith.subf %318, %319 : vector<8x128xf32>
    %321 = arith.select %315, %313, %320 : vector<8x128xi1>, vector<8x128xf32>
    %322 = arith.truncf %305 : vector<8x128xf32> to vector<8x128xbf16>
    %cst_154 = arith.constant dense<0.000000e+00> : vector<8x128xf32>
    %323 = tpu.matmul %322, %307, %cst_154 {dimension_numbers = #tpu.dot_dimension_numbers<[1], [0], [0], [1], [0, 0, 1, 1], [], []>} : vector<8x128xbf16>, vector<128x128xbf16>, vector<8x128xf32> -> vector<8x128xf32>
    %324 = vector.broadcast %309 : vector<1x128xf32> to vector<8x128xf32>
    %325 = arith.addf %323, %324 : vector<8x128xf32>
    %cst_155 = arith.constant 0.000000e+00 : f32
    %326 = vector.broadcast %cst_155 : f32 to vector<8x128xf32>
    %327 = arith.cmpf ogt, %325, %326 : vector<8x128xf32>
    %cst_156 = arith.constant 0.000000e+00 : f32
    %328 = vector.broadcast %cst_156 : f32 to vector<8x128xf32>
    %329 = arith.minimumf %325, %328 : vector<8x128xf32>
    %330 = math.exp %329 : vector<8x128xf32>
    %cst_157 = arith.constant 1.000000e+00 : f32
    %331 = vector.broadcast %cst_157 : f32 to vector<8x128xf32>
    %332 = arith.subf %330, %331 : vector<8x128xf32>
    %333 = arith.select %327, %325, %332 : vector<8x128xi1>, vector<8x128xf32>
    %c11 = arith.constant 11 : index
    %c0_158 = arith.constant 0 : index
    %c0_159 = arith.constant 0 : index
    %334 = vector.load %arg4[%c11, %c0_158, %c0_159] : memref<19x128x128xbf16, #tpu.memory_space<vmem>>, vector<1x128x128xbf16>
    %335 = vector.shape_cast %334 : vector<1x128x128xbf16> to vector<128x128xbf16>
    %c11_160 = arith.constant 11 : index
    %c0_161 = arith.constant 0 : index
    %c0_162 = arith.constant 0 : index
    %336 = vector.load %arg5[%c11_160, %c0_161, %c0_162] : memref<19x1x128xf32, #tpu.memory_space<vmem>>, vector<1x1x128xf32>
    %337 = vector.shape_cast %336 : vector<1x1x128xf32> to vector<1x128xf32>
    %338 = arith.truncf %321 : vector<8x128xf32> to vector<8x128xbf16>
    %cst_163 = arith.constant dense<0.000000e+00> : vector<8x128xf32>
    %339 = tpu.matmul %338, %335, %cst_163 {dimension_numbers = #tpu.dot_dimension_numbers<[1], [0], [0], [1], [0, 0, 1, 1], [], []>} : vector<8x128xbf16>, vector<128x128xbf16>, vector<8x128xf32> -> vector<8x128xf32>
    %340 = vector.broadcast %337 : vector<1x128xf32> to vector<8x128xf32>
    %341 = arith.addf %339, %340 : vector<8x128xf32>
    %cst_164 = arith.constant 0.000000e+00 : f32
    %342 = vector.broadcast %cst_164 : f32 to vector<8x128xf32>
    %343 = arith.cmpf ogt, %341, %342 : vector<8x128xf32>
    %cst_165 = arith.constant 0.000000e+00 : f32
    %344 = vector.broadcast %cst_165 : f32 to vector<8x128xf32>
    %345 = arith.minimumf %341, %344 : vector<8x128xf32>
    %346 = math.exp %345 : vector<8x128xf32>
    %cst_166 = arith.constant 1.000000e+00 : f32
    %347 = vector.broadcast %cst_166 : f32 to vector<8x128xf32>
    %348 = arith.subf %346, %347 : vector<8x128xf32>
    %349 = arith.select %343, %341, %348 : vector<8x128xi1>, vector<8x128xf32>
    %350 = arith.truncf %333 : vector<8x128xf32> to vector<8x128xbf16>
    %cst_167 = arith.constant dense<0.000000e+00> : vector<8x128xf32>
    %351 = tpu.matmul %350, %335, %cst_167 {dimension_numbers = #tpu.dot_dimension_numbers<[1], [0], [0], [1], [0, 0, 1, 1], [], []>} : vector<8x128xbf16>, vector<128x128xbf16>, vector<8x128xf32> -> vector<8x128xf32>
    %352 = vector.broadcast %337 : vector<1x128xf32> to vector<8x128xf32>
    %353 = arith.addf %351, %352 : vector<8x128xf32>
    %cst_168 = arith.constant 0.000000e+00 : f32
    %354 = vector.broadcast %cst_168 : f32 to vector<8x128xf32>
    %355 = arith.cmpf ogt, %353, %354 : vector<8x128xf32>
    %cst_169 = arith.constant 0.000000e+00 : f32
    %356 = vector.broadcast %cst_169 : f32 to vector<8x128xf32>
    %357 = arith.minimumf %353, %356 : vector<8x128xf32>
    %358 = math.exp %357 : vector<8x128xf32>
    %cst_170 = arith.constant 1.000000e+00 : f32
    %359 = vector.broadcast %cst_170 : f32 to vector<8x128xf32>
    %360 = arith.subf %358, %359 : vector<8x128xf32>
    %361 = arith.select %355, %353, %360 : vector<8x128xi1>, vector<8x128xf32>
    %c12 = arith.constant 12 : index
    %c0_171 = arith.constant 0 : index
    %c0_172 = arith.constant 0 : index
    %362 = vector.load %arg4[%c12, %c0_171, %c0_172] : memref<19x128x128xbf16, #tpu.memory_space<vmem>>, vector<1x128x128xbf16>
    %363 = vector.shape_cast %362 : vector<1x128x128xbf16> to vector<128x128xbf16>
    %c12_173 = arith.constant 12 : index
    %c0_174 = arith.constant 0 : index
    %c0_175 = arith.constant 0 : index
    %364 = vector.load %arg5[%c12_173, %c0_174, %c0_175] : memref<19x1x128xf32, #tpu.memory_space<vmem>>, vector<1x1x128xf32>
    %365 = vector.shape_cast %364 : vector<1x1x128xf32> to vector<1x128xf32>
    %366 = arith.truncf %349 : vector<8x128xf32> to vector<8x128xbf16>
    %cst_176 = arith.constant dense<0.000000e+00> : vector<8x128xf32>
    %367 = tpu.matmul %366, %363, %cst_176 {dimension_numbers = #tpu.dot_dimension_numbers<[1], [0], [0], [1], [0, 0, 1, 1], [], []>} : vector<8x128xbf16>, vector<128x128xbf16>, vector<8x128xf32> -> vector<8x128xf32>
    %368 = vector.broadcast %365 : vector<1x128xf32> to vector<8x128xf32>
    %369 = arith.addf %367, %368 : vector<8x128xf32>
    %cst_177 = arith.constant 0.000000e+00 : f32
    %370 = vector.broadcast %cst_177 : f32 to vector<8x128xf32>
    %371 = arith.cmpf ogt, %369, %370 : vector<8x128xf32>
    %cst_178 = arith.constant 0.000000e+00 : f32
    %372 = vector.broadcast %cst_178 : f32 to vector<8x128xf32>
    %373 = arith.minimumf %369, %372 : vector<8x128xf32>
    %374 = math.exp %373 : vector<8x128xf32>
    %cst_179 = arith.constant 1.000000e+00 : f32
    %375 = vector.broadcast %cst_179 : f32 to vector<8x128xf32>
    %376 = arith.subf %374, %375 : vector<8x128xf32>
    %377 = arith.select %371, %369, %376 : vector<8x128xi1>, vector<8x128xf32>
    %378 = arith.truncf %361 : vector<8x128xf32> to vector<8x128xbf16>
    %cst_180 = arith.constant dense<0.000000e+00> : vector<8x128xf32>
    %379 = tpu.matmul %378, %363, %cst_180 {dimension_numbers = #tpu.dot_dimension_numbers<[1], [0], [0], [1], [0, 0, 1, 1], [], []>} : vector<8x128xbf16>, vector<128x128xbf16>, vector<8x128xf32> -> vector<8x128xf32>
    %380 = vector.broadcast %365 : vector<1x128xf32> to vector<8x128xf32>
    %381 = arith.addf %379, %380 : vector<8x128xf32>
    %cst_181 = arith.constant 0.000000e+00 : f32
    %382 = vector.broadcast %cst_181 : f32 to vector<8x128xf32>
    %383 = arith.cmpf ogt, %381, %382 : vector<8x128xf32>
    %cst_182 = arith.constant 0.000000e+00 : f32
    %384 = vector.broadcast %cst_182 : f32 to vector<8x128xf32>
    %385 = arith.minimumf %381, %384 : vector<8x128xf32>
    %386 = math.exp %385 : vector<8x128xf32>
    %cst_183 = arith.constant 1.000000e+00 : f32
    %387 = vector.broadcast %cst_183 : f32 to vector<8x128xf32>
    %388 = arith.subf %386, %387 : vector<8x128xf32>
    %389 = arith.select %383, %381, %388 : vector<8x128xi1>, vector<8x128xf32>
    %c13 = arith.constant 13 : index
    %c0_184 = arith.constant 0 : index
    %c0_185 = arith.constant 0 : index
    %390 = vector.load %arg4[%c13, %c0_184, %c0_185] : memref<19x128x128xbf16, #tpu.memory_space<vmem>>, vector<1x128x128xbf16>
    %391 = vector.shape_cast %390 : vector<1x128x128xbf16> to vector<128x128xbf16>
    %c13_186 = arith.constant 13 : index
    %c0_187 = arith.constant 0 : index
    %c0_188 = arith.constant 0 : index
    %392 = vector.load %arg5[%c13_186, %c0_187, %c0_188] : memref<19x1x128xf32, #tpu.memory_space<vmem>>, vector<1x1x128xf32>
    %393 = vector.shape_cast %392 : vector<1x1x128xf32> to vector<1x128xf32>
    %394 = arith.truncf %377 : vector<8x128xf32> to vector<8x128xbf16>
    %cst_189 = arith.constant dense<0.000000e+00> : vector<8x128xf32>
    %395 = tpu.matmul %394, %391, %cst_189 {dimension_numbers = #tpu.dot_dimension_numbers<[1], [0], [0], [1], [0, 0, 1, 1], [], []>} : vector<8x128xbf16>, vector<128x128xbf16>, vector<8x128xf32> -> vector<8x128xf32>
    %396 = vector.broadcast %393 : vector<1x128xf32> to vector<8x128xf32>
    %397 = arith.addf %395, %396 : vector<8x128xf32>
    %cst_190 = arith.constant 0.000000e+00 : f32
    %398 = vector.broadcast %cst_190 : f32 to vector<8x128xf32>
    %399 = arith.cmpf ogt, %397, %398 : vector<8x128xf32>
    %cst_191 = arith.constant 0.000000e+00 : f32
    %400 = vector.broadcast %cst_191 : f32 to vector<8x128xf32>
    %401 = arith.minimumf %397, %400 : vector<8x128xf32>
    %402 = math.exp %401 : vector<8x128xf32>
    %cst_192 = arith.constant 1.000000e+00 : f32
    %403 = vector.broadcast %cst_192 : f32 to vector<8x128xf32>
    %404 = arith.subf %402, %403 : vector<8x128xf32>
    %405 = arith.select %399, %397, %404 : vector<8x128xi1>, vector<8x128xf32>
    %406 = arith.truncf %389 : vector<8x128xf32> to vector<8x128xbf16>
    %cst_193 = arith.constant dense<0.000000e+00> : vector<8x128xf32>
    %407 = tpu.matmul %406, %391, %cst_193 {dimension_numbers = #tpu.dot_dimension_numbers<[1], [0], [0], [1], [0, 0, 1, 1], [], []>} : vector<8x128xbf16>, vector<128x128xbf16>, vector<8x128xf32> -> vector<8x128xf32>
    %408 = vector.broadcast %393 : vector<1x128xf32> to vector<8x128xf32>
    %409 = arith.addf %407, %408 : vector<8x128xf32>
    %cst_194 = arith.constant 0.000000e+00 : f32
    %410 = vector.broadcast %cst_194 : f32 to vector<8x128xf32>
    %411 = arith.cmpf ogt, %409, %410 : vector<8x128xf32>
    %cst_195 = arith.constant 0.000000e+00 : f32
    %412 = vector.broadcast %cst_195 : f32 to vector<8x128xf32>
    %413 = arith.minimumf %409, %412 : vector<8x128xf32>
    %414 = math.exp %413 : vector<8x128xf32>
    %cst_196 = arith.constant 1.000000e+00 : f32
    %415 = vector.broadcast %cst_196 : f32 to vector<8x128xf32>
    %416 = arith.subf %414, %415 : vector<8x128xf32>
    %417 = arith.select %411, %409, %416 : vector<8x128xi1>, vector<8x128xf32>
    %c14 = arith.constant 14 : index
    %c0_197 = arith.constant 0 : index
    %c0_198 = arith.constant 0 : index
    %418 = vector.load %arg4[%c14, %c0_197, %c0_198] : memref<19x128x128xbf16, #tpu.memory_space<vmem>>, vector<1x128x128xbf16>
    %419 = vector.shape_cast %418 : vector<1x128x128xbf16> to vector<128x128xbf16>
    %c14_199 = arith.constant 14 : index
    %c0_200 = arith.constant 0 : index
    %c0_201 = arith.constant 0 : index
    %420 = vector.load %arg5[%c14_199, %c0_200, %c0_201] : memref<19x1x128xf32, #tpu.memory_space<vmem>>, vector<1x1x128xf32>
    %421 = vector.shape_cast %420 : vector<1x1x128xf32> to vector<1x128xf32>
    %422 = arith.truncf %405 : vector<8x128xf32> to vector<8x128xbf16>
    %cst_202 = arith.constant dense<0.000000e+00> : vector<8x128xf32>
    %423 = tpu.matmul %422, %419, %cst_202 {dimension_numbers = #tpu.dot_dimension_numbers<[1], [0], [0], [1], [0, 0, 1, 1], [], []>} : vector<8x128xbf16>, vector<128x128xbf16>, vector<8x128xf32> -> vector<8x128xf32>
    %424 = vector.broadcast %421 : vector<1x128xf32> to vector<8x128xf32>
    %425 = arith.addf %423, %424 : vector<8x128xf32>
    %cst_203 = arith.constant 0.000000e+00 : f32
    %426 = vector.broadcast %cst_203 : f32 to vector<8x128xf32>
    %427 = arith.cmpf ogt, %425, %426 : vector<8x128xf32>
    %cst_204 = arith.constant 0.000000e+00 : f32
    %428 = vector.broadcast %cst_204 : f32 to vector<8x128xf32>
    %429 = arith.minimumf %425, %428 : vector<8x128xf32>
    %430 = math.exp %429 : vector<8x128xf32>
    %cst_205 = arith.constant 1.000000e+00 : f32
    %431 = vector.broadcast %cst_205 : f32 to vector<8x128xf32>
    %432 = arith.subf %430, %431 : vector<8x128xf32>
    %433 = arith.select %427, %425, %432 : vector<8x128xi1>, vector<8x128xf32>
    %434 = arith.truncf %417 : vector<8x128xf32> to vector<8x128xbf16>
    %cst_206 = arith.constant dense<0.000000e+00> : vector<8x128xf32>
    %435 = tpu.matmul %434, %419, %cst_206 {dimension_numbers = #tpu.dot_dimension_numbers<[1], [0], [0], [1], [0, 0, 1, 1], [], []>} : vector<8x128xbf16>, vector<128x128xbf16>, vector<8x128xf32> -> vector<8x128xf32>
    %436 = vector.broadcast %421 : vector<1x128xf32> to vector<8x128xf32>
    %437 = arith.addf %435, %436 : vector<8x128xf32>
    %cst_207 = arith.constant 0.000000e+00 : f32
    %438 = vector.broadcast %cst_207 : f32 to vector<8x128xf32>
    %439 = arith.cmpf ogt, %437, %438 : vector<8x128xf32>
    %cst_208 = arith.constant 0.000000e+00 : f32
    %440 = vector.broadcast %cst_208 : f32 to vector<8x128xf32>
    %441 = arith.minimumf %437, %440 : vector<8x128xf32>
    %442 = math.exp %441 : vector<8x128xf32>
    %cst_209 = arith.constant 1.000000e+00 : f32
    %443 = vector.broadcast %cst_209 : f32 to vector<8x128xf32>
    %444 = arith.subf %442, %443 : vector<8x128xf32>
    %445 = arith.select %439, %437, %444 : vector<8x128xi1>, vector<8x128xf32>
    %c15 = arith.constant 15 : index
    %c0_210 = arith.constant 0 : index
    %c0_211 = arith.constant 0 : index
    %446 = vector.load %arg4[%c15, %c0_210, %c0_211] : memref<19x128x128xbf16, #tpu.memory_space<vmem>>, vector<1x128x128xbf16>
    %447 = vector.shape_cast %446 : vector<1x128x128xbf16> to vector<128x128xbf16>
    %c15_212 = arith.constant 15 : index
    %c0_213 = arith.constant 0 : index
    %c0_214 = arith.constant 0 : index
    %448 = vector.load %arg5[%c15_212, %c0_213, %c0_214] : memref<19x1x128xf32, #tpu.memory_space<vmem>>, vector<1x1x128xf32>
    %449 = vector.shape_cast %448 : vector<1x1x128xf32> to vector<1x128xf32>
    %450 = arith.truncf %433 : vector<8x128xf32> to vector<8x128xbf16>
    %cst_215 = arith.constant dense<0.000000e+00> : vector<8x128xf32>
    %451 = tpu.matmul %450, %447, %cst_215 {dimension_numbers = #tpu.dot_dimension_numbers<[1], [0], [0], [1], [0, 0, 1, 1], [], []>} : vector<8x128xbf16>, vector<128x128xbf16>, vector<8x128xf32> -> vector<8x128xf32>
    %452 = vector.broadcast %449 : vector<1x128xf32> to vector<8x128xf32>
    %453 = arith.addf %451, %452 : vector<8x128xf32>
    %cst_216 = arith.constant 0.000000e+00 : f32
    %454 = vector.broadcast %cst_216 : f32 to vector<8x128xf32>
    %455 = arith.cmpf ogt, %453, %454 : vector<8x128xf32>
    %cst_217 = arith.constant 0.000000e+00 : f32
    %456 = vector.broadcast %cst_217 : f32 to vector<8x128xf32>
    %457 = arith.minimumf %453, %456 : vector<8x128xf32>
    %458 = math.exp %457 : vector<8x128xf32>
    %cst_218 = arith.constant 1.000000e+00 : f32
    %459 = vector.broadcast %cst_218 : f32 to vector<8x128xf32>
    %460 = arith.subf %458, %459 : vector<8x128xf32>
    %461 = arith.select %455, %453, %460 : vector<8x128xi1>, vector<8x128xf32>
    %462 = arith.truncf %445 : vector<8x128xf32> to vector<8x128xbf16>
    %cst_219 = arith.constant dense<0.000000e+00> : vector<8x128xf32>
    %463 = tpu.matmul %462, %447, %cst_219 {dimension_numbers = #tpu.dot_dimension_numbers<[1], [0], [0], [1], [0, 0, 1, 1], [], []>} : vector<8x128xbf16>, vector<128x128xbf16>, vector<8x128xf32> -> vector<8x128xf32>
    %464 = vector.broadcast %449 : vector<1x128xf32> to vector<8x128xf32>
    %465 = arith.addf %463, %464 : vector<8x128xf32>
    %cst_220 = arith.constant 0.000000e+00 : f32
    %466 = vector.broadcast %cst_220 : f32 to vector<8x128xf32>
    %467 = arith.cmpf ogt, %465, %466 : vector<8x128xf32>
    %cst_221 = arith.constant 0.000000e+00 : f32
    %468 = vector.broadcast %cst_221 : f32 to vector<8x128xf32>
    %469 = arith.minimumf %465, %468 : vector<8x128xf32>
    %470 = math.exp %469 : vector<8x128xf32>
    %cst_222 = arith.constant 1.000000e+00 : f32
    %471 = vector.broadcast %cst_222 : f32 to vector<8x128xf32>
    %472 = arith.subf %470, %471 : vector<8x128xf32>
    %473 = arith.select %467, %465, %472 : vector<8x128xi1>, vector<8x128xf32>
    %c16 = arith.constant 16 : index
    %c0_223 = arith.constant 0 : index
    %c0_224 = arith.constant 0 : index
    %474 = vector.load %arg4[%c16, %c0_223, %c0_224] : memref<19x128x128xbf16, #tpu.memory_space<vmem>>, vector<1x128x128xbf16>
    %475 = vector.shape_cast %474 : vector<1x128x128xbf16> to vector<128x128xbf16>
    %c16_225 = arith.constant 16 : index
    %c0_226 = arith.constant 0 : index
    %c0_227 = arith.constant 0 : index
    %476 = vector.load %arg5[%c16_225, %c0_226, %c0_227] : memref<19x1x128xf32, #tpu.memory_space<vmem>>, vector<1x1x128xf32>
    %477 = vector.shape_cast %476 : vector<1x1x128xf32> to vector<1x128xf32>
    %478 = arith.truncf %461 : vector<8x128xf32> to vector<8x128xbf16>
    %cst_228 = arith.constant dense<0.000000e+00> : vector<8x128xf32>
    %479 = tpu.matmul %478, %475, %cst_228 {dimension_numbers = #tpu.dot_dimension_numbers<[1], [0], [0], [1], [0, 0, 1, 1], [], []>} : vector<8x128xbf16>, vector<128x128xbf16>, vector<8x128xf32> -> vector<8x128xf32>
    %480 = vector.broadcast %477 : vector<1x128xf32> to vector<8x128xf32>
    %481 = arith.addf %479, %480 : vector<8x128xf32>
    %cst_229 = arith.constant 0.000000e+00 : f32
    %482 = vector.broadcast %cst_229 : f32 to vector<8x128xf32>
    %483 = arith.cmpf ogt, %481, %482 : vector<8x128xf32>
    %cst_230 = arith.constant 0.000000e+00 : f32
    %484 = vector.broadcast %cst_230 : f32 to vector<8x128xf32>
    %485 = arith.minimumf %481, %484 : vector<8x128xf32>
    %486 = math.exp %485 : vector<8x128xf32>
    %cst_231 = arith.constant 1.000000e+00 : f32
    %487 = vector.broadcast %cst_231 : f32 to vector<8x128xf32>
    %488 = arith.subf %486, %487 : vector<8x128xf32>
    %489 = arith.select %483, %481, %488 : vector<8x128xi1>, vector<8x128xf32>
    %490 = arith.truncf %473 : vector<8x128xf32> to vector<8x128xbf16>
    %cst_232 = arith.constant dense<0.000000e+00> : vector<8x128xf32>
    %491 = tpu.matmul %490, %475, %cst_232 {dimension_numbers = #tpu.dot_dimension_numbers<[1], [0], [0], [1], [0, 0, 1, 1], [], []>} : vector<8x128xbf16>, vector<128x128xbf16>, vector<8x128xf32> -> vector<8x128xf32>
    %492 = vector.broadcast %477 : vector<1x128xf32> to vector<8x128xf32>
    %493 = arith.addf %491, %492 : vector<8x128xf32>
    %cst_233 = arith.constant 0.000000e+00 : f32
    %494 = vector.broadcast %cst_233 : f32 to vector<8x128xf32>
    %495 = arith.cmpf ogt, %493, %494 : vector<8x128xf32>
    %cst_234 = arith.constant 0.000000e+00 : f32
    %496 = vector.broadcast %cst_234 : f32 to vector<8x128xf32>
    %497 = arith.minimumf %493, %496 : vector<8x128xf32>
    %498 = math.exp %497 : vector<8x128xf32>
    %cst_235 = arith.constant 1.000000e+00 : f32
    %499 = vector.broadcast %cst_235 : f32 to vector<8x128xf32>
    %500 = arith.subf %498, %499 : vector<8x128xf32>
    %501 = arith.select %495, %493, %500 : vector<8x128xi1>, vector<8x128xf32>
    %c17 = arith.constant 17 : index
    %c0_236 = arith.constant 0 : index
    %c0_237 = arith.constant 0 : index
    %502 = vector.load %arg4[%c17, %c0_236, %c0_237] : memref<19x128x128xbf16, #tpu.memory_space<vmem>>, vector<1x128x128xbf16>
    %503 = vector.shape_cast %502 : vector<1x128x128xbf16> to vector<128x128xbf16>
    %c17_238 = arith.constant 17 : index
    %c0_239 = arith.constant 0 : index
    %c0_240 = arith.constant 0 : index
    %504 = vector.load %arg5[%c17_238, %c0_239, %c0_240] : memref<19x1x128xf32, #tpu.memory_space<vmem>>, vector<1x1x128xf32>
    %505 = vector.shape_cast %504 : vector<1x1x128xf32> to vector<1x128xf32>
    %506 = arith.truncf %489 : vector<8x128xf32> to vector<8x128xbf16>
    %cst_241 = arith.constant dense<0.000000e+00> : vector<8x128xf32>
    %507 = tpu.matmul %506, %503, %cst_241 {dimension_numbers = #tpu.dot_dimension_numbers<[1], [0], [0], [1], [0, 0, 1, 1], [], []>} : vector<8x128xbf16>, vector<128x128xbf16>, vector<8x128xf32> -> vector<8x128xf32>
    %508 = vector.broadcast %505 : vector<1x128xf32> to vector<8x128xf32>
    %509 = arith.addf %507, %508 : vector<8x128xf32>
    %cst_242 = arith.constant 0.000000e+00 : f32
    %510 = vector.broadcast %cst_242 : f32 to vector<8x128xf32>
    %511 = arith.cmpf ogt, %509, %510 : vector<8x128xf32>
    %cst_243 = arith.constant 0.000000e+00 : f32
    %512 = vector.broadcast %cst_243 : f32 to vector<8x128xf32>
    %513 = arith.minimumf %509, %512 : vector<8x128xf32>
    %514 = math.exp %513 : vector<8x128xf32>
    %cst_244 = arith.constant 1.000000e+00 : f32
    %515 = vector.broadcast %cst_244 : f32 to vector<8x128xf32>
    %516 = arith.subf %514, %515 : vector<8x128xf32>
    %517 = arith.select %511, %509, %516 : vector<8x128xi1>, vector<8x128xf32>
    %518 = arith.truncf %501 : vector<8x128xf32> to vector<8x128xbf16>
    %cst_245 = arith.constant dense<0.000000e+00> : vector<8x128xf32>
    %519 = tpu.matmul %518, %503, %cst_245 {dimension_numbers = #tpu.dot_dimension_numbers<[1], [0], [0], [1], [0, 0, 1, 1], [], []>} : vector<8x128xbf16>, vector<128x128xbf16>, vector<8x128xf32> -> vector<8x128xf32>
    %520 = vector.broadcast %505 : vector<1x128xf32> to vector<8x128xf32>
    %521 = arith.addf %519, %520 : vector<8x128xf32>
    %cst_246 = arith.constant 0.000000e+00 : f32
    %522 = vector.broadcast %cst_246 : f32 to vector<8x128xf32>
    %523 = arith.cmpf ogt, %521, %522 : vector<8x128xf32>
    %cst_247 = arith.constant 0.000000e+00 : f32
    %524 = vector.broadcast %cst_247 : f32 to vector<8x128xf32>
    %525 = arith.minimumf %521, %524 : vector<8x128xf32>
    %526 = math.exp %525 : vector<8x128xf32>
    %cst_248 = arith.constant 1.000000e+00 : f32
    %527 = vector.broadcast %cst_248 : f32 to vector<8x128xf32>
    %528 = arith.subf %526, %527 : vector<8x128xf32>
    %529 = arith.select %523, %521, %528 : vector<8x128xi1>, vector<8x128xf32>
    %c18 = arith.constant 18 : index
    %c0_249 = arith.constant 0 : index
    %c0_250 = arith.constant 0 : index
    %530 = vector.load %arg4[%c18, %c0_249, %c0_250] : memref<19x128x128xbf16, #tpu.memory_space<vmem>>, vector<1x128x128xbf16>
    %531 = vector.shape_cast %530 : vector<1x128x128xbf16> to vector<128x128xbf16>
    %c18_251 = arith.constant 18 : index
    %c0_252 = arith.constant 0 : index
    %c0_253 = arith.constant 0 : index
    %532 = vector.load %arg5[%c18_251, %c0_252, %c0_253] : memref<19x1x128xf32, #tpu.memory_space<vmem>>, vector<1x1x128xf32>
    %533 = vector.shape_cast %532 : vector<1x1x128xf32> to vector<1x128xf32>
    %534 = arith.truncf %517 : vector<8x128xf32> to vector<8x128xbf16>
    %cst_254 = arith.constant dense<0.000000e+00> : vector<8x128xf32>
    %535 = tpu.matmul %534, %531, %cst_254 {dimension_numbers = #tpu.dot_dimension_numbers<[1], [0], [0], [1], [0, 0, 1, 1], [], []>} : vector<8x128xbf16>, vector<128x128xbf16>, vector<8x128xf32> -> vector<8x128xf32>
    %536 = vector.broadcast %533 : vector<1x128xf32> to vector<8x128xf32>
    %537 = arith.addf %535, %536 : vector<8x128xf32>
    %cst_255 = arith.constant 0.000000e+00 : f32
    %538 = vector.broadcast %cst_255 : f32 to vector<8x128xf32>
    %539 = arith.cmpf ogt, %537, %538 : vector<8x128xf32>
    %cst_256 = arith.constant 0.000000e+00 : f32
    %540 = vector.broadcast %cst_256 : f32 to vector<8x128xf32>
    %541 = arith.minimumf %537, %540 : vector<8x128xf32>
    %542 = math.exp %541 : vector<8x128xf32>
    %cst_257 = arith.constant 1.000000e+00 : f32
    %543 = vector.broadcast %cst_257 : f32 to vector<8x128xf32>
    %544 = arith.subf %542, %543 : vector<8x128xf32>
    %545 = arith.select %539, %537, %544 : vector<8x128xi1>, vector<8x128xf32>
    %546 = arith.truncf %529 : vector<8x128xf32> to vector<8x128xbf16>
    %cst_258 = arith.constant dense<0.000000e+00> : vector<8x128xf32>
    %547 = tpu.matmul %546, %531, %cst_258 {dimension_numbers = #tpu.dot_dimension_numbers<[1], [0], [0], [1], [0, 0, 1, 1], [], []>} : vector<8x128xbf16>, vector<128x128xbf16>, vector<8x128xf32> -> vector<8x128xf32>
    %548 = vector.broadcast %533 : vector<1x128xf32> to vector<8x128xf32>
    %549 = arith.addf %547, %548 : vector<8x128xf32>
    %cst_259 = arith.constant 0.000000e+00 : f32
    %550 = vector.broadcast %cst_259 : f32 to vector<8x128xf32>
    %551 = arith.cmpf ogt, %549, %550 : vector<8x128xf32>
    %cst_260 = arith.constant 0.000000e+00 : f32
    %552 = vector.broadcast %cst_260 : f32 to vector<8x128xf32>
    %553 = arith.minimumf %549, %552 : vector<8x128xf32>
    %554 = math.exp %553 : vector<8x128xf32>
    %cst_261 = arith.constant 1.000000e+00 : f32
    %555 = vector.broadcast %cst_261 : f32 to vector<8x128xf32>
    %556 = arith.subf %554, %555 : vector<8x128xf32>
    %557 = arith.select %551, %549, %556 : vector<8x128xi1>, vector<8x128xf32>
    %c0_262 = arith.constant 0 : index
    %c0_263 = arith.constant 0 : index
    %558 = vector.load %arg6[%c0_262, %c0_263] : memref<128x128xbf16, #tpu.memory_space<vmem>>, vector<128x128xbf16>
    %c0_264 = arith.constant 0 : index
    %c0_265 = arith.constant 0 : index
    %559 = vector.load %arg7[%c0_264, %c0_265] : memref<1x128xf32, #tpu.memory_space<vmem>>, vector<1x128xf32>
    %560 = arith.truncf %545 : vector<8x128xf32> to vector<8x128xbf16>
    %cst_266 = arith.constant dense<0.000000e+00> : vector<8x128xf32>
    %561 = tpu.matmul %560, %558, %cst_266 {dimension_numbers = #tpu.dot_dimension_numbers<[1], [0], [0], [1], [0, 0, 1, 1], [], []>} : vector<8x128xbf16>, vector<128x128xbf16>, vector<8x128xf32> -> vector<8x128xf32>
    %562 = vector.broadcast %559 : vector<1x128xf32> to vector<8x128xf32>
    %563 = arith.addf %561, %562 : vector<8x128xf32>
    %564 = tpu.iota {dimensions = array<i32: 1>} : vector<8x128xi32>
    %c10_i32 = arith.constant 10 : i32
    %565 = vector.broadcast %c10_i32 : i32 to vector<8x128xi32>
    %566 = arith.cmpi slt, %564, %565 : vector<8x128xi32>
    %cst_267 = arith.constant 0xFF800000 : f32
    %567 = vector.broadcast %cst_267 : f32 to vector<8x128xf32>
    %568 = arith.select %566, %563, %567 : vector<8x128xi1>, vector<8x128xf32>
    %cst_268 = arith.constant dense<0xFF800000> : vector<8xf32>
    %569 = vector.multi_reduction <maximumf>, %568, %cst_268 [1] : vector<8x128xf32> to vector<8xf32>
    %570 = vector.shape_cast %569 : vector<8xf32> to vector<8x1xf32>
    %571 = vector.broadcast %570 : vector<8x1xf32> to vector<8x128xf32>
    %572 = arith.subf %568, %571 : vector<8x128xf32>
    %573 = math.exp %572 : vector<8x128xf32>
    %cst_269 = arith.constant dense<0.000000e+00> : vector<8xf32>
    %574 = vector.multi_reduction <add>, %573, %cst_269 [1] : vector<8x128xf32> to vector<8xf32>
    %575 = vector.shape_cast %574 : vector<8xf32> to vector<8x1xf32>
    %576 = tpu.reciprocal %575 {approx = true} : vector<8x1xf32> -> vector<8x1xf32>
    %577 = vector.broadcast %576 : vector<8x1xf32> to vector<8x128xf32>
    %578 = arith.mulf %573, %577 : vector<8x128xf32>
    %c0_270 = arith.constant 0 : index
    %c0_271 = arith.constant 0 : index
    %579 = vector.load %arg8[%c0_270, %c0_271] : memref<16x128xf32, #tpu.memory_space<vmem>>, vector<8x128xf32>
    tpu.vector_store %arg8[%c0_270, %c0_271], %578 {strides = array<i32>} : memref<16x128xf32, #tpu.memory_space<vmem>>, vector<8x128xf32>,
    %580 = arith.truncf %557 : vector<8x128xf32> to vector<8x128xbf16>
    %cst_272 = arith.constant dense<0.000000e+00> : vector<8x128xf32>
    %581 = tpu.matmul %580, %558, %cst_272 {dimension_numbers = #tpu.dot_dimension_numbers<[1], [0], [0], [1], [0, 0, 1, 1], [], []>} : vector<8x128xbf16>, vector<128x128xbf16>, vector<8x128xf32> -> vector<8x128xf32>
    %582 = vector.broadcast %559 : vector<1x128xf32> to vector<8x128xf32>
    %583 = arith.addf %581, %582 : vector<8x128xf32>
    %584 = tpu.iota {dimensions = array<i32: 1>} : vector<8x128xi32>
    %c10_i32_273 = arith.constant 10 : i32
    %585 = vector.broadcast %c10_i32_273 : i32 to vector<8x128xi32>
    %586 = arith.cmpi slt, %584, %585 : vector<8x128xi32>
    %cst_274 = arith.constant 0xFF800000 : f32
    %587 = vector.broadcast %cst_274 : f32 to vector<8x128xf32>
    %588 = arith.select %586, %583, %587 : vector<8x128xi1>, vector<8x128xf32>
    %cst_275 = arith.constant dense<0xFF800000> : vector<8xf32>
    %589 = vector.multi_reduction <maximumf>, %588, %cst_275 [1] : vector<8x128xf32> to vector<8xf32>
    %590 = vector.shape_cast %589 : vector<8xf32> to vector<8x1xf32>
    %591 = vector.broadcast %590 : vector<8x1xf32> to vector<8x128xf32>
    %592 = arith.subf %588, %591 : vector<8x128xf32>
    %593 = math.exp %592 : vector<8x128xf32>
    %cst_276 = arith.constant dense<0.000000e+00> : vector<8xf32>
    %594 = vector.multi_reduction <add>, %593, %cst_276 [1] : vector<8x128xf32> to vector<8xf32>
    %595 = vector.shape_cast %594 : vector<8xf32> to vector<8x1xf32>
    %596 = tpu.reciprocal %595 {approx = true} : vector<8x1xf32> -> vector<8x1xf32>
    %597 = vector.broadcast %596 : vector<8x1xf32> to vector<8x128xf32>
    %598 = arith.mulf %593, %597 : vector<8x128xf32>
    %c8_277 = arith.constant 8 : index
    %c0_278 = arith.constant 0 : index
    %599 = vector.load %arg8[%c8_277, %c0_278] : memref<16x128xf32, #tpu.memory_space<vmem>>, vector<8x128xf32>
    tpu.vector_store %arg8[%c8_277, %c0_278], %598 {strides = array<i32>} : memref<16x128xf32, #tpu.memory_space<vmem>>, vector<8x128xf32>,
    return
  }
  func.func @transform_0(%arg0: i32) -> (i32, i32) {
    %c0_i32 = arith.constant 0 : i32
    %c0_i32_0 = arith.constant 0 : i32
    return %arg0, %c0_i32 : i32, i32
  }
  func.func @transform_1(%arg0: i32) -> (i32, i32) {
    %c0_i32 = arith.constant 0 : i32
    %c0_i32_0 = arith.constant 0 : i32
    %c0_i32_1 = arith.constant 0 : i32
    return %c0_i32, %c0_i32_0 : i32, i32
  }
  func.func @transform_2(%arg0: i32) -> (i32, i32) {
    %c0_i32 = arith.constant 0 : i32
    %c0_i32_0 = arith.constant 0 : i32
    %c0_i32_1 = arith.constant 0 : i32
    return %c0_i32, %c0_i32_0 : i32, i32
  }
  func.func @transform_3(%arg0: i32) -> (i32, i32, i32) {
    %c0_i32 = arith.constant 0 : i32
    %c0_i32_0 = arith.constant 0 : i32
    %c0_i32_1 = arith.constant 0 : i32
    %c0_i32_2 = arith.constant 0 : i32
    return %c0_i32, %c0_i32_0, %c0_i32_1 : i32, i32, i32
  }
  func.func @transform_4(%arg0: i32) -> (i32, i32, i32) {
    %c0_i32 = arith.constant 0 : i32
    %c0_i32_0 = arith.constant 0 : i32
    %c0_i32_1 = arith.constant 0 : i32
    %c0_i32_2 = arith.constant 0 : i32
    return %c0_i32, %c0_i32_0, %c0_i32_1 : i32, i32, i32
  }
  func.func @transform_5(%arg0: i32) -> (i32, i32) {
    %c0_i32 = arith.constant 0 : i32
    %c0_i32_0 = arith.constant 0 : i32
    %c0_i32_1 = arith.constant 0 : i32
    return %c0_i32, %c0_i32_0 : i32, i32
  }
  func.func @transform_6(%arg0: i32) -> (i32, i32) {
    %c0_i32 = arith.constant 0 : i32
    %c0_i32_0 = arith.constant 0 : i32
    %c0_i32_1 = arith.constant 0 : i32
    return %c0_i32, %c0_i32_0 : i32, i32
  }
  func.func @transform_7(%arg0: i32) -> (i32, i32) {
    %c0_i32 = arith.constant 0 : i32
    %c0_i32_0 = arith.constant 0 : i32
    return %arg0, %c0_i32 : i32, i32
  }
}

</mosaic_0001>

<llo_original>
// kernel: dnn_forward.1
$region0: #{dnn_forward.1}
  #allocation0 [shape = 'u32[]', space=smem, size = 0x4, offset = 0x4, fixed_abs, tag = 'smem constant byte address 0x4 - core index']
  #allocation1 [shape = 'u32[144,128]{1,0:T(1,128)}', space=vmem, size = 0x12000, scoped, tag = 'internal scratch']
  %s0 = inlined_call_operand.vmem [shape: bf16[16,3072], index: 0, kind: input, shape index: {}]
  %s1 = inlined_call_operand.hbm [shape: bf16[3072,128], index: 1, kind: input, shape index: {}]
  %s2 = inlined_call_operand.vmem [shape: f32[1,128], index: 2, kind: input, shape index: {}]
  %s3 = inlined_call_operand.hbm [shape: bf16[19,128,128], index: 3, kind: input, shape index: {}]
  %s4 = inlined_call_operand.vmem [shape: f32[19,1,128], index: 4, kind: input, shape index: {}]
  %s5 = inlined_call_operand.vmem [shape: bf16[128,128], index: 5, kind: input, shape index: {}]
  %s6 = inlined_call_operand.vmem [shape: f32[1,128], index: 6, kind: input, shape index: {}]
  %s7 = inlined_call_operand.vmem [shape: f32[16,128], index: 7, kind: output, shape index: {}]
  %s8 = sld [smem:[#allocation0]]
  $region46: #{dnn_forward.1} parent=0
    _
  %s10 = ssub.s32 1, %s8
  %s11 = scalar_select 0, %s10, %s8
  $region1: #{dnn_forward.1} parent=0
    #allocation2 [shape = 'u8[786432]{0}', space=vmem, size = 0xc0000, scoped, tag = 'input window, operand 1, single buffered']
    #allocation3 [shape = 's32[1]{0}', space=sflag, size = 0x4, scoped, tag = 'scoped memory for dnn_forward.1']
    #allocation4 [shape = 'u8[622592]{0}', space=vmem, size = 0x98000, scoped, tag = 'input window, operand 3, single buffered']
    #allocation5 [shape = 's32[1]{0}', space=sflag, size = 0x4, scoped, tag = 'scoped memory for dnn_forward.1']
    %12 = vsyncpa [#allocation3], 0
    %13 = vsyncpa [#allocation5], 0
    // Predicated region
    $region2: #{dnn_forward.1} parent=1 // pred_check
      _
    $region3: #{dnn_forward.1} parent=1 // pred_check_branch
      %15 = sbr.rel (0) target = $region5
    $region4: #{dnn_forward.1} parent=1 // pred_region
      _
    $region5: #{dnn_forward.1} parent=1 // pred_fallthru
      _
    // Predicated region
    $region6: #{dnn_forward.1} parent=1 // pred_check
      _
    $region7: #{dnn_forward.1} parent=1 // pred_check_branch
      %17 = sbr.rel (0) target = $region9
    $region8: #{dnn_forward.1} parent=1 // pred_region
      %s19 = ssub.s32 24576, 24576
      %20 = vsyncadd [#allocation3], %s19
      %s21 = sshll.u32 [#allocation2], 4
      %s22 = int_to_ptr.vmem [resolvable:$true] %s21
      %27 = dma.hbm_to_vmem [thread:$0]  %s1, 24576, %s22, [#allocation3], 64, 64, 4
    $region9: #{dnn_forward.1} parent=1 // pred_fallthru
      _
    // Predicated region
    $region10: #{dnn_forward.1} parent=1 // pred_check
      _
    $region11: #{dnn_forward.1} parent=1 // pred_check_branch
      %29 = sbr.rel (0) target = $region13
    $region12: #{dnn_forward.1} parent=1 // pred_region
      _
    $region13: #{dnn_forward.1} parent=1 // pred_fallthru
      _
    // Predicated region
    $region14: #{dnn_forward.1} parent=1 // pred_check
      _
    $region15: #{dnn_forward.1} parent=1 // pred_check_branch
      %31 = sbr.rel (0) target = $region17
    $region16: #{dnn_forward.1} parent=1 // pred_region
      %s33 = ssub.s32 19456, 19456
      %34 = vsyncadd [#allocation5], %s33
      %s35 = sshll.u32 [#allocation4], 4
      %s36 = int_to_ptr.vmem [resolvable:$true] %s35
      %41 = dma.hbm_to_vmem [thread:$0]  %s3, 19456, %s36, [#allocation5], 64, 64, 4
    $region17: #{dnn_forward.1} parent=1 // pred_fallthru
      _
    // Predicated region
    $region18: #{dnn_forward.1} parent=1 // pred_check
      _
    $region19: #{dnn_forward.1} parent=1 // pred_check_branch
      %43 = sbr.rel (0) target = $region21
    $region20: #{dnn_forward.1} parent=1 // pred_region
      _
    $region21: #{dnn_forward.1} parent=1 // pred_fallthru
      _
    // Predicated region
    $region22: #{dnn_forward.1} parent=1 // pred_check
      _
    $region23: #{dnn_forward.1} parent=1 // pred_check_branch
      %45 = sbr.rel (0) target = $region25
    $region24: #{dnn_forward.1} parent=1 // pred_region
      _
    $region25: #{dnn_forward.1} parent=1 // pred_fallthru
      _
    // Predicated region
    $region26: #{dnn_forward.1} parent=1 // pred_check
      _
    $region27: #{dnn_forward.1} parent=1 // pred_check_branch
      %47 = sbr.rel (0) target = $region29
    $region28: #{dnn_forward.1} parent=1 // pred_region
      _
    $region29: #{dnn_forward.1} parent=1 // pred_fallthru
      _
    // Predicated region
    $region30: #{dnn_forward.1} parent=1 // pred_check
      _
    $region31: #{dnn_forward.1} parent=1 // pred_check_branch
      %49 = sbr.rel (0) target = $region33
    $region32: #{dnn_forward.1} parent=1 // pred_region
      %50 = dma.done [#allocation3], 24576
    $region33: #{dnn_forward.1} parent=1 // pred_fallthru
      _
    // Predicated region
    $region34: #{dnn_forward.1} parent=1 // pred_check
      _
    $region35: #{dnn_forward.1} parent=1 // pred_check_branch
      %52 = sbr.rel (0) target = $region37
    $region36: #{dnn_forward.1} parent=1 // pred_region
      %53 = dma.done [#allocation5], 19456
    $region37: #{dnn_forward.1} parent=1 // pred_fallthru
      _
    %v55 = vld [vmem:[#allocation2] sm:$0xf]
    %v56 = vld [vmem:[#allocation2 + $0x4] sm:$0xf]
    %v57 = vld [vmem:[#allocation2 + $0x8] sm:$0xf]
    %v58 = vld [vmem:[#allocation2 + $0xc] sm:$0xf]
    %v59 = vld [vmem:[#allocation2 + $0x10] sm:$0xf]
    %v60 = vld [vmem:[#allocation2 + $0x14] sm:$0xf]
    %v61 = vld [vmem:[#allocation2 + $0x18] sm:$0xf]
    %v62 = vld [vmem:[#allocation2 + $0x1c] sm:$0xf]
    %v63 = vld [vmem:[#allocation2 + $0x20] sm:$0xf]
    %v64 = vld [vmem:[#allocation2 + $0x24] sm:$0xf]
    %v65 = vld [vmem:[#allocation2 + $0x28] sm:$0xf]
    %v66 = vld [vmem:[#allocation2 + $0x2c] sm:$0xf]
    %v67 = vld [vmem:[#allocation2 + $0x30] sm:$0xf]
    %v68 = vld [vmem:[#allocation2 + $0x34] sm:$0xf]
    %v69 = vld [vmem:[#allocation2 + $0x38] sm:$0xf]
    %v70 = vld [vmem:[#allocation2 + $0x3c] sm:$0xf]
    %v71 = vld [vmem:[#allocation2 + $0x40] sm:$0xf]
    %v72 = vld [vmem:[#allocation2 + $0x44] sm:$0xf]
    %v73 = vld [vmem:[#allocation2 + $0x48] sm:$0xf]
    %v74 = vld [vmem:[#allocation2 + $0x4c] sm:$0xf]
    %v75 = vld [vmem:[#allocation2 + $0x50] sm:$0xf]
    %v76 = vld [vmem:[#allocation2 + $0x54] sm:$0xf]
    %v77 = vld [vmem:[#allocation2 + $0x58] sm:$0xf]
    %v78 = vld [vmem:[#allocation2 + $0x5c] sm:$0xf]
    %v79 = vld [vmem:[#allocation2 + $0x60] sm:$0xf]
    %v80 = vld [vmem:[#allocation2 + $0x64] sm:$0xf]
    %v81 = vld [vmem:[#allocation2 + $0x68] sm:$0xf]
    %v82 = vld [vmem:[#allocation2 + $0x6c] sm:$0xf]
    %v83 = vld [vmem:[#allocation2 + $0x70] sm:$0xf]
    %v84 = vld [vmem:[#allocation2 + $0x74] sm:$0xf]
    %v85 = vld [vmem:[#allocation2 + $0x78] sm:$0xf]
    %v86 = vld [vmem:[#allocation2 + $0x7c] sm:$0xf]
    %v87 = vld [vmem:[#allocation2 + $0x80] sm:$0xf]
    %v88 = vld [vmem:[#allocation2 + $0x84] sm:$0xf]
    %v89 = vld [vmem:[#allocation2 + $0x88] sm:$0xf]
    %v90 = vld [vmem:[#allocation2 + $0x8c] sm:$0xf]
    %v91 = vld [vmem:[#allocation2 + $0x90] sm:$0xf]
    %v92 = vld [vmem:[#allocation2 + $0x94] sm:$0xf]
    %v93 = vld [vmem:[#allocation2 + $0x98] sm:$0xf]
    %v94 = vld [vmem:[#allocation2 + $0x9c] sm:$0xf]
    %v95 = vld [vmem:[#allocation2 + $0xa0] sm:$0xf]
    %v96 = vld [vmem:[#allocation2 + $0xa4] sm:$0xf]
    %v97 = vld [vmem:[#allocation2 + $0xa8] sm:$0xf]
    %v98 = vld [vmem:[#allocation2 + $0xac] sm:$0xf]
    %v99 = vld [vmem:[#allocation2 + $0xb0] sm:$0xf]
    %v100 = vld [vmem:[#allocation2 + $0xb4] sm:$0xf]
    %v101 = vld [vmem:[#allocation2 + $0xb8] sm:$0xf]
    %v102 = vld [vmem:[#allocation2 + $0xbc] sm:$0xf]
    %v103 = vld [vmem:[#allocation2 + $0xc0] sm:$0xf]
    %v104 = vld [vmem:[#allocation2 + $0xc4] sm:$0xf]
    %v105 = vld [vmem:[#allocation2 + $0xc8] sm:$0xf]
    %v106 = vld [vmem:[#allocation2 + $0xcc] sm:$0xf]
    %v107 = vld [vmem:[#allocation2 + $0xd0] sm:$0xf]
    %v108 = vld [vmem:[#allocation2 + $0xd4] sm:$0xf]
    %v109 = vld [vmem:[#allocation2 + $0xd8] sm:$0xf]
    %v110 = vld [vmem:[#allocation2 + $0xdc] sm:$0xf]
    %v111 = vld [vmem:[#allocation2 + $0xe0] sm:$0xf]
    %v112 = vld [vmem:[#allocation2 + $0xe4] sm:$0xf]
    %v113 = vld [vmem:[#allocation2 + $0xe8] sm:$0xf]
    %v114 = vld [vmem:[#allocation2 + $0xec] sm:$0xf]
    %v115 = vld [vmem:[#allocation2 + $0xf0] sm:$0xf]
    %v116 = vld [vmem:[#allocation2 + $0xf4] sm:$0xf]
    %v117 = vld [vmem:[#allocation2 + $0xf8] sm:$0xf]
    %v118 = vld [vmem:[#allocation2 + $0xfc] sm:$0xf]
    %v119 = vld [vmem:[#allocation2 + $0x100] sm:$0xf]
    %v120 = vld [vmem:[#allocation2 + $0x104] sm:$0xf]
    %v121 = vld [vmem:[#allocation2 + $0x108] sm:$0xf]
    %v122 = vld [vmem:[#allocation2 + $0x10c] sm:$0xf]
    %v123 = vld [vmem:[#allocation2 + $0x110] sm:$0xf]
    %v124 = vld [vmem:[#allocation2 + $0x114] sm:$0xf]
    %v125 = vld [vmem:[#allocation2 + $0x118] sm:$0xf]
    %v126 = vld [vmem:[#allocation2 + $0x11c] sm:$0xf]
    %v127 = vld [vmem:[#allocation2 + $0x120] sm:$0xf]
    %v128 = vld [vmem:[#allocation2 + $0x124] sm:$0xf]
    %v129 = vld [vmem:[#allocation2 + $0x128] sm:$0xf]
    %v130 = vld [vmem:[#allocation2 + $0x12c] sm:$0xf]
    %v131 = vld [vmem:[#allocation2 + $0x130] sm:$0xf]
    %v132 = vld [vmem:[#allocation2 + $0x134] sm:$0xf]
    %v133 = vld [vmem:[#allocation2 + $0x138] sm:$0xf]
    %v134 = vld [vmem:[#allocation2 + $0x13c] sm:$0xf]
    %v135 = vld [vmem:[#allocation2 + $0x140] sm:$0xf]
    %v136 = vld [vmem:[#allocation2 + $0x144] sm:$0xf]
    %v137 = vld [vmem:[#allocation2 + $0x148] sm:$0xf]
    %v138 = vld [vmem:[#allocation2 + $0x14c] sm:$0xf]
    %v139 = vld [vmem:[#allocation2 + $0x150] sm:$0xf]
    %v140 = vld [vmem:[#allocation2 + $0x154] sm:$0xf]
    %v141 = vld [vmem:[#allocation2 + $0x158] sm:$0xf]
    %v142 = vld [vmem:[#allocation2 + $0x15c] sm:$0xf]
    %v143 = vld [vmem:[#allocation2 + $0x160] sm:$0xf]
    %v144 = vld [vmem:[#allocation2 + $0x164] sm:$0xf]
    %v145 = vld [vmem:[#allocation2 + $0x168] sm:$0xf]
    %v146 = vld [vmem:[#allocation2 + $0x16c] sm:$0xf]
    %v147 = vld [vmem:[#allocation2 + $0x170] sm:$0xf]
    %v148 = vld [vmem:[#allocation2 + $0x174] sm:$0xf]
    %v149 = vld [vmem:[#allocation2 + $0x178] sm:$0xf]
    %v150 = vld [vmem:[#allocation2 + $0x17c] sm:$0xf]
    %v151 = vld [vmem:[#allocation2 + $0x180] sm:$0xf]
    %v152 = vld [vmem:[#allocation2 + $0x184] sm:$0xf]
    %v153 = vld [vmem:[#allocation2 + $0x188] sm:$0xf]
    %v154 = vld [vmem:[#allocation2 + $0x18c] sm:$0xf]
    %v155 = vld [vmem:[#allocation2 + $0x190] sm:$0xf]
    %v156 = vld [vmem:[#allocation2 + $0x194] sm:$0xf]
    %v157 = vld [vmem:[#allocation2 + $0x198] sm:$0xf]
    %v158 = vld [vmem:[#allocation2 + $0x19c] sm:$0xf]
    %v159 = vld [vmem:[#allocation2 + $0x1a0] sm:$0xf]
    %v160 = vld [vmem:[#allocation2 + $0x1a4] sm:$0xf]
    %v161 = vld [vmem:[#allocation2 + $0x1a8] sm:$0xf]
    %v162 = vld [vmem:[#allocation2 + $0x1ac] sm:$0xf]
    %v163 = vld [vmem:[#allocation2 + $0x1b0] sm:$0xf]
    %v164 = vld [vmem:[#allocation2 + $0x1b4] sm:$0xf]
    %v165 = vld [vmem:[#allocation2 + $0x1b8] sm:$0xf]
    %v166 = vld [vmem:[#allocation2 + $0x1bc] sm:$0xf]
    %v167 = vld [vmem:[#allocation2 + $0x1c0] sm:$0xf]
    %v168 = vld [vmem:[#allocation2 + $0x1c4] sm:$0xf]
    %v169 = vld [vmem:[#allocation2 + $0x1c8] sm:$0xf]
    %v170 = vld [vmem:[#allocation2 + $0x1cc] sm:$0xf]
    %v171 = vld [vmem:[#allocation2 + $0x1d0] sm:$0xf]
    %v172 = vld [vmem:[#allocation2 + $0x1d4] sm:$0xf]
    %v173 = vld [vmem:[#allocation2 + $0x1d8] sm:$0xf]
    %v174 = vld [vmem:[#allocation2 + $0x1dc] sm:$0xf]
    %v175 = vld [vmem:[#allocation2 + $0x1e0] sm:$0xf]
    %v176 = vld [vmem:[#allocation2 + $0x1e4] sm:$0xf]
    %v177 = vld [vmem:[#allocation2 + $0x1e8] sm:$0xf]
    %v178 = vld [vmem:[#allocation2 + $0x1ec] sm:$0xf]
    %v179 = vld [vmem:[#allocation2 + $0x1f0] sm:$0xf]
    %v180 = vld [vmem:[#allocation2 + $0x1f4] sm:$0xf]
    %v181 = vld [vmem:[#allocation2 + $0x1f8] sm:$0xf]
    %v182 = vld [vmem:[#allocation2 + $0x1fc] sm:$0xf]
    %v183 = vld [vmem:[#allocation2 + $0x200] sm:$0xf]
    %v184 = vld [vmem:[#allocation2 + $0x204] sm:$0xf]
    %v185 = vld [vmem:[#allocation2 + $0x208] sm:$0xf]
    %v186 = vld [vmem:[#allocation2 + $0x20c] sm:$0xf]
    %v187 = vld [vmem:[#allocation2 + $0x210] sm:$0xf]
    %v188 = vld [vmem:[#allocation2 + $0x214] sm:$0xf]
    %v189 = vld [vmem:[#allocation2 + $0x218] sm:$0xf]
    %v190 = vld [vmem:[#allocation2 + $0x21c] sm:$0xf]
    %v191 = vld [vmem:[#allocation2 + $0x220] sm:$0xf]
    %v192 = vld [vmem:[#allocation2 + $0x224] sm:$0xf]
    %v193 = vld [vmem:[#allocation2 + $0x228] sm:$0xf]
    %v194 = vld [vmem:[#allocation2 + $0x22c] sm:$0xf]
    %v195 = vld [vmem:[#allocation2 + $0x230] sm:$0xf]
    %v196 = vld [vmem:[#allocation2 + $0x234] sm:$0xf]
    %v197 = vld [vmem:[#allocation2 + $0x238] sm:$0xf]
    %v198 = vld [vmem:[#allocation2 + $0x23c] sm:$0xf]
    %v199 = vld [vmem:[#allocation2 + $0x240] sm:$0xf]
    %v200 = vld [vmem:[#allocation2 + $0x244] sm:$0xf]
    %v201 = vld [vmem:[#allocation2 + $0x248] sm:$0xf]
    %v202 = vld [vmem:[#allocation2 + $0x24c] sm:$0xf]
    %v203 = vld [vmem:[#allocation2 + $0x250] sm:$0xf]
    %v204 = vld [vmem:[#allocation2 + $0x254] sm:$0xf]
    %v205 = vld [vmem:[#allocation2 + $0x258] sm:$0xf]
    %v206 = vld [vmem:[#allocation2 + $0x25c] sm:$0xf]
    %v207 = vld [vmem:[#allocation2 + $0x260] sm:$0xf]
    %v208 = vld [vmem:[#allocation2 + $0x264] sm:$0xf]
    %v209 = vld [vmem:[#allocation2 + $0x268] sm:$0xf]
    %v210 = vld [vmem:[#allocation2 + $0x26c] sm:$0xf]
    %v211 = vld [vmem:[#allocation2 + $0x270] sm:$0xf]
    %v212 = vld [vmem:[#allocation2 + $0x274] sm:$0xf]
    %v213 = vld [vmem:[#allocation2 + $0x278] sm:$0xf]
    %v214 = vld [vmem:[#allocation2 + $0x27c] sm:$0xf]
    %v215 = vld [vmem:[#allocation2 + $0x280] sm:$0xf]
    %v216 = vld [vmem:[#allocation2 + $0x284] sm:$0xf]
    %v217 = vld [vmem:[#allocation2 + $0x288] sm:$0xf]
    %v218 = vld [vmem:[#allocation2 + $0x28c] sm:$0xf]
    %v219 = vld [vmem:[#allocation2 + $0x290] sm:$0xf]
    %v220 = vld [vmem:[#allocation2 + $0x294] sm:$0xf]
    %v221 = vld [vmem:[#allocation2 + $0x298] sm:$0xf]
    %v222 = vld [vmem:[#allocation2 + $0x29c] sm:$0xf]
    %v223 = vld [vmem:[#allocation2 + $0x2a0] sm:$0xf]
    %v224 = vld [vmem:[#allocation2 + $0x2a4] sm:$0xf]
    %v225 = vld [vmem:[#allocation2 + $0x2a8] sm:$0xf]
    %v226 = vld [vmem:[#allocation2 + $0x2ac] sm:$0xf]
    %v227 = vld [vmem:[#allocation2 + $0x2b0] sm:$0xf]
    %v228 = vld [vmem:[#allocation2 + $0x2b4] sm:$0xf]
    %v229 = vld [vmem:[#allocation2 + $0x2b8] sm:$0xf]
    %v230 = vld [vmem:[#allocation2 + $0x2bc] sm:$0xf]
    %v231 = vld [vmem:[#allocation2 + $0x2c0] sm:$0xf]
    %v232 = vld [vmem:[#allocation2 + $0x2c4] sm:$0xf]
    %v233 = vld [vmem:[#allocation2 + $0x2c8] sm:$0xf]
    %v234 = vld [vmem:[#allocation2 + $0x2cc] sm:$0xf]
    %v235 = vld [vmem:[#allocation2 + $0x2d0] sm:$0xf]
    %v236 = vld [vmem:[#allocation2 + $0x2d4] sm:$0xf]
    %v237 = vld [vmem:[#allocation2 + $0x2d8] sm:$0xf]
    %v238 = vld [vmem:[#allocation2 + $0x2dc] sm:$0xf]
    %v239 = vld [vmem:[#allocation2 + $0x2e0] sm:$0xf]
    %v240 = vld [vmem:[#allocation2 + $0x2e4] sm:$0xf]
    %v241 = vld [vmem:[#allocation2 + $0x2e8] sm:$0xf]
    %v242 = vld [vmem:[#allocation2 + $0x2ec] sm:$0xf]
    %v243 = vld [vmem:[#allocation2 + $0x2f0] sm:$0xf]
    %v244 = vld [vmem:[#allocation2 + $0x2f4] sm:$0xf]
    %v245 = vld [vmem:[#allocation2 + $0x2f8] sm:$0xf]
    %v246 = vld [vmem:[#allocation2 + $0x2fc] sm:$0xf]
    %v247 = vld [vmem:[#allocation2 + $0x300] sm:$0xf]
    %v248 = vld [vmem:[#allocation2 + $0x304] sm:$0xf]
    %v249 = vld [vmem:[#allocation2 + $0x308] sm:$0xf]
    %v250 = vld [vmem:[#allocation2 + $0x30c] sm:$0xf]
    %v251 = vld [vmem:[#allocation2 + $0x310] sm:$0xf]
    %v252 = vld [vmem:[#allocation2 + $0x314] sm:$0xf]
    %v253 = vld [vmem:[#allocation2 + $0x318] sm:$0xf]
    %v254 = vld [vmem:[#allocation2 + $0x31c] sm:$0xf]
    %v255 = vld [vmem:[#allocation2 + $0x320] sm:$0xf]
    %v256 = vld [vmem:[#allocation2 + $0x324] sm:$0xf]
    %v257 = vld [vmem:[#allocation2 + $0x328] sm:$0xf]
    %v258 = vld [vmem:[#allocation2 + $0x32c] sm:$0xf]
    %v259 = vld [vmem:[#allocation2 + $0x330] sm:$0xf]
    %v260 = vld [vmem:[#allocation2 + $0x334] sm:$0xf]
    %v261 = vld [vmem:[#allocation2 + $0x338] sm:$0xf]
    %v262 = vld [vmem:[#allocation2 + $0x33c] sm:$0xf]
    %v263 = vld [vmem:[#allocation2 + $0x340] sm:$0xf]
    %v264 = vld [vmem:[#allocation2 + $0x344] sm:$0xf]
    %v265 = vld [vmem:[#allocation2 + $0x348] sm:$0xf]
    %v266 = vld [vmem:[#allocation2 + $0x34c] sm:$0xf]
    %v267 = vld [vmem:[#allocation2 + $0x350] sm:$0xf]
    %v268 = vld [vmem:[#allocation2 + $0x354] sm:$0xf]
    %v269 = vld [vmem:[#allocation2 + $0x358] sm:$0xf]
    %v270 = vld [vmem:[#allocation2 + $0x35c] sm:$0xf]
    %v271 = vld [vmem:[#allocation2 + $0x360] sm:$0xf]
    %v272 = vld [vmem:[#allocation2 + $0x364] sm:$0xf]
    %v273 = vld [vmem:[#allocation2 + $0x368] sm:$0xf]
    %v274 = vld [vmem:[#allocation2 + $0x36c] sm:$0xf]
    %v275 = vld [vmem:[#allocation2 + $0x370] sm:$0xf]
    %v276 = vld [vmem:[#allocation2 + $0x374] sm:$0xf]
    %v277 = vld [vmem:[#allocation2 + $0x378] sm:$0xf]
    %v278 = vld [vmem:[#allocation2 + $0x37c] sm:$0xf]
    %v279 = vld [vmem:[#allocation2 + $0x380] sm:$0xf]
    %v280 = vld [vmem:[#allocation2 + $0x384] sm:$0xf]
    %v281 = vld [vmem:[#allocation2 + $0x388] sm:$0xf]
    %v282 = vld [vmem:[#allocation2 + $0x38c] sm:$0xf]
    %v283 = vld [vmem:[#allocation2 + $0x390] sm:$0xf]
    %v284 = vld [vmem:[#allocation2 + $0x394] sm:$0xf]
    %v285 = vld [vmem:[#allocation2 + $0x398] sm:$0xf]
    %v286 = vld [vmem:[#allocation2 + $0x39c] sm:$0xf]
    %v287 = vld [vmem:[#allocation2 + $0x3a0] sm:$0xf]
    %v288 = vld [vmem:[#allocation2 + $0x3a4] sm:$0xf]
    %v289 = vld [vmem:[#allocation2 + $0x3a8] sm:$0xf]
    %v290 = vld [vmem:[#allocation2 + $0x3ac] sm:$0xf]
    %v291 = vld [vmem:[#allocation2 + $0x3b0] sm:$0xf]
    %v292 = vld [vmem:[#allocation2 + $0x3b4] sm:$0xf]
    %v293 = vld [vmem:[#allocation2 + $0x3b8] sm:$0xf]
    %v294 = vld [vmem:[#allocation2 + $0x3bc] sm:$0xf]
    %v295 = vld [vmem:[#allocation2 + $0x3c0] sm:$0xf]
    %v296 = vld [vmem:[#allocation2 + $0x3c4] sm:$0xf]
    %v297 = vld [vmem:[#allocation2 + $0x3c8] sm:$0xf]
    %v298 = vld [vmem:[#allocation2 + $0x3cc] sm:$0xf]
    %v299 = vld [vmem:[#allocation2 + $0x3d0] sm:$0xf]
    %v300 = vld [vmem:[#allocation2 + $0x3d4] sm:$0xf]
    %v301 = vld [vmem:[#allocation2 + $0x3d8] sm:$0xf]
    %v302 = vld [vmem:[#allocation2 + $0x3dc] sm:$0xf]
    %v303 = vld [vmem:[#allocation2 + $0x3e0] sm:$0xf]
    %v304 = vld [vmem:[#allocation2 + $0x3e4] sm:$0xf]
    %v305 = vld [vmem:[#allocation2 + $0x3e8] sm:$0xf]
    %v306 = vld [vmem:[#allocation2 + $0x3ec] sm:$0xf]
    %v307 = vld [vmem:[#allocation2 + $0x3f0] sm:$0xf]
    %v308 = vld [vmem:[#allocation2 + $0x3f4] sm:$0xf]
    %v309 = vld [vmem:[#allocation2 + $0x3f8] sm:$0xf]
    %v310 = vld [vmem:[#allocation2 + $0x3fc] sm:$0xf]
    %v311 = vld [vmem:[#allocation2 + $0x400] sm:$0xf]
    %v312 = vld [vmem:[#allocation2 + $0x404] sm:$0xf]
    %v313 = vld [vmem:[#allocation2 + $0x408] sm:$0xf]
    %v314 = vld [vmem:[#allocation2 + $0x40c] sm:$0xf]
    %v315 = vld [vmem:[#allocation2 + $0x410] sm:$0xf]
    %v316 = vld [vmem:[#allocation2 + $0x414] sm:$0xf]
    %v317 = vld [vmem:[#allocation2 + $0x418] sm:$0xf]
    %v318 = vld [vmem:[#allocation2 + $0x41c] sm:$0xf]
    %v319 = vld [vmem:[#allocation2 + $0x420] sm:$0xf]
    %v320 = vld [vmem:[#allocation2 + $0x424] sm:$0xf]
    %v321 = vld [vmem:[#allocation2 + $0x428] sm:$0xf]
    %v322 = vld [vmem:[#allocation2 + $0x42c] sm:$0xf]
    %v323 = vld [vmem:[#allocation2 + $0x430] sm:$0xf]
    %v324 = vld [vmem:[#allocation2 + $0x434] sm:$0xf]
    %v325 = vld [vmem:[#allocation2 + $0x438] sm:$0xf]
    %v326 = vld [vmem:[#allocation2 + $0x43c] sm:$0xf]
    %v327 = vld [vmem:[#allocation2 + $0x440] sm:$0xf]
    %v328 = vld [vmem:[#allocation2 + $0x444] sm:$0xf]
    %v329 = vld [vmem:[#allocation2 + $0x448] sm:$0xf]
    %v330 = vld [vmem:[#allocation2 + $0x44c] sm:$0xf]
    %v331 = vld [vmem:[#allocation2 + $0x450] sm:$0xf]
    %v332 = vld [vmem:[#allocation2 + $0x454] sm:$0xf]
    %v333 = vld [vmem:[#allocation2 + $0x458] sm:$0xf]
    %v334 = vld [vmem:[#allocation2 + $0x45c] sm:$0xf]
    %v335 = vld [vmem:[#allocation2 + $0x460] sm:$0xf]
    %v336 = vld [vmem:[#allocation2 + $0x464] sm:$0xf]
    %v337 = vld [vmem:[#allocation2 + $0x468] sm:$0xf]
    %v338 = vld [vmem:[#allocation2 + $0x46c] sm:$0xf]
    %v339 = vld [vmem:[#allocation2 + $0x470] sm:$0xf]
    %v340 = vld [vmem:[#allocation2 + $0x474] sm:$0xf]
    %v341 = vld [vmem:[#allocation2 + $0x478] sm:$0xf]
    %v342 = vld [vmem:[#allocation2 + $0x47c] sm:$0xf]
    %v343 = vld [vmem:[#allocation2 + $0x480] sm:$0xf]
    %v344 = vld [vmem:[#allocation2 + $0x484] sm:$0xf]
    %v345 = vld [vmem:[#allocation2 + $0x488] sm:$0xf]
    %v346 = vld [vmem:[#allocation2 + $0x48c] sm:$0xf]
    %v347 = vld [vmem:[#allocation2 + $0x490] sm:$0xf]
    %v348 = vld [vmem:[#allocation2 + $0x494] sm:$0xf]
    %v349 = vld [vmem:[#allocation2 + $0x498] sm:$0xf]
    %v350 = vld [vmem:[#allocation2 + $0x49c] sm:$0xf]
    %v351 = vld [vmem:[#allocation2 + $0x4a0] sm:$0xf]
    %v352 = vld [vmem:[#allocation2 + $0x4a4] sm:$0xf]
    %v353 = vld [vmem:[#allocation2 + $0x4a8] sm:$0xf]
    %v354 = vld [vmem:[#allocation2 + $0x4ac] sm:$0xf]
    %v355 = vld [vmem:[#allocation2 + $0x4b0] sm:$0xf]
    %v356 = vld [vmem:[#allocation2 + $0x4b4] sm:$0xf]
    %v357 = vld [vmem:[#allocation2 + $0x4b8] sm:$0xf]
    %v358 = vld [vmem:[#allocation2 + $0x4bc] sm:$0xf]
    %v359 = vld [vmem:[#allocation2 + $0x4c0] sm:$0xf]
    %v360 = vld [vmem:[#allocation2 + $0x4c4] sm:$0xf]
    %v361 = vld [vmem:[#allocation2 + $0x4c8] sm:$0xf]
    %v362 = vld [vmem:[#allocation2 + $0x4cc] sm:$0xf]
    %v363 = vld [vmem:[#allocation2 + $0x4d0] sm:$0xf]
    %v364 = vld [vmem:[#allocation2 + $0x4d4] sm:$0xf]
    %v365 = vld [vmem:[#allocation2 + $0x4d8] sm:$0xf]
    %v366 = vld [vmem:[#allocation2 + $0x4dc] sm:$0xf]
    %v367 = vld [vmem:[#allocation2 + $0x4e0] sm:$0xf]
    %v368 = vld [vmem:[#allocation2 + $0x4e4] sm:$0xf]
    %v369 = vld [vmem:[#allocation2 + $0x4e8] sm:$0xf]
    %v370 = vld [vmem:[#allocation2 + $0x4ec] sm:$0xf]
    %v371 = vld [vmem:[#allocation2 + $0x4f0] sm:$0xf]
    %v372 = vld [vmem:[#allocation2 + $0x4f4] sm:$0xf]
    %v373 = vld [vmem:[#allocation2 + $0x4f8] sm:$0xf]
    %v374 = vld [vmem:[#allocation2 + $0x4fc] sm:$0xf]
    %v375 = vld [vmem:[#allocation2 + $0x500] sm:$0xf]
    %v376 = vld [vmem:[#allocation2 + $0x504] sm:$0xf]
    %v377 = vld [vmem:[#allocation2 + $0x508] sm:$0xf]
    %v378 = vld [vmem:[#allocation2 + $0x50c] sm:$0xf]
    %v379 = vld [vmem:[#allocation2 + $0x510] sm:$0xf]
    %v380 = vld [vmem:[#allocation2 + $0x514] sm:$0xf]
    %v381 = vld [vmem:[#allocation2 + $0x518] sm:$0xf]
    %v382 = vld [vmem:[#allocation2 + $0x51c] sm:$0xf]
    %v383 = vld [vmem:[#allocation2 + $0x520] sm:$0xf]
    %v384 = vld [vmem:[#allocation2 + $0x524] sm:$0xf]
    %v385 = vld [vmem:[#allocation2 + $0x528] sm:$0xf]
    %v386 = vld [vmem:[#allocation2 + $0x52c] sm:$0xf]
    %v387 = vld [vmem:[#allocation2 + $0x530] sm:$0xf]
    %v388 = vld [vmem:[#allocation2 + $0x534] sm:$0xf]
    %v389 = vld [vmem:[#allocation2 + $0x538] sm:$0xf]
    %v390 = vld [vmem:[#allocation2 + $0x53c] sm:$0xf]
    %v391 = vld [vmem:[#allocation2 + $0x540] sm:$0xf]
    %v392 = vld [vmem:[#allocation2 + $0x544] sm:$0xf]
    %v393 = vld [vmem:[#allocation2 + $0x548] sm:$0xf]
    %v394 = vld [vmem:[#allocation2 + $0x54c] sm:$0xf]
    %v395 = vld [vmem:[#allocation2 + $0x550] sm:$0xf]
    %v396 = vld [vmem:[#allocation2 + $0x554] sm:$0xf]
    %v397 = vld [vmem:[#allocation2 + $0x558] sm:$0xf]
    %v398 = vld [vmem:[#allocation2 + $0x55c] sm:$0xf]
    %v399 = vld [vmem:[#allocation2 + $0x560] sm:$0xf]
    %v400 = vld [vmem:[#allocation2 + $0x564] sm:$0xf]
    %v401 = vld [vmem:[#allocation2 + $0x568] sm:$0xf]
    %v402 = vld [vmem:[#allocation2 + $0x56c] sm:$0xf]
    %v403 = vld [vmem:[#allocation2 + $0x570] sm:$0xf]
    %v404 = vld [vmem:[#allocation2 + $0x574] sm:$0xf]
    %v405 = vld [vmem:[#allocation2 + $0x578] sm:$0xf]
    %v406 = vld [vmem:[#allocation2 + $0x57c] sm:$0xf]
    %v407 = vld [vmem:[#allocation2 + $0x580] sm:$0xf]
    %v408 = vld [vmem:[#allocation2 + $0x584] sm:$0xf]
    %v409 = vld [vmem:[#allocation2 + $0x588] sm:$0xf]
    %v410 = vld [vmem:[#allocation2 + $0x58c] sm:$0xf]
    %v411 = vld [vmem:[#allocation2 + $0x590] sm:$0xf]
    %v412 = vld [vmem:[#allocation2 + $0x594] sm:$0xf]
    %v413 = vld [vmem:[#allocation2 + $0x598] sm:$0xf]
    %v414 = vld [vmem:[#allocation2 + $0x59c] sm:$0xf]
    %v415 = vld [vmem:[#allocation2 + $0x5a0] sm:$0xf]
    %v416 = vld [vmem:[#allocation2 + $0x5a4] sm:$0xf]
    %v417 = vld [vmem:[#allocation2 + $0x5a8] sm:$0xf]
    %v418 = vld [vmem:[#allocation2 + $0x5ac] sm:$0xf]
    %v419 = vld [vmem:[#allocation2 + $0x5b0] sm:$0xf]
    %v420 = vld [vmem:[#allocation2 + $0x5b4] sm:$0xf]
    %v421 = vld [vmem:[#allocation2 + $0x5b8] sm:$0xf]
    %v422 = vld [vmem:[#allocation2 + $0x5bc] sm:$0xf]
    %v423 = vld [vmem:[#allocation2 + $0x5c0] sm:$0xf]
    %v424 = vld [vmem:[#allocation2 + $0x5c4] sm:$0xf]
    %v425 = vld [vmem:[#allocation2 + $0x5c8] sm:$0xf]
    %v426 = vld [vmem:[#allocation2 + $0x5cc] sm:$0xf]
    %v427 = vld [vmem:[#allocation2 + $0x5d0] sm:$0xf]
    %v428 = vld [vmem:[#allocation2 + $0x5d4] sm:$0xf]
    %v429 = vld [vmem:[#allocation2 + $0x5d8] sm:$0xf]
    %v430 = vld [vmem:[#allocation2 + $0x5dc] sm:$0xf]
    %v431 = vld [vmem:[#allocation2 + $0x5e0] sm:$0xf]
    %v432 = vld [vmem:[#allocation2 + $0x5e4] sm:$0xf]
    %v433 = vld [vmem:[#allocation2 + $0x5e8] sm:$0xf]
    %v434 = vld [vmem:[#allocation2 + $0x5ec] sm:$0xf]
    %v435 = vld [vmem:[#allocation2 + $0x5f0] sm:$0xf]
    %v436 = vld [vmem:[#allocation2 + $0x5f4] sm:$0xf]
    %v437 = vld [vmem:[#allocation2 + $0x5f8] sm:$0xf]
    %v438 = vld [vmem:[#allocation2 + $0x5fc] sm:$0xf]
    %v439 = vld [vmem:[%s2] sm:$0x1]
    %v440 = vld [vmem:[%s0] sm:$0xff]
    %v441 = vld [vmem:[%s0 + $0x8] sm:$0xff]
    %v442 = vld [vmem:[%s0 + $0x10] sm:$0xff]
    %v443 = vld [vmem:[%s0 + $0x18] sm:$0xff]
    %v444 = vld [vmem:[%s0 + $0x20] sm:$0xff]
    %v445 = vld [vmem:[%s0 + $0x28] sm:$0xff]
    %v446 = vld [vmem:[%s0 + $0x30] sm:$0xff]
    %v447 = vld [vmem:[%s0 + $0x38] sm:$0xff]
    %v448 = vld [vmem:[%s0 + $0x40] sm:$0xff]
    %v449 = vld [vmem:[%s0 + $0x48] sm:$0xff]
    %v450 = vld [vmem:[%s0 + $0x50] sm:$0xff]
    %v451 = vld [vmem:[%s0 + $0x58] sm:$0xff]
    %v453 = vlaneseq
    %v454 = vshrl.u32 %v453, 7
    %v455 = vsub.s32 0, %v454
    %v456 = vrot.slane %v439, %v455
    %v470 = vunpack.c.l.b16 %v440
    %v471 = vunpack.c.h.b16 %v440
    %v472 = vunpack.c.l.b16 %v441
    %v473 = vunpack.c.h.b16 %v441
    %v474 = vunpack.c.l.b16 %v442
    %v475 = vunpack.c.h.b16 %v442
    %v476 = vunpack.c.l.b16 %v443
    %v477 = vunpack.c.h.b16 %v443
    %v478 = vunpack.c.l.b16 %v444
    %v479 = vunpack.c.h.b16 %v444
    %v480 = vunpack.c.l.b16 %v445
    %v481 = vunpack.c.h.b16 %v445
    %v482 = vunpack.c.l.b16 %v446
    %v483 = vunpack.c.h.b16 %v446
    %v484 = vunpack.c.l.b16 %v447
    %v485 = vunpack.c.h.b16 %v447
    %v486 = vunpack.c.l.b16 %v448
    %v487 = vunpack.c.h.b16 %v448
    %v488 = vunpack.c.l.b16 %v449
    %v489 = vunpack.c.h.b16 %v449
    %v490 = vunpack.c.l.b16 %v450
    %v491 = vunpack.c.h.b16 %v450
    %v492 = vunpack.c.l.b16 %v451
    %v493 = vunpack.c.h.b16 %v451
    %v494 = vpack.c.b16 %v470, %v470
    %v495 = vpack.c.b16 %v471, %v471
    %v496 = vpack.c.b16 %v472, %v472
    %v497 = vpack.c.b16 %v473, %v473
    %v498 = vpack.c.b16 %v474, %v474
    %v499 = vpack.c.b16 %v475, %v475
    %v500 = vpack.c.b16 %v476, %v476
    %v501 = vpack.c.b16 %v477, %v477
    %v502 = vpack.c.b16 %v478, %v478
    %v503 = vpack.c.b16 %v479, %v479
    %v504 = vpack.c.b16 %v480, %v480
    %v505 = vpack.c.b16 %v481, %v481
    %v506 = vpack.c.b16 %v482, %v482
    %v507 = vpack.c.b16 %v483, %v483
    %v508 = vpack.c.b16 %v484, %v484
    %v509 = vpack.c.b16 %v485, %v485
    %v510 = vpack.c.b16 %v486, %v486
    %v511 = vpack.c.b16 %v487, %v487
    %v512 = vpack.c.b16 %v488, %v488
    %v513 = vpack.c.b16 %v489, %v489
    %v514 = vpack.c.b16 %v490, %v490
    %v515 = vpack.c.b16 %v491, %v491
    %v516 = vpack.c.b16 %v492, %v492
    %v517 = vpack.c.b16 %v493, %v493
    %v926 = vunpack.c.l.b16 %v55
    %v927 = vunpack.c.l.b16 %v56
    %v928 = vunpack.c.l.b16 %v57
    %v929 = vunpack.c.l.b16 %v58
    %v930 = vunpack.c.l.b16 %v59
    %v931 = vunpack.c.l.b16 %v60
    %v932 = vunpack.c.l.b16 %v61
    %v933 = vunpack.c.l.b16 %v62
    %v934 = vunpack.c.l.b16 %v63
    %v935 = vunpack.c.l.b16 %v64
    %v936 = vunpack.c.l.b16 %v65
    %v937 = vunpack.c.l.b16 %v66
    %v938 = vunpack.c.l.b16 %v67
    %v939 = vunpack.c.l.b16 %v68
    %v940 = vunpack.c.l.b16 %v69
    %v941 = vunpack.c.l.b16 %v70
    %v942 = vunpack.c.l.b16 %v71
    %v943 = vunpack.c.l.b16 %v72
    %v944 = vunpack.c.l.b16 %v73
    %v945 = vunpack.c.l.b16 %v74
    %v946 = vunpack.c.l.b16 %v75
    %v947 = vunpack.c.l.b16 %v76
    %v948 = vunpack.c.l.b16 %v77
    %v949 = vunpack.c.l.b16 %v78
    %v950 = vunpack.c.l.b16 %v79
    %v951 = vunpack.c.l.b16 %v80
    %v952 = vunpack.c.l.b16 %v81
    %v953 = vunpack.c.l.b16 %v82
    %v954 = vunpack.c.l.b16 %v83
    %v955 = vunpack.c.l.b16 %v84
    %v956 = vunpack.c.l.b16 %v85
    %v957 = vunpack.c.l.b16 %v86
    %v958 = vunpack.c.l.b16 %v87
    %v959 = vunpack.c.l.b16 %v88
    %v960 = vunpack.c.l.b16 %v89
    %v961 = vunpack.c.l.b16 %v90
    %v962 = vunpack.c.l.b16 %v91
    %v963 = vunpack.c.l.b16 %v92
    %v964 = vunpack.c.l.b16 %v93
    %v965 = vunpack.c.l.b16 %v94
    %v966 = vunpack.c.l.b16 %v95
    %v967 = vunpack.c.l.b16 %v96
    %v968 = vunpack.c.l.b16 %v97
    %v969 = vunpack.c.l.b16 %v98
    %v970 = vunpack.c.l.b16 %v99
    %v971 = vunpack.c.l.b16 %v100
    %v972 = vunpack.c.l.b16 %v101
    %v973 = vunpack.c.l.b16 %v102
    %v974 = vunpack.c.l.b16 %v103
    %v975 = vunpack.c.l.b16 %v104
    %v976 = vunpack.c.l.b16 %v105
    %v977 = vunpack.c.l.b16 %v106
    %v978 = vunpack.c.l.b16 %v107
    %v979 = vunpack.c.l.b16 %v108
    %v980 = vunpack.c.l.b16 %v109
    %v981 = vunpack.c.l.b16 %v110
    %v982 = vunpack.c.l.b16 %v111
    %v983 = vunpack.c.l.b16 %v112
    %v984 = vunpack.c.l.b16 %v113
    %v985 = vunpack.c.l.b16 %v114
    %v986 = vunpack.c.l.b16 %v115
    %v987 = vunpack.c.l.b16 %v116
    %v988 = vunpack.c.l.b16 %v117
    %v989 = vunpack.c.l.b16 %v118
    %v990 = vunpack.c.l.b16 %v119
    %v991 = vunpack.c.l.b16 %v120
    %v992 = vunpack.c.l.b16 %v121
    %v993 = vunpack.c.l.b16 %v122
    %v994 = vunpack.c.l.b16 %v123
    %v995 = vunpack.c.l.b16 %v124
    %v996 = vunpack.c.l.b16 %v125
    %v997 = vunpack.c.l.b16 %v126
    %v998 = vunpack.c.l.b16 %v127
    %v999 = vunpack.c.l.b16 %v128
    %v1000 = vunpack.c.l.b16 %v129
    %v1001 = vunpack.c.l.b16 %v130
    %v1002 = vunpack.c.l.b16 %v131
    %v1003 = vunpack.c.l.b16 %v132
    %v1004 = vunpack.c.l.b16 %v133
    %v1005 = vunpack.c.l.b16 %v134
    %v1006 = vunpack.c.l.b16 %v135
    %v1007 = vunpack.c.l.b16 %v136
    %v1008 = vunpack.c.l.b16 %v137
    %v1009 = vunpack.c.l.b16 %v138
    %v1010 = vunpack.c.l.b16 %v139
    %v1011 = vunpack.c.l.b16 %v140
    %v1012 = vunpack.c.l.b16 %v141
    %v1013 = vunpack.c.l.b16 %v142
    %v1014 = vunpack.c.l.b16 %v143
    %v1015 = vunpack.c.l.b16 %v144
    %v1016 = vunpack.c.l.b16 %v145
    %v1017 = vunpack.c.l.b16 %v146
    %v1018 = vunpack.c.l.b16 %v147
    %v1019 = vunpack.c.l.b16 %v148
    %v1020 = vunpack.c.l.b16 %v149
    %v1021 = vunpack.c.l.b16 %v150
    %v1022 = vunpack.c.l.b16 %v151
    %v1023 = vunpack.c.l.b16 %v152
    %v1024 = vunpack.c.l.b16 %v153
    %v1025 = vunpack.c.l.b16 %v154
    %v1026 = vunpack.c.l.b16 %v155
    %v1027 = vunpack.c.l.b16 %v156
    %v1028 = vunpack.c.l.b16 %v157
    %v1029 = vunpack.c.l.b16 %v158
    %v1030 = vunpack.c.l.b16 %v159
    %v1031 = vunpack.c.l.b16 %v160
    %v1032 = vunpack.c.l.b16 %v161
    %v1033 = vunpack.c.l.b16 %v162
    %v1034 = vunpack.c.l.b16 %v163
    %v1035 = vunpack.c.l.b16 %v164
    %v1036 = vunpack.c.l.b16 %v165
    %v1037 = vunpack.c.l.b16 %v166
    %v1038 = vunpack.c.l.b16 %v167
    %v1039 = vunpack.c.l.b16 %v168
    %v1040 = vunpack.c.l.b16 %v169
    %v1041 = vunpack.c.l.b16 %v170
    %v1042 = vunpack.c.l.b16 %v171
    %v1043 = vunpack.c.l.b16 %v172
    %v1044 = vunpack.c.l.b16 %v173
    %v1045 = vunpack.c.l.b16 %v174
    %v1046 = vunpack.c.l.b16 %v175
    %v1047 = vunpack.c.l.b16 %v176
    %v1048 = vunpack.c.l.b16 %v177
    %v1049 = vunpack.c.l.b16 %v178
    %v1050 = vunpack.c.l.b16 %v179
    %v1051 = vunpack.c.l.b16 %v180
    %v1052 = vunpack.c.l.b16 %v181
    %v1053 = vunpack.c.l.b16 %v182
    %v1054 = vunpack.c.l.b16 %v183
    %v1055 = vunpack.c.l.b16 %v184
    %v1056 = vunpack.c.l.b16 %v185
    %v1057 = vunpack.c.l.b16 %v186
    %v1058 = vunpack.c.l.b16 %v187
    %v1059 = vunpack.c.l.b16 %v188
    %v1060 = vunpack.c.l.b16 %v189
    %v1061 = vunpack.c.l.b16 %v190
    %v1062 = vunpack.c.l.b16 %v191
    %v1063 = vunpack.c.l.b16 %v192
    %v1064 = vunpack.c.l.b16 %v193
    %v1065 = vunpack.c.l.b16 %v194
    %v1066 = vunpack.c.l.b16 %v195
    %v1067 = vunpack.c.l.b16 %v196
    %v1068 = vunpack.c.l.b16 %v197
    %v1069 = vunpack.c.l.b16 %v198
    %v1070 = vunpack.c.l.b16 %v199
    %v1071 = vunpack.c.l.b16 %v200
    %v1072 = vunpack.c.l.b16 %v201
    %v1073 = vunpack.c.l.b16 %v202
    %v1074 = vunpack.c.l.b16 %v203
    %v1075 = vunpack.c.l.b16 %v204
    %v1076 = vunpack.c.l.b16 %v205
    %v1077 = vunpack.c.l.b16 %v206
    %v1078 = vunpack.c.l.b16 %v207
    %v1079 = vunpack.c.l.b16 %v208
    %v1080 = vunpack.c.l.b16 %v209
    %v1081 = vunpack.c.l.b16 %v210
    %v1082 = vunpack.c.l.b16 %v211
    %v1083 = vunpack.c.l.b16 %v212
    %v1084 = vunpack.c.l.b16 %v213
    %v1085 = vunpack.c.l.b16 %v214
    %v1086 = vunpack.c.l.b16 %v215
    %v1087 = vunpack.c.l.b16 %v216
    %v1088 = vunpack.c.l.b16 %v217
    %v1089 = vunpack.c.l.b16 %v218
    %v1090 = vunpack.c.l.b16 %v219
    %v1091 = vunpack.c.l.b16 %v220
    %v1092 = vunpack.c.l.b16 %v221
    %v1093 = vunpack.c.l.b16 %v222
    %v1094 = vunpack.c.l.b16 %v223
    %v1095 = vunpack.c.l.b16 %v224
    %v1096 = vunpack.c.l.b16 %v225
    %v1097 = vunpack.c.l.b16 %v226
    %v1098 = vunpack.c.l.b16 %v227
    %v1099 = vunpack.c.l.b16 %v228
    %v1100 = vunpack.c.l.b16 %v229
    %v1101 = vunpack.c.l.b16 %v230
    %v1102 = vunpack.c.l.b16 %v231
    %v1103 = vunpack.c.l.b16 %v232
    %v1104 = vunpack.c.l.b16 %v233
    %v1105 = vunpack.c.l.b16 %v234
    %v1106 = vunpack.c.l.b16 %v235
    %v1107 = vunpack.c.l.b16 %v236
    %v1108 = vunpack.c.l.b16 %v237
    %v1109 = vunpack.c.l.b16 %v238
    %v1110 = vunpack.c.l.b16 %v239
    %v1111 = vunpack.c.l.b16 %v240
    %v1112 = vunpack.c.l.b16 %v241
    %v1113 = vunpack.c.l.b16 %v242
    %v1114 = vunpack.c.l.b16 %v243
    %v1115 = vunpack.c.l.b16 %v244
    %v1116 = vunpack.c.l.b16 %v245
    %v1117 = vunpack.c.l.b16 %v246
    %v1118 = vunpack.c.l.b16 %v247
    %v1119 = vunpack.c.l.b16 %v248
    %v1120 = vunpack.c.l.b16 %v249
    %v1121 = vunpack.c.l.b16 %v250
    %v1122 = vunpack.c.l.b16 %v251
    %v1123 = vunpack.c.l.b16 %v252
    %v1124 = vunpack.c.l.b16 %v253
    %v1125 = vunpack.c.l.b16 %v254
    %v1126 = vunpack.c.l.b16 %v255
    %v1127 = vunpack.c.l.b16 %v256
    %v1128 = vunpack.c.l.b16 %v257
    %v1129 = vunpack.c.l.b16 %v258
    %v1130 = vunpack.c.l.b16 %v259
    %v1131 = vunpack.c.l.b16 %v260
    %v1132 = vunpack.c.l.b16 %v261
    %v1133 = vunpack.c.l.b16 %v262
    %v1134 = vunpack.c.l.b16 %v263
    %v1135 = vunpack.c.l.b16 %v264
    %v1136 = vunpack.c.l.b16 %v265
    %v1137 = vunpack.c.l.b16 %v266
    %v1138 = vunpack.c.l.b16 %v267
    %v1139 = vunpack.c.l.b16 %v268
    %v1140 = vunpack.c.l.b16 %v269
    %v1141 = vunpack.c.l.b16 %v270
    %v1142 = vunpack.c.l.b16 %v271
    %v1143 = vunpack.c.l.b16 %v272
    %v1144 = vunpack.c.l.b16 %v273
    %v1145 = vunpack.c.l.b16 %v274
    %v1146 = vunpack.c.l.b16 %v275
    %v1147 = vunpack.c.l.b16 %v276
    %v1148 = vunpack.c.l.b16 %v277
    %v1149 = vunpack.c.l.b16 %v278
    %v1150 = vunpack.c.l.b16 %v279
    %v1151 = vunpack.c.l.b16 %v280
    %v1152 = vunpack.c.l.b16 %v281
    %v1153 = vunpack.c.l.b16 %v282
    %v1154 = vunpack.c.l.b16 %v283
    %v1155 = vunpack.c.l.b16 %v284
    %v1156 = vunpack.c.l.b16 %v285
    %v1157 = vunpack.c.l.b16 %v286
    %v1158 = vunpack.c.l.b16 %v287
    %v1159 = vunpack.c.l.b16 %v288
    %v1160 = vunpack.c.l.b16 %v289
    %v1161 = vunpack.c.l.b16 %v290
    %v1162 = vunpack.c.l.b16 %v291
    %v1163 = vunpack.c.l.b16 %v292
    %v1164 = vunpack.c.l.b16 %v293
    %v1165 = vunpack.c.l.b16 %v294
    %v1166 = vunpack.c.l.b16 %v295
    %v1167 = vunpack.c.l.b16 %v296
    %v1168 = vunpack.c.l.b16 %v297
    %v1169 = vunpack.c.l.b16 %v298
    %v1170 = vunpack.c.l.b16 %v299
    %v1171 = vunpack.c.l.b16 %v300
    %v1172 = vunpack.c.l.b16 %v301
    %v1173 = vunpack.c.l.b16 %v302
    %v1174 = vunpack.c.l.b16 %v303
    %v1175 = vunpack.c.l.b16 %v304
    %v1176 = vunpack.c.l.b16 %v305
    %v1177 = vunpack.c.l.b16 %v306
    %v1178 = vunpack.c.l.b16 %v307
    %v1179 = vunpack.c.l.b16 %v308
    %v1180 = vunpack.c.l.b16 %v309
    %v1181 = vunpack.c.l.b16 %v310
    %v1182 = vunpack.c.l.b16 %v311
    %v1183 = vunpack.c.l.b16 %v312
    %v1184 = vunpack.c.l.b16 %v313
    %v1185 = vunpack.c.l.b16 %v314
    %v1186 = vunpack.c.l.b16 %v315
    %v1187 = vunpack.c.l.b16 %v316
    %v1188 = vunpack.c.l.b16 %v317
    %v1189 = vunpack.c.l.b16 %v318
    %v1190 = vunpack.c.l.b16 %v319
    %v1191 = vunpack.c.l.b16 %v320
    %v1192 = vunpack.c.l.b16 %v321
    %v1193 = vunpack.c.l.b16 %v322
    %v1194 = vunpack.c.l.b16 %v323
    %v1195 = vunpack.c.l.b16 %v324
    %v1196 = vunpack.c.l.b16 %v325
    %v1197 = vunpack.c.l.b16 %v326
    %v1198 = vunpack.c.l.b16 %v327
    %v1199 = vunpack.c.l.b16 %v328
    %v1200 = vunpack.c.l.b16 %v329
    %v1201 = vunpack.c.l.b16 %v330
    %v1202 = vunpack.c.l.b16 %v331
    %v1203 = vunpack.c.l.b16 %v332
    %v1204 = vunpack.c.l.b16 %v333
    %v1205 = vunpack.c.l.b16 %v334
    %v1206 = vunpack.c.l.b16 %v335
    %v1207 = vunpack.c.l.b16 %v336
    %v1208 = vunpack.c.l.b16 %v337
    %v1209 = vunpack.c.l.b16 %v338
    %v1210 = vunpack.c.l.b16 %v339
    %v1211 = vunpack.c.l.b16 %v340
    %v1212 = vunpack.c.l.b16 %v341
    %v1213 = vunpack.c.l.b16 %v342
    %v1214 = vunpack.c.l.b16 %v343
    %v1215 = vunpack.c.l.b16 %v344
    %v1216 = vunpack.c.l.b16 %v345
    %v1217 = vunpack.c.l.b16 %v346
    %v1218 = vunpack.c.l.b16 %v347
    %v1219 = vunpack.c.l.b16 %v348
    %v1220 = vunpack.c.l.b16 %v349
    %v1221 = vunpack.c.l.b16 %v350
    %v1222 = vunpack.c.l.b16 %v351
    %v1223 = vunpack.c.l.b16 %v352
    %v1224 = vunpack.c.l.b16 %v353
    %v1225 = vunpack.c.l.b16 %v354
    %v1226 = vunpack.c.l.b16 %v355
    %v1227 = vunpack.c.l.b16 %v356
    %v1228 = vunpack.c.l.b16 %v357
    %v1229 = vunpack.c.l.b16 %v358
    %v1230 = vunpack.c.l.b16 %v359
    %v1231 = vunpack.c.l.b16 %v360
    %v1232 = vunpack.c.l.b16 %v361
    %v1233 = vunpack.c.l.b16 %v362
    %v1234 = vunpack.c.l.b16 %v363
    %v1235 = vunpack.c.l.b16 %v364
    %v1236 = vunpack.c.l.b16 %v365
    %v1237 = vunpack.c.l.b16 %v366
    %v1238 = vunpack.c.l.b16 %v367
    %v1239 = vunpack.c.l.b16 %v368
    %v1240 = vunpack.c.l.b16 %v369
    %v1241 = vunpack.c.l.b16 %v370
    %v1242 = vunpack.c.l.b16 %v371
    %v1243 = vunpack.c.l.b16 %v372
    %v1244 = vunpack.c.l.b16 %v373
    %v1245 = vunpack.c.l.b16 %v374
    %v1246 = vunpack.c.l.b16 %v375
    %v1247 = vunpack.c.l.b16 %v376
    %v1248 = vunpack.c.l.b16 %v377
    %v1249 = vunpack.c.l.b16 %v378
    %v1250 = vunpack.c.l.b16 %v379
    %v1251 = vunpack.c.l.b16 %v380
    %v1252 = vunpack.c.l.b16 %v381
    %v1253 = vunpack.c.l.b16 %v382
    %v1254 = vunpack.c.l.b16 %v383
    %v1255 = vunpack.c.l.b16 %v384
    %v1256 = vunpack.c.l.b16 %v385
    %v1257 = vunpack.c.l.b16 %v386
    %v1258 = vunpack.c.l.b16 %v387
    %v1259 = vunpack.c.l.b16 %v388
    %v1260 = vunpack.c.l.b16 %v389
    %v1261 = vunpack.c.l.b16 %v390
    %v1262 = vunpack.c.l.b16 %v391
    %v1263 = vunpack.c.l.b16 %v392
    %v1264 = vunpack.c.l.b16 %v393
    %v1265 = vunpack.c.l.b16 %v394
    %v1266 = vunpack.c.l.b16 %v395
    %v1267 = vunpack.c.l.b16 %v396
    %v1268 = vunpack.c.l.b16 %v397
    %v1269 = vunpack.c.l.b16 %v398
    %v1270 = vunpack.c.l.b16 %v399
    %v1271 = vunpack.c.l.b16 %v400
    %v1272 = vunpack.c.l.b16 %v401
    %v1273 = vunpack.c.l.b16 %v402
    %v1274 = vunpack.c.l.b16 %v403
    %v1275 = vunpack.c.l.b16 %v404
    %v1276 = vunpack.c.l.b16 %v405
    %v1277 = vunpack.c.l.b16 %v406
    %v1278 = vunpack.c.l.b16 %v407
    %v1279 = vunpack.c.l.b16 %v408
    %v1280 = vunpack.c.l.b16 %v409
    %v1281 = vunpack.c.l.b16 %v410
    %v1282 = vunpack.c.l.b16 %v411
    %v1283 = vunpack.c.l.b16 %v412
    %v1284 = vunpack.c.l.b16 %v413
    %v1285 = vunpack.c.l.b16 %v414
    %v1286 = vunpack.c.l.b16 %v415
    %v1287 = vunpack.c.l.b16 %v416
    %v1288 = vunpack.c.l.b16 %v417
    %v1289 = vunpack.c.l.b16 %v418
    %v1290 = vunpack.c.l.b16 %v419
    %v1291 = vunpack.c.l.b16 %v420
    %v1292 = vunpack.c.l.b16 %v421
    %v1293 = vunpack.c.l.b16 %v422
    %v1294 = vunpack.c.l.b16 %v423
    %v1295 = vunpack.c.l.b16 %v424
    %v1296 = vunpack.c.l.b16 %v425
    %v1297 = vunpack.c.l.b16 %v426
    %v1298 = vunpack.c.l.b16 %v427
    %v1299 = vunpack.c.l.b16 %v428
    %v1300 = vunpack.c.l.b16 %v429
    %v1301 = vunpack.c.l.b16 %v430
    %v1302 = vunpack.c.l.b16 %v431
    %v1303 = vunpack.c.l.b16 %v432
    %v1304 = vunpack.c.l.b16 %v433
    %v1305 = vunpack.c.l.b16 %v434
    %v1306 = vunpack.c.l.b16 %v435
    %v1307 = vunpack.c.l.b16 %v436
    %v1308 = vunpack.c.l.b16 %v437
    %v1309 = vunpack.c.l.b16 %v438
    %v1310 = vpack.c.b16 %v927, %v926
    %v1311 = vpack.c.b16 %v929, %v928
    %v1312 = vpack.c.b16 %v931, %v930
    %v1313 = vpack.c.b16 %v933, %v932
    %v1314 = vpack.c.b16 %v935, %v934
    %v1315 = vpack.c.b16 %v937, %v936
    %v1316 = vpack.c.b16 %v939, %v938
    %v1317 = vpack.c.b16 %v941, %v940
    %v1318 = vpack.c.b16 %v943, %v942
    %v1319 = vpack.c.b16 %v945, %v944
    %v1320 = vpack.c.b16 %v947, %v946
    %v1321 = vpack.c.b16 %v949, %v948
    %v1322 = vpack.c.b16 %v951, %v950
    %v1323 = vpack.c.b16 %v953, %v952
    %v1324 = vpack.c.b16 %v955, %v954
    %v1325 = vpack.c.b16 %v957, %v956
    %v1326 = vpack.c.b16 %v959, %v958
    %v1327 = vpack.c.b16 %v961, %v960
    %v1328 = vpack.c.b16 %v963, %v962
    %v1329 = vpack.c.b16 %v965, %v964
    %v1330 = vpack.c.b16 %v967, %v966
    %v1331 = vpack.c.b16 %v969, %v968
    %v1332 = vpack.c.b16 %v971, %v970
    %v1333 = vpack.c.b16 %v973, %v972
    %v1334 = vpack.c.b16 %v975, %v974
    %v1335 = vpack.c.b16 %v977, %v976
    %v1336 = vpack.c.b16 %v979, %v978
    %v1337 = vpack.c.b16 %v981, %v980
    %v1338 = vpack.c.b16 %v983, %v982
    %v1339 = vpack.c.b16 %v985, %v984
    %v1340 = vpack.c.b16 %v987, %v986
    %v1341 = vpack.c.b16 %v989, %v988
    %v1342 = vpack.c.b16 %v991, %v990
    %v1343 = vpack.c.b16 %v993, %v992
    %v1344 = vpack.c.b16 %v995, %v994
    %v1345 = vpack.c.b16 %v997, %v996
    %v1346 = vpack.c.b16 %v999, %v998
    %v1347 = vpack.c.b16 %v1001, %v1000
    %v1348 = vpack.c.b16 %v1003, %v1002
    %v1349 = vpack.c.b16 %v1005, %v1004
    %v1350 = vpack.c.b16 %v1007, %v1006
    %v1351 = vpack.c.b16 %v1009, %v1008
    %v1352 = vpack.c.b16 %v1011, %v1010
    %v1353 = vpack.c.b16 %v1013, %v1012
    %v1354 = vpack.c.b16 %v1015, %v1014
    %v1355 = vpack.c.b16 %v1017, %v1016
    %v1356 = vpack.c.b16 %v1019, %v1018
    %v1357 = vpack.c.b16 %v1021, %v1020
    %v1358 = vpack.c.b16 %v1023, %v1022
    %v1359 = vpack.c.b16 %v1025, %v1024
    %v1360 = vpack.c.b16 %v1027, %v1026
    %v1361 = vpack.c.b16 %v1029, %v1028
    %v1362 = vpack.c.b16 %v1031, %v1030
    %v1363 = vpack.c.b16 %v1033, %v1032
    %v1364 = vpack.c.b16 %v1035, %v1034
    %v1365 = vpack.c.b16 %v1037, %v1036
    %v1366 = vpack.c.b16 %v1039, %v1038
    %v1367 = vpack.c.b16 %v1041, %v1040
    %v1368 = vpack.c.b16 %v1043, %v1042
    %v1369 = vpack.c.b16 %v1045, %v1044
    %v1370 = vpack.c.b16 %v1047, %v1046
    %v1371 = vpack.c.b16 %v1049, %v1048
    %v1372 = vpack.c.b16 %v1051, %v1050
    %v1373 = vpack.c.b16 %v1053, %v1052
    %v1374 = vpack.c.b16 %v1055, %v1054
    %v1375 = vpack.c.b16 %v1057, %v1056
    %v1376 = vpack.c.b16 %v1059, %v1058
    %v1377 = vpack.c.b16 %v1061, %v1060
    %v1378 = vpack.c.b16 %v1063, %v1062
    %v1379 = vpack.c.b16 %v1065, %v1064
    %v1380 = vpack.c.b16 %v1067, %v1066
    %v1381 = vpack.c.b16 %v1069, %v1068
    %v1382 = vpack.c.b16 %v1071, %v1070
    %v1383 = vpack.c.b16 %v1073, %v1072
    %v1384 = vpack.c.b16 %v1075, %v1074
    %v1385 = vpack.c.b16 %v1077, %v1076
    %v1386 = vpack.c.b16 %v1079, %v1078
    %v1387 = vpack.c.b16 %v1081, %v1080
    %v1388 = vpack.c.b16 %v1083, %v1082
    %v1389 = vpack.c.b16 %v1085, %v1084
    %v1390 = vpack.c.b16 %v1087, %v1086
    %v1391 = vpack.c.b16 %v1089, %v1088
    %v1392 = vpack.c.b16 %v1091, %v1090
    %v1393 = vpack.c.b16 %v1093, %v1092
    %v1394 = vpack.c.b16 %v1095, %v1094
    %v1395 = vpack.c.b16 %v1097, %v1096
    %v1396 = vpack.c.b16 %v1099, %v1098
    %v1397 = vpack.c.b16 %v1101, %v1100
    %v1398 = vpack.c.b16 %v1103, %v1102
    %v1399 = vpack.c.b16 %v1105, %v1104
    %v1400 = vpack.c.b16 %v1107, %v1106
    %v1401 = vpack.c.b16 %v1109, %v1108
    %v1402 = vpack.c.b16 %v1111, %v1110
    %v1403 = vpack.c.b16 %v1113, %v1112
    %v1404 = vpack.c.b16 %v1115, %v1114
    %v1405 = vpack.c.b16 %v1117, %v1116
    %v1406 = vpack.c.b16 %v1119, %v1118
    %v1407 = vpack.c.b16 %v1121, %v1120
    %v1408 = vpack.c.b16 %v1123, %v1122
    %v1409 = vpack.c.b16 %v1125, %v1124
    %v1410 = vpack.c.b16 %v1127, %v1126
    %v1411 = vpack.c.b16 %v1129, %v1128
    %v1412 = vpack.c.b16 %v1131, %v1130
    %v1413 = vpack.c.b16 %v1133, %v1132
    %v1414 = vpack.c.b16 %v1135, %v1134
    %v1415 = vpack.c.b16 %v1137, %v1136
    %v1416 = vpack.c.b16 %v1139, %v1138
    %v1417 = vpack.c.b16 %v1141, %v1140
    %v1418 = vpack.c.b16 %v1143, %v1142
    %v1419 = vpack.c.b16 %v1145, %v1144
    %v1420 = vpack.c.b16 %v1147, %v1146
    %v1421 = vpack.c.b16 %v1149, %v1148
    %v1422 = vpack.c.b16 %v1151, %v1150
    %v1423 = vpack.c.b16 %v1153, %v1152
    %v1424 = vpack.c.b16 %v1155, %v1154
    %v1425 = vpack.c.b16 %v1157, %v1156
    %v1426 = vpack.c.b16 %v1159, %v1158
    %v1427 = vpack.c.b16 %v1161, %v1160
    %v1428 = vpack.c.b16 %v1163, %v1162
    %v1429 = vpack.c.b16 %v1165, %v1164
    %v1430 = vpack.c.b16 %v1167, %v1166
    %v1431 = vpack.c.b16 %v1169, %v1168
    %v1432 = vpack.c.b16 %v1171, %v1170
    %v1433 = vpack.c.b16 %v1173, %v1172
    %v1434 = vpack.c.b16 %v1175, %v1174
    %v1435 = vpack.c.b16 %v1177, %v1176
    %v1436 = vpack.c.b16 %v1179, %v1178
    %v1437 = vpack.c.b16 %v1181, %v1180
    %v1438 = vpack.c.b16 %v1183, %v1182
    %v1439 = vpack.c.b16 %v1185, %v1184
    %v1440 = vpack.c.b16 %v1187, %v1186
    %v1441 = vpack.c.b16 %v1189, %v1188
    %v1442 = vpack.c.b16 %v1191, %v1190
    %v1443 = vpack.c.b16 %v1193, %v1192
    %v1444 = vpack.c.b16 %v1195, %v1194
    %v1445 = vpack.c.b16 %v1197, %v1196
    %v1446 = vpack.c.b16 %v1199, %v1198
    %v1447 = vpack.c.b16 %v1201, %v1200
    %v1448 = vpack.c.b16 %v1203, %v1202
    %v1449 = vpack.c.b16 %v1205, %v1204
    %v1450 = vpack.c.b16 %v1207, %v1206
    %v1451 = vpack.c.b16 %v1209, %v1208
    %v1452 = vpack.c.b16 %v1211, %v1210
    %v1453 = vpack.c.b16 %v1213, %v1212
    %v1454 = vpack.c.b16 %v1215, %v1214
    %v1455 = vpack.c.b16 %v1217, %v1216
    %v1456 = vpack.c.b16 %v1219, %v1218
    %v1457 = vpack.c.b16 %v1221, %v1220
    %v1458 = vpack.c.b16 %v1223, %v1222
    %v1459 = vpack.c.b16 %v1225, %v1224
    %v1460 = vpack.c.b16 %v1227, %v1226
    %v1461 = vpack.c.b16 %v1229, %v1228
    %v1462 = vpack.c.b16 %v1231, %v1230
    %v1463 = vpack.c.b16 %v1233, %v1232
    %v1464 = vpack.c.b16 %v1235, %v1234
    %v1465 = vpack.c.b16 %v1237, %v1236
    %v1466 = vpack.c.b16 %v1239, %v1238
    %v1467 = vpack.c.b16 %v1241, %v1240
    %v1468 = vpack.c.b16 %v1243, %v1242
    %v1469 = vpack.c.b16 %v1245, %v1244
    %v1470 = vpack.c.b16 %v1247, %v1246
    %v1471 = vpack.c.b16 %v1249, %v1248
    %v1472 = vpack.c.b16 %v1251, %v1250
    %v1473 = vpack.c.b16 %v1253, %v1252
    %v1474 = vpack.c.b16 %v1255, %v1254
    %v1475 = vpack.c.b16 %v1257, %v1256
    %v1476 = vpack.c.b16 %v1259, %v1258
    %v1477 = vpack.c.b16 %v1261, %v1260
    %v1478 = vpack.c.b16 %v1263, %v1262
    %v1479 = vpack.c.b16 %v1265, %v1264
    %v1480 = vpack.c.b16 %v1267, %v1266
    %v1481 = vpack.c.b16 %v1269, %v1268
    %v1482 = vpack.c.b16 %v1271, %v1270
    %v1483 = vpack.c.b16 %v1273, %v1272
    %v1484 = vpack.c.b16 %v1275, %v1274
    %v1485 = vpack.c.b16 %v1277, %v1276
    %v1486 = vpack.c.b16 %v1279, %v1278
    %v1487 = vpack.c.b16 %v1281, %v1280
    %v1488 = vpack.c.b16 %v1283, %v1282
    %v1489 = vpack.c.b16 %v1285, %v1284
    %v1490 = vpack.c.b16 %v1287, %v1286
    %v1491 = vpack.c.b16 %v1289, %v1288
    %v1492 = vpack.c.b16 %v1291, %v1290
    %v1493 = vpack.c.b16 %v1293, %v1292
    %v1494 = vpack.c.b16 %v1295, %v1294
    %v1495 = vpack.c.b16 %v1297, %v1296
    %v1496 = vpack.c.b16 %v1299, %v1298
    %v1497 = vpack.c.b16 %v1301, %v1300
    %v1498 = vpack.c.b16 %v1303, %v1302
    %v1499 = vpack.c.b16 %v1305, %v1304
    %v1500 = vpack.c.b16 %v1307, %v1306
    %v1501 = vpack.c.b16 %v1309, %v1308
    %1694 = vmatprep.subr.bf16.mxu0 0
    %1695 = vmatpush1.bf16.msra.mxu0 %v1317
    %1696 = vmatprep.subr.bf16.mxu0 0
    %1697 = vmatpush1.bf16.msra.mxu0 %v1316
    %1698 = vmatprep.subr.bf16.mxu0 0
    %1699 = vmatpush1.bf16.msra.mxu0 %v1315
    %1700 = vmatprep.subr.bf16.mxu0 0
    %1701 = vmatpush1.bf16.msra.mxu0 %v1314
    %1702 = vmatprep.subr.bf16.mxu0 0
    %1703 = vmatpush1.bf16.msra.mxu0 %v1313
    %1704 = vmatprep.subr.bf16.mxu0 0
    %1705 = vmatpush1.bf16.msra.mxu0 %v1312
    %1706 = vmatprep.subr.bf16.mxu0 0
    %1707 = vmatpush1.bf16.msra.mxu0 %v1311
    %1708 = vmatprep.subr.bf16.mxu0 0
    %1709 = vmatpush1.bf16.msra.mxu0 %v1310
    %1710 = vmatprep.subr.bf16.mxu0 0
    %1711 = vmatpush2.bf16.msra.mxu0 %v1325
    %1712 = vmatprep.subr.bf16.mxu0 0
    %1713 = vmatpush2.bf16.msra.mxu0 %v1324
    %1714 = vmatprep.subr.bf16.mxu0 0
    %1715 = vmatpush2.bf16.msra.mxu0 %v1323
    %1716 = vmatprep.subr.bf16.mxu0 0
    %1717 = vmatpush2.bf16.msra.mxu0 %v1322
    %1718 = vmatprep.subr.bf16.mxu0 0
    %1719 = vmatpush2.bf16.msra.mxu0 %v1321
    %1720 = vmatprep.subr.bf16.mxu0 0
    %1721 = vmatpush2.bf16.msra.mxu0 %v1320
    %1722 = vmatprep.subr.bf16.mxu0 0
    %1723 = vmatpush2.bf16.msra.mxu0 %v1319
    %1724 = vmatprep.subr.bf16.mxu0 0
    %1725 = vmatpush2.bf16.msra.mxu0 %v1318
    %1726 = vmatprep.mubr.bf16.mxu0 %v495
    %1727 = vmatmul.mubr.bf16.gmra.mxu0 %v494
    %v1728 = vpop.f32.mrf.mxu0
    %v1729 = vadd.f32 %v456, %v1728
    %v1730 = vpop.f32.mrf.mxu0
    %v1731 = vpop.f32.mrf.mxu0
    %v1732 = vpop.f32.mrf.mxu0
    %1733 = vdwg.mxu0
    %1734 = vmatprep.subr.bf16.mxu0 0
    %1735 = vmatpush1.bf16.msra.mxu0 %v1333
    %1736 = vmatprep.subr.bf16.mxu0 0
    %1737 = vmatpush1.bf16.msra.mxu0 %v1332
    %1738 = vmatprep.subr.bf16.mxu0 0
    %1739 = vmatpush1.bf16.msra.mxu0 %v1331
    %1740 = vmatprep.subr.bf16.mxu0 0
    %1741 = vmatpush1.bf16.msra.mxu0 %v1330
    %1742 = vmatprep.subr.bf16.mxu0 0
    %1743 = vmatpush1.bf16.msra.mxu0 %v1329
    %1744 = vmatprep.subr.bf16.mxu0 0
    %1745 = vmatpush1.bf16.msra.mxu0 %v1328
    %1746 = vmatprep.subr.bf16.mxu0 0
    %1747 = vmatpush1.bf16.msra.mxu0 %v1327
    %1748 = vmatprep.subr.bf16.mxu0 0
    %1749 = vmatpush1.bf16.msra.mxu0 %v1326
    %1750 = vmatprep.subr.bf16.mxu0 0
    %1751 = vmatpush2.bf16.msra.mxu0 %v1341
    %1752 = vmatprep.subr.bf16.mxu0 0
    %1753 = vmatpush2.bf16.msra.mxu0 %v1340
    %1754 = vmatprep.subr.bf16.mxu0 0
    %1755 = vmatpush2.bf16.msra.mxu0 %v1339
    %1756 = vmatprep.subr.bf16.mxu0 0
    %1757 = vmatpush2.bf16.msra.mxu0 %v1338
    %1758 = vmatprep.subr.bf16.mxu0 0
    %1759 = vmatpush2.bf16.msra.mxu0 %v1337
    %1760 = vmatprep.subr.bf16.mxu0 0
    %1761 = vmatpush2.bf16.msra.mxu0 %v1336
    %1762 = vmatprep.subr.bf16.mxu0 0
    %1763 = vmatpush2.bf16.msra.mxu0 %v1335
    %1764 = vmatprep.subr.bf16.mxu0 0
    %1765 = vmatpush2.bf16.msra.mxu0 %v1334
    %1766 = vmatprep.mubr.bf16.mxu0 %v497
    %1767 = vmatmul.mubr.bf16.gmra.mxu0 %v496
    %v1768 = vpop.f32.mrf.mxu0
    %v1769 = vadd.f32 %v1729, %v1768
    %v1770 = vpop.f32.mrf.mxu0
    %v1771 = vpop.f32.mrf.mxu0
    %v1772 = vpop.f32.mrf.mxu0
    %1773 = vdwg.mxu0
    %1774 = vmatprep.subr.bf16.mxu0 0
    %1775 = vmatpush1.bf16.msra.mxu0 %v1349
    %1776 = vmatprep.subr.bf16.mxu0 0
    %1777 = vmatpush1.bf16.msra.mxu0 %v1348
    %1778 = vmatprep.subr.bf16.mxu0 0
    %1779 = vmatpush1.bf16.msra.mxu0 %v1347
    %1780 = vmatprep.subr.bf16.mxu0 0
    %1781 = vmatpush1.bf16.msra.mxu0 %v1346
    %1782 = vmatprep.subr.bf16.mxu0 0
    %1783 = vmatpush1.bf16.msra.mxu0 %v1345
    %1784 = vmatprep.subr.bf16.mxu0 0
    %1785 = vmatpush1.bf16.msra.mxu0 %v1344
    %1786 = vmatprep.subr.bf16.mxu0 0
    %1787 = vmatpush1.bf16.msra.mxu0 %v1343
    %1788 = vmatprep.subr.bf16.mxu0 0
    %1789 = vmatpush1.bf16.msra.mxu0 %v1342
    %1790 = vmatprep.subr.bf16.mxu0 0
    %1791 = vmatpush2.bf16.msra.mxu0 %v1357
    %1792 = vmatprep.subr.bf16.mxu0 0
    %1793 = vmatpush2.bf16.msra.mxu0 %v1356
    %1794 = vmatprep.subr.bf16.mxu0 0
    %1795 = vmatpush2.bf16.msra.mxu0 %v1355
    %1796 = vmatprep.subr.bf16.mxu0 0
    %1797 = vmatpush2.bf16.msra.mxu0 %v1354
    %1798 = vmatprep.subr.bf16.mxu0 0
    %1799 = vmatpush2.bf16.msra.mxu0 %v1353
    %1800 = vmatprep.subr.bf16.mxu0 0
    %1801 = vmatpush2.bf16.msra.mxu0 %v1352
    %1802 = vmatprep.subr.bf16.mxu0 0
    %1803 = vmatpush2.bf16.msra.mxu0 %v1351
    %1804 = vmatprep.subr.bf16.mxu0 0
    %1805 = vmatpush2.bf16.msra.mxu0 %v1350
    %1806 = vmatprep.mubr.bf16.mxu0 %v499
    %1807 = vmatmul.mubr.bf16.gmra.mxu0 %v498
    %v1808 = vpop.f32.mrf.mxu0
    %v1809 = vadd.f32 %v1769, %v1808
    %v1810 = vpop.f32.mrf.mxu0
    %v1811 = vpop.f32.mrf.mxu0
    %v1812 = vpop.f32.mrf.mxu0
    %1813 = vdwg.mxu0
    %1814 = vmatprep.subr.bf16.mxu0 0
    %1815 = vmatpush1.bf16.msra.mxu0 %v1365
    %1816 = vmatprep.subr.bf16.mxu0 0
    %1817 = vmatpush1.bf16.msra.mxu0 %v1364
    %1818 = vmatprep.subr.bf16.mxu0 0
    %1819 = vmatpush1.bf16.msra.mxu0 %v1363
    %1820 = vmatprep.subr.bf16.mxu0 0
    %1821 = vmatpush1.bf16.msra.mxu0 %v1362
    %1822 = vmatprep.subr.bf16.mxu0 0
    %1823 = vmatpush1.bf16.msra.mxu0 %v1361
    %1824 = vmatprep.subr.bf16.mxu0 0
    %1825 = vmatpush1.bf16.msra.mxu0 %v1360
    %1826 = vmatprep.subr.bf16.mxu0 0
    %1827 = vmatpush1.bf16.msra.mxu0 %v1359
    %1828 = vmatprep.subr.bf16.mxu0 0
    %1829 = vmatpush1.bf16.msra.mxu0 %v1358
    %1830 = vmatprep.subr.bf16.mxu0 0
    %1831 = vmatpush2.bf16.msra.mxu0 %v1373
    %1832 = vmatprep.subr.bf16.mxu0 0
    %1833 = vmatpush2.bf16.msra.mxu0 %v1372
    %1834 = vmatprep.subr.bf16.mxu0 0
    %1835 = vmatpush2.bf16.msra.mxu0 %v1371
    %1836 = vmatprep.subr.bf16.mxu0 0
    %1837 = vmatpush2.bf16.msra.mxu0 %v1370
    %1838 = vmatprep.subr.bf16.mxu0 0
    %1839 = vmatpush2.bf16.msra.mxu0 %v1369
    %1840 = vmatprep.subr.bf16.mxu0 0
    %1841 = vmatpush2.bf16.msra.mxu0 %v1368
    %1842 = vmatprep.subr.bf16.mxu0 0
    %1843 = vmatpush2.bf16.msra.mxu0 %v1367
    %1844 = vmatprep.subr.bf16.mxu0 0
    %1845 = vmatpush2.bf16.msra.mxu0 %v1366
    %1846 = vmatprep.mubr.bf16.mxu0 %v501
    %1847 = vmatmul.mubr.bf16.gmra.mxu0 %v500
    %v1848 = vpop.f32.mrf.mxu0
    %v1849 = vadd.f32 %v1809, %v1848
    %v1850 = vpop.f32.mrf.mxu0
    %v1851 = vpop.f32.mrf.mxu0
    %v1852 = vpop.f32.mrf.mxu0
    %1853 = vdwg.mxu0
    %1854 = vmatprep.subr.bf16.mxu0 0
    %1855 = vmatpush1.bf16.msra.mxu0 %v1381
    %1856 = vmatprep.subr.bf16.mxu0 0
    %1857 = vmatpush1.bf16.msra.mxu0 %v1380
    %1858 = vmatprep.subr.bf16.mxu0 0
    %1859 = vmatpush1.bf16.msra.mxu0 %v1379
    %1860 = vmatprep.subr.bf16.mxu0 0
    %1861 = vmatpush1.bf16.msra.mxu0 %v1378
    %1862 = vmatprep.subr.bf16.mxu0 0
    %1863 = vmatpush1.bf16.msra.mxu0 %v1377
    %1864 = vmatprep.subr.bf16.mxu0 0
    %1865 = vmatpush1.bf16.msra.mxu0 %v1376
    %1866 = vmatprep.subr.bf16.mxu0 0
    %1867 = vmatpush1.bf16.msra.mxu0 %v1375
    %1868 = vmatprep.subr.bf16.mxu0 0
    %1869 = vmatpush1.bf16.msra.mxu0 %v1374
    %1870 = vmatprep.subr.bf16.mxu0 0
    %1871 = vmatpush2.bf16.msra.mxu0 %v1389
    %1872 = vmatprep.subr.bf16.mxu0 0
    %1873 = vmatpush2.bf16.msra.mxu0 %v1388
    %1874 = vmatprep.subr.bf16.mxu0 0
    %1875 = vmatpush2.bf16.msra.mxu0 %v1387
    %1876 = vmatprep.subr.bf16.mxu0 0
    %1877 = vmatpush2.bf16.msra.mxu0 %v1386
    %1878 = vmatprep.subr.bf16.mxu0 0
    %1879 = vmatpush2.bf16.msra.mxu0 %v1385
    %1880 = vmatprep.subr.bf16.mxu0 0
    %1881 = vmatpush2.bf16.msra.mxu0 %v1384
    %1882 = vmatprep.subr.bf16.mxu0 0
    %1883 = vmatpush2.bf16.msra.mxu0 %v1383
    %1884 = vmatprep.subr.bf16.mxu0 0
    %1885 = vmatpush2.bf16.msra.mxu0 %v1382
    %1886 = vmatprep.mubr.bf16.mxu0 %v503
    %1887 = vmatmul.mubr.bf16.gmra.mxu0 %v502
    %v1888 = vpop.f32.mrf.mxu0
    %v1889 = vadd.f32 %v1849, %v1888
    %v1890 = vpop.f32.mrf.mxu0
    %v1891 = vpop.f32.mrf.mxu0
    %v1892 = vpop.f32.mrf.mxu0
    %1893 = vdwg.mxu0
    %1894 = vmatprep.subr.bf16.mxu0 0
    %1895 = vmatpush1.bf16.msra.mxu0 %v1397
    %1896 = vmatprep.subr.bf16.mxu0 0
    %1897 = vmatpush1.bf16.msra.mxu0 %v1396
    %1898 = vmatprep.subr.bf16.mxu0 0
    %1899 = vmatpush1.bf16.msra.mxu0 %v1395
    %1900 = vmatprep.subr.bf16.mxu0 0
    %1901 = vmatpush1.bf16.msra.mxu0 %v1394
    %1902 = vmatprep.subr.bf16.mxu0 0
    %1903 = vmatpush1.bf16.msra.mxu0 %v1393
    %1904 = vmatprep.subr.bf16.mxu0 0
    %1905 = vmatpush1.bf16.msra.mxu0 %v1392
    %1906 = vmatprep.subr.bf16.mxu0 0
    %1907 = vmatpush1.bf16.msra.mxu0 %v1391
    %1908 = vmatprep.subr.bf16.mxu0 0
    %1909 = vmatpush1.bf16.msra.mxu0 %v1390
    %1910 = vmatprep.subr.bf16.mxu0 0
    %1911 = vmatpush2.bf16.msra.mxu0 %v1405
    %1912 = vmatprep.subr.bf16.mxu0 0
    %1913 = vmatpush2.bf16.msra.mxu0 %v1404
    %1914 = vmatprep.subr.bf16.mxu0 0
    %1915 = vmatpush2.bf16.msra.mxu0 %v1403
    %1916 = vmatprep.subr.bf16.mxu0 0
    %1917 = vmatpush2.bf16.msra.mxu0 %v1402
    %1918 = vmatprep.subr.bf16.mxu0 0
    %1919 = vmatpush2.bf16.msra.mxu0 %v1401
    %1920 = vmatprep.subr.bf16.mxu0 0
    %1921 = vmatpush2.bf16.msra.mxu0 %v1400
    %1922 = vmatprep.subr.bf16.mxu0 0
    %1923 = vmatpush2.bf16.msra.mxu0 %v1399
    %1924 = vmatprep.subr.bf16.mxu0 0
    %1925 = vmatpush2.bf16.msra.mxu0 %v1398
    %1926 = vmatprep.mubr.bf16.mxu0 %v505
    %1927 = vmatmul.mubr.bf16.gmra.mxu0 %v504
    %v1928 = vpop.f32.mrf.mxu0
    %v1929 = vadd.f32 %v1889, %v1928
    %v1930 = vpop.f32.mrf.mxu0
    %v1931 = vpop.f32.mrf.mxu0
    %v1932 = vpop.f32.mrf.mxu0
    %1933 = vdwg.mxu0
    %1934 = vmatprep.subr.bf16.mxu0 0
    %1935 = vmatpush1.bf16.msra.mxu0 %v1413
    %1936 = vmatprep.subr.bf16.mxu0 0
    %1937 = vmatpush1.bf16.msra.mxu0 %v1412
    %1938 = vmatprep.subr.bf16.mxu0 0
    %1939 = vmatpush1.bf16.msra.mxu0 %v1411
    %1940 = vmatprep.subr.bf16.mxu0 0
    %1941 = vmatpush1.bf16.msra.mxu0 %v1410
    %1942 = vmatprep.subr.bf16.mxu0 0
    %1943 = vmatpush1.bf16.msra.mxu0 %v1409
    %1944 = vmatprep.subr.bf16.mxu0 0
    %1945 = vmatpush1.bf16.msra.mxu0 %v1408
    %1946 = vmatprep.subr.bf16.mxu0 0
    %1947 = vmatpush1.bf16.msra.mxu0 %v1407
    %1948 = vmatprep.subr.bf16.mxu0 0
    %1949 = vmatpush1.bf16.msra.mxu0 %v1406
    %1950 = vmatprep.subr.bf16.mxu0 0
    %1951 = vmatpush2.bf16.msra.mxu0 %v1421
    %1952 = vmatprep.subr.bf16.mxu0 0
    %1953 = vmatpush2.bf16.msra.mxu0 %v1420
    %1954 = vmatprep.subr.bf16.mxu0 0
    %1955 = vmatpush2.bf16.msra.mxu0 %v1419
    %1956 = vmatprep.subr.bf16.mxu0 0
    %1957 = vmatpush2.bf16.msra.mxu0 %v1418
    %1958 = vmatprep.subr.bf16.mxu0 0
    %1959 = vmatpush2.bf16.msra.mxu0 %v1417
    %1960 = vmatprep.subr.bf16.mxu0 0
    %1961 = vmatpush2.bf16.msra.mxu0 %v1416
    %1962 = vmatprep.subr.bf16.mxu0 0
    %1963 = vmatpush2.bf16.msra.mxu0 %v1415
    %1964 = vmatprep.subr.bf16.mxu0 0
    %1965 = vmatpush2.bf16.msra.mxu0 %v1414
    %1966 = vmatprep.mubr.bf16.mxu0 %v507
    %1967 = vmatmul.mubr.bf16.gmra.mxu0 %v506
    %v1968 = vpop.f32.mrf.mxu0
    %v1969 = vadd.f32 %v1929, %v1968
    %v1970 = vpop.f32.mrf.mxu0
    %v1971 = vpop.f32.mrf.mxu0
    %v1972 = vpop.f32.mrf.mxu0
    %1973 = vdwg.mxu0
    %1974 = vmatprep.subr.bf16.mxu0 0
    %1975 = vmatpush1.bf16.msra.mxu0 %v1429
    %1976 = vmatprep.subr.bf16.mxu0 0
    %1977 = vmatpush1.bf16.msra.mxu0 %v1428
    %1978 = vmatprep.subr.bf16.mxu0 0
    %1979 = vmatpush1.bf16.msra.mxu0 %v1427
    %1980 = vmatprep.subr.bf16.mxu0 0
    %1981 = vmatpush1.bf16.msra.mxu0 %v1426
    %1982 = vmatprep.subr.bf16.mxu0 0
    %1983 = vmatpush1.bf16.msra.mxu0 %v1425
    %1984 = vmatprep.subr.bf16.mxu0 0
    %1985 = vmatpush1.bf16.msra.mxu0 %v1424
    %1986 = vmatprep.subr.bf16.mxu0 0
    %1987 = vmatpush1.bf16.msra.mxu0 %v1423
    %1988 = vmatprep.subr.bf16.mxu0 0
    %1989 = vmatpush1.bf16.msra.mxu0 %v1422
    %1990 = vmatprep.subr.bf16.mxu0 0
    %1991 = vmatpush2.bf16.msra.mxu0 %v1437
    %1992 = vmatprep.subr.bf16.mxu0 0
    %1993 = vmatpush2.bf16.msra.mxu0 %v1436
    %1994 = vmatprep.subr.bf16.mxu0 0
    %1995 = vmatpush2.bf16.msra.mxu0 %v1435
    %1996 = vmatprep.subr.bf16.mxu0 0
    %1997 = vmatpush2.bf16.msra.mxu0 %v1434
    %1998 = vmatprep.subr.bf16.mxu0 0
    %1999 = vmatpush2.bf16.msra.mxu0 %v1433
    %2000 = vmatprep.subr.bf16.mxu0 0
    %2001 = vmatpush2.bf16.msra.mxu0 %v1432
    %2002 = vmatprep.subr.bf16.mxu0 0
    %2003 = vmatpush2.bf16.msra.mxu0 %v1431
    %2004 = vmatprep.subr.bf16.mxu0 0
    %2005 = vmatpush2.bf16.msra.mxu0 %v1430
    %2006 = vmatprep.mubr.bf16.mxu0 %v509
    %2007 = vmatmul.mubr.bf16.gmra.mxu0 %v508
    %v2008 = vpop.f32.mrf.mxu0
    %v2009 = vadd.f32 %v1969, %v2008
    %v2010 = vpop.f32.mrf.mxu0
    %v2011 = vpop.f32.mrf.mxu0
    %v2012 = vpop.f32.mrf.mxu0
    %2013 = vdwg.mxu0
    %2014 = vmatprep.subr.bf16.mxu0 0
    %2015 = vmatpush1.bf16.msra.mxu0 %v1445
    %2016 = vmatprep.subr.bf16.mxu0 0
    %2017 = vmatpush1.bf16.msra.mxu0 %v1444
    %2018 = vmatprep.subr.bf16.mxu0 0
    %2019 = vmatpush1.bf16.msra.mxu0 %v1443
    %2020 = vmatprep.subr.bf16.mxu0 0
    %2021 = vmatpush1.bf16.msra.mxu0 %v1442
    %2022 = vmatprep.subr.bf16.mxu0 0
    %2023 = vmatpush1.bf16.msra.mxu0 %v1441
    %2024 = vmatprep.subr.bf16.mxu0 0
    %2025 = vmatpush1.bf16.msra.mxu0 %v1440
    %2026 = vmatprep.subr.bf16.mxu0 0
    %2027 = vmatpush1.bf16.msra.mxu0 %v1439
    %2028 = vmatprep.subr.bf16.mxu0 0
    %2029 = vmatpush1.bf16.msra.mxu0 %v1438
    %2030 = vmatprep.subr.bf16.mxu0 0
    %2031 = vmatpush2.bf16.msra.mxu0 %v1453
    %2032 = vmatprep.subr.bf16.mxu0 0
    %2033 = vmatpush2.bf16.msra.mxu0 %v1452
    %2034 = vmatprep.subr.bf16.mxu0 0
    %2035 = vmatpush2.bf16.msra.mxu0 %v1451
    %2036 = vmatprep.subr.bf16.mxu0 0
    %2037 = vmatpush2.bf16.msra.mxu0 %v1450
    %2038 = vmatprep.subr.bf16.mxu0 0
    %2039 = vmatpush2.bf16.msra.mxu0 %v1449
    %2040 = vmatprep.subr.bf16.mxu0 0
    %2041 = vmatpush2.bf16.msra.mxu0 %v1448
    %2042 = vmatprep.subr.bf16.mxu0 0
    %2043 = vmatpush2.bf16.msra.mxu0 %v1447
    %2044 = vmatprep.subr.bf16.mxu0 0
    %2045 = vmatpush2.bf16.msra.mxu0 %v1446
    %2046 = vmatprep.mubr.bf16.mxu0 %v511
    %2047 = vmatmul.mubr.bf16.gmra.mxu0 %v510
    %v2048 = vpop.f32.mrf.mxu0
    %v2049 = vadd.f32 %v2009, %v2048
    %v2050 = vpop.f32.mrf.mxu0
    %v2051 = vpop.f32.mrf.mxu0
    %v2052 = vpop.f32.mrf.mxu0
    %2053 = vdwg.mxu0
    %2054 = vmatprep.subr.bf16.mxu0 0
    %2055 = vmatpush1.bf16.msra.mxu0 %v1461
    %2056 = vmatprep.subr.bf16.mxu0 0
    %2057 = vmatpush1.bf16.msra.mxu0 %v1460
    %2058 = vmatprep.subr.bf16.mxu0 0
    %2059 = vmatpush1.bf16.msra.mxu0 %v1459
    %2060 = vmatprep.subr.bf16.mxu0 0
    %2061 = vmatpush1.bf16.msra.mxu0 %v1458
    %2062 = vmatprep.subr.bf16.mxu0 0
    %2063 = vmatpush1.bf16.msra.mxu0 %v1457
    %2064 = vmatprep.subr.bf16.mxu0 0
    %2065 = vmatpush1.bf16.msra.mxu0 %v1456
    %2066 = vmatprep.subr.bf16.mxu0 0
    %2067 = vmatpush1.bf16.msra.mxu0 %v1455
    %2068 = vmatprep.subr.bf16.mxu0 0
    %2069 = vmatpush1.bf16.msra.mxu0 %v1454
    %2070 = vmatprep.subr.bf16.mxu0 0
    %2071 = vmatpush2.bf16.msra.mxu0 %v1469
    %2072 = vmatprep.subr.bf16.mxu0 0
    %2073 = vmatpush2.bf16.msra.mxu0 %v1468
    %2074 = vmatprep.subr.bf16.mxu0 0
    %2075 = vmatpush2.bf16.msra.mxu0 %v1467
    %2076 = vmatprep.subr.bf16.mxu0 0
    %2077 = vmatpush2.bf16.msra.mxu0 %v1466
    %2078 = vmatprep.subr.bf16.mxu0 0
    %2079 = vmatpush2.bf16.msra.mxu0 %v1465
    %2080 = vmatprep.subr.bf16.mxu0 0
    %2081 = vmatpush2.bf16.msra.mxu0 %v1464
    %2082 = vmatprep.subr.bf16.mxu0 0
    %2083 = vmatpush2.bf16.msra.mxu0 %v1463
    %2084 = vmatprep.subr.bf16.mxu0 0
    %2085 = vmatpush2.bf16.msra.mxu0 %v1462
    %2086 = vmatprep.mubr.bf16.mxu0 %v513
    %2087 = vmatmul.mubr.bf16.gmra.mxu0 %v512
    %v2088 = vpop.f32.mrf.mxu0
    %v2089 = vadd.f32 %v2049, %v2088
    %v2090 = vpop.f32.mrf.mxu0
    %v2091 = vpop.f32.mrf.mxu0
    %v2092 = vpop.f32.mrf.mxu0
    %2093 = vdwg.mxu0
    %2094 = vmatprep.subr.bf16.mxu0 0
    %2095 = vmatpush1.bf16.msra.mxu0 %v1477
    %2096 = vmatprep.subr.bf16.mxu0 0
    %2097 = vmatpush1.bf16.msra.mxu0 %v1476
    %2098 = vmatprep.subr.bf16.mxu0 0
    %2099 = vmatpush1.bf16.msra.mxu0 %v1475
    %2100 = vmatprep.subr.bf16.mxu0 0
    %2101 = vmatpush1.bf16.msra.mxu0 %v1474
    %2102 = vmatprep.subr.bf16.mxu0 0
    %2103 = vmatpush1.bf16.msra.mxu0 %v1473
    %2104 = vmatprep.subr.bf16.mxu0 0
    %2105 = vmatpush1.bf16.msra.mxu0 %v1472
    %2106 = vmatprep.subr.bf16.mxu0 0
    %2107 = vmatpush1.bf16.msra.mxu0 %v1471
    %2108 = vmatprep.subr.bf16.mxu0 0
    %2109 = vmatpush1.bf16.msra.mxu0 %v1470
    %2110 = vmatprep.subr.bf16.mxu0 0
    %2111 = vmatpush2.bf16.msra.mxu0 %v1485
    %2112 = vmatprep.subr.bf16.mxu0 0
    %2113 = vmatpush2.bf16.msra.mxu0 %v1484
    %2114 = vmatprep.subr.bf16.mxu0 0
    %2115 = vmatpush2.bf16.msra.mxu0 %v1483
    %2116 = vmatprep.subr.bf16.mxu0 0
    %2117 = vmatpush2.bf16.msra.mxu0 %v1482
    %2118 = vmatprep.subr.bf16.mxu0 0
    %2119 = vmatpush2.bf16.msra.mxu0 %v1481
    %2120 = vmatprep.subr.bf16.mxu0 0
    %2121 = vmatpush2.bf16.msra.mxu0 %v1480
    %2122 = vmatprep.subr.bf16.mxu0 0
    %2123 = vmatpush2.bf16.msra.mxu0 %v1479
    %2124 = vmatprep.subr.bf16.mxu0 0
    %2125 = vmatpush2.bf16.msra.mxu0 %v1478
    %2126 = vmatprep.mubr.bf16.mxu0 %v515
    %2127 = vmatmul.mubr.bf16.gmra.mxu0 %v514
    %v2128 = vpop.f32.mrf.mxu0
    %v2129 = vadd.f32 %v2089, %v2128
    %v2130 = vpop.f32.mrf.mxu0
    %v2131 = vpop.f32.mrf.mxu0
    %v2132 = vpop.f32.mrf.mxu0
    %2133 = vdwg.mxu0
    %2134 = vmatprep.subr.bf16.mxu0 0
    %2135 = vmatpush1.bf16.msra.mxu0 %v1493
    %2136 = vmatprep.subr.bf16.mxu0 0
    %2137 = vmatpush1.bf16.msra.mxu0 %v1492
    %2138 = vmatprep.subr.bf16.mxu0 0
    %2139 = vmatpush1.bf16.msra.mxu0 %v1491
    %2140 = vmatprep.subr.bf16.mxu0 0
    %2141 = vmatpush1.bf16.msra.mxu0 %v1490
    %2142 = vmatprep.subr.bf16.mxu0 0
    %2143 = vmatpush1.bf16.msra.mxu0 %v1489
    %2144 = vmatprep.subr.bf16.mxu0 0
    %2145 = vmatpush1.bf16.msra.mxu0 %v1488
    %2146 = vmatprep.subr.bf16.mxu0 0
    %2147 = vmatpush1.bf16.msra.mxu0 %v1487
    %2148 = vmatprep.subr.bf16.mxu0 0
    %2149 = vmatpush1.bf16.msra.mxu0 %v1486
    %2150 = vmatprep.subr.bf16.mxu0 0
    %2151 = vmatpush2.bf16.msra.mxu0 %v1501
    %2152 = vmatprep.subr.bf16.mxu0 0
    %2153 = vmatpush2.bf16.msra.mxu0 %v1500
    %2154 = vmatprep.subr.bf16.mxu0 0
    %2155 = vmatpush2.bf16.msra.mxu0 %v1499
    %2156 = vmatprep.subr.bf16.mxu0 0
    %2157 = vmatpush2.bf16.msra.mxu0 %v1498
    %2158 = vmatprep.subr.bf16.mxu0 0
    %2159 = vmatpush2.bf16.msra.mxu0 %v1497
    %2160 = vmatprep.subr.bf16.mxu0 0
    %2161 = vmatpush2.bf16.msra.mxu0 %v1496
    %2162 = vmatprep.subr.bf16.mxu0 0
    %2163 = vmatpush2.bf16.msra.mxu0 %v1495
    %2164 = vmatprep.subr.bf16.mxu0 0
    %2165 = vmatpush2.bf16.msra.mxu0 %v1494
    %2166 = vmatprep.mubr.bf16.mxu0 %v517
    %2167 = vmatmul.mubr.bf16.gmra.mxu0 %v516
    %v2168 = vpop.f32.mrf.mxu0
    %v2169 = vadd.f32 %v2129, %v2168
    %v2170 = vpop.f32.mrf.mxu0
    %v2171 = vpop.f32.mrf.mxu0
    %v2172 = vpop.f32.mrf.mxu0
    %2173 = vdwg.mxu0
    %vm2174 = vcmp.gt.f32.partialorder %v2169, 0.0
    %v2175 = vmin.f32 %v2169, 0.0
    %v2176 = vmul.f32 %v2175, 1.442695
    %v2177 = vpow.pop %v2176
    %v2178 = vsub.f32 %v2177, 1.0
    %v2179 = vsel %vm2174, %v2169, %v2178
    %v2180 = vld [vmem:[%s0 + $0x60] sm:$0xff]
    %v2181 = vld [vmem:[%s0 + $0x68] sm:$0xff]
    %v2182 = vld [vmem:[%s0 + $0x70] sm:$0xff]
    %v2183 = vld [vmem:[%s0 + $0x78] sm:$0xff]
    %v2184 = vld [vmem:[%s0 + $0x80] sm:$0xff]
    %v2185 = vld [vmem:[%s0 + $0x88] sm:$0xff]
    %v2186 = vld [vmem:[%s0 + $0x90] sm:$0xff]
    %v2187 = vld [vmem:[%s0 + $0x98] sm:$0xff]
    %v2188 = vld [vmem:[%s0 + $0xa0] sm:$0xff]
    %v2189 = vld [vmem:[%s0 + $0xa8] sm:$0xff]
    %v2190 = vld [vmem:[%s0 + $0xb0] sm:$0xff]
    %v2191 = vld [vmem:[%s0 + $0xb8] sm:$0xff]
    %v2204 = vunpack.c.l.b16 %v2180
    %v2205 = vunpack.c.h.b16 %v2180
    %v2206 = vunpack.c.l.b16 %v2181
    %v2207 = vunpack.c.h.b16 %v2181
    %v2208 = vunpack.c.l.b16 %v2182
    %v2209 = vunpack.c.h.b16 %v2182
    %v2210 = vunpack.c.l.b16 %v2183
    %v2211 = vunpack.c.h.b16 %v2183
    %v2212 = vunpack.c.l.b16 %v2184
    %v2213 = vunpack.c.h.b16 %v2184
    %v2214 = vunpack.c.l.b16 %v2185
    %v2215 = vunpack.c.h.b16 %v2185
    %v2216 = vunpack.c.l.b16 %v2186
    %v2217 = vunpack.c.h.b16 %v2186
    %v2218 = vunpack.c.l.b16 %v2187
    %v2219 = vunpack.c.h.b16 %v2187
    %v2220 = vunpack.c.l.b16 %v2188
    %v2221 = vunpack.c.h.b16 %v2188
    %v2222 = vunpack.c.l.b16 %v2189
    %v2223 = vunpack.c.h.b16 %v2189
    %v2224 = vunpack.c.l.b16 %v2190
    %v2225 = vunpack.c.h.b16 %v2190
    %v2226 = vunpack.c.l.b16 %v2191
    %v2227 = vunpack.c.h.b16 %v2191
    %v2228 = vpack.c.b16 %v2204, %v2204
    %v2229 = vpack.c.b16 %v2205, %v2205
    %v2230 = vpack.c.b16 %v2206, %v2206
    %v2231 = vpack.c.b16 %v2207, %v2207
    %v2232 = vpack.c.b16 %v2208, %v2208
    %v2233 = vpack.c.b16 %v2209, %v2209
    %v2234 = vpack.c.b16 %v2210, %v2210
    %v2235 = vpack.c.b16 %v2211, %v2211
    %v2236 = vpack.c.b16 %v2212, %v2212
    %v2237 = vpack.c.b16 %v2213, %v2213
    %v2238 = vpack.c.b16 %v2214, %v2214
    %v2239 = vpack.c.b16 %v2215, %v2215
    %v2240 = vpack.c.b16 %v2216, %v2216
    %v2241 = vpack.c.b16 %v2217, %v2217
    %v2242 = vpack.c.b16 %v2218, %v2218
    %v2243 = vpack.c.b16 %v2219, %v2219
    %v2244 = vpack.c.b16 %v2220, %v2220
    %v2245 = vpack.c.b16 %v2221, %v2221
    %v2246 = vpack.c.b16 %v2222, %v2222
    %v2247 = vpack.c.b16 %v2223, %v2223
    %v2248 = vpack.c.b16 %v2224, %v2224
    %v2249 = vpack.c.b16 %v2225, %v2225
    %v2250 = vpack.c.b16 %v2226, %v2226
    %v2251 = vpack.c.b16 %v2227, %v2227
    %2276 = vmatprep.subr.bf16.mxu0 0
    %2277 = vmatpush1.bf16.msra.mxu0 %v1317
    %2278 = vmatprep.subr.bf16.mxu0 0
    %2279 = vmatpush1.bf16.msra.mxu0 %v1316
    %2280 = vmatprep.subr.bf16.mxu0 0
    %2281 = vmatpush1.bf16.msra.mxu0 %v1315
    %2282 = vmatprep.subr.bf16.mxu0 0
    %2283 = vmatpush1.bf16.msra.mxu0 %v1314
    %2284 = vmatprep.subr.bf16.mxu0 0
    %2285 = vmatpush1.bf16.msra.mxu0 %v1313
    %2286 = vmatprep.subr.bf16.mxu0 0
    %2287 = vmatpush1.bf16.msra.mxu0 %v1312
    %2288 = vmatprep.subr.bf16.mxu0 0
    %2289 = vmatpush1.bf16.msra.mxu0 %v1311
    %2290 = vmatprep.subr.bf16.mxu0 0
    %2291 = vmatpush1.bf16.msra.mxu0 %v1310
    %2292 = vmatprep.subr.bf16.mxu0 0
    %2293 = vmatpush2.bf16.msra.mxu0 %v1325
    %2294 = vmatprep.subr.bf16.mxu0 0
    %2295 = vmatpush2.bf16.msra.mxu0 %v1324
    %2296 = vmatprep.subr.bf16.mxu0 0
    %2297 = vmatpush2.bf16.msra.mxu0 %v1323
    %2298 = vmatprep.subr.bf16.mxu0 0
    %2299 = vmatpush2.bf16.msra.mxu0 %v1322
    %2300 = vmatprep.subr.bf16.mxu0 0
    %2301 = vmatpush2.bf16.msra.mxu0 %v1321
    %2302 = vmatprep.subr.bf16.mxu0 0
    %2303 = vmatpush2.bf16.msra.mxu0 %v1320
    %2304 = vmatprep.subr.bf16.mxu0 0
    %2305 = vmatpush2.bf16.msra.mxu0 %v1319
    %2306 = vmatprep.subr.bf16.mxu0 0
    %2307 = vmatpush2.bf16.msra.mxu0 %v1318
    %2308 = vmatprep.mubr.bf16.mxu0 %v2229
    %2309 = vmatmul.mubr.bf16.gmra.mxu0 %v2228
    %v2310 = vpop.f32.mrf.mxu0
    %v2311 = vadd.f32 %v456, %v2310
    %v2312 = vpop.f32.mrf.mxu0
    %v2313 = vpop.f32.mrf.mxu0
    %v2314 = vpop.f32.mrf.mxu0
    %2315 = vdwg.mxu0
    %2316 = vmatprep.subr.bf16.mxu0 0
    %2317 = vmatpush1.bf16.msra.mxu0 %v1333
    %2318 = vmatprep.subr.bf16.mxu0 0
    %2319 = vmatpush1.bf16.msra.mxu0 %v1332
    %2320 = vmatprep.subr.bf16.mxu0 0
    %2321 = vmatpush1.bf16.msra.mxu0 %v1331
    %2322 = vmatprep.subr.bf16.mxu0 0
    %2323 = vmatpush1.bf16.msra.mxu0 %v1330
    %2324 = vmatprep.subr.bf16.mxu0 0
    %2325 = vmatpush1.bf16.msra.mxu0 %v1329
    %2326 = vmatprep.subr.bf16.mxu0 0
    %2327 = vmatpush1.bf16.msra.mxu0 %v1328
    %2328 = vmatprep.subr.bf16.mxu0 0
    %2329 = vmatpush1.bf16.msra.mxu0 %v1327
    %2330 = vmatprep.subr.bf16.mxu0 0
    %2331 = vmatpush1.bf16.msra.mxu0 %v1326
    %2332 = vmatprep.subr.bf16.mxu0 0
    %2333 = vmatpush2.bf16.msra.mxu0 %v1341
    %2334 = vmatprep.subr.bf16.mxu0 0
    %2335 = vmatpush2.bf16.msra.mxu0 %v1340
    %2336 = vmatprep.subr.bf16.mxu0 0
    %2337 = vmatpush2.bf16.msra.mxu0 %v1339
    %2338 = vmatprep.subr.bf16.mxu0 0
    %2339 = vmatpush2.bf16.msra.mxu0 %v1338
    %2340 = vmatprep.subr.bf16.mxu0 0
    %2341 = vmatpush2.bf16.msra.mxu0 %v1337
    %2342 = vmatprep.subr.bf16.mxu0 0
    %2343 = vmatpush2.bf16.msra.mxu0 %v1336
    %2344 = vmatprep.subr.bf16.mxu0 0
    %2345 = vmatpush2.bf16.msra.mxu0 %v1335
    %2346 = vmatprep.subr.bf16.mxu0 0
    %2347 = vmatpush2.bf16.msra.mxu0 %v1334
    %2348 = vmatprep.mubr.bf16.mxu0 %v2231
    %2349 = vmatmul.mubr.bf16.gmra.mxu0 %v2230
    %v2350 = vpop.f32.mrf.mxu0
    %v2351 = vadd.f32 %v2311, %v2350
    %v2352 = vpop.f32.mrf.mxu0
    %v2353 = vpop.f32.mrf.mxu0
    %v2354 = vpop.f32.mrf.mxu0
    %2355 = vdwg.mxu0
    %2356 = vmatprep.subr.bf16.mxu0 0
    %2357 = vmatpush1.bf16.msra.mxu0 %v1349
    %2358 = vmatprep.subr.bf16.mxu0 0
    %2359 = vmatpush1.bf16.msra.mxu0 %v1348
    %2360 = vmatprep.subr.bf16.mxu0 0
    %2361 = vmatpush1.bf16.msra.mxu0 %v1347
    %2362 = vmatprep.subr.bf16.mxu0 0
    %2363 = vmatpush1.bf16.msra.mxu0 %v1346
    %2364 = vmatprep.subr.bf16.mxu0 0
    %2365 = vmatpush1.bf16.msra.mxu0 %v1345
    %2366 = vmatprep.subr.bf16.mxu0 0
    %2367 = vmatpush1.bf16.msra.mxu0 %v1344
    %2368 = vmatprep.subr.bf16.mxu0 0
    %2369 = vmatpush1.bf16.msra.mxu0 %v1343
    %2370 = vmatprep.subr.bf16.mxu0 0
    %2371 = vmatpush1.bf16.msra.mxu0 %v1342
    %2372 = vmatprep.subr.bf16.mxu0 0
    %2373 = vmatpush2.bf16.msra.mxu0 %v1357
    %2374 = vmatprep.subr.bf16.mxu0 0
    %2375 = vmatpush2.bf16.msra.mxu0 %v1356
    %2376 = vmatprep.subr.bf16.mxu0 0
    %2377 = vmatpush2.bf16.msra.mxu0 %v1355
    %2378 = vmatprep.subr.bf16.mxu0 0
    %2379 = vmatpush2.bf16.msra.mxu0 %v1354
    %2380 = vmatprep.subr.bf16.mxu0 0
    %2381 = vmatpush2.bf16.msra.mxu0 %v1353
    %2382 = vmatprep.subr.bf16.mxu0 0
    %2383 = vmatpush2.bf16.msra.mxu0 %v1352
    %2384 = vmatprep.subr.bf16.mxu0 0
    %2385 = vmatpush2.bf16.msra.mxu0 %v1351
    %2386 = vmatprep.subr.bf16.mxu0 0
    %2387 = vmatpush2.bf16.msra.mxu0 %v1350
    %2388 = vmatprep.mubr.bf16.mxu0 %v2233
    %2389 = vmatmul.mubr.bf16.gmra.mxu0 %v2232
    %v2390 = vpop.f32.mrf.mxu0
    %v2391 = vadd.f32 %v2351, %v2390
    %v2392 = vpop.f32.mrf.mxu0
    %v2393 = vpop.f32.mrf.mxu0
    %v2394 = vpop.f32.mrf.mxu0
    %2395 = vdwg.mxu0
    %2396 = vmatprep.subr.bf16.mxu0 0
    %2397 = vmatpush1.bf16.msra.mxu0 %v1365
    %2398 = vmatprep.subr.bf16.mxu0 0
    %2399 = vmatpush1.bf16.msra.mxu0 %v1364
    %2400 = vmatprep.subr.bf16.mxu0 0
    %2401 = vmatpush1.bf16.msra.mxu0 %v1363
    %2402 = vmatprep.subr.bf16.mxu0 0
    %2403 = vmatpush1.bf16.msra.mxu0 %v1362
    %2404 = vmatprep.subr.bf16.mxu0 0
    %2405 = vmatpush1.bf16.msra.mxu0 %v1361
    %2406 = vmatprep.subr.bf16.mxu0 0
    %2407 = vmatpush1.bf16.msra.mxu0 %v1360
    %2408 = vmatprep.subr.bf16.mxu0 0
    %2409 = vmatpush1.bf16.msra.mxu0 %v1359
    %2410 = vmatprep.subr.bf16.mxu0 0
    %2411 = vmatpush1.bf16.msra.mxu0 %v1358
    %2412 = vmatprep.subr.bf16.mxu0 0
    %2413 = vmatpush2.bf16.msra.mxu0 %v1373
    %2414 = vmatprep.subr.bf16.mxu0 0
    %2415 = vmatpush2.bf16.msra.mxu0 %v1372
    %2416 = vmatprep.subr.bf16.mxu0 0
    %2417 = vmatpush2.bf16.msra.mxu0 %v1371
    %2418 = vmatprep.subr.bf16.mxu0 0
    %2419 = vmatpush2.bf16.msra.mxu0 %v1370
    %2420 = vmatprep.subr.bf16.mxu0 0
    %2421 = vmatpush2.bf16.msra.mxu0 %v1369
    %2422 = vmatprep.subr.bf16.mxu0 0
    %2423 = vmatpush2.bf16.msra.mxu0 %v1368
    %2424 = vmatprep.subr.bf16.mxu0 0
    %2425 = vmatpush2.bf16.msra.mxu0 %v1367
    %2426 = vmatprep.subr.bf16.mxu0 0
    %2427 = vmatpush2.bf16.msra.mxu0 %v1366
    %2428 = vmatprep.mubr.bf16.mxu0 %v2235
    %2429 = vmatmul.mubr.bf16.gmra.mxu0 %v2234
    %v2430 = vpop.f32.mrf.mxu0
    %v2431 = vadd.f32 %v2391, %v2430
    %v2432 = vpop.f32.mrf.mxu0
    %v2433 = vpop.f32.mrf.mxu0
    %v2434 = vpop.f32.mrf.mxu0
    %2435 = vdwg.mxu0
    %2436 = vmatprep.subr.bf16.mxu0 0
    %2437 = vmatpush1.bf16.msra.mxu0 %v1381
    %2438 = vmatprep.subr.bf16.mxu0 0
    %2439 = vmatpush1.bf16.msra.mxu0 %v1380
    %2440 = vmatprep.subr.bf16.mxu0 0
    %2441 = vmatpush1.bf16.msra.mxu0 %v1379
    %2442 = vmatprep.subr.bf16.mxu0 0
    %2443 = vmatpush1.bf16.msra.mxu0 %v1378
    %2444 = vmatprep.subr.bf16.mxu0 0
    %2445 = vmatpush1.bf16.msra.mxu0 %v1377
    %2446 = vmatprep.subr.bf16.mxu0 0
    %2447 = vmatpush1.bf16.msra.mxu0 %v1376
    %2448 = vmatprep.subr.bf16.mxu0 0
    %2449 = vmatpush1.bf16.msra.mxu0 %v1375
    %2450 = vmatprep.subr.bf16.mxu0 0
    %2451 = vmatpush1.bf16.msra.mxu0 %v1374
    %2452 = vmatprep.subr.bf16.mxu0 0
    %2453 = vmatpush2.bf16.msra.mxu0 %v1389
    %2454 = vmatprep.subr.bf16.mxu0 0
    %2455 = vmatpush2.bf16.msra.mxu0 %v1388
    %2456 = vmatprep.subr.bf16.mxu0 0
    %2457 = vmatpush2.bf16.msra.mxu0 %v1387
    %2458 = vmatprep.subr.bf16.mxu0 0
    %2459 = vmatpush2.bf16.msra.mxu0 %v1386
    %2460 = vmatprep.subr.bf16.mxu0 0
    %2461 = vmatpush2.bf16.msra.mxu0 %v1385
    %2462 = vmatprep.subr.bf16.mxu0 0
    %2463 = vmatpush2.bf16.msra.mxu0 %v1384
    %2464 = vmatprep.subr.bf16.mxu0 0
    %2465 = vmatpush2.bf16.msra.mxu0 %v1383
    %2466 = vmatprep.subr.bf16.mxu0 0
    %2467 = vmatpush2.bf16.msra.mxu0 %v1382
    %2468 = vmatprep.mubr.bf16.mxu0 %v2237
    %2469 = vmatmul.mubr.bf16.gmra.mxu0 %v2236
    %v2470 = vpop.f32.mrf.mxu0
    %v2471 = vadd.f32 %v2431, %v2470
    %v2472 = vpop.f32.mrf.mxu0
    %v2473 = vpop.f32.mrf.mxu0
    %v2474 = vpop.f32.mrf.mxu0
    %2475 = vdwg.mxu0
    %2476 = vmatprep.subr.bf16.mxu0 0
    %2477 = vmatpush1.bf16.msra.mxu0 %v1397
    %2478 = vmatprep.subr.bf16.mxu0 0
    %2479 = vmatpush1.bf16.msra.mxu0 %v1396
    %2480 = vmatprep.subr.bf16.mxu0 0
    %2481 = vmatpush1.bf16.msra.mxu0 %v1395
    %2482 = vmatprep.subr.bf16.mxu0 0
    %2483 = vmatpush1.bf16.msra.mxu0 %v1394
    %2484 = vmatprep.subr.bf16.mxu0 0
    %2485 = vmatpush1.bf16.msra.mxu0 %v1393
    %2486 = vmatprep.subr.bf16.mxu0 0
    %2487 = vmatpush1.bf16.msra.mxu0 %v1392
    %2488 = vmatprep.subr.bf16.mxu0 0
    %2489 = vmatpush1.bf16.msra.mxu0 %v1391
    %2490 = vmatprep.subr.bf16.mxu0 0
    %2491 = vmatpush1.bf16.msra.mxu0 %v1390
    %2492 = vmatprep.subr.bf16.mxu0 0
    %2493 = vmatpush2.bf16.msra.mxu0 %v1405
    %2494 = vmatprep.subr.bf16.mxu0 0
    %2495 = vmatpush2.bf16.msra.mxu0 %v1404
    %2496 = vmatprep.subr.bf16.mxu0 0
    %2497 = vmatpush2.bf16.msra.mxu0 %v1403
    %2498 = vmatprep.subr.bf16.mxu0 0
    %2499 = vmatpush2.bf16.msra.mxu0 %v1402
    %2500 = vmatprep.subr.bf16.mxu0 0
    %2501 = vmatpush2.bf16.msra.mxu0 %v1401
    %2502 = vmatprep.subr.bf16.mxu0 0
    %2503 = vmatpush2.bf16.msra.mxu0 %v1400
    %2504 = vmatprep.subr.bf16.mxu0 0
    %2505 = vmatpush2.bf16.msra.mxu0 %v1399
    %2506 = vmatprep.subr.bf16.mxu0 0
    %2507 = vmatpush2.bf16.msra.mxu0 %v1398
    %2508 = vmatprep.mubr.bf16.mxu0 %v2239
    %2509 = vmatmul.mubr.bf16.gmra.mxu0 %v2238
    %v2510 = vpop.f32.mrf.mxu0
    %v2511 = vadd.f32 %v2471, %v2510
    %v2512 = vpop.f32.mrf.mxu0
    %v2513 = vpop.f32.mrf.mxu0
    %v2514 = vpop.f32.mrf.mxu0
    %2515 = vdwg.mxu0
    %2516 = vmatprep.subr.bf16.mxu0 0
    %2517 = vmatpush1.bf16.msra.mxu0 %v1413
    %2518 = vmatprep.subr.bf16.mxu0 0
    %2519 = vmatpush1.bf16.msra.mxu0 %v1412
    %2520 = vmatprep.subr.bf16.mxu0 0
    %2521 = vmatpush1.bf16.msra.mxu0 %v1411
    %2522 = vmatprep.subr.bf16.mxu0 0
    %2523 = vmatpush1.bf16.msra.mxu0 %v1410
    %2524 = vmatprep.subr.bf16.mxu0 0
    %2525 = vmatpush1.bf16.msra.mxu0 %v1409
    %2526 = vmatprep.subr.bf16.mxu0 0
    %2527 = vmatpush1.bf16.msra.mxu0 %v1408
    %2528 = vmatprep.subr.bf16.mxu0 0
    %2529 = vmatpush1.bf16.msra.mxu0 %v1407
    %2530 = vmatprep.subr.bf16.mxu0 0
    %2531 = vmatpush1.bf16.msra.mxu0 %v1406
    %2532 = vmatprep.subr.bf16.mxu0 0
    %2533 = vmatpush2.bf16.msra.mxu0 %v1421
    %2534 = vmatprep.subr.bf16.mxu0 0
    %2535 = vmatpush2.bf16.msra.mxu0 %v1420
    %2536 = vmatprep.subr.bf16.mxu0 0
    %2537 = vmatpush2.bf16.msra.mxu0 %v1419
    %2538 = vmatprep.subr.bf16.mxu0 0
    %2539 = vmatpush2.bf16.msra.mxu0 %v1418
    %2540 = vmatprep.subr.bf16.mxu0 0
    %2541 = vmatpush2.bf16.msra.mxu0 %v1417
    %2542 = vmatprep.subr.bf16.mxu0 0
    %2543 = vmatpush2.bf16.msra.mxu0 %v1416
    %2544 = vmatprep.subr.bf16.mxu0 0
    %2545 = vmatpush2.bf16.msra.mxu0 %v1415
    %2546 = vmatprep.subr.bf16.mxu0 0
    %2547 = vmatpush2.bf16.msra.mxu0 %v1414
    %2548 = vmatprep.mubr.bf16.mxu0 %v2241
    %2549 = vmatmul.mubr.bf16.gmra.mxu0 %v2240
    %v2550 = vpop.f32.mrf.mxu0
    %v2551 = vadd.f32 %v2511, %v2550
    %v2552 = vpop.f32.mrf.mxu0
    %v2553 = vpop.f32.mrf.mxu0
    %v2554 = vpop.f32.mrf.mxu0
    %2555 = vdwg.mxu0
    %2556 = vmatprep.subr.bf16.mxu0 0
    %2557 = vmatpush1.bf16.msra.mxu0 %v1429
    %2558 = vmatprep.subr.bf16.mxu0 0
    %2559 = vmatpush1.bf16.msra.mxu0 %v1428
    %2560 = vmatprep.subr.bf16.mxu0 0
    %2561 = vmatpush1.bf16.msra.mxu0 %v1427
    %2562 = vmatprep.subr.bf16.mxu0 0
    %2563 = vmatpush1.bf16.msra.mxu0 %v1426
    %2564 = vmatprep.subr.bf16.mxu0 0
    %2565 = vmatpush1.bf16.msra.mxu0 %v1425
    %2566 = vmatprep.subr.bf16.mxu0 0
    %2567 = vmatpush1.bf16.msra.mxu0 %v1424
    %2568 = vmatprep.subr.bf16.mxu0 0
    %2569 = vmatpush1.bf16.msra.mxu0 %v1423
    %2570 = vmatprep.subr.bf16.mxu0 0
    %2571 = vmatpush1.bf16.msra.mxu0 %v1422
    %2572 = vmatprep.subr.bf16.mxu0 0
    %2573 = vmatpush2.bf16.msra.mxu0 %v1437
    %2574 = vmatprep.subr.bf16.mxu0 0
    %2575 = vmatpush2.bf16.msra.mxu0 %v1436
    %2576 = vmatprep.subr.bf16.mxu0 0
    %2577 = vmatpush2.bf16.msra.mxu0 %v1435
    %2578 = vmatprep.subr.bf16.mxu0 0
    %2579 = vmatpush2.bf16.msra.mxu0 %v1434
    %2580 = vmatprep.subr.bf16.mxu0 0
    %2581 = vmatpush2.bf16.msra.mxu0 %v1433
    %2582 = vmatprep.subr.bf16.mxu0 0
    %2583 = vmatpush2.bf16.msra.mxu0 %v1432
    %2584 = vmatprep.subr.bf16.mxu0 0
    %2585 = vmatpush2.bf16.msra.mxu0 %v1431
    %2586 = vmatprep.subr.bf16.mxu0 0
    %2587 = vmatpush2.bf16.msra.mxu0 %v1430
    %2588 = vmatprep.mubr.bf16.mxu0 %v2243
    %2589 = vmatmul.mubr.bf16.gmra.mxu0 %v2242
    %v2590 = vpop.f32.mrf.mxu0
    %v2591 = vadd.f32 %v2551, %v2590
    %v2592 = vpop.f32.mrf.mxu0
    %v2593 = vpop.f32.mrf.mxu0
    %v2594 = vpop.f32.mrf.mxu0
    %2595 = vdwg.mxu0
    %2596 = vmatprep.subr.bf16.mxu0 0
    %2597 = vmatpush1.bf16.msra.mxu0 %v1445
    %2598 = vmatprep.subr.bf16.mxu0 0
    %2599 = vmatpush1.bf16.msra.mxu0 %v1444
    %2600 = vmatprep.subr.bf16.mxu0 0
    %2601 = vmatpush1.bf16.msra.mxu0 %v1443
    %2602 = vmatprep.subr.bf16.mxu0 0
    %2603 = vmatpush1.bf16.msra.mxu0 %v1442
    %2604 = vmatprep.subr.bf16.mxu0 0
    %2605 = vmatpush1.bf16.msra.mxu0 %v1441
    %2606 = vmatprep.subr.bf16.mxu0 0
    %2607 = vmatpush1.bf16.msra.mxu0 %v1440
    %2608 = vmatprep.subr.bf16.mxu0 0
    %2609 = vmatpush1.bf16.msra.mxu0 %v1439
    %2610 = vmatprep.subr.bf16.mxu0 0
    %2611 = vmatpush1.bf16.msra.mxu0 %v1438
    %2612 = vmatprep.subr.bf16.mxu0 0
    %2613 = vmatpush2.bf16.msra.mxu0 %v1453
    %2614 = vmatprep.subr.bf16.mxu0 0
    %2615 = vmatpush2.bf16.msra.mxu0 %v1452
    %2616 = vmatprep.subr.bf16.mxu0 0
    %2617 = vmatpush2.bf16.msra.mxu0 %v1451
    %2618 = vmatprep.subr.bf16.mxu0 0
    %2619 = vmatpush2.bf16.msra.mxu0 %v1450
    %2620 = vmatprep.subr.bf16.mxu0 0
    %2621 = vmatpush2.bf16.msra.mxu0 %v1449
    %2622 = vmatprep.subr.bf16.mxu0 0
    %2623 = vmatpush2.bf16.msra.mxu0 %v1448
    %2624 = vmatprep.subr.bf16.mxu0 0
    %2625 = vmatpush2.bf16.msra.mxu0 %v1447
    %2626 = vmatprep.subr.bf16.mxu0 0
    %2627 = vmatpush2.bf16.msra.mxu0 %v1446
    %2628 = vmatprep.mubr.bf16.mxu0 %v2245
    %2629 = vmatmul.mubr.bf16.gmra.mxu0 %v2244
    %v2630 = vpop.f32.mrf.mxu0
    %v2631 = vadd.f32 %v2591, %v2630
    %v2632 = vpop.f32.mrf.mxu0
    %v2633 = vpop.f32.mrf.mxu0
    %v2634 = vpop.f32.mrf.mxu0
    %2635 = vdwg.mxu0
    %2636 = vmatprep.subr.bf16.mxu0 0
    %2637 = vmatpush1.bf16.msra.mxu0 %v1461
    %2638 = vmatprep.subr.bf16.mxu0 0
    %2639 = vmatpush1.bf16.msra.mxu0 %v1460
    %2640 = vmatprep.subr.bf16.mxu0 0
    %2641 = vmatpush1.bf16.msra.mxu0 %v1459
    %2642 = vmatprep.subr.bf16.mxu0 0
    %2643 = vmatpush1.bf16.msra.mxu0 %v1458
    %2644 = vmatprep.subr.bf16.mxu0 0
    %2645 = vmatpush1.bf16.msra.mxu0 %v1457
    %2646 = vmatprep.subr.bf16.mxu0 0
    %2647 = vmatpush1.bf16.msra.mxu0 %v1456
    %2648 = vmatprep.subr.bf16.mxu0 0
    %2649 = vmatpush1.bf16.msra.mxu0 %v1455
    %2650 = vmatprep.subr.bf16.mxu0 0
    %2651 = vmatpush1.bf16.msra.mxu0 %v1454
    %2652 = vmatprep.subr.bf16.mxu0 0
    %2653 = vmatpush2.bf16.msra.mxu0 %v1469
    %2654 = vmatprep.subr.bf16.mxu0 0
    %2655 = vmatpush2.bf16.msra.mxu0 %v1468
    %2656 = vmatprep.subr.bf16.mxu0 0
    %2657 = vmatpush2.bf16.msra.mxu0 %v1467
    %2658 = vmatprep.subr.bf16.mxu0 0
    %2659 = vmatpush2.bf16.msra.mxu0 %v1466
    %2660 = vmatprep.subr.bf16.mxu0 0
    %2661 = vmatpush2.bf16.msra.mxu0 %v1465
    %2662 = vmatprep.subr.bf16.mxu0 0
    %2663 = vmatpush2.bf16.msra.mxu0 %v1464
    %2664 = vmatprep.subr.bf16.mxu0 0
    %2665 = vmatpush2.bf16.msra.mxu0 %v1463
    %2666 = vmatprep.subr.bf16.mxu0 0
    %2667 = vmatpush2.bf16.msra.mxu0 %v1462
    %2668 = vmatprep.mubr.bf16.mxu0 %v2247
    %2669 = vmatmul.mubr.bf16.gmra.mxu0 %v2246
    %v2670 = vpop.f32.mrf.mxu0
    %v2671 = vadd.f32 %v2631, %v2670
    %v2672 = vpop.f32.mrf.mxu0
    %v2673 = vpop.f32.mrf.mxu0
    %v2674 = vpop.f32.mrf.mxu0
    %2675 = vdwg.mxu0
    %2676 = vmatprep.subr.bf16.mxu0 0
    %2677 = vmatpush1.bf16.msra.mxu0 %v1477
    %2678 = vmatprep.subr.bf16.mxu0 0
    %2679 = vmatpush1.bf16.msra.mxu0 %v1476
    %2680 = vmatprep.subr.bf16.mxu0 0
    %2681 = vmatpush1.bf16.msra.mxu0 %v1475
    %2682 = vmatprep.subr.bf16.mxu0 0
    %2683 = vmatpush1.bf16.msra.mxu0 %v1474
    %2684 = vmatprep.subr.bf16.mxu0 0
    %2685 = vmatpush1.bf16.msra.mxu0 %v1473
    %2686 = vmatprep.subr.bf16.mxu0 0
    %2687 = vmatpush1.bf16.msra.mxu0 %v1472
    %2688 = vmatprep.subr.bf16.mxu0 0
    %2689 = vmatpush1.bf16.msra.mxu0 %v1471
    %2690 = vmatprep.subr.bf16.mxu0 0
    %2691 = vmatpush1.bf16.msra.mxu0 %v1470
    %2692 = vmatprep.subr.bf16.mxu0 0
    %2693 = vmatpush2.bf16.msra.mxu0 %v1485
    %2694 = vmatprep.subr.bf16.mxu0 0
    %2695 = vmatpush2.bf16.msra.mxu0 %v1484
    %2696 = vmatprep.subr.bf16.mxu0 0
    %2697 = vmatpush2.bf16.msra.mxu0 %v1483
    %2698 = vmatprep.subr.bf16.mxu0 0
    %2699 = vmatpush2.bf16.msra.mxu0 %v1482
    %2700 = vmatprep.subr.bf16.mxu0 0
    %2701 = vmatpush2.bf16.msra.mxu0 %v1481
    %2702 = vmatprep.subr.bf16.mxu0 0
    %2703 = vmatpush2.bf16.msra.mxu0 %v1480
    %2704 = vmatprep.subr.bf16.mxu0 0
    %2705 = vmatpush2.bf16.msra.mxu0 %v1479
    %2706 = vmatprep.subr.bf16.mxu0 0
    %2707 = vmatpush2.bf16.msra.mxu0 %v1478
    %2708 = vmatprep.mubr.bf16.mxu0 %v2249
    %2709 = vmatmul.mubr.bf16.gmra.mxu0 %v2248
    %v2710 = vpop.f32.mrf.mxu0
    %v2711 = vadd.f32 %v2671, %v2710
    %v2712 = vpop.f32.mrf.mxu0
    %v2713 = vpop.f32.mrf.mxu0
    %v2714 = vpop.f32.mrf.mxu0
    %2715 = vdwg.mxu0
    %2716 = vmatprep.subr.bf16.mxu0 0
    %2717 = vmatpush1.bf16.msra.mxu0 %v1493
    %2718 = vmatprep.subr.bf16.mxu0 0
    %2719 = vmatpush1.bf16.msra.mxu0 %v1492
    %2720 = vmatprep.subr.bf16.mxu0 0
    %2721 = vmatpush1.bf16.msra.mxu0 %v1491
    %2722 = vmatprep.subr.bf16.mxu0 0
    %2723 = vmatpush1.bf16.msra.mxu0 %v1490
    %2724 = vmatprep.subr.bf16.mxu0 0
    %2725 = vmatpush1.bf16.msra.mxu0 %v1489
    %2726 = vmatprep.subr.bf16.mxu0 0
    %2727 = vmatpush1.bf16.msra.mxu0 %v1488
    %2728 = vmatprep.subr.bf16.mxu0 0
    %2729 = vmatpush1.bf16.msra.mxu0 %v1487
    %2730 = vmatprep.subr.bf16.mxu0 0
    %2731 = vmatpush1.bf16.msra.mxu0 %v1486
    %2732 = vmatprep.subr.bf16.mxu0 0
    %2733 = vmatpush2.bf16.msra.mxu0 %v1501
    %2734 = vmatprep.subr.bf16.mxu0 0
    %2735 = vmatpush2.bf16.msra.mxu0 %v1500
    %2736 = vmatprep.subr.bf16.mxu0 0
    %2737 = vmatpush2.bf16.msra.mxu0 %v1499
    %2738 = vmatprep.subr.bf16.mxu0 0
    %2739 = vmatpush2.bf16.msra.mxu0 %v1498
    %2740 = vmatprep.subr.bf16.mxu0 0
    %2741 = vmatpush2.bf16.msra.mxu0 %v1497
    %2742 = vmatprep.subr.bf16.mxu0 0
    %2743 = vmatpush2.bf16.msra.mxu0 %v1496
    %2744 = vmatprep.subr.bf16.mxu0 0
    %2745 = vmatpush2.bf16.msra.mxu0 %v1495
    %2746 = vmatprep.subr.bf16.mxu0 0
    %2747 = vmatpush2.bf16.msra.mxu0 %v1494
    %2748 = vmatprep.mubr.bf16.mxu0 %v2251
    %2749 = vmatmul.mubr.bf16.gmra.mxu0 %v2250
    %v2750 = vpop.f32.mrf.mxu0
    %v2751 = vadd.f32 %v2711, %v2750
    %v2752 = vpop.f32.mrf.mxu0
    %v2753 = vpop.f32.mrf.mxu0
    %v2754 = vpop.f32.mrf.mxu0
    %2755 = vdwg.mxu0
    %vm2756 = vcmp.gt.f32.partialorder %v2751, 0.0
    %v2757 = vmin.f32 %v2751, 0.0
    %v2758 = vmul.f32 %v2757, 1.442695
    %v2759 = vpow.pop %v2758
    %v2760 = vsub.f32 %v2759, 1.0
    %v2761 = vsel %vm2756, %v2751, %v2760
    %v2762 = vld [vmem:[#allocation4] sm:$0xf]
    %v2763 = vld [vmem:[#allocation4 + $0x4] sm:$0xf]
    %v2764 = vld [vmem:[#allocation4 + $0x8] sm:$0xf]
    %v2765 = vld [vmem:[#allocation4 + $0xc] sm:$0xf]
    %v2766 = vld [vmem:[#allocation4 + $0x10] sm:$0xf]
    %v2767 = vld [vmem:[#allocation4 + $0x14] sm:$0xf]
    %v2768 = vld [vmem:[#allocation4 + $0x18] sm:$0xf]
    %v2769 = vld [vmem:[#allocation4 + $0x1c] sm:$0xf]
    %v2770 = vld [vmem:[#allocation4 + $0x20] sm:$0xf]
    %v2771 = vld [vmem:[#allocation4 + $0x24] sm:$0xf]
    %v2772 = vld [vmem:[#allocation4 + $0x28] sm:$0xf]
    %v2773 = vld [vmem:[#allocation4 + $0x2c] sm:$0xf]
    %v2774 = vld [vmem:[#allocation4 + $0x30] sm:$0xf]
    %v2775 = vld [vmem:[#allocation4 + $0x34] sm:$0xf]
    %v2776 = vld [vmem:[#allocation4 + $0x38] sm:$0xf]
    %v2777 = vld [vmem:[#allocation4 + $0x3c] sm:$0xf]
    %v2778 = vld [vmem:[%s4] sm:$0x1]
    %v2779 = vpack.c.bf16 %v2179, %v2179
    %v2781 = vlaneseq
    %v2782 = vshrl.u32 %v2781, 7
    %v2783 = vsub.s32 0, %v2782
    %v2784 = vrot.slane %v2778, %v2783
    %v2802 = vunpack.c.l.b16 %v2762
    %v2803 = vunpack.c.l.b16 %v2763
    %v2804 = vunpack.c.l.b16 %v2764
    %v2805 = vunpack.c.l.b16 %v2765
    %v2806 = vunpack.c.l.b16 %v2766
    %v2807 = vunpack.c.l.b16 %v2767
    %v2808 = vunpack.c.l.b16 %v2768
    %v2809 = vunpack.c.l.b16 %v2769
    %v2810 = vunpack.c.l.b16 %v2770
    %v2811 = vunpack.c.l.b16 %v2771
    %v2812 = vunpack.c.l.b16 %v2772
    %v2813 = vunpack.c.l.b16 %v2773
    %v2814 = vunpack.c.l.b16 %v2774
    %v2815 = vunpack.c.l.b16 %v2775
    %v2816 = vunpack.c.l.b16 %v2776
    %v2817 = vunpack.c.l.b16 %v2777
    %v2818 = vpack.c.b16 %v2803, %v2802
    %v2819 = vpack.c.b16 %v2805, %v2804
    %v2820 = vpack.c.b16 %v2807, %v2806
    %v2821 = vpack.c.b16 %v2809, %v2808
    %v2822 = vpack.c.b16 %v2811, %v2810
    %v2823 = vpack.c.b16 %v2813, %v2812
    %v2824 = vpack.c.b16 %v2815, %v2814
    %v2825 = vpack.c.b16 %v2817, %v2816
    %2834 = vmatprep.subr.bf16.mxu0 0
    %2835 = vmatpush1.bf16.msra.mxu0 %v2825
    %2836 = vmatprep.subr.bf16.mxu0 0
    %2837 = vmatpush1.bf16.msra.mxu0 %v2824
    %2838 = vmatprep.subr.bf16.mxu0 0
    %2839 = vmatpush1.bf16.msra.mxu0 %v2823
    %2840 = vmatprep.subr.bf16.mxu0 0
    %2841 = vmatpush1.bf16.msra.mxu0 %v2822
    %2842 = vmatprep.subr.bf16.mxu0 0
    %2843 = vmatpush1.bf16.msra.mxu0 %v2821
    %2844 = vmatprep.subr.bf16.mxu0 0
    %2845 = vmatpush1.bf16.msra.mxu0 %v2820
    %2846 = vmatprep.subr.bf16.mxu0 0
    %2847 = vmatpush1.bf16.msra.mxu0 %v2819
    %2848 = vmatprep.subr.bf16.mxu0 0
    %2849 = vmatpush1.bf16.msra.mxu0 %v2818
    %2850 = vmatprep.subr.bf16.mxu0 0
    %2851 = vmatpush2.bf16.msra.mxu0 0
    %2852 = vmatprep.subr.bf16.mxu0 0
    %2853 = vmatpush2.bf16.msra.mxu0 0
    %2854 = vmatprep.subr.bf16.mxu0 0
    %2855 = vmatpush2.bf16.msra.mxu0 0
    %2856 = vmatprep.subr.bf16.mxu0 0
    %2857 = vmatpush2.bf16.msra.mxu0 0
    %2858 = vmatprep.subr.bf16.mxu0 0
    %2859 = vmatpush2.bf16.msra.mxu0 0
    %2860 = vmatprep.subr.bf16.mxu0 0
    %2861 = vmatpush2.bf16.msra.mxu0 0
    %2862 = vmatprep.subr.bf16.mxu0 0
    %2863 = vmatpush2.bf16.msra.mxu0 0
    %2864 = vmatprep.subr.bf16.mxu0 0
    %2865 = vmatpush2.bf16.msra.mxu0 0
    %2866 = vmatprep.mubr.bf16.mxu0 0
    %2867 = vmatmul.mubr.bf16.gmra.mxu0 %v2779
    %v2868 = vpop.f32.mrf.mxu0
    %v2869 = vadd.f32 %v2784, %v2868
    %v2870 = vpop.f32.mrf.mxu0
    %v2871 = vpop.f32.mrf.mxu0
    %v2872 = vpop.f32.mrf.mxu0
    %2873 = vdwg.mxu0
    %vm2874 = vcmp.gt.f32.partialorder %v2869, 0.0
    %v2875 = vmin.f32 %v2869, 0.0
    %v2876 = vmul.f32 %v2875, 1.442695
    %v2877 = vpow.pop %v2876
    %v2878 = vsub.f32 %v2877, 1.0
    %v2879 = vsel %vm2874, %v2869, %v2878
    %v2880 = vpack.c.bf16 %v2761, %v2761
    %2881 = vmatprep.subr.bf16.mxu0 0
    %2882 = vmatpush1.bf16.msra.mxu0 %v2825
    %2883 = vmatprep.subr.bf16.mxu0 0
    %2884 = vmatpush1.bf16.msra.mxu0 %v2824
    %2885 = vmatprep.subr.bf16.mxu0 0
    %2886 = vmatpush1.bf16.msra.mxu0 %v2823
    %2887 = vmatprep.subr.bf16.mxu0 0
    %2888 = vmatpush1.bf16.msra.mxu0 %v2822
    %2889 = vmatprep.subr.bf16.mxu0 0
    %2890 = vmatpush1.bf16.msra.mxu0 %v2821
    %2891 = vmatprep.subr.bf16.mxu0 0
    %2892 = vmatpush1.bf16.msra.mxu0 %v2820
    %2893 = vmatprep.subr.bf16.mxu0 0
    %2894 = vmatpush1.bf16.msra.mxu0 %v2819
    %2895 = vmatprep.subr.bf16.mxu0 0
    %2896 = vmatpush1.bf16.msra.mxu0 %v2818
    %2897 = vmatprep.subr.bf16.mxu0 0
    %2898 = vmatpush2.bf16.msra.mxu0 0
    %2899 = vmatprep.subr.bf16.mxu0 0
    %2900 = vmatpush2.bf16.msra.mxu0 0
    %2901 = vmatprep.subr.bf16.mxu0 0
    %2902 = vmatpush2.bf16.msra.mxu0 0
    %2903 = vmatprep.subr.bf16.mxu0 0
    %2904 = vmatpush2.bf16.msra.mxu0 0
    %2905 = vmatprep.subr.bf16.mxu0 0
    %2906 = vmatpush2.bf16.msra.mxu0 0
    %2907 = vmatprep.subr.bf16.mxu0 0
    %2908 = vmatpush2.bf16.msra.mxu0 0
    %2909 = vmatprep.subr.bf16.mxu0 0
    %2910 = vmatpush2.bf16.msra.mxu0 0
    %2911 = vmatprep.subr.bf16.mxu0 0
    %2912 = vmatpush2.bf16.msra.mxu0 0
    %2913 = vmatprep.mubr.bf16.mxu0 0
    %2914 = vmatmul.mubr.bf16.gmra.mxu0 %v2880
    %v2915 = vpop.f32.mrf.mxu0
    %v2916 = vadd.f32 %v2784, %v2915
    %v2917 = vpop.f32.mrf.mxu0
    %v2918 = vpop.f32.mrf.mxu0
    %v2919 = vpop.f32.mrf.mxu0
    %2920 = vdwg.mxu0
    %vm2921 = vcmp.gt.f32.partialorder %v2916, 0.0
    %v2922 = vmin.f32 %v2916, 0.0
    %v2923 = vmul.f32 %v2922, 1.442695
    %v2924 = vpow.pop %v2923
    %v2925 = vsub.f32 %v2924, 1.0
    %v2926 = vsel %vm2921, %v2916, %v2925
    %s2927 = scalar_lea.vmem [#allocation4], 64
    %v2928 = vld [vmem:[%s2927] sm:$0xf]
    %v2929 = vld [vmem:[%s2927 + $0x4] sm:$0xf]
    %v2930 = vld [vmem:[%s2927 + $0x8] sm:$0xf]
    %v2931 = vld [vmem:[%s2927 + $0xc] sm:$0xf]
    %v2932 = vld [vmem:[%s2927 + $0x10] sm:$0xf]
    %v2933 = vld [vmem:[%s2927 + $0x14] sm:$0xf]
    %v2934 = vld [vmem:[%s2927 + $0x18] sm:$0xf]
    %v2935 = vld [vmem:[%s2927 + $0x1c] sm:$0xf]
    %v2936 = vld [vmem:[%s2927 + $0x20] sm:$0xf]
    %v2937 = vld [vmem:[%s2927 + $0x24] sm:$0xf]
    %v2938 = vld [vmem:[%s2927 + $0x28] sm:$0xf]
    %v2939 = vld [vmem:[%s2927 + $0x2c] sm:$0xf]
    %v2940 = vld [vmem:[%s2927 + $0x30] sm:$0xf]
    %v2941 = vld [vmem:[%s2927 + $0x34] sm:$0xf]
    %v2942 = vld [vmem:[%s2927 + $0x38] sm:$0xf]
    %v2943 = vld [vmem:[%s2927 + $0x3c] sm:$0xf]
    %s2944 = scalar_lea.vmem %s4, 1
    %v2945 = vld [vmem:[%s2944] sm:$0x1]
    %v2946 = vpack.c.bf16 %v2879, %v2879
    %v2948 = vlaneseq
    %v2949 = vshrl.u32 %v2948, 7
    %v2950 = vsub.s32 0, %v2949
    %v2951 = vrot.slane %v2945, %v2950
    %v2969 = vunpack.c.l.b16 %v2928
    %v2970 = vunpack.c.l.b16 %v2929
    %v2971 = vunpack.c.l.b16 %v2930
    %v2972 = vunpack.c.l.b16 %v2931
    %v2973 = vunpack.c.l.b16 %v2932
    %v2974 = vunpack.c.l.b16 %v2933
    %v2975 = vunpack.c.l.b16 %v2934
    %v2976 = vunpack.c.l.b16 %v2935
    %v2977 = vunpack.c.l.b16 %v2936
    %v2978 = vunpack.c.l.b16 %v2937
    %v2979 = vunpack.c.l.b16 %v2938
    %v2980 = vunpack.c.l.b16 %v2939
    %v2981 = vunpack.c.l.b16 %v2940
    %v2982 = vunpack.c.l.b16 %v2941
    %v2983 = vunpack.c.l.b16 %v2942
    %v2984 = vunpack.c.l.b16 %v2943
    %v2985 = vpack.c.b16 %v2970, %v2969
    %v2986 = vpack.c.b16 %v2972, %v2971
    %v2987 = vpack.c.b16 %v2974, %v2973
    %v2988 = vpack.c.b16 %v2976, %v2975
    %v2989 = vpack.c.b16 %v2978, %v2977
    %v2990 = vpack.c.b16 %v2980, %v2979
    %v2991 = vpack.c.b16 %v2982, %v2981
    %v2992 = vpack.c.b16 %v2984, %v2983
    %3001 = vmatprep.subr.bf16.mxu0 0
    %3002 = vmatpush1.bf16.msra.mxu0 %v2992
    %3003 = vmatprep.subr.bf16.mxu0 0
    %3004 = vmatpush1.bf16.msra.mxu0 %v2991
    %3005 = vmatprep.subr.bf16.mxu0 0
    %3006 = vmatpush1.bf16.msra.mxu0 %v2990
    %3007 = vmatprep.subr.bf16.mxu0 0
    %3008 = vmatpush1.bf16.msra.mxu0 %v2989
    %3009 = vmatprep.subr.bf16.mxu0 0
    %3010 = vmatpush1.bf16.msra.mxu0 %v2988
    %3011 = vmatprep.subr.bf16.mxu0 0
    %3012 = vmatpush1.bf16.msra.mxu0 %v2987
    %3013 = vmatprep.subr.bf16.mxu0 0
    %3014 = vmatpush1.bf16.msra.mxu0 %v2986
    %3015 = vmatprep.subr.bf16.mxu0 0
    %3016 = vmatpush1.bf16.msra.mxu0 %v2985
    %3017 = vmatprep.subr.bf16.mxu0 0
    %3018 = vmatpush2.bf16.msra.mxu0 0
    %3019 = vmatprep.subr.bf16.mxu0 0
    %3020 = vmatpush2.bf16.msra.mxu0 0
    %3021 = vmatprep.subr.bf16.mxu0 0
    %3022 = vmatpush2.bf16.msra.mxu0 0
    %3023 = vmatprep.subr.bf16.mxu0 0
    %3024 = vmatpush2.bf16.msra.mxu0 0
    %3025 = vmatprep.subr.bf16.mxu0 0
    %3026 = vmatpush2.bf16.msra.mxu0 0
    %3027 = vmatprep.subr.bf16.mxu0 0
    %3028 = vmatpush2.bf16.msra.mxu0 0
    %3029 = vmatprep.subr.bf16.mxu0 0
    %3030 = vmatpush2.bf16.msra.mxu0 0
    %3031 = vmatprep.subr.bf16.mxu0 0
    %3032 = vmatpush2.bf16.msra.mxu0 0
    %3033 = vmatprep.mubr.bf16.mxu0 0
    %3034 = vmatmul.mubr.bf16.gmra.mxu0 %v2946
    %v3035 = vpop.f32.mrf.mxu0
    %v3036 = vadd.f32 %v2951, %v3035
    %v3037 = vpop.f32.mrf.mxu0
    %v3038 = vpop.f32.mrf.mxu0
    %v3039 = vpop.f32.mrf.mxu0
    %3040 = vdwg.mxu0
    %vm3041 = vcmp.gt.f32.partialorder %v3036, 0.0
    %v3042 = vmin.f32 %v3036, 0.0
    %v3043 = vmul.f32 %v3042, 1.442695
    %v3044 = vpow.pop %v3043
    %v3045 = vsub.f32 %v3044, 1.0
    %v3046 = vsel %vm3041, %v3036, %v3045
    %v3047 = vpack.c.bf16 %v2926, %v2926
    %3048 = vmatprep.subr.bf16.mxu0 0
    %3049 = vmatpush1.bf16.msra.mxu0 %v2992
    %3050 = vmatprep.subr.bf16.mxu0 0
    %3051 = vmatpush1.bf16.msra.mxu0 %v2991
    %3052 = vmatprep.subr.bf16.mxu0 0
    %3053 = vmatpush1.bf16.msra.mxu0 %v2990
    %3054 = vmatprep.subr.bf16.mxu0 0
    %3055 = vmatpush1.bf16.msra.mxu0 %v2989
    %3056 = vmatprep.subr.bf16.mxu0 0
    %3057 = vmatpush1.bf16.msra.mxu0 %v2988
    %3058 = vmatprep.subr.bf16.mxu0 0
    %3059 = vmatpush1.bf16.msra.mxu0 %v2987
    %3060 = vmatprep.subr.bf16.mxu0 0
    %3061 = vmatpush1.bf16.msra.mxu0 %v2986
    %3062 = vmatprep.subr.bf16.mxu0 0
    %3063 = vmatpush1.bf16.msra.mxu0 %v2985
    %3064 = vmatprep.subr.bf16.mxu0 0
    %3065 = vmatpush2.bf16.msra.mxu0 0
    %3066 = vmatprep.subr.bf16.mxu0 0
    %3067 = vmatpush2.bf16.msra.mxu0 0
    %3068 = vmatprep.subr.bf16.mxu0 0
    %3069 = vmatpush2.bf16.msra.mxu0 0
    %3070 = vmatprep.subr.bf16.mxu0 0
    %3071 = vmatpush2.bf16.msra.mxu0 0
    %3072 = vmatprep.subr.bf16.mxu0 0
    %3073 = vmatpush2.bf16.msra.mxu0 0
    %3074 = vmatprep.subr.bf16.mxu0 0
    %3075 = vmatpush2.bf16.msra.mxu0 0
    %3076 = vmatprep.subr.bf16.mxu0 0
    %3077 = vmatpush2.bf16.msra.mxu0 0
    %3078 = vmatprep.subr.bf16.mxu0 0
    %3079 = vmatpush2.bf16.msra.mxu0 0
    %3080 = vmatprep.mubr.bf16.mxu0 0
    %3081 = vmatmul.mubr.bf16.gmra.mxu0 %v3047
    %v3082 = vpop.f32.mrf.mxu0
    %v3083 = vadd.f32 %v2951, %v3082
    %v3084 = vpop.f32.mrf.mxu0
    %v3085 = vpop.f32.mrf.mxu0
    %v3086 = vpop.f32.mrf.mxu0
    %3087 = vdwg.mxu0
    %vm3088 = vcmp.gt.f32.partialorder %v3083, 0.0
    %v3089 = vmin.f32 %v3083, 0.0
    %v3090 = vmul.f32 %v3089, 1.442695
    %v3091 = vpow.pop %v3090
    %v3092 = vsub.f32 %v3091, 1.0
    %v3093 = vsel %vm3088, %v3083, %v3092
    %s3094 = scalar_lea.vmem [#allocation4], 128
    %v3095 = vld [vmem:[%s3094] sm:$0xf]
    %v3096 = vld [vmem:[%s3094 + $0x4] sm:$0xf]
    %v3097 = vld [vmem:[%s3094 + $0x8] sm:$0xf]
    %v3098 = vld [vmem:[%s3094 + $0xc] sm:$0xf]
    %v3099 = vld [vmem:[%s3094 + $0x10] sm:$0xf]
    %v3100 = vld [vmem:[%s3094 + $0x14] sm:$0xf]
    %v3101 = vld [vmem:[%s3094 + $0x18] sm:$0xf]
    %v3102 = vld [vmem:[%s3094 + $0x1c] sm:$0xf]
    %v3103 = vld [vmem:[%s3094 + $0x20] sm:$0xf]
    %v3104 = vld [vmem:[%s3094 + $0x24] sm:$0xf]
    %v3105 = vld [vmem:[%s3094 + $0x28] sm:$0xf]
    %v3106 = vld [vmem:[%s3094 + $0x2c] sm:$0xf]
    %v3107 = vld [vmem:[%s3094 + $0x30] sm:$0xf]
    %v3108 = vld [vmem:[%s3094 + $0x34] sm:$0xf]
    %v3109 = vld [vmem:[%s3094 + $0x38] sm:$0xf]
    %v3110 = vld [vmem:[%s3094 + $0x3c] sm:$0xf]
    %s3111 = scalar_lea.vmem %s4, 2
    %v3112 = vld [vmem:[%s3111] sm:$0x1]
    %v3113 = vpack.c.bf16 %v3046, %v3046
    %v3115 = vlaneseq
    %v3116 = vshrl.u32 %v3115, 7
    %v3117 = vsub.s32 0, %v3116
    %v3118 = vrot.slane %v3112, %v3117
    %v3136 = vunpack.c.l.b16 %v3095
    %v3137 = vunpack.c.l.b16 %v3096
    %v3138 = vunpack.c.l.b16 %v3097
    %v3139 = vunpack.c.l.b16 %v3098
    %v3140 = vunpack.c.l.b16 %v3099
    %v3141 = vunpack.c.l.b16 %v3100
    %v3142 = vunpack.c.l.b16 %v3101
    %v3143 = vunpack.c.l.b16 %v3102
    %v3144 = vunpack.c.l.b16 %v3103
    %v3145 = vunpack.c.l.b16 %v3104
    %v3146 = vunpack.c.l.b16 %v3105
    %v3147 = vunpack.c.l.b16 %v3106
    %v3148 = vunpack.c.l.b16 %v3107
    %v3149 = vunpack.c.l.b16 %v3108
    %v3150 = vunpack.c.l.b16 %v3109
    %v3151 = vunpack.c.l.b16 %v3110
    %v3152 = vpack.c.b16 %v3137, %v3136
    %v3153 = vpack.c.b16 %v3139, %v3138
    %v3154 = vpack.c.b16 %v3141, %v3140
    %v3155 = vpack.c.b16 %v3143, %v3142
    %v3156 = vpack.c.b16 %v3145, %v3144
    %v3157 = vpack.c.b16 %v3147, %v3146
    %v3158 = vpack.c.b16 %v3149, %v3148
    %v3159 = vpack.c.b16 %v3151, %v3150
    %3168 = vmatprep.subr.bf16.mxu0 0
    %3169 = vmatpush1.bf16.msra.mxu0 %v3159
    %3170 = vmatprep.subr.bf16.mxu0 0
    %3171 = vmatpush1.bf16.msra.mxu0 %v3158
    %3172 = vmatprep.subr.bf16.mxu0 0
    %3173 = vmatpush1.bf16.msra.mxu0 %v3157
    %3174 = vmatprep.subr.bf16.mxu0 0
    %3175 = vmatpush1.bf16.msra.mxu0 %v3156
    %3176 = vmatprep.subr.bf16.mxu0 0
    %3177 = vmatpush1.bf16.msra.mxu0 %v3155
    %3178 = vmatprep.subr.bf16.mxu0 0
    %3179 = vmatpush1.bf16.msra.mxu0 %v3154
    %3180 = vmatprep.subr.bf16.mxu0 0
    %3181 = vmatpush1.bf16.msra.mxu0 %v3153
    %3182 = vmatprep.subr.bf16.mxu0 0
    %3183 = vmatpush1.bf16.msra.mxu0 %v3152
    %3184 = vmatprep.subr.bf16.mxu0 0
    %3185 = vmatpush2.bf16.msra.mxu0 0
    %3186 = vmatprep.subr.bf16.mxu0 0
    %3187 = vmatpush2.bf16.msra.mxu0 0
    %3188 = vmatprep.subr.bf16.mxu0 0
    %3189 = vmatpush2.bf16.msra.mxu0 0
    %3190 = vmatprep.subr.bf16.mxu0 0
    %3191 = vmatpush2.bf16.msra.mxu0 0
    %3192 = vmatprep.subr.bf16.mxu0 0
    %3193 = vmatpush2.bf16.msra.mxu0 0
    %3194 = vmatprep.subr.bf16.mxu0 0
    %3195 = vmatpush2.bf16.msra.mxu0 0
    %3196 = vmatprep.subr.bf16.mxu0 0
    %3197 = vmatpush2.bf16.msra.mxu0 0
    %3198 = vmatprep.subr.bf16.mxu0 0
    %3199 = vmatpush2.bf16.msra.mxu0 0
    %3200 = vmatprep.mubr.bf16.mxu0 0
    %3201 = vmatmul.mubr.bf16.gmra.mxu0 %v3113
    %v3202 = vpop.f32.mrf.mxu0
    %v3203 = vadd.f32 %v3118, %v3202
    %v3204 = vpop.f32.mrf.mxu0
    %v3205 = vpop.f32.mrf.mxu0
    %v3206 = vpop.f32.mrf.mxu0
    %3207 = vdwg.mxu0
    %vm3208 = vcmp.gt.f32.partialorder %v3203, 0.0
    %v3209 = vmin.f32 %v3203, 0.0
    %v3210 = vmul.f32 %v3209, 1.442695
    %v3211 = vpow.pop %v3210
    %v3212 = vsub.f32 %v3211, 1.0
    %v3213 = vsel %vm3208, %v3203, %v3212
    %v3214 = vpack.c.bf16 %v3093, %v3093
    %3215 = vmatprep.subr.bf16.mxu0 0
    %3216 = vmatpush1.bf16.msra.mxu0 %v3159
    %3217 = vmatprep.subr.bf16.mxu0 0
    %3218 = vmatpush1.bf16.msra.mxu0 %v3158
    %3219 = vmatprep.subr.bf16.mxu0 0
    %3220 = vmatpush1.bf16.msra.mxu0 %v3157
    %3221 = vmatprep.subr.bf16.mxu0 0
    %3222 = vmatpush1.bf16.msra.mxu0 %v3156
    %3223 = vmatprep.subr.bf16.mxu0 0
    %3224 = vmatpush1.bf16.msra.mxu0 %v3155
    %3225 = vmatprep.subr.bf16.mxu0 0
    %3226 = vmatpush1.bf16.msra.mxu0 %v3154
    %3227 = vmatprep.subr.bf16.mxu0 0
    %3228 = vmatpush1.bf16.msra.mxu0 %v3153
    %3229 = vmatprep.subr.bf16.mxu0 0
    %3230 = vmatpush1.bf16.msra.mxu0 %v3152
    %3231 = vmatprep.subr.bf16.mxu0 0
    %3232 = vmatpush2.bf16.msra.mxu0 0
    %3233 = vmatprep.subr.bf16.mxu0 0
    %3234 = vmatpush2.bf16.msra.mxu0 0
    %3235 = vmatprep.subr.bf16.mxu0 0
    %3236 = vmatpush2.bf16.msra.mxu0 0
    %3237 = vmatprep.subr.bf16.mxu0 0
    %3238 = vmatpush2.bf16.msra.mxu0 0
    %3239 = vmatprep.subr.bf16.mxu0 0
    %3240 = vmatpush2.bf16.msra.mxu0 0
    %3241 = vmatprep.subr.bf16.mxu0 0
    %3242 = vmatpush2.bf16.msra.mxu0 0
    %3243 = vmatprep.subr.bf16.mxu0 0
    %3244 = vmatpush2.bf16.msra.mxu0 0
    %3245 = vmatprep.subr.bf16.mxu0 0
    %3246 = vmatpush2.bf16.msra.mxu0 0
    %3247 = vmatprep.mubr.bf16.mxu0 0
    %3248 = vmatmul.mubr.bf16.gmra.mxu0 %v3214
    %v3249 = vpop.f32.mrf.mxu0
    %v3250 = vadd.f32 %v3118, %v3249
    %v3251 = vpop.f32.mrf.mxu0
    %v3252 = vpop.f32.mrf.mxu0
    %v3253 = vpop.f32.mrf.mxu0
    %3254 = vdwg.mxu0
    %vm3255 = vcmp.gt.f32.partialorder %v3250, 0.0
    %v3256 = vmin.f32 %v3250, 0.0
    %v3257 = vmul.f32 %v3256, 1.442695
    %v3258 = vpow.pop %v3257
    %v3259 = vsub.f32 %v3258, 1.0
    %v3260 = vsel %vm3255, %v3250, %v3259
    %s3261 = scalar_lea.vmem [#allocation4], 192
    %v3262 = vld [vmem:[%s3261] sm:$0xf]
    %v3263 = vld [vmem:[%s3261 + $0x4] sm:$0xf]
    %v3264 = vld [vmem:[%s3261 + $0x8] sm:$0xf]
    %v3265 = vld [vmem:[%s3261 + $0xc] sm:$0xf]
    %v3266 = vld [vmem:[%s3261 + $0x10] sm:$0xf]
    %v3267 = vld [vmem:[%s3261 + $0x14] sm:$0xf]
    %v3268 = vld [vmem:[%s3261 + $0x18] sm:$0xf]
    %v3269 = vld [vmem:[%s3261 + $0x1c] sm:$0xf]
    %v3270 = vld [vmem:[%s3261 + $0x20] sm:$0xf]
    %v3271 = vld [vmem:[%s3261 + $0x24] sm:$0xf]
    %v3272 = vld [vmem:[%s3261 + $0x28] sm:$0xf]
    %v3273 = vld [vmem:[%s3261 + $0x2c] sm:$0xf]
    %v3274 = vld [vmem:[%s3261 + $0x30] sm:$0xf]
    %v3275 = vld [vmem:[%s3261 + $0x34] sm:$0xf]
    %v3276 = vld [vmem:[%s3261 + $0x38] sm:$0xf]
    %v3277 = vld [vmem:[%s3261 + $0x3c] sm:$0xf]
    %s3278 = scalar_lea.vmem %s4, 3
    %v3279 = vld [vmem:[%s3278] sm:$0x1]
    %v3280 = vpack.c.bf16 %v3213, %v3213
    %v3282 = vlaneseq
    %v3283 = vshrl.u32 %v3282, 7
    %v3284 = vsub.s32 0, %v3283
    %v3285 = vrot.slane %v3279, %v3284
    %v3303 = vunpack.c.l.b16 %v3262
    %v3304 = vunpack.c.l.b16 %v3263
    %v3305 = vunpack.c.l.b16 %v3264
    %v3306 = vunpack.c.l.b16 %v3265
    %v3307 = vunpack.c.l.b16 %v3266
    %v3308 = vunpack.c.l.b16 %v3267
    %v3309 = vunpack.c.l.b16 %v3268
    %v3310 = vunpack.c.l.b16 %v3269
    %v3311 = vunpack.c.l.b16 %v3270
    %v3312 = vunpack.c.l.b16 %v3271
    %v3313 = vunpack.c.l.b16 %v3272
    %v3314 = vunpack.c.l.b16 %v3273
    %v3315 = vunpack.c.l.b16 %v3274
    %v3316 = vunpack.c.l.b16 %v3275
    %v3317 = vunpack.c.l.b16 %v3276
    %v3318 = vunpack.c.l.b16 %v3277
    %v3319 = vpack.c.b16 %v3304, %v3303
    %v3320 = vpack.c.b16 %v3306, %v3305
    %v3321 = vpack.c.b16 %v3308, %v3307
    %v3322 = vpack.c.b16 %v3310, %v3309
    %v3323 = vpack.c.b16 %v3312, %v3311
    %v3324 = vpack.c.b16 %v3314, %v3313
    %v3325 = vpack.c.b16 %v3316, %v3315
    %v3326 = vpack.c.b16 %v3318, %v3317
    %3335 = vmatprep.subr.bf16.mxu0 0
    %3336 = vmatpush1.bf16.msra.mxu0 %v3326
    %3337 = vmatprep.subr.bf16.mxu0 0
    %3338 = vmatpush1.bf16.msra.mxu0 %v3325
    %3339 = vmatprep.subr.bf16.mxu0 0
    %3340 = vmatpush1.bf16.msra.mxu0 %v3324
    %3341 = vmatprep.subr.bf16.mxu0 0
    %3342 = vmatpush1.bf16.msra.mxu0 %v3323
    %3343 = vmatprep.subr.bf16.mxu0 0
    %3344 = vmatpush1.bf16.msra.mxu0 %v3322
    %3345 = vmatprep.subr.bf16.mxu0 0
    %3346 = vmatpush1.bf16.msra.mxu0 %v3321
    %3347 = vmatprep.subr.bf16.mxu0 0
    %3348 = vmatpush1.bf16.msra.mxu0 %v3320
    %3349 = vmatprep.subr.bf16.mxu0 0
    %3350 = vmatpush1.bf16.msra.mxu0 %v3319
    %3351 = vmatprep.subr.bf16.mxu0 0
    %3352 = vmatpush2.bf16.msra.mxu0 0
    %3353 = vmatprep.subr.bf16.mxu0 0
    %3354 = vmatpush2.bf16.msra.mxu0 0
    %3355 = vmatprep.subr.bf16.mxu0 0
    %3356 = vmatpush2.bf16.msra.mxu0 0
    %3357 = vmatprep.subr.bf16.mxu0 0
    %3358 = vmatpush2.bf16.msra.mxu0 0
    %3359 = vmatprep.subr.bf16.mxu0 0
    %3360 = vmatpush2.bf16.msra.mxu0 0
    %3361 = vmatprep.subr.bf16.mxu0 0
    %3362 = vmatpush2.bf16.msra.mxu0 0
    %3363 = vmatprep.subr.bf16.mxu0 0
    %3364 = vmatpush2.bf16.msra.mxu0 0
    %3365 = vmatprep.subr.bf16.mxu0 0
    %3366 = vmatpush2.bf16.msra.mxu0 0
    %3367 = vmatprep.mubr.bf16.mxu0 0
    %3368 = vmatmul.mubr.bf16.gmra.mxu0 %v3280
    %v3369 = vpop.f32.mrf.mxu0
    %v3370 = vadd.f32 %v3285, %v3369
    %v3371 = vpop.f32.mrf.mxu0
    %v3372 = vpop.f32.mrf.mxu0
    %v3373 = vpop.f32.mrf.mxu0
    %3374 = vdwg.mxu0
    %vm3375 = vcmp.gt.f32.partialorder %v3370, 0.0
    %v3376 = vmin.f32 %v3370, 0.0
    %v3377 = vmul.f32 %v3376, 1.442695
    %v3378 = vpow.pop %v3377
    %v3379 = vsub.f32 %v3378, 1.0
    %v3380 = vsel %vm3375, %v3370, %v3379
    %v3381 = vpack.c.bf16 %v3260, %v3260
    %3382 = vmatprep.subr.bf16.mxu0 0
    %3383 = vmatpush1.bf16.msra.mxu0 %v3326
    %3384 = vmatprep.subr.bf16.mxu0 0
    %3385 = vmatpush1.bf16.msra.mxu0 %v3325
    %3386 = vmatprep.subr.bf16.mxu0 0
    %3387 = vmatpush1.bf16.msra.mxu0 %v3324
    %3388 = vmatprep.subr.bf16.mxu0 0
    %3389 = vmatpush1.bf16.msra.mxu0 %v3323
    %3390 = vmatprep.subr.bf16.mxu0 0
    %3391 = vmatpush1.bf16.msra.mxu0 %v3322
    %3392 = vmatprep.subr.bf16.mxu0 0
    %3393 = vmatpush1.bf16.msra.mxu0 %v3321
    %3394 = vmatprep.subr.bf16.mxu0 0
    %3395 = vmatpush1.bf16.msra.mxu0 %v3320
    %3396 = vmatprep.subr.bf16.mxu0 0
    %3397 = vmatpush1.bf16.msra.mxu0 %v3319
    %3398 = vmatprep.subr.bf16.mxu0 0
    %3399 = vmatpush2.bf16.msra.mxu0 0
    %3400 = vmatprep.subr.bf16.mxu0 0
    %3401 = vmatpush2.bf16.msra.mxu0 0
    %3402 = vmatprep.subr.bf16.mxu0 0
    %3403 = vmatpush2.bf16.msra.mxu0 0
    %3404 = vmatprep.subr.bf16.mxu0 0
    %3405 = vmatpush2.bf16.msra.mxu0 0
    %3406 = vmatprep.subr.bf16.mxu0 0
    %3407 = vmatpush2.bf16.msra.mxu0 0
    %3408 = vmatprep.subr.bf16.mxu0 0
    %3409 = vmatpush2.bf16.msra.mxu0 0
    %3410 = vmatprep.subr.bf16.mxu0 0
    %3411 = vmatpush2.bf16.msra.mxu0 0
    %3412 = vmatprep.subr.bf16.mxu0 0
    %3413 = vmatpush2.bf16.msra.mxu0 0
    %3414 = vmatprep.mubr.bf16.mxu0 0
    %3415 = vmatmul.mubr.bf16.gmra.mxu0 %v3381
    %v3416 = vpop.f32.mrf.mxu0
    %v3417 = vadd.f32 %v3285, %v3416
    %v3418 = vpop.f32.mrf.mxu0
    %v3419 = vpop.f32.mrf.mxu0
    %v3420 = vpop.f32.mrf.mxu0
    %3421 = vdwg.mxu0
    %vm3422 = vcmp.gt.f32.partialorder %v3417, 0.0
    %v3423 = vmin.f32 %v3417, 0.0
    %v3424 = vmul.f32 %v3423, 1.442695
    %v3425 = vpow.pop %v3424
    %v3426 = vsub.f32 %v3425, 1.0
    %v3427 = vsel %vm3422, %v3417, %v3426
    %s3428 = scalar_lea.vmem [#allocation4], 256
    %v3429 = vld [vmem:[%s3428] sm:$0xf]
    %v3430 = vld [vmem:[%s3428 + $0x4] sm:$0xf]
    %v3431 = vld [vmem:[%s3428 + $0x8] sm:$0xf]
    %v3432 = vld [vmem:[%s3428 + $0xc] sm:$0xf]
    %v3433 = vld [vmem:[%s3428 + $0x10] sm:$0xf]
    %v3434 = vld [vmem:[%s3428 + $0x14] sm:$0xf]
    %v3435 = vld [vmem:[%s3428 + $0x18] sm:$0xf]
    %v3436 = vld [vmem:[%s3428 + $0x1c] sm:$0xf]
    %v3437 = vld [vmem:[%s3428 + $0x20] sm:$0xf]
    %v3438 = vld [vmem:[%s3428 + $0x24] sm:$0xf]
    %v3439 = vld [vmem:[%s3428 + $0x28] sm:$0xf]
    %v3440 = vld [vmem:[%s3428 + $0x2c] sm:$0xf]
    %v3441 = vld [vmem:[%s3428 + $0x30] sm:$0xf]
    %v3442 = vld [vmem:[%s3428 + $0x34] sm:$0xf]
    %v3443 = vld [vmem:[%s3428 + $0x38] sm:$0xf]
    %v3444 = vld [vmem:[%s3428 + $0x3c] sm:$0xf]
    %s3445 = scalar_lea.vmem %s4, 4
    %v3446 = vld [vmem:[%s3445] sm:$0x1]
    %v3447 = vpack.c.bf16 %v3380, %v3380
    %v3449 = vlaneseq
    %v3450 = vshrl.u32 %v3449, 7
    %v3451 = vsub.s32 0, %v3450
    %v3452 = vrot.slane %v3446, %v3451
    %v3470 = vunpack.c.l.b16 %v3429
    %v3471 = vunpack.c.l.b16 %v3430
    %v3472 = vunpack.c.l.b16 %v3431
    %v3473 = vunpack.c.l.b16 %v3432
    %v3474 = vunpack.c.l.b16 %v3433
    %v3475 = vunpack.c.l.b16 %v3434
    %v3476 = vunpack.c.l.b16 %v3435
    %v3477 = vunpack.c.l.b16 %v3436
    %v3478 = vunpack.c.l.b16 %v3437
    %v3479 = vunpack.c.l.b16 %v3438
    %v3480 = vunpack.c.l.b16 %v3439
    %v3481 = vunpack.c.l.b16 %v3440
    %v3482 = vunpack.c.l.b16 %v3441
    %v3483 = vunpack.c.l.b16 %v3442
    %v3484 = vunpack.c.l.b16 %v3443
    %v3485 = vunpack.c.l.b16 %v3444
    %v3486 = vpack.c.b16 %v3471, %v3470
    %v3487 = vpack.c.b16 %v3473, %v3472
    %v3488 = vpack.c.b16 %v3475, %v3474
    %v3489 = vpack.c.b16 %v3477, %v3476
    %v3490 = vpack.c.b16 %v3479, %v3478
    %v3491 = vpack.c.b16 %v3481, %v3480
    %v3492 = vpack.c.b16 %v3483, %v3482
    %v3493 = vpack.c.b16 %v3485, %v3484
    %3502 = vmatprep.subr.bf16.mxu0 0
    %3503 = vmatpush1.bf16.msra.mxu0 %v3493
    %3504 = vmatprep.subr.bf16.mxu0 0
    %3505 = vmatpush1.bf16.msra.mxu0 %v3492
    %3506 = vmatprep.subr.bf16.mxu0 0
    %3507 = vmatpush1.bf16.msra.mxu0 %v3491
    %3508 = vmatprep.subr.bf16.mxu0 0
    %3509 = vmatpush1.bf16.msra.mxu0 %v3490
    %3510 = vmatprep.subr.bf16.mxu0 0
    %3511 = vmatpush1.bf16.msra.mxu0 %v3489
    %3512 = vmatprep.subr.bf16.mxu0 0
    %3513 = vmatpush1.bf16.msra.mxu0 %v3488
    %3514 = vmatprep.subr.bf16.mxu0 0
    %3515 = vmatpush1.bf16.msra.mxu0 %v3487
    %3516 = vmatprep.subr.bf16.mxu0 0
    %3517 = vmatpush1.bf16.msra.mxu0 %v3486
    %3518 = vmatprep.subr.bf16.mxu0 0
    %3519 = vmatpush2.bf16.msra.mxu0 0
    %3520 = vmatprep.subr.bf16.mxu0 0
    %3521 = vmatpush2.bf16.msra.mxu0 0
    %3522 = vmatprep.subr.bf16.mxu0 0
    %3523 = vmatpush2.bf16.msra.mxu0 0
    %3524 = vmatprep.subr.bf16.mxu0 0
    %3525 = vmatpush2.bf16.msra.mxu0 0
    %3526 = vmatprep.subr.bf16.mxu0 0
    %3527 = vmatpush2.bf16.msra.mxu0 0
    %3528 = vmatprep.subr.bf16.mxu0 0
    %3529 = vmatpush2.bf16.msra.mxu0 0
    %3530 = vmatprep.subr.bf16.mxu0 0
    %3531 = vmatpush2.bf16.msra.mxu0 0
    %3532 = vmatprep.subr.bf16.mxu0 0
    %3533 = vmatpush2.bf16.msra.mxu0 0
    %3534 = vmatprep.mubr.bf16.mxu0 0
    %3535 = vmatmul.mubr.bf16.gmra.mxu0 %v3447
    %v3536 = vpop.f32.mrf.mxu0
    %v3537 = vadd.f32 %v3452, %v3536
    %v3538 = vpop.f32.mrf.mxu0
    %v3539 = vpop.f32.mrf.mxu0
    %v3540 = vpop.f32.mrf.mxu0
    %3541 = vdwg.mxu0
    %vm3542 = vcmp.gt.f32.partialorder %v3537, 0.0
    %v3543 = vmin.f32 %v3537, 0.0
    %v3544 = vmul.f32 %v3543, 1.442695
    %v3545 = vpow.pop %v3544
    %v3546 = vsub.f32 %v3545, 1.0
    %v3547 = vsel %vm3542, %v3537, %v3546
    %v3548 = vpack.c.bf16 %v3427, %v3427
    %3549 = vmatprep.subr.bf16.mxu0 0
    %3550 = vmatpush1.bf16.msra.mxu0 %v3493
    %3551 = vmatprep.subr.bf16.mxu0 0
    %3552 = vmatpush1.bf16.msra.mxu0 %v3492
    %3553 = vmatprep.subr.bf16.mxu0 0
    %3554 = vmatpush1.bf16.msra.mxu0 %v3491
    %3555 = vmatprep.subr.bf16.mxu0 0
    %3556 = vmatpush1.bf16.msra.mxu0 %v3490
    %3557 = vmatprep.subr.bf16.mxu0 0
    %3558 = vmatpush1.bf16.msra.mxu0 %v3489
    %3559 = vmatprep.subr.bf16.mxu0 0
    %3560 = vmatpush1.bf16.msra.mxu0 %v3488
    %3561 = vmatprep.subr.bf16.mxu0 0
    %3562 = vmatpush1.bf16.msra.mxu0 %v3487
    %3563 = vmatprep.subr.bf16.mxu0 0
    %3564 = vmatpush1.bf16.msra.mxu0 %v3486
    %3565 = vmatprep.subr.bf16.mxu0 0
    %3566 = vmatpush2.bf16.msra.mxu0 0
    %3567 = vmatprep.subr.bf16.mxu0 0
    %3568 = vmatpush2.bf16.msra.mxu0 0
    %3569 = vmatprep.subr.bf16.mxu0 0
    %3570 = vmatpush2.bf16.msra.mxu0 0
    %3571 = vmatprep.subr.bf16.mxu0 0
    %3572 = vmatpush2.bf16.msra.mxu0 0
    %3573 = vmatprep.subr.bf16.mxu0 0
    %3574 = vmatpush2.bf16.msra.mxu0 0
    %3575 = vmatprep.subr.bf16.mxu0 0
    %3576 = vmatpush2.bf16.msra.mxu0 0
    %3577 = vmatprep.subr.bf16.mxu0 0
    %3578 = vmatpush2.bf16.msra.mxu0 0
    %3579 = vmatprep.subr.bf16.mxu0 0
    %3580 = vmatpush2.bf16.msra.mxu0 0
    %3581 = vmatprep.mubr.bf16.mxu0 0
    %3582 = vmatmul.mubr.bf16.gmra.mxu0 %v3548
    %v3583 = vpop.f32.mrf.mxu0
    %v3584 = vadd.f32 %v3452, %v3583
    %v3585 = vpop.f32.mrf.mxu0
    %v3586 = vpop.f32.mrf.mxu0
    %v3587 = vpop.f32.mrf.mxu0
    %3588 = vdwg.mxu0
    %vm3589 = vcmp.gt.f32.partialorder %v3584, 0.0
    %v3590 = vmin.f32 %v3584, 0.0
    %v3591 = vmul.f32 %v3590, 1.442695
    %v3592 = vpow.pop %v3591
    %v3593 = vsub.f32 %v3592, 1.0
    %v3594 = vsel %vm3589, %v3584, %v3593
    %s3595 = scalar_lea.vmem [#allocation4], 320
    %v3596 = vld [vmem:[%s3595] sm:$0xf]
    %v3597 = vld [vmem:[%s3595 + $0x4] sm:$0xf]
    %v3598 = vld [vmem:[%s3595 + $0x8] sm:$0xf]
    %v3599 = vld [vmem:[%s3595 + $0xc] sm:$0xf]
    %v3600 = vld [vmem:[%s3595 + $0x10] sm:$0xf]
    %v3601 = vld [vmem:[%s3595 + $0x14] sm:$0xf]
    %v3602 = vld [vmem:[%s3595 + $0x18] sm:$0xf]
    %v3603 = vld [vmem:[%s3595 + $0x1c] sm:$0xf]
    %v3604 = vld [vmem:[%s3595 + $0x20] sm:$0xf]
    %v3605 = vld [vmem:[%s3595 + $0x24] sm:$0xf]
    %v3606 = vld [vmem:[%s3595 + $0x28] sm:$0xf]
    %v3607 = vld [vmem:[%s3595 + $0x2c] sm:$0xf]
    %v3608 = vld [vmem:[%s3595 + $0x30] sm:$0xf]
    %v3609 = vld [vmem:[%s3595 + $0x34] sm:$0xf]
    %v3610 = vld [vmem:[%s3595 + $0x38] sm:$0xf]
    %v3611 = vld [vmem:[%s3595 + $0x3c] sm:$0xf]
    %s3612 = scalar_lea.vmem %s4, 5
    %v3613 = vld [vmem:[%s3612] sm:$0x1]
    %v3614 = vpack.c.bf16 %v3547, %v3547
    %v3616 = vlaneseq
    %v3617 = vshrl.u32 %v3616, 7
    %v3618 = vsub.s32 0, %v3617
    %v3619 = vrot.slane %v3613, %v3618
    %v3637 = vunpack.c.l.b16 %v3596
    %v3638 = vunpack.c.l.b16 %v3597
    %v3639 = vunpack.c.l.b16 %v3598
    %v3640 = vunpack.c.l.b16 %v3599
    %v3641 = vunpack.c.l.b16 %v3600
    %v3642 = vunpack.c.l.b16 %v3601
    %v3643 = vunpack.c.l.b16 %v3602
    %v3644 = vunpack.c.l.b16 %v3603
    %v3645 = vunpack.c.l.b16 %v3604
    %v3646 = vunpack.c.l.b16 %v3605
    %v3647 = vunpack.c.l.b16 %v3606
    %v3648 = vunpack.c.l.b16 %v3607
    %v3649 = vunpack.c.l.b16 %v3608
    %v3650 = vunpack.c.l.b16 %v3609
    %v3651 = vunpack.c.l.b16 %v3610
    %v3652 = vunpack.c.l.b16 %v3611
    %v3653 = vpack.c.b16 %v3638, %v3637
    %v3654 = vpack.c.b16 %v3640, %v3639
    %v3655 = vpack.c.b16 %v3642, %v3641
    %v3656 = vpack.c.b16 %v3644, %v3643
    %v3657 = vpack.c.b16 %v3646, %v3645
    %v3658 = vpack.c.b16 %v3648, %v3647
    %v3659 = vpack.c.b16 %v3650, %v3649
    %v3660 = vpack.c.b16 %v3652, %v3651
    %3669 = vmatprep.subr.bf16.mxu0 0
    %3670 = vmatpush1.bf16.msra.mxu0 %v3660
    %3671 = vmatprep.subr.bf16.mxu0 0
    %3672 = vmatpush1.bf16.msra.mxu0 %v3659
    %3673 = vmatprep.subr.bf16.mxu0 0
    %3674 = vmatpush1.bf16.msra.mxu0 %v3658
    %3675 = vmatprep.subr.bf16.mxu0 0
    %3676 = vmatpush1.bf16.msra.mxu0 %v3657
    %3677 = vmatprep.subr.bf16.mxu0 0
    %3678 = vmatpush1.bf16.msra.mxu0 %v3656
    %3679 = vmatprep.subr.bf16.mxu0 0
    %3680 = vmatpush1.bf16.msra.mxu0 %v3655
    %3681 = vmatprep.subr.bf16.mxu0 0
    %3682 = vmatpush1.bf16.msra.mxu0 %v3654
    %3683 = vmatprep.subr.bf16.mxu0 0
    %3684 = vmatpush1.bf16.msra.mxu0 %v3653
    %3685 = vmatprep.subr.bf16.mxu0 0
    %3686 = vmatpush2.bf16.msra.mxu0 0
    %3687 = vmatprep.subr.bf16.mxu0 0
    %3688 = vmatpush2.bf16.msra.mxu0 0
    %3689 = vmatprep.subr.bf16.mxu0 0
    %3690 = vmatpush2.bf16.msra.mxu0 0
    %3691 = vmatprep.subr.bf16.mxu0 0
    %3692 = vmatpush2.bf16.msra.mxu0 0
    %3693 = vmatprep.subr.bf16.mxu0 0
    %3694 = vmatpush2.bf16.msra.mxu0 0
    %3695 = vmatprep.subr.bf16.mxu0 0
    %3696 = vmatpush2.bf16.msra.mxu0 0
    %3697 = vmatprep.subr.bf16.mxu0 0
    %3698 = vmatpush2.bf16.msra.mxu0 0
    %3699 = vmatprep.subr.bf16.mxu0 0
    %3700 = vmatpush2.bf16.msra.mxu0 0
    %3701 = vmatprep.mubr.bf16.mxu0 0
    %3702 = vmatmul.mubr.bf16.gmra.mxu0 %v3614
    %v3703 = vpop.f32.mrf.mxu0
    %v3704 = vadd.f32 %v3619, %v3703
    %v3705 = vpop.f32.mrf.mxu0
    %v3706 = vpop.f32.mrf.mxu0
    %v3707 = vpop.f32.mrf.mxu0
    %3708 = vdwg.mxu0
    %vm3709 = vcmp.gt.f32.partialorder %v3704, 0.0
    %v3710 = vmin.f32 %v3704, 0.0
    %v3711 = vmul.f32 %v3710, 1.442695
    %v3712 = vpow.pop %v3711
    %v3713 = vsub.f32 %v3712, 1.0
    %v3714 = vsel %vm3709, %v3704, %v3713
    %v3715 = vpack.c.bf16 %v3594, %v3594
    %3716 = vmatprep.subr.bf16.mxu0 0
    %3717 = vmatpush1.bf16.msra.mxu0 %v3660
    %3718 = vmatprep.subr.bf16.mxu0 0
    %3719 = vmatpush1.bf16.msra.mxu0 %v3659
    %3720 = vmatprep.subr.bf16.mxu0 0
    %3721 = vmatpush1.bf16.msra.mxu0 %v3658
    %3722 = vmatprep.subr.bf16.mxu0 0
    %3723 = vmatpush1.bf16.msra.mxu0 %v3657
    %3724 = vmatprep.subr.bf16.mxu0 0
    %3725 = vmatpush1.bf16.msra.mxu0 %v3656
    %3726 = vmatprep.subr.bf16.mxu0 0
    %3727 = vmatpush1.bf16.msra.mxu0 %v3655
    %3728 = vmatprep.subr.bf16.mxu0 0
    %3729 = vmatpush1.bf16.msra.mxu0 %v3654
    %3730 = vmatprep.subr.bf16.mxu0 0
    %3731 = vmatpush1.bf16.msra.mxu0 %v3653
    %3732 = vmatprep.subr.bf16.mxu0 0
    %3733 = vmatpush2.bf16.msra.mxu0 0
    %3734 = vmatprep.subr.bf16.mxu0 0
    %3735 = vmatpush2.bf16.msra.mxu0 0
    %3736 = vmatprep.subr.bf16.mxu0 0
    %3737 = vmatpush2.bf16.msra.mxu0 0
    %3738 = vmatprep.subr.bf16.mxu0 0
    %3739 = vmatpush2.bf16.msra.mxu0 0
    %3740 = vmatprep.subr.bf16.mxu0 0
    %3741 = vmatpush2.bf16.msra.mxu0 0
    %3742 = vmatprep.subr.bf16.mxu0 0
    %3743 = vmatpush2.bf16.msra.mxu0 0
    %3744 = vmatprep.subr.bf16.mxu0 0
    %3745 = vmatpush2.bf16.msra.mxu0 0
    %3746 = vmatprep.subr.bf16.mxu0 0
    %3747 = vmatpush2.bf16.msra.mxu0 0
    %3748 = vmatprep.mubr.bf16.mxu0 0
    %3749 = vmatmul.mubr.bf16.gmra.mxu0 %v3715
    %v3750 = vpop.f32.mrf.mxu0
    %v3751 = vadd.f32 %v3619, %v3750
    %v3752 = vpop.f32.mrf.mxu0
    %v3753 = vpop.f32.mrf.mxu0
    %v3754 = vpop.f32.mrf.mxu0
    %3755 = vdwg.mxu0
    %vm3756 = vcmp.gt.f32.partialorder %v3751, 0.0
    %v3757 = vmin.f32 %v3751, 0.0
    %v3758 = vmul.f32 %v3757, 1.442695
    %v3759 = vpow.pop %v3758
    %v3760 = vsub.f32 %v3759, 1.0
    %v3761 = vsel %vm3756, %v3751, %v3760
    %s3762 = scalar_lea.vmem [#allocation4], 384
    %v3763 = vld [vmem:[%s3762] sm:$0xf]
    %v3764 = vld [vmem:[%s3762 + $0x4] sm:$0xf]
    %v3765 = vld [vmem:[%s3762 + $0x8] sm:$0xf]
    %v3766 = vld [vmem:[%s3762 + $0xc] sm:$0xf]
    %v3767 = vld [vmem:[%s3762 + $0x10] sm:$0xf]
    %v3768 = vld [vmem:[%s3762 + $0x14] sm:$0xf]
    %v3769 = vld [vmem:[%s3762 + $0x18] sm:$0xf]
    %v3770 = vld [vmem:[%s3762 + $0x1c] sm:$0xf]
    %v3771 = vld [vmem:[%s3762 + $0x20] sm:$0xf]
    %v3772 = vld [vmem:[%s3762 + $0x24] sm:$0xf]
    %v3773 = vld [vmem:[%s3762 + $0x28] sm:$0xf]
    %v3774 = vld [vmem:[%s3762 + $0x2c] sm:$0xf]
    %v3775 = vld [vmem:[%s3762 + $0x30] sm:$0xf]
    %v3776 = vld [vmem:[%s3762 + $0x34] sm:$0xf]
    %v3777 = vld [vmem:[%s3762 + $0x38] sm:$0xf]
    %v3778 = vld [vmem:[%s3762 + $0x3c] sm:$0xf]
    %s3779 = scalar_lea.vmem %s4, 6
    %v3780 = vld [vmem:[%s3779] sm:$0x1]
    %v3781 = vpack.c.bf16 %v3714, %v3714
    %v3783 = vlaneseq
    %v3784 = vshrl.u32 %v3783, 7
    %v3785 = vsub.s32 0, %v3784
    %v3786 = vrot.slane %v3780, %v3785
    %v3804 = vunpack.c.l.b16 %v3763
    %v3805 = vunpack.c.l.b16 %v3764
    %v3806 = vunpack.c.l.b16 %v3765
    %v3807 = vunpack.c.l.b16 %v3766
    %v3808 = vunpack.c.l.b16 %v3767
    %v3809 = vunpack.c.l.b16 %v3768
    %v3810 = vunpack.c.l.b16 %v3769
    %v3811 = vunpack.c.l.b16 %v3770
    %v3812 = vunpack.c.l.b16 %v3771
    %v3813 = vunpack.c.l.b16 %v3772
    %v3814 = vunpack.c.l.b16 %v3773
    %v3815 = vunpack.c.l.b16 %v3774
    %v3816 = vunpack.c.l.b16 %v3775
    %v3817 = vunpack.c.l.b16 %v3776
    %v3818 = vunpack.c.l.b16 %v3777
    %v3819 = vunpack.c.l.b16 %v3778
    %v3820 = vpack.c.b16 %v3805, %v3804
    %v3821 = vpack.c.b16 %v3807, %v3806
    %v3822 = vpack.c.b16 %v3809, %v3808
    %v3823 = vpack.c.b16 %v3811, %v3810
    %v3824 = vpack.c.b16 %v3813, %v3812
    %v3825 = vpack.c.b16 %v3815, %v3814
    %v3826 = vpack.c.b16 %v3817, %v3816
    %v3827 = vpack.c.b16 %v3819, %v3818
    %3836 = vmatprep.subr.bf16.mxu0 0
    %3837 = vmatpush1.bf16.msra.mxu0 %v3827
    %3838 = vmatprep.subr.bf16.mxu0 0
    %3839 = vmatpush1.bf16.msra.mxu0 %v3826
    %3840 = vmatprep.subr.bf16.mxu0 0
    %3841 = vmatpush1.bf16.msra.mxu0 %v3825
    %3842 = vmatprep.subr.bf16.mxu0 0
    %3843 = vmatpush1.bf16.msra.mxu0 %v3824
    %3844 = vmatprep.subr.bf16.mxu0 0
    %3845 = vmatpush1.bf16.msra.mxu0 %v3823
    %3846 = vmatprep.subr.bf16.mxu0 0
    %3847 = vmatpush1.bf16.msra.mxu0 %v3822
    %3848 = vmatprep.subr.bf16.mxu0 0
    %3849 = vmatpush1.bf16.msra.mxu0 %v3821
    %3850 = vmatprep.subr.bf16.mxu0 0
    %3851 = vmatpush1.bf16.msra.mxu0 %v3820
    %3852 = vmatprep.subr.bf16.mxu0 0
    %3853 = vmatpush2.bf16.msra.mxu0 0
    %3854 = vmatprep.subr.bf16.mxu0 0
    %3855 = vmatpush2.bf16.msra.mxu0 0
    %3856 = vmatprep.subr.bf16.mxu0 0
    %3857 = vmatpush2.bf16.msra.mxu0 0
    %3858 = vmatprep.subr.bf16.mxu0 0
    %3859 = vmatpush2.bf16.msra.mxu0 0
    %3860 = vmatprep.subr.bf16.mxu0 0
    %3861 = vmatpush2.bf16.msra.mxu0 0
    %3862 = vmatprep.subr.bf16.mxu0 0
    %3863 = vmatpush2.bf16.msra.mxu0 0
    %3864 = vmatprep.subr.bf16.mxu0 0
    %3865 = vmatpush2.bf16.msra.mxu0 0
    %3866 = vmatprep.subr.bf16.mxu0 0
    %3867 = vmatpush2.bf16.msra.mxu0 0
    %3868 = vmatprep.mubr.bf16.mxu0 0
    %3869 = vmatmul.mubr.bf16.gmra.mxu0 %v3781
    %v3870 = vpop.f32.mrf.mxu0
    %v3871 = vadd.f32 %v3786, %v3870
    %v3872 = vpop.f32.mrf.mxu0
    %v3873 = vpop.f32.mrf.mxu0
    %v3874 = vpop.f32.mrf.mxu0
    %3875 = vdwg.mxu0
    %vm3876 = vcmp.gt.f32.partialorder %v3871, 0.0
    %v3877 = vmin.f32 %v3871, 0.0
    %v3878 = vmul.f32 %v3877, 1.442695
    %v3879 = vpow.pop %v3878
    %v3880 = vsub.f32 %v3879, 1.0
    %v3881 = vsel %vm3876, %v3871, %v3880
    %v3882 = vpack.c.bf16 %v3761, %v3761
    %3883 = vmatprep.subr.bf16.mxu0 0
    %3884 = vmatpush1.bf16.msra.mxu0 %v3827
    %3885 = vmatprep.subr.bf16.mxu0 0
    %3886 = vmatpush1.bf16.msra.mxu0 %v3826
    %3887 = vmatprep.subr.bf16.mxu0 0
    %3888 = vmatpush1.bf16.msra.mxu0 %v3825
    %3889 = vmatprep.subr.bf16.mxu0 0
    %3890 = vmatpush1.bf16.msra.mxu0 %v3824
    %3891 = vmatprep.subr.bf16.mxu0 0
    %3892 = vmatpush1.bf16.msra.mxu0 %v3823
    %3893 = vmatprep.subr.bf16.mxu0 0
    %3894 = vmatpush1.bf16.msra.mxu0 %v3822
    %3895 = vmatprep.subr.bf16.mxu0 0
    %3896 = vmatpush1.bf16.msra.mxu0 %v3821
    %3897 = vmatprep.subr.bf16.mxu0 0
    %3898 = vmatpush1.bf16.msra.mxu0 %v3820
    %3899 = vmatprep.subr.bf16.mxu0 0
    %3900 = vmatpush2.bf16.msra.mxu0 0
    %3901 = vmatprep.subr.bf16.mxu0 0
    %3902 = vmatpush2.bf16.msra.mxu0 0
    %3903 = vmatprep.subr.bf16.mxu0 0
    %3904 = vmatpush2.bf16.msra.mxu0 0
    %3905 = vmatprep.subr.bf16.mxu0 0
    %3906 = vmatpush2.bf16.msra.mxu0 0
    %3907 = vmatprep.subr.bf16.mxu0 0
    %3908 = vmatpush2.bf16.msra.mxu0 0
    %3909 = vmatprep.subr.bf16.mxu0 0
    %3910 = vmatpush2.bf16.msra.mxu0 0
    %3911 = vmatprep.subr.bf16.mxu0 0
    %3912 = vmatpush2.bf16.msra.mxu0 0
    %3913 = vmatprep.subr.bf16.mxu0 0
    %3914 = vmatpush2.bf16.msra.mxu0 0
    %3915 = vmatprep.mubr.bf16.mxu0 0
    %3916 = vmatmul.mubr.bf16.gmra.mxu0 %v3882
    %v3917 = vpop.f32.mrf.mxu0
    %v3918 = vadd.f32 %v3786, %v3917
    %v3919 = vpop.f32.mrf.mxu0
    %v3920 = vpop.f32.mrf.mxu0
    %v3921 = vpop.f32.mrf.mxu0
    %3922 = vdwg.mxu0
    %vm3923 = vcmp.gt.f32.partialorder %v3918, 0.0
    %v3924 = vmin.f32 %v3918, 0.0
    %v3925 = vmul.f32 %v3924, 1.442695
    %v3926 = vpow.pop %v3925
    %v3927 = vsub.f32 %v3926, 1.0
    %v3928 = vsel %vm3923, %v3918, %v3927
    %s3929 = scalar_lea.vmem [#allocation4], 448
    %v3930 = vld [vmem:[%s3929] sm:$0xf]
    %v3931 = vld [vmem:[%s3929 + $0x4] sm:$0xf]
    %v3932 = vld [vmem:[%s3929 + $0x8] sm:$0xf]
    %v3933 = vld [vmem:[%s3929 + $0xc] sm:$0xf]
    %v3934 = vld [vmem:[%s3929 + $0x10] sm:$0xf]
    %v3935 = vld [vmem:[%s3929 + $0x14] sm:$0xf]
    %v3936 = vld [vmem:[%s3929 + $0x18] sm:$0xf]
    %v3937 = vld [vmem:[%s3929 + $0x1c] sm:$0xf]
    %v3938 = vld [vmem:[%s3929 + $0x20] sm:$0xf]
    %v3939 = vld [vmem:[%s3929 + $0x24] sm:$0xf]
    %v3940 = vld [vmem:[%s3929 + $0x28] sm:$0xf]
    %v3941 = vld [vmem:[%s3929 + $0x2c] sm:$0xf]
    %v3942 = vld [vmem:[%s3929 + $0x30] sm:$0xf]
    %v3943 = vld [vmem:[%s3929 + $0x34] sm:$0xf]
    %v3944 = vld [vmem:[%s3929 + $0x38] sm:$0xf]
    %v3945 = vld [vmem:[%s3929 + $0x3c] sm:$0xf]
    %s3946 = scalar_lea.vmem %s4, 7
    %v3947 = vld [vmem:[%s3946] sm:$0x1]
    %v3948 = vpack.c.bf16 %v3881, %v3881
    %v3950 = vlaneseq
    %v3951 = vshrl.u32 %v3950, 7
    %v3952 = vsub.s32 0, %v3951
    %v3953 = vrot.slane %v3947, %v3952
    %v3971 = vunpack.c.l.b16 %v3930
    %v3972 = vunpack.c.l.b16 %v3931
    %v3973 = vunpack.c.l.b16 %v3932
    %v3974 = vunpack.c.l.b16 %v3933
    %v3975 = vunpack.c.l.b16 %v3934
    %v3976 = vunpack.c.l.b16 %v3935
    %v3977 = vunpack.c.l.b16 %v3936
    %v3978 = vunpack.c.l.b16 %v3937
    %v3979 = vunpack.c.l.b16 %v3938
    %v3980 = vunpack.c.l.b16 %v3939
    %v3981 = vunpack.c.l.b16 %v3940
    %v3982 = vunpack.c.l.b16 %v3941
    %v3983 = vunpack.c.l.b16 %v3942
    %v3984 = vunpack.c.l.b16 %v3943
    %v3985 = vunpack.c.l.b16 %v3944
    %v3986 = vunpack.c.l.b16 %v3945
    %v3987 = vpack.c.b16 %v3972, %v3971
    %v3988 = vpack.c.b16 %v3974, %v3973
    %v3989 = vpack.c.b16 %v3976, %v3975
    %v3990 = vpack.c.b16 %v3978, %v3977
    %v3991 = vpack.c.b16 %v3980, %v3979
    %v3992 = vpack.c.b16 %v3982, %v3981
    %v3993 = vpack.c.b16 %v3984, %v3983
    %v3994 = vpack.c.b16 %v3986, %v3985
    %4003 = vmatprep.subr.bf16.mxu0 0
    %4004 = vmatpush1.bf16.msra.mxu0 %v3994
    %4005 = vmatprep.subr.bf16.mxu0 0
    %4006 = vmatpush1.bf16.msra.mxu0 %v3993
    %4007 = vmatprep.subr.bf16.mxu0 0
    %4008 = vmatpush1.bf16.msra.mxu0 %v3992
    %4009 = vmatprep.subr.bf16.mxu0 0
    %4010 = vmatpush1.bf16.msra.mxu0 %v3991
    %4011 = vmatprep.subr.bf16.mxu0 0
    %4012 = vmatpush1.bf16.msra.mxu0 %v3990
    %4013 = vmatprep.subr.bf16.mxu0 0
    %4014 = vmatpush1.bf16.msra.mxu0 %v3989
    %4015 = vmatprep.subr.bf16.mxu0 0
    %4016 = vmatpush1.bf16.msra.mxu0 %v3988
    %4017 = vmatprep.subr.bf16.mxu0 0
    %4018 = vmatpush1.bf16.msra.mxu0 %v3987
    %4019 = vmatprep.subr.bf16.mxu0 0
    %4020 = vmatpush2.bf16.msra.mxu0 0
    %4021 = vmatprep.subr.bf16.mxu0 0
    %4022 = vmatpush2.bf16.msra.mxu0 0
    %4023 = vmatprep.subr.bf16.mxu0 0
    %4024 = vmatpush2.bf16.msra.mxu0 0
    %4025 = vmatprep.subr.bf16.mxu0 0
    %4026 = vmatpush2.bf16.msra.mxu0 0
    %4027 = vmatprep.subr.bf16.mxu0 0
    %4028 = vmatpush2.bf16.msra.mxu0 0
    %4029 = vmatprep.subr.bf16.mxu0 0
    %4030 = vmatpush2.bf16.msra.mxu0 0
    %4031 = vmatprep.subr.bf16.mxu0 0
    %4032 = vmatpush2.bf16.msra.mxu0 0
    %4033 = vmatprep.subr.bf16.mxu0 0
    %4034 = vmatpush2.bf16.msra.mxu0 0
    %4035 = vmatprep.mubr.bf16.mxu0 0
    %4036 = vmatmul.mubr.bf16.gmra.mxu0 %v3948
    %v4037 = vpop.f32.mrf.mxu0
    %v4038 = vadd.f32 %v3953, %v4037
    %v4039 = vpop.f32.mrf.mxu0
    %v4040 = vpop.f32.mrf.mxu0
    %v4041 = vpop.f32.mrf.mxu0
    %4042 = vdwg.mxu0
    %vm4043 = vcmp.gt.f32.partialorder %v4038, 0.0
    %v4044 = vmin.f32 %v4038, 0.0
    %v4045 = vmul.f32 %v4044, 1.442695
    %v4046 = vpow.pop %v4045
    %v4047 = vsub.f32 %v4046, 1.0
    %v4048 = vsel %vm4043, %v4038, %v4047
    %v4049 = vpack.c.bf16 %v3928, %v3928
    %4050 = vmatprep.subr.bf16.mxu0 0
    %4051 = vmatpush1.bf16.msra.mxu0 %v3994
    %4052 = vmatprep.subr.bf16.mxu0 0
    %4053 = vmatpush1.bf16.msra.mxu0 %v3993
    %4054 = vmatprep.subr.bf16.mxu0 0
    %4055 = vmatpush1.bf16.msra.mxu0 %v3992
    %4056 = vmatprep.subr.bf16.mxu0 0
    %4057 = vmatpush1.bf16.msra.mxu0 %v3991
    %4058 = vmatprep.subr.bf16.mxu0 0
    %4059 = vmatpush1.bf16.msra.mxu0 %v3990
    %4060 = vmatprep.subr.bf16.mxu0 0
    %4061 = vmatpush1.bf16.msra.mxu0 %v3989
    %4062 = vmatprep.subr.bf16.mxu0 0
    %4063 = vmatpush1.bf16.msra.mxu0 %v3988
    %4064 = vmatprep.subr.bf16.mxu0 0
    %4065 = vmatpush1.bf16.msra.mxu0 %v3987
    %4066 = vmatprep.subr.bf16.mxu0 0
    %4067 = vmatpush2.bf16.msra.mxu0 0
    %4068 = vmatprep.subr.bf16.mxu0 0
    %4069 = vmatpush2.bf16.msra.mxu0 0
    %4070 = vmatprep.subr.bf16.mxu0 0
    %4071 = vmatpush2.bf16.msra.mxu0 0
    %4072 = vmatprep.subr.bf16.mxu0 0
    %4073 = vmatpush2.bf16.msra.mxu0 0
    %4074 = vmatprep.subr.bf16.mxu0 0
    %4075 = vmatpush2.bf16.msra.mxu0 0
    %4076 = vmatprep.subr.bf16.mxu0 0
    %4077 = vmatpush2.bf16.msra.mxu0 0
    %4078 = vmatprep.subr.bf16.mxu0 0
    %4079 = vmatpush2.bf16.msra.mxu0 0
    %4080 = vmatprep.subr.bf16.mxu0 0
    %4081 = vmatpush2.bf16.msra.mxu0 0
    %4082 = vmatprep.mubr.bf16.mxu0 0
    %4083 = vmatmul.mubr.bf16.gmra.mxu0 %v4049
    %v4084 = vpop.f32.mrf.mxu0
    %v4085 = vadd.f32 %v3953, %v4084
    %v4086 = vpop.f32.mrf.mxu0
    %v4087 = vpop.f32.mrf.mxu0
    %v4088 = vpop.f32.mrf.mxu0
    %4089 = vdwg.mxu0
    %vm4090 = vcmp.gt.f32.partialorder %v4085, 0.0
    %v4091 = vmin.f32 %v4085, 0.0
    %v4092 = vmul.f32 %v4091, 1.442695
    %v4093 = vpow.pop %v4092
    %v4094 = vsub.f32 %v4093, 1.0
    %v4095 = vsel %vm4090, %v4085, %v4094
    %s4096 = scalar_lea.vmem [#allocation4], 512
    %v4097 = vld [vmem:[%s4096] sm:$0xf]
    %v4098 = vld [vmem:[%s4096 + $0x4] sm:$0xf]
    %v4099 = vld [vmem:[%s4096 + $0x8] sm:$0xf]
    %v4100 = vld [vmem:[%s4096 + $0xc] sm:$0xf]
    %v4101 = vld [vmem:[%s4096 + $0x10] sm:$0xf]
    %v4102 = vld [vmem:[%s4096 + $0x14] sm:$0xf]
    %v4103 = vld [vmem:[%s4096 + $0x18] sm:$0xf]
    %v4104 = vld [vmem:[%s4096 + $0x1c] sm:$0xf]
    %v4105 = vld [vmem:[%s4096 + $0x20] sm:$0xf]
    %v4106 = vld [vmem:[%s4096 + $0x24] sm:$0xf]
    %v4107 = vld [vmem:[%s4096 + $0x28] sm:$0xf]
    %v4108 = vld [vmem:[%s4096 + $0x2c] sm:$0xf]
    %v4109 = vld [vmem:[%s4096 + $0x30] sm:$0xf]
    %v4110 = vld [vmem:[%s4096 + $0x34] sm:$0xf]
    %v4111 = vld [vmem:[%s4096 + $0x38] sm:$0xf]
    %v4112 = vld [vmem:[%s4096 + $0x3c] sm:$0xf]
    %s4113 = scalar_lea.vmem %s4, 8
    %v4114 = vld [vmem:[%s4113] sm:$0x1]
    %v4115 = vpack.c.bf16 %v4048, %v4048
    %v4117 = vlaneseq
    %v4118 = vshrl.u32 %v4117, 7
    %v4119 = vsub.s32 0, %v4118
    %v4120 = vrot.slane %v4114, %v4119
    %v4138 = vunpack.c.l.b16 %v4097
    %v4139 = vunpack.c.l.b16 %v4098
    %v4140 = vunpack.c.l.b16 %v4099
    %v4141 = vunpack.c.l.b16 %v4100
    %v4142 = vunpack.c.l.b16 %v4101
    %v4143 = vunpack.c.l.b16 %v4102
    %v4144 = vunpack.c.l.b16 %v4103
    %v4145 = vunpack.c.l.b16 %v4104
    %v4146 = vunpack.c.l.b16 %v4105
    %v4147 = vunpack.c.l.b16 %v4106
    %v4148 = vunpack.c.l.b16 %v4107
    %v4149 = vunpack.c.l.b16 %v4108
    %v4150 = vunpack.c.l.b16 %v4109
    %v4151 = vunpack.c.l.b16 %v4110
    %v4152 = vunpack.c.l.b16 %v4111
    %v4153 = vunpack.c.l.b16 %v4112
    %v4154 = vpack.c.b16 %v4139, %v4138
    %v4155 = vpack.c.b16 %v4141, %v4140
    %v4156 = vpack.c.b16 %v4143, %v4142
    %v4157 = vpack.c.b16 %v4145, %v4144
    %v4158 = vpack.c.b16 %v4147, %v4146
    %v4159 = vpack.c.b16 %v4149, %v4148
    %v4160 = vpack.c.b16 %v4151, %v4150
    %v4161 = vpack.c.b16 %v4153, %v4152
    %4170 = vmatprep.subr.bf16.mxu0 0
    %4171 = vmatpush1.bf16.msra.mxu0 %v4161
    %4172 = vmatprep.subr.bf16.mxu0 0
    %4173 = vmatpush1.bf16.msra.mxu0 %v4160
    %4174 = vmatprep.subr.bf16.mxu0 0
    %4175 = vmatpush1.bf16.msra.mxu0 %v4159
    %4176 = vmatprep.subr.bf16.mxu0 0
    %4177 = vmatpush1.bf16.msra.mxu0 %v4158
    %4178 = vmatprep.subr.bf16.mxu0 0
    %4179 = vmatpush1.bf16.msra.mxu0 %v4157
    %4180 = vmatprep.subr.bf16.mxu0 0
    %4181 = vmatpush1.bf16.msra.mxu0 %v4156
    %4182 = vmatprep.subr.bf16.mxu0 0
    %4183 = vmatpush1.bf16.msra.mxu0 %v4155
    %4184 = vmatprep.subr.bf16.mxu0 0
    %4185 = vmatpush1.bf16.msra.mxu0 %v4154
    %4186 = vmatprep.subr.bf16.mxu0 0
    %4187 = vmatpush2.bf16.msra.mxu0 0
    %4188 = vmatprep.subr.bf16.mxu0 0
    %4189 = vmatpush2.bf16.msra.mxu0 0
    %4190 = vmatprep.subr.bf16.mxu0 0
    %4191 = vmatpush2.bf16.msra.mxu0 0
    %4192 = vmatprep.subr.bf16.mxu0 0
    %4193 = vmatpush2.bf16.msra.mxu0 0
    %4194 = vmatprep.subr.bf16.mxu0 0
    %4195 = vmatpush2.bf16.msra.mxu0 0
    %4196 = vmatprep.subr.bf16.mxu0 0
    %4197 = vmatpush2.bf16.msra.mxu0 0
    %4198 = vmatprep.subr.bf16.mxu0 0
    %4199 = vmatpush2.bf16.msra.mxu0 0
    %4200 = vmatprep.subr.bf16.mxu0 0
    %4201 = vmatpush2.bf16.msra.mxu0 0
    %4202 = vmatprep.mubr.bf16.mxu0 0
    %4203 = vmatmul.mubr.bf16.gmra.mxu0 %v4115
    %v4204 = vpop.f32.mrf.mxu0
    %v4205 = vadd.f32 %v4120, %v4204
    %v4206 = vpop.f32.mrf.mxu0
    %v4207 = vpop.f32.mrf.mxu0
    %v4208 = vpop.f32.mrf.mxu0
    %4209 = vdwg.mxu0
    %vm4210 = vcmp.gt.f32.partialorder %v4205, 0.0
    %v4211 = vmin.f32 %v4205, 0.0
    %v4212 = vmul.f32 %v4211, 1.442695
    %v4213 = vpow.pop %v4212
    %v4214 = vsub.f32 %v4213, 1.0
    %v4215 = vsel %vm4210, %v4205, %v4214
    %v4216 = vpack.c.bf16 %v4095, %v4095
    %4217 = vmatprep.subr.bf16.mxu0 0
    %4218 = vmatpush1.bf16.msra.mxu0 %v4161
    %4219 = vmatprep.subr.bf16.mxu0 0
    %4220 = vmatpush1.bf16.msra.mxu0 %v4160
    %4221 = vmatprep.subr.bf16.mxu0 0
    %4222 = vmatpush1.bf16.msra.mxu0 %v4159
    %4223 = vmatprep.subr.bf16.mxu0 0
    %4224 = vmatpush1.bf16.msra.mxu0 %v4158
    %4225 = vmatprep.subr.bf16.mxu0 0
    %4226 = vmatpush1.bf16.msra.mxu0 %v4157
    %4227 = vmatprep.subr.bf16.mxu0 0
    %4228 = vmatpush1.bf16.msra.mxu0 %v4156
    %4229 = vmatprep.subr.bf16.mxu0 0
    %4230 = vmatpush1.bf16.msra.mxu0 %v4155
    %4231 = vmatprep.subr.bf16.mxu0 0
    %4232 = vmatpush1.bf16.msra.mxu0 %v4154
    %4233 = vmatprep.subr.bf16.mxu0 0
    %4234 = vmatpush2.bf16.msra.mxu0 0
    %4235 = vmatprep.subr.bf16.mxu0 0
    %4236 = vmatpush2.bf16.msra.mxu0 0
    %4237 = vmatprep.subr.bf16.mxu0 0
    %4238 = vmatpush2.bf16.msra.mxu0 0
    %4239 = vmatprep.subr.bf16.mxu0 0
    %4240 = vmatpush2.bf16.msra.mxu0 0
    %4241 = vmatprep.subr.bf16.mxu0 0
    %4242 = vmatpush2.bf16.msra.mxu0 0
    %4243 = vmatprep.subr.bf16.mxu0 0
    %4244 = vmatpush2.bf16.msra.mxu0 0
    %4245 = vmatprep.subr.bf16.mxu0 0
    %4246 = vmatpush2.bf16.msra.mxu0 0
    %4247 = vmatprep.subr.bf16.mxu0 0
    %4248 = vmatpush2.bf16.msra.mxu0 0
    %4249 = vmatprep.mubr.bf16.mxu0 0
    %4250 = vmatmul.mubr.bf16.gmra.mxu0 %v4216
    %v4251 = vpop.f32.mrf.mxu0
    %v4252 = vadd.f32 %v4120, %v4251
    %v4253 = vpop.f32.mrf.mxu0
    %v4254 = vpop.f32.mrf.mxu0
    %v4255 = vpop.f32.mrf.mxu0
    %4256 = vdwg.mxu0
    %vm4257 = vcmp.gt.f32.partialorder %v4252, 0.0
    %v4258 = vmin.f32 %v4252, 0.0
    %v4259 = vmul.f32 %v4258, 1.442695
    %v4260 = vpow.pop %v4259
    %v4261 = vsub.f32 %v4260, 1.0
    %v4262 = vsel %vm4257, %v4252, %v4261
    %s4263 = scalar_lea.vmem [#allocation4], 576
    %v4264 = vld [vmem:[%s4263] sm:$0xf]
    %v4265 = vld [vmem:[%s4263 + $0x4] sm:$0xf]
    %v4266 = vld [vmem:[%s4263 + $0x8] sm:$0xf]
    %v4267 = vld [vmem:[%s4263 + $0xc] sm:$0xf]
    %v4268 = vld [vmem:[%s4263 + $0x10] sm:$0xf]
    %v4269 = vld [vmem:[%s4263 + $0x14] sm:$0xf]
    %v4270 = vld [vmem:[%s4263 + $0x18] sm:$0xf]
    %v4271 = vld [vmem:[%s4263 + $0x1c] sm:$0xf]
    %v4272 = vld [vmem:[%s4263 + $0x20] sm:$0xf]
    %v4273 = vld [vmem:[%s4263 + $0x24] sm:$0xf]
    %v4274 = vld [vmem:[%s4263 + $0x28] sm:$0xf]
    %v4275 = vld [vmem:[%s4263 + $0x2c] sm:$0xf]
    %v4276 = vld [vmem:[%s4263 + $0x30] sm:$0xf]
    %v4277 = vld [vmem:[%s4263 + $0x34] sm:$0xf]
    %v4278 = vld [vmem:[%s4263 + $0x38] sm:$0xf]
    %v4279 = vld [vmem:[%s4263 + $0x3c] sm:$0xf]
    %s4280 = scalar_lea.vmem %s4, 9
    %v4281 = vld [vmem:[%s4280] sm:$0x1]
    %v4282 = vpack.c.bf16 %v4215, %v4215
    %v4284 = vlaneseq
    %v4285 = vshrl.u32 %v4284, 7
    %v4286 = vsub.s32 0, %v4285
    %v4287 = vrot.slane %v4281, %v4286
    %v4305 = vunpack.c.l.b16 %v4264
    %v4306 = vunpack.c.l.b16 %v4265
    %v4307 = vunpack.c.l.b16 %v4266
    %v4308 = vunpack.c.l.b16 %v4267
    %v4309 = vunpack.c.l.b16 %v4268
    %v4310 = vunpack.c.l.b16 %v4269
    %v4311 = vunpack.c.l.b16 %v4270
    %v4312 = vunpack.c.l.b16 %v4271
    %v4313 = vunpack.c.l.b16 %v4272
    %v4314 = vunpack.c.l.b16 %v4273
    %v4315 = vunpack.c.l.b16 %v4274
    %v4316 = vunpack.c.l.b16 %v4275
    %v4317 = vunpack.c.l.b16 %v4276
    %v4318 = vunpack.c.l.b16 %v4277
    %v4319 = vunpack.c.l.b16 %v4278
    %v4320 = vunpack.c.l.b16 %v4279
    %v4321 = vpack.c.b16 %v4306, %v4305
    %v4322 = vpack.c.b16 %v4308, %v4307
    %v4323 = vpack.c.b16 %v4310, %v4309
    %v4324 = vpack.c.b16 %v4312, %v4311
    %v4325 = vpack.c.b16 %v4314, %v4313
    %v4326 = vpack.c.b16 %v4316, %v4315
    %v4327 = vpack.c.b16 %v4318, %v4317
    %v4328 = vpack.c.b16 %v4320, %v4319
    %4337 = vmatprep.subr.bf16.mxu0 0
    %4338 = vmatpush1.bf16.msra.mxu0 %v4328
    %4339 = vmatprep.subr.bf16.mxu0 0
    %4340 = vmatpush1.bf16.msra.mxu0 %v4327
    %4341 = vmatprep.subr.bf16.mxu0 0
    %4342 = vmatpush1.bf16.msra.mxu0 %v4326
    %4343 = vmatprep.subr.bf16.mxu0 0
    %4344 = vmatpush1.bf16.msra.mxu0 %v4325
    %4345 = vmatprep.subr.bf16.mxu0 0
    %4346 = vmatpush1.bf16.msra.mxu0 %v4324
    %4347 = vmatprep.subr.bf16.mxu0 0
    %4348 = vmatpush1.bf16.msra.mxu0 %v4323
    %4349 = vmatprep.subr.bf16.mxu0 0
    %4350 = vmatpush1.bf16.msra.mxu0 %v4322
    %4351 = vmatprep.subr.bf16.mxu0 0
    %4352 = vmatpush1.bf16.msra.mxu0 %v4321
    %4353 = vmatprep.subr.bf16.mxu0 0
    %4354 = vmatpush2.bf16.msra.mxu0 0
    %4355 = vmatprep.subr.bf16.mxu0 0
    %4356 = vmatpush2.bf16.msra.mxu0 0
    %4357 = vmatprep.subr.bf16.mxu0 0
    %4358 = vmatpush2.bf16.msra.mxu0 0
    %4359 = vmatprep.subr.bf16.mxu0 0
    %4360 = vmatpush2.bf16.msra.mxu0 0
    %4361 = vmatprep.subr.bf16.mxu0 0
    %4362 = vmatpush2.bf16.msra.mxu0 0
    %4363 = vmatprep.subr.bf16.mxu0 0
    %4364 = vmatpush2.bf16.msra.mxu0 0
    %4365 = vmatprep.subr.bf16.mxu0 0
    %4366 = vmatpush2.bf16.msra.mxu0 0
    %4367 = vmatprep.subr.bf16.mxu0 0
    %4368 = vmatpush2.bf16.msra.mxu0 0
    %4369 = vmatprep.mubr.bf16.mxu0 0
    %4370 = vmatmul.mubr.bf16.gmra.mxu0 %v4282
    %v4371 = vpop.f32.mrf.mxu0
    %v4372 = vadd.f32 %v4287, %v4371
    %v4373 = vpop.f32.mrf.mxu0
    %v4374 = vpop.f32.mrf.mxu0
    %v4375 = vpop.f32.mrf.mxu0
    %4376 = vdwg.mxu0
    %vm4377 = vcmp.gt.f32.partialorder %v4372, 0.0
    %v4378 = vmin.f32 %v4372, 0.0
    %v4379 = vmul.f32 %v4378, 1.442695
    %v4380 = vpow.pop %v4379
    %v4381 = vsub.f32 %v4380, 1.0
    %v4382 = vsel %vm4377, %v4372, %v4381
    %v4383 = vpack.c.bf16 %v4262, %v4262
    %4384 = vmatprep.subr.bf16.mxu0 0
    %4385 = vmatpush1.bf16.msra.mxu0 %v4328
    %4386 = vmatprep.subr.bf16.mxu0 0
    %4387 = vmatpush1.bf16.msra.mxu0 %v4327
    %4388 = vmatprep.subr.bf16.mxu0 0
    %4389 = vmatpush1.bf16.msra.mxu0 %v4326
    %4390 = vmatprep.subr.bf16.mxu0 0
    %4391 = vmatpush1.bf16.msra.mxu0 %v4325
    %4392 = vmatprep.subr.bf16.mxu0 0
    %4393 = vmatpush1.bf16.msra.mxu0 %v4324
    %4394 = vmatprep.subr.bf16.mxu0 0
    %4395 = vmatpush1.bf16.msra.mxu0 %v4323
    %4396 = vmatprep.subr.bf16.mxu0 0
    %4397 = vmatpush1.bf16.msra.mxu0 %v4322
    %4398 = vmatprep.subr.bf16.mxu0 0
    %4399 = vmatpush1.bf16.msra.mxu0 %v4321
    %4400 = vmatprep.subr.bf16.mxu0 0
    %4401 = vmatpush2.bf16.msra.mxu0 0
    %4402 = vmatprep.subr.bf16.mxu0 0
    %4403 = vmatpush2.bf16.msra.mxu0 0
    %4404 = vmatprep.subr.bf16.mxu0 0
    %4405 = vmatpush2.bf16.msra.mxu0 0
    %4406 = vmatprep.subr.bf16.mxu0 0
    %4407 = vmatpush2.bf16.msra.mxu0 0
    %4408 = vmatprep.subr.bf16.mxu0 0
    %4409 = vmatpush2.bf16.msra.mxu0 0
    %4410 = vmatprep.subr.bf16.mxu0 0
    %4411 = vmatpush2.bf16.msra.mxu0 0
    %4412 = vmatprep.subr.bf16.mxu0 0
    %4413 = vmatpush2.bf16.msra.mxu0 0
    %4414 = vmatprep.subr.bf16.mxu0 0
    %4415 = vmatpush2.bf16.msra.mxu0 0
    %4416 = vmatprep.mubr.bf16.mxu0 0
    %4417 = vmatmul.mubr.bf16.gmra.mxu0 %v4383
    %v4418 = vpop.f32.mrf.mxu0
    %v4419 = vadd.f32 %v4287, %v4418
    %v4420 = vpop.f32.mrf.mxu0
    %v4421 = vpop.f32.mrf.mxu0
    %v4422 = vpop.f32.mrf.mxu0
    %4423 = vdwg.mxu0
    %vm4424 = vcmp.gt.f32.partialorder %v4419, 0.0
    %v4425 = vmin.f32 %v4419, 0.0
    %v4426 = vmul.f32 %v4425, 1.442695
    %v4427 = vpow.pop %v4426
    %v4428 = vsub.f32 %v4427, 1.0
    %v4429 = vsel %vm4424, %v4419, %v4428
    %s4430 = scalar_lea.vmem [#allocation4], 640
    %v4431 = vld [vmem:[%s4430] sm:$0xf]
    %v4432 = vld [vmem:[%s4430 + $0x4] sm:$0xf]
    %v4433 = vld [vmem:[%s4430 + $0x8] sm:$0xf]
    %v4434 = vld [vmem:[%s4430 + $0xc] sm:$0xf]
    %v4435 = vld [vmem:[%s4430 + $0x10] sm:$0xf]
    %v4436 = vld [vmem:[%s4430 + $0x14] sm:$0xf]
    %v4437 = vld [vmem:[%s4430 + $0x18] sm:$0xf]
    %v4438 = vld [vmem:[%s4430 + $0x1c] sm:$0xf]
    %v4439 = vld [vmem:[%s4430 + $0x20] sm:$0xf]
    %v4440 = vld [vmem:[%s4430 + $0x24] sm:$0xf]
    %v4441 = vld [vmem:[%s4430 + $0x28] sm:$0xf]
    %v4442 = vld [vmem:[%s4430 + $0x2c] sm:$0xf]
    %v4443 = vld [vmem:[%s4430 + $0x30] sm:$0xf]
    %v4444 = vld [vmem:[%s4430 + $0x34] sm:$0xf]
    %v4445 = vld [vmem:[%s4430 + $0x38] sm:$0xf]
    %v4446 = vld [vmem:[%s4430 + $0x3c] sm:$0xf]
    %s4447 = scalar_lea.vmem %s4, 10
    %v4448 = vld [vmem:[%s4447] sm:$0x1]
    %v4449 = vpack.c.bf16 %v4382, %v4382
    %v4451 = vlaneseq
    %v4452 = vshrl.u32 %v4451, 7
    %v4453 = vsub.s32 0, %v4452
    %v4454 = vrot.slane %v4448, %v4453
    %v4472 = vunpack.c.l.b16 %v4431
    %v4473 = vunpack.c.l.b16 %v4432
    %v4474 = vunpack.c.l.b16 %v4433
    %v4475 = vunpack.c.l.b16 %v4434
    %v4476 = vunpack.c.l.b16 %v4435
    %v4477 = vunpack.c.l.b16 %v4436
    %v4478 = vunpack.c.l.b16 %v4437
    %v4479 = vunpack.c.l.b16 %v4438
    %v4480 = vunpack.c.l.b16 %v4439
    %v4481 = vunpack.c.l.b16 %v4440
    %v4482 = vunpack.c.l.b16 %v4441
    %v4483 = vunpack.c.l.b16 %v4442
    %v4484 = vunpack.c.l.b16 %v4443
    %v4485 = vunpack.c.l.b16 %v4444
    %v4486 = vunpack.c.l.b16 %v4445
    %v4487 = vunpack.c.l.b16 %v4446
    %v4488 = vpack.c.b16 %v4473, %v4472
    %v4489 = vpack.c.b16 %v4475, %v4474
    %v4490 = vpack.c.b16 %v4477, %v4476
    %v4491 = vpack.c.b16 %v4479, %v4478
    %v4492 = vpack.c.b16 %v4481, %v4480
    %v4493 = vpack.c.b16 %v4483, %v4482
    %v4494 = vpack.c.b16 %v4485, %v4484
    %v4495 = vpack.c.b16 %v4487, %v4486
    %4504 = vmatprep.subr.bf16.mxu0 0
    %4505 = vmatpush1.bf16.msra.mxu0 %v4495
    %4506 = vmatprep.subr.bf16.mxu0 0
    %4507 = vmatpush1.bf16.msra.mxu0 %v4494
    %4508 = vmatprep.subr.bf16.mxu0 0
    %4509 = vmatpush1.bf16.msra.mxu0 %v4493
    %4510 = vmatprep.subr.bf16.mxu0 0
    %4511 = vmatpush1.bf16.msra.mxu0 %v4492
    %4512 = vmatprep.subr.bf16.mxu0 0
    %4513 = vmatpush1.bf16.msra.mxu0 %v4491
    %4514 = vmatprep.subr.bf16.mxu0 0
    %4515 = vmatpush1.bf16.msra.mxu0 %v4490
    %4516 = vmatprep.subr.bf16.mxu0 0
    %4517 = vmatpush1.bf16.msra.mxu0 %v4489
    %4518 = vmatprep.subr.bf16.mxu0 0
    %4519 = vmatpush1.bf16.msra.mxu0 %v4488
    %4520 = vmatprep.subr.bf16.mxu0 0
    %4521 = vmatpush2.bf16.msra.mxu0 0
    %4522 = vmatprep.subr.bf16.mxu0 0
    %4523 = vmatpush2.bf16.msra.mxu0 0
    %4524 = vmatprep.subr.bf16.mxu0 0
    %4525 = vmatpush2.bf16.msra.mxu0 0
    %4526 = vmatprep.subr.bf16.mxu0 0
    %4527 = vmatpush2.bf16.msra.mxu0 0
    %4528 = vmatprep.subr.bf16.mxu0 0
    %4529 = vmatpush2.bf16.msra.mxu0 0
    %4530 = vmatprep.subr.bf16.mxu0 0
    %4531 = vmatpush2.bf16.msra.mxu0 0
    %4532 = vmatprep.subr.bf16.mxu0 0
    %4533 = vmatpush2.bf16.msra.mxu0 0
    %4534 = vmatprep.subr.bf16.mxu0 0
    %4535 = vmatpush2.bf16.msra.mxu0 0
    %4536 = vmatprep.mubr.bf16.mxu0 0
    %4537 = vmatmul.mubr.bf16.gmra.mxu0 %v4449
    %v4538 = vpop.f32.mrf.mxu0
    %v4539 = vadd.f32 %v4454, %v4538
    %v4540 = vpop.f32.mrf.mxu0
    %v4541 = vpop.f32.mrf.mxu0
    %v4542 = vpop.f32.mrf.mxu0
    %4543 = vdwg.mxu0
    %vm4544 = vcmp.gt.f32.partialorder %v4539, 0.0
    %v4545 = vmin.f32 %v4539, 0.0
    %v4546 = vmul.f32 %v4545, 1.442695
    %v4547 = vpow.pop %v4546
    %v4548 = vsub.f32 %v4547, 1.0
    %v4549 = vsel %vm4544, %v4539, %v4548
    %v4550 = vpack.c.bf16 %v4429, %v4429
    %4551 = vmatprep.subr.bf16.mxu0 0
    %4552 = vmatpush1.bf16.msra.mxu0 %v4495
    %4553 = vmatprep.subr.bf16.mxu0 0
    %4554 = vmatpush1.bf16.msra.mxu0 %v4494
    %4555 = vmatprep.subr.bf16.mxu0 0
    %4556 = vmatpush1.bf16.msra.mxu0 %v4493
    %4557 = vmatprep.subr.bf16.mxu0 0
    %4558 = vmatpush1.bf16.msra.mxu0 %v4492
    %4559 = vmatprep.subr.bf16.mxu0 0
    %4560 = vmatpush1.bf16.msra.mxu0 %v4491
    %4561 = vmatprep.subr.bf16.mxu0 0
    %4562 = vmatpush1.bf16.msra.mxu0 %v4490
    %4563 = vmatprep.subr.bf16.mxu0 0
    %4564 = vmatpush1.bf16.msra.mxu0 %v4489
    %4565 = vmatprep.subr.bf16.mxu0 0
    %4566 = vmatpush1.bf16.msra.mxu0 %v4488
    %4567 = vmatprep.subr.bf16.mxu0 0
    %4568 = vmatpush2.bf16.msra.mxu0 0
    %4569 = vmatprep.subr.bf16.mxu0 0
    %4570 = vmatpush2.bf16.msra.mxu0 0
    %4571 = vmatprep.subr.bf16.mxu0 0
    %4572 = vmatpush2.bf16.msra.mxu0 0
    %4573 = vmatprep.subr.bf16.mxu0 0
    %4574 = vmatpush2.bf16.msra.mxu0 0
    %4575 = vmatprep.subr.bf16.mxu0 0
    %4576 = vmatpush2.bf16.msra.mxu0 0
    %4577 = vmatprep.subr.bf16.mxu0 0
    %4578 = vmatpush2.bf16.msra.mxu0 0
    %4579 = vmatprep.subr.bf16.mxu0 0
    %4580 = vmatpush2.bf16.msra.mxu0 0
    %4581 = vmatprep.subr.bf16.mxu0 0
    %4582 = vmatpush2.bf16.msra.mxu0 0
    %4583 = vmatprep.mubr.bf16.mxu0 0
    %4584 = vmatmul.mubr.bf16.gmra.mxu0 %v4550
    %v4585 = vpop.f32.mrf.mxu0
    %v4586 = vadd.f32 %v4454, %v4585
    %v4587 = vpop.f32.mrf.mxu0
    %v4588 = vpop.f32.mrf.mxu0
    %v4589 = vpop.f32.mrf.mxu0
    %4590 = vdwg.mxu0
    %vm4591 = vcmp.gt.f32.partialorder %v4586, 0.0
    %v4592 = vmin.f32 %v4586, 0.0
    %v4593 = vmul.f32 %v4592, 1.442695
    %v4594 = vpow.pop %v4593
    %v4595 = vsub.f32 %v4594, 1.0
    %v4596 = vsel %vm4591, %v4586, %v4595
    %s4597 = scalar_lea.vmem [#allocation4], 704
    %v4598 = vld [vmem:[%s4597] sm:$0xf]
    %v4599 = vld [vmem:[%s4597 + $0x4] sm:$0xf]
    %v4600 = vld [vmem:[%s4597 + $0x8] sm:$0xf]
    %v4601 = vld [vmem:[%s4597 + $0xc] sm:$0xf]
    %v4602 = vld [vmem:[%s4597 + $0x10] sm:$0xf]
    %v4603 = vld [vmem:[%s4597 + $0x14] sm:$0xf]
    %v4604 = vld [vmem:[%s4597 + $0x18] sm:$0xf]
    %v4605 = vld [vmem:[%s4597 + $0x1c] sm:$0xf]
    %v4606 = vld [vmem:[%s4597 + $0x20] sm:$0xf]
    %v4607 = vld [vmem:[%s4597 + $0x24] sm:$0xf]
    %v4608 = vld [vmem:[%s4597 + $0x28] sm:$0xf]
    %v4609 = vld [vmem:[%s4597 + $0x2c] sm:$0xf]
    %v4610 = vld [vmem:[%s4597 + $0x30] sm:$0xf]
    %v4611 = vld [vmem:[%s4597 + $0x34] sm:$0xf]
    %v4612 = vld [vmem:[%s4597 + $0x38] sm:$0xf]
    %v4613 = vld [vmem:[%s4597 + $0x3c] sm:$0xf]
    %s4614 = scalar_lea.vmem %s4, 11
    %v4615 = vld [vmem:[%s4614] sm:$0x1]
    %v4616 = vpack.c.bf16 %v4549, %v4549
    %v4618 = vlaneseq
    %v4619 = vshrl.u32 %v4618, 7
    %v4620 = vsub.s32 0, %v4619
    %v4621 = vrot.slane %v4615, %v4620
    %v4639 = vunpack.c.l.b16 %v4598
    %v4640 = vunpack.c.l.b16 %v4599
    %v4641 = vunpack.c.l.b16 %v4600
    %v4642 = vunpack.c.l.b16 %v4601
    %v4643 = vunpack.c.l.b16 %v4602
    %v4644 = vunpack.c.l.b16 %v4603
    %v4645 = vunpack.c.l.b16 %v4604
    %v4646 = vunpack.c.l.b16 %v4605
    %v4647 = vunpack.c.l.b16 %v4606
    %v4648 = vunpack.c.l.b16 %v4607
    %v4649 = vunpack.c.l.b16 %v4608
    %v4650 = vunpack.c.l.b16 %v4609
    %v4651 = vunpack.c.l.b16 %v4610
    %v4652 = vunpack.c.l.b16 %v4611
    %v4653 = vunpack.c.l.b16 %v4612
    %v4654 = vunpack.c.l.b16 %v4613
    %v4655 = vpack.c.b16 %v4640, %v4639
    %v4656 = vpack.c.b16 %v4642, %v4641
    %v4657 = vpack.c.b16 %v4644, %v4643
    %v4658 = vpack.c.b16 %v4646, %v4645
    %v4659 = vpack.c.b16 %v4648, %v4647
    %v4660 = vpack.c.b16 %v4650, %v4649
    %v4661 = vpack.c.b16 %v4652, %v4651
    %v4662 = vpack.c.b16 %v4654, %v4653
    %4671 = vmatprep.subr.bf16.mxu0 0
    %4672 = vmatpush1.bf16.msra.mxu0 %v4662
    %4673 = vmatprep.subr.bf16.mxu0 0
    %4674 = vmatpush1.bf16.msra.mxu0 %v4661
    %4675 = vmatprep.subr.bf16.mxu0 0
    %4676 = vmatpush1.bf16.msra.mxu0 %v4660
    %4677 = vmatprep.subr.bf16.mxu0 0
    %4678 = vmatpush1.bf16.msra.mxu0 %v4659
    %4679 = vmatprep.subr.bf16.mxu0 0
    %4680 = vmatpush1.bf16.msra.mxu0 %v4658
    %4681 = vmatprep.subr.bf16.mxu0 0
    %4682 = vmatpush1.bf16.msra.mxu0 %v4657
    %4683 = vmatprep.subr.bf16.mxu0 0
    %4684 = vmatpush1.bf16.msra.mxu0 %v4656
    %4685 = vmatprep.subr.bf16.mxu0 0
    %4686 = vmatpush1.bf16.msra.mxu0 %v4655
    %4687 = vmatprep.subr.bf16.mxu0 0
    %4688 = vmatpush2.bf16.msra.mxu0 0
    %4689 = vmatprep.subr.bf16.mxu0 0
    %4690 = vmatpush2.bf16.msra.mxu0 0
    %4691 = vmatprep.subr.bf16.mxu0 0
    %4692 = vmatpush2.bf16.msra.mxu0 0
    %4693 = vmatprep.subr.bf16.mxu0 0
    %4694 = vmatpush2.bf16.msra.mxu0 0
    %4695 = vmatprep.subr.bf16.mxu0 0
    %4696 = vmatpush2.bf16.msra.mxu0 0
    %4697 = vmatprep.subr.bf16.mxu0 0
    %4698 = vmatpush2.bf16.msra.mxu0 0
    %4699 = vmatprep.subr.bf16.mxu0 0
    %4700 = vmatpush2.bf16.msra.mxu0 0
    %4701 = vmatprep.subr.bf16.mxu0 0
    %4702 = vmatpush2.bf16.msra.mxu0 0
    %4703 = vmatprep.mubr.bf16.mxu0 0
    %4704 = vmatmul.mubr.bf16.gmra.mxu0 %v4616
    %v4705 = vpop.f32.mrf.mxu0
    %v4706 = vadd.f32 %v4621, %v4705
    %v4707 = vpop.f32.mrf.mxu0
    %v4708 = vpop.f32.mrf.mxu0
    %v4709 = vpop.f32.mrf.mxu0
    %4710 = vdwg.mxu0
    %vm4711 = vcmp.gt.f32.partialorder %v4706, 0.0
    %v4712 = vmin.f32 %v4706, 0.0
    %v4713 = vmul.f32 %v4712, 1.442695
    %v4714 = vpow.pop %v4713
    %v4715 = vsub.f32 %v4714, 1.0
    %v4716 = vsel %vm4711, %v4706, %v4715
    %v4717 = vpack.c.bf16 %v4596, %v4596
    %4718 = vmatprep.subr.bf16.mxu0 0
    %4719 = vmatpush1.bf16.msra.mxu0 %v4662
    %4720 = vmatprep.subr.bf16.mxu0 0
    %4721 = vmatpush1.bf16.msra.mxu0 %v4661
    %4722 = vmatprep.subr.bf16.mxu0 0
    %4723 = vmatpush1.bf16.msra.mxu0 %v4660
    %4724 = vmatprep.subr.bf16.mxu0 0
    %4725 = vmatpush1.bf16.msra.mxu0 %v4659
    %4726 = vmatprep.subr.bf16.mxu0 0
    %4727 = vmatpush1.bf16.msra.mxu0 %v4658
    %4728 = vmatprep.subr.bf16.mxu0 0
    %4729 = vmatpush1.bf16.msra.mxu0 %v4657
    %4730 = vmatprep.subr.bf16.mxu0 0
    %4731 = vmatpush1.bf16.msra.mxu0 %v4656
    %4732 = vmatprep.subr.bf16.mxu0 0
    %4733 = vmatpush1.bf16.msra.mxu0 %v4655
    %4734 = vmatprep.subr.bf16.mxu0 0
    %4735 = vmatpush2.bf16.msra.mxu0 0
    %4736 = vmatprep.subr.bf16.mxu0 0
    %4737 = vmatpush2.bf16.msra.mxu0 0
    %4738 = vmatprep.subr.bf16.mxu0 0
    %4739 = vmatpush2.bf16.msra.mxu0 0
    %4740 = vmatprep.subr.bf16.mxu0 0
    %4741 = vmatpush2.bf16.msra.mxu0 0
    %4742 = vmatprep.subr.bf16.mxu0 0
    %4743 = vmatpush2.bf16.msra.mxu0 0
    %4744 = vmatprep.subr.bf16.mxu0 0
    %4745 = vmatpush2.bf16.msra.mxu0 0
    %4746 = vmatprep.subr.bf16.mxu0 0
    %4747 = vmatpush2.bf16.msra.mxu0 0
    %4748 = vmatprep.subr.bf16.mxu0 0
    %4749 = vmatpush2.bf16.msra.mxu0 0
    %4750 = vmatprep.mubr.bf16.mxu0 0
    %4751 = vmatmul.mubr.bf16.gmra.mxu0 %v4717
    %v4752 = vpop.f32.mrf.mxu0
    %v4753 = vadd.f32 %v4621, %v4752
    %v4754 = vpop.f32.mrf.mxu0
    %v4755 = vpop.f32.mrf.mxu0
    %v4756 = vpop.f32.mrf.mxu0
    %4757 = vdwg.mxu0
    %vm4758 = vcmp.gt.f32.partialorder %v4753, 0.0
    %v4759 = vmin.f32 %v4753, 0.0
    %v4760 = vmul.f32 %v4759, 1.442695
    %v4761 = vpow.pop %v4760
    %v4762 = vsub.f32 %v4761, 1.0
    %v4763 = vsel %vm4758, %v4753, %v4762
    %s4764 = scalar_lea.vmem [#allocation4], 768
    %v4765 = vld [vmem:[%s4764] sm:$0xf]
    %v4766 = vld [vmem:[%s4764 + $0x4] sm:$0xf]
    %v4767 = vld [vmem:[%s4764 + $0x8] sm:$0xf]
    %v4768 = vld [vmem:[%s4764 + $0xc] sm:$0xf]
    %v4769 = vld [vmem:[%s4764 + $0x10] sm:$0xf]
    %v4770 = vld [vmem:[%s4764 + $0x14] sm:$0xf]
    %v4771 = vld [vmem:[%s4764 + $0x18] sm:$0xf]
    %v4772 = vld [vmem:[%s4764 + $0x1c] sm:$0xf]
    %v4773 = vld [vmem:[%s4764 + $0x20] sm:$0xf]
    %v4774 = vld [vmem:[%s4764 + $0x24] sm:$0xf]
    %v4775 = vld [vmem:[%s4764 + $0x28] sm:$0xf]
    %v4776 = vld [vmem:[%s4764 + $0x2c] sm:$0xf]
    %v4777 = vld [vmem:[%s4764 + $0x30] sm:$0xf]
    %v4778 = vld [vmem:[%s4764 + $0x34] sm:$0xf]
    %v4779 = vld [vmem:[%s4764 + $0x38] sm:$0xf]
    %v4780 = vld [vmem:[%s4764 + $0x3c] sm:$0xf]
    %s4781 = scalar_lea.vmem %s4, 12
    %v4782 = vld [vmem:[%s4781] sm:$0x1]
    %v4783 = vpack.c.bf16 %v4716, %v4716
    %v4785 = vlaneseq
    %v4786 = vshrl.u32 %v4785, 7
    %v4787 = vsub.s32 0, %v4786
    %v4788 = vrot.slane %v4782, %v4787
    %v4806 = vunpack.c.l.b16 %v4765
    %v4807 = vunpack.c.l.b16 %v4766
    %v4808 = vunpack.c.l.b16 %v4767
    %v4809 = vunpack.c.l.b16 %v4768
    %v4810 = vunpack.c.l.b16 %v4769
    %v4811 = vunpack.c.l.b16 %v4770
    %v4812 = vunpack.c.l.b16 %v4771
    %v4813 = vunpack.c.l.b16 %v4772
    %v4814 = vunpack.c.l.b16 %v4773
    %v4815 = vunpack.c.l.b16 %v4774
    %v4816 = vunpack.c.l.b16 %v4775
    %v4817 = vunpack.c.l.b16 %v4776
    %v4818 = vunpack.c.l.b16 %v4777
    %v4819 = vunpack.c.l.b16 %v4778
    %v4820 = vunpack.c.l.b16 %v4779
    %v4821 = vunpack.c.l.b16 %v4780
    %v4822 = vpack.c.b16 %v4807, %v4806
    %v4823 = vpack.c.b16 %v4809, %v4808
    %v4824 = vpack.c.b16 %v4811, %v4810
    %v4825 = vpack.c.b16 %v4813, %v4812
    %v4826 = vpack.c.b16 %v4815, %v4814
    %v4827 = vpack.c.b16 %v4817, %v4816
    %v4828 = vpack.c.b16 %v4819, %v4818
    %v4829 = vpack.c.b16 %v4821, %v4820
    %4838 = vmatprep.subr.bf16.mxu0 0
    %4839 = vmatpush1.bf16.msra.mxu0 %v4829
    %4840 = vmatprep.subr.bf16.mxu0 0
    %4841 = vmatpush1.bf16.msra.mxu0 %v4828
    %4842 = vmatprep.subr.bf16.mxu0 0
    %4843 = vmatpush1.bf16.msra.mxu0 %v4827
    %4844 = vmatprep.subr.bf16.mxu0 0
    %4845 = vmatpush1.bf16.msra.mxu0 %v4826
    %4846 = vmatprep.subr.bf16.mxu0 0
    %4847 = vmatpush1.bf16.msra.mxu0 %v4825
    %4848 = vmatprep.subr.bf16.mxu0 0
    %4849 = vmatpush1.bf16.msra.mxu0 %v4824
    %4850 = vmatprep.subr.bf16.mxu0 0
    %4851 = vmatpush1.bf16.msra.mxu0 %v4823
    %4852 = vmatprep.subr.bf16.mxu0 0
    %4853 = vmatpush1.bf16.msra.mxu0 %v4822
    %4854 = vmatprep.subr.bf16.mxu0 0
    %4855 = vmatpush2.bf16.msra.mxu0 0
    %4856 = vmatprep.subr.bf16.mxu0 0
    %4857 = vmatpush2.bf16.msra.mxu0 0
    %4858 = vmatprep.subr.bf16.mxu0 0
    %4859 = vmatpush2.bf16.msra.mxu0 0
    %4860 = vmatprep.subr.bf16.mxu0 0
    %4861 = vmatpush2.bf16.msra.mxu0 0
    %4862 = vmatprep.subr.bf16.mxu0 0
    %4863 = vmatpush2.bf16.msra.mxu0 0
    %4864 = vmatprep.subr.bf16.mxu0 0
    %4865 = vmatpush2.bf16.msra.mxu0 0
    %4866 = vmatprep.subr.bf16.mxu0 0
    %4867 = vmatpush2.bf16.msra.mxu0 0
    %4868 = vmatprep.subr.bf16.mxu0 0
    %4869 = vmatpush2.bf16.msra.mxu0 0
    %4870 = vmatprep.mubr.bf16.mxu0 0
    %4871 = vmatmul.mubr.bf16.gmra.mxu0 %v4783
    %v4872 = vpop.f32.mrf.mxu0
    %v4873 = vadd.f32 %v4788, %v4872
    %v4874 = vpop.f32.mrf.mxu0
    %v4875 = vpop.f32.mrf.mxu0
    %v4876 = vpop.f32.mrf.mxu0
    %4877 = vdwg.mxu0
    %vm4878 = vcmp.gt.f32.partialorder %v4873, 0.0
    %v4879 = vmin.f32 %v4873, 0.0
    %v4880 = vmul.f32 %v4879, 1.442695
    %v4881 = vpow.pop %v4880
    %v4882 = vsub.f32 %v4881, 1.0
    %v4883 = vsel %vm4878, %v4873, %v4882
    %v4884 = vpack.c.bf16 %v4763, %v4763
    %4885 = vmatprep.subr.bf16.mxu0 0
    %4886 = vmatpush1.bf16.msra.mxu0 %v4829
    %4887 = vmatprep.subr.bf16.mxu0 0
    %4888 = vmatpush1.bf16.msra.mxu0 %v4828
    %4889 = vmatprep.subr.bf16.mxu0 0
    %4890 = vmatpush1.bf16.msra.mxu0 %v4827
    %4891 = vmatprep.subr.bf16.mxu0 0
    %4892 = vmatpush1.bf16.msra.mxu0 %v4826
    %4893 = vmatprep.subr.bf16.mxu0 0
    %4894 = vmatpush1.bf16.msra.mxu0 %v4825
    %4895 = vmatprep.subr.bf16.mxu0 0
    %4896 = vmatpush1.bf16.msra.mxu0 %v4824
    %4897 = vmatprep.subr.bf16.mxu0 0
    %4898 = vmatpush1.bf16.msra.mxu0 %v4823
    %4899 = vmatprep.subr.bf16.mxu0 0
    %4900 = vmatpush1.bf16.msra.mxu0 %v4822
    %4901 = vmatprep.subr.bf16.mxu0 0
    %4902 = vmatpush2.bf16.msra.mxu0 0
    %4903 = vmatprep.subr.bf16.mxu0 0
    %4904 = vmatpush2.bf16.msra.mxu0 0
    %4905 = vmatprep.subr.bf16.mxu0 0
    %4906 = vmatpush2.bf16.msra.mxu0 0
    %4907 = vmatprep.subr.bf16.mxu0 0
    %4908 = vmatpush2.bf16.msra.mxu0 0
    %4909 = vmatprep.subr.bf16.mxu0 0
    %4910 = vmatpush2.bf16.msra.mxu0 0
    %4911 = vmatprep.subr.bf16.mxu0 0
    %4912 = vmatpush2.bf16.msra.mxu0 0
    %4913 = vmatprep.subr.bf16.mxu0 0
    %4914 = vmatpush2.bf16.msra.mxu0 0
    %4915 = vmatprep.subr.bf16.mxu0 0
    %4916 = vmatpush2.bf16.msra.mxu0 0
    %4917 = vmatprep.mubr.bf16.mxu0 0
    %4918 = vmatmul.mubr.bf16.gmra.mxu0 %v4884
    %v4919 = vpop.f32.mrf.mxu0
    %v4920 = vadd.f32 %v4788, %v4919
    %v4921 = vpop.f32.mrf.mxu0
    %v4922 = vpop.f32.mrf.mxu0
    %v4923 = vpop.f32.mrf.mxu0
    %4924 = vdwg.mxu0
    %vm4925 = vcmp.gt.f32.partialorder %v4920, 0.0
    %v4926 = vmin.f32 %v4920, 0.0
    %v4927 = vmul.f32 %v4926, 1.442695
    %v4928 = vpow.pop %v4927
    %v4929 = vsub.f32 %v4928, 1.0
    %v4930 = vsel %vm4925, %v4920, %v4929
    %s4931 = scalar_lea.vmem [#allocation4], 832
    %v4932 = vld [vmem:[%s4931] sm:$0xf]
    %v4933 = vld [vmem:[%s4931 + $0x4] sm:$0xf]
    %v4934 = vld [vmem:[%s4931 + $0x8] sm:$0xf]
    %v4935 = vld [vmem:[%s4931 + $0xc] sm:$0xf]
    %v4936 = vld [vmem:[%s4931 + $0x10] sm:$0xf]
    %v4937 = vld [vmem:[%s4931 + $0x14] sm:$0xf]
    %v4938 = vld [vmem:[%s4931 + $0x18] sm:$0xf]
    %v4939 = vld [vmem:[%s4931 + $0x1c] sm:$0xf]
    %v4940 = vld [vmem:[%s4931 + $0x20] sm:$0xf]
    %v4941 = vld [vmem:[%s4931 + $0x24] sm:$0xf]
    %v4942 = vld [vmem:[%s4931 + $0x28] sm:$0xf]
    %v4943 = vld [vmem:[%s4931 + $0x2c] sm:$0xf]
    %v4944 = vld [vmem:[%s4931 + $0x30] sm:$0xf]
    %v4945 = vld [vmem:[%s4931 + $0x34] sm:$0xf]
    %v4946 = vld [vmem:[%s4931 + $0x38] sm:$0xf]
    %v4947 = vld [vmem:[%s4931 + $0x3c] sm:$0xf]
    %s4948 = scalar_lea.vmem %s4, 13
    %v4949 = vld [vmem:[%s4948] sm:$0x1]
    %v4950 = vpack.c.bf16 %v4883, %v4883
    %v4952 = vlaneseq
    %v4953 = vshrl.u32 %v4952, 7
    %v4954 = vsub.s32 0, %v4953
    %v4955 = vrot.slane %v4949, %v4954
    %v4973 = vunpack.c.l.b16 %v4932
    %v4974 = vunpack.c.l.b16 %v4933
    %v4975 = vunpack.c.l.b16 %v4934
    %v4976 = vunpack.c.l.b16 %v4935
    %v4977 = vunpack.c.l.b16 %v4936
    %v4978 = vunpack.c.l.b16 %v4937
    %v4979 = vunpack.c.l.b16 %v4938
    %v4980 = vunpack.c.l.b16 %v4939
    %v4981 = vunpack.c.l.b16 %v4940
    %v4982 = vunpack.c.l.b16 %v4941
    %v4983 = vunpack.c.l.b16 %v4942
    %v4984 = vunpack.c.l.b16 %v4943
    %v4985 = vunpack.c.l.b16 %v4944
    %v4986 = vunpack.c.l.b16 %v4945
    %v4987 = vunpack.c.l.b16 %v4946
    %v4988 = vunpack.c.l.b16 %v4947
    %v4989 = vpack.c.b16 %v4974, %v4973
    %v4990 = vpack.c.b16 %v4976, %v4975
    %v4991 = vpack.c.b16 %v4978, %v4977
    %v4992 = vpack.c.b16 %v4980, %v4979
    %v4993 = vpack.c.b16 %v4982, %v4981
    %v4994 = vpack.c.b16 %v4984, %v4983
    %v4995 = vpack.c.b16 %v4986, %v4985
    %v4996 = vpack.c.b16 %v4988, %v4987
    %5005 = vmatprep.subr.bf16.mxu0 0
    %5006 = vmatpush1.bf16.msra.mxu0 %v4996
    %5007 = vmatprep.subr.bf16.mxu0 0
    %5008 = vmatpush1.bf16.msra.mxu0 %v4995
    %5009 = vmatprep.subr.bf16.mxu0 0
    %5010 = vmatpush1.bf16.msra.mxu0 %v4994
    %5011 = vmatprep.subr.bf16.mxu0 0
    %5012 = vmatpush1.bf16.msra.mxu0 %v4993
    %5013 = vmatprep.subr.bf16.mxu0 0
    %5014 = vmatpush1.bf16.msra.mxu0 %v4992
    %5015 = vmatprep.subr.bf16.mxu0 0
    %5016 = vmatpush1.bf16.msra.mxu0 %v4991
    %5017 = vmatprep.subr.bf16.mxu0 0
    %5018 = vmatpush1.bf16.msra.mxu0 %v4990
    %5019 = vmatprep.subr.bf16.mxu0 0
    %5020 = vmatpush1.bf16.msra.mxu0 %v4989
    %5021 = vmatprep.subr.bf16.mxu0 0
    %5022 = vmatpush2.bf16.msra.mxu0 0
    %5023 = vmatprep.subr.bf16.mxu0 0
    %5024 = vmatpush2.bf16.msra.mxu0 0
    %5025 = vmatprep.subr.bf16.mxu0 0
    %5026 = vmatpush2.bf16.msra.mxu0 0
    %5027 = vmatprep.subr.bf16.mxu0 0
    %5028 = vmatpush2.bf16.msra.mxu0 0
    %5029 = vmatprep.subr.bf16.mxu0 0
    %5030 = vmatpush2.bf16.msra.mxu0 0
    %5031 = vmatprep.subr.bf16.mxu0 0
    %5032 = vmatpush2.bf16.msra.mxu0 0
    %5033 = vmatprep.subr.bf16.mxu0 0
    %5034 = vmatpush2.bf16.msra.mxu0 0
    %5035 = vmatprep.subr.bf16.mxu0 0
    %5036 = vmatpush2.bf16.msra.mxu0 0
    %5037 = vmatprep.mubr.bf16.mxu0 0
    %5038 = vmatmul.mubr.bf16.gmra.mxu0 %v4950
    %v5039 = vpop.f32.mrf.mxu0
    %v5040 = vadd.f32 %v4955, %v5039
    %v5041 = vpop.f32.mrf.mxu0
    %v5042 = vpop.f32.mrf.mxu0
    %v5043 = vpop.f32.mrf.mxu0
    %5044 = vdwg.mxu0
    %vm5045 = vcmp.gt.f32.partialorder %v5040, 0.0
    %v5046 = vmin.f32 %v5040, 0.0
    %v5047 = vmul.f32 %v5046, 1.442695
    %v5048 = vpow.pop %v5047
    %v5049 = vsub.f32 %v5048, 1.0
    %v5050 = vsel %vm5045, %v5040, %v5049
    %v5051 = vpack.c.bf16 %v4930, %v4930
    %5052 = vmatprep.subr.bf16.mxu0 0
    %5053 = vmatpush1.bf16.msra.mxu0 %v4996
    %5054 = vmatprep.subr.bf16.mxu0 0
    %5055 = vmatpush1.bf16.msra.mxu0 %v4995
    %5056 = vmatprep.subr.bf16.mxu0 0
    %5057 = vmatpush1.bf16.msra.mxu0 %v4994
    %5058 = vmatprep.subr.bf16.mxu0 0
    %5059 = vmatpush1.bf16.msra.mxu0 %v4993
    %5060 = vmatprep.subr.bf16.mxu0 0
    %5061 = vmatpush1.bf16.msra.mxu0 %v4992
    %5062 = vmatprep.subr.bf16.mxu0 0
    %5063 = vmatpush1.bf16.msra.mxu0 %v4991
    %5064 = vmatprep.subr.bf16.mxu0 0
    %5065 = vmatpush1.bf16.msra.mxu0 %v4990
    %5066 = vmatprep.subr.bf16.mxu0 0
    %5067 = vmatpush1.bf16.msra.mxu0 %v4989
    %5068 = vmatprep.subr.bf16.mxu0 0
    %5069 = vmatpush2.bf16.msra.mxu0 0
    %5070 = vmatprep.subr.bf16.mxu0 0
    %5071 = vmatpush2.bf16.msra.mxu0 0
    %5072 = vmatprep.subr.bf16.mxu0 0
    %5073 = vmatpush2.bf16.msra.mxu0 0
    %5074 = vmatprep.subr.bf16.mxu0 0
    %5075 = vmatpush2.bf16.msra.mxu0 0
    %5076 = vmatprep.subr.bf16.mxu0 0
    %5077 = vmatpush2.bf16.msra.mxu0 0
    %5078 = vmatprep.subr.bf16.mxu0 0
    %5079 = vmatpush2.bf16.msra.mxu0 0
    %5080 = vmatprep.subr.bf16.mxu0 0
    %5081 = vmatpush2.bf16.msra.mxu0 0
    %5082 = vmatprep.subr.bf16.mxu0 0
    %5083 = vmatpush2.bf16.msra.mxu0 0
    %5084 = vmatprep.mubr.bf16.mxu0 0
    %5085 = vmatmul.mubr.bf16.gmra.mxu0 %v5051
    %v5086 = vpop.f32.mrf.mxu0
    %v5087 = vadd.f32 %v4955, %v5086
    %v5088 = vpop.f32.mrf.mxu0
    %v5089 = vpop.f32.mrf.mxu0
    %v5090 = vpop.f32.mrf.mxu0
    %5091 = vdwg.mxu0
    %vm5092 = vcmp.gt.f32.partialorder %v5087, 0.0
    %v5093 = vmin.f32 %v5087, 0.0
    %v5094 = vmul.f32 %v5093, 1.442695
    %v5095 = vpow.pop %v5094
    %v5096 = vsub.f32 %v5095, 1.0
    %v5097 = vsel %vm5092, %v5087, %v5096
    %s5098 = scalar_lea.vmem [#allocation4], 896
    %v5099 = vld [vmem:[%s5098] sm:$0xf]
    %v5100 = vld [vmem:[%s5098 + $0x4] sm:$0xf]
    %v5101 = vld [vmem:[%s5098 + $0x8] sm:$0xf]
    %v5102 = vld [vmem:[%s5098 + $0xc] sm:$0xf]
    %v5103 = vld [vmem:[%s5098 + $0x10] sm:$0xf]
    %v5104 = vld [vmem:[%s5098 + $0x14] sm:$0xf]
    %v5105 = vld [vmem:[%s5098 + $0x18] sm:$0xf]
    %v5106 = vld [vmem:[%s5098 + $0x1c] sm:$0xf]
    %v5107 = vld [vmem:[%s5098 + $0x20] sm:$0xf]
    %v5108 = vld [vmem:[%s5098 + $0x24] sm:$0xf]
    %v5109 = vld [vmem:[%s5098 + $0x28] sm:$0xf]
    %v5110 = vld [vmem:[%s5098 + $0x2c] sm:$0xf]
    %v5111 = vld [vmem:[%s5098 + $0x30] sm:$0xf]
    %v5112 = vld [vmem:[%s5098 + $0x34] sm:$0xf]
    %v5113 = vld [vmem:[%s5098 + $0x38] sm:$0xf]
    %v5114 = vld [vmem:[%s5098 + $0x3c] sm:$0xf]
    %s5115 = scalar_lea.vmem %s4, 14
    %v5116 = vld [vmem:[%s5115] sm:$0x1]
    %v5117 = vpack.c.bf16 %v5050, %v5050
    %v5119 = vlaneseq
    %v5120 = vshrl.u32 %v5119, 7
    %v5121 = vsub.s32 0, %v5120
    %v5122 = vrot.slane %v5116, %v5121
    %v5140 = vunpack.c.l.b16 %v5099
    %v5141 = vunpack.c.l.b16 %v5100
    %v5142 = vunpack.c.l.b16 %v5101
    %v5143 = vunpack.c.l.b16 %v5102
    %v5144 = vunpack.c.l.b16 %v5103
    %v5145 = vunpack.c.l.b16 %v5104
    %v5146 = vunpack.c.l.b16 %v5105
    %v5147 = vunpack.c.l.b16 %v5106
    %v5148 = vunpack.c.l.b16 %v5107
    %v5149 = vunpack.c.l.b16 %v5108
    %v5150 = vunpack.c.l.b16 %v5109
    %v5151 = vunpack.c.l.b16 %v5110
    %v5152 = vunpack.c.l.b16 %v5111
    %v5153 = vunpack.c.l.b16 %v5112
    %v5154 = vunpack.c.l.b16 %v5113
    %v5155 = vunpack.c.l.b16 %v5114
    %v5156 = vpack.c.b16 %v5141, %v5140
    %v5157 = vpack.c.b16 %v5143, %v5142
    %v5158 = vpack.c.b16 %v5145, %v5144
    %v5159 = vpack.c.b16 %v5147, %v5146
    %v5160 = vpack.c.b16 %v5149, %v5148
    %v5161 = vpack.c.b16 %v5151, %v5150
    %v5162 = vpack.c.b16 %v5153, %v5152
    %v5163 = vpack.c.b16 %v5155, %v5154
    %5172 = vmatprep.subr.bf16.mxu0 0
    %5173 = vmatpush1.bf16.msra.mxu0 %v5163
    %5174 = vmatprep.subr.bf16.mxu0 0
    %5175 = vmatpush1.bf16.msra.mxu0 %v5162
    %5176 = vmatprep.subr.bf16.mxu0 0
    %5177 = vmatpush1.bf16.msra.mxu0 %v5161
    %5178 = vmatprep.subr.bf16.mxu0 0
    %5179 = vmatpush1.bf16.msra.mxu0 %v5160
    %5180 = vmatprep.subr.bf16.mxu0 0
    %5181 = vmatpush1.bf16.msra.mxu0 %v5159
    %5182 = vmatprep.subr.bf16.mxu0 0
    %5183 = vmatpush1.bf16.msra.mxu0 %v5158
    %5184 = vmatprep.subr.bf16.mxu0 0
    %5185 = vmatpush1.bf16.msra.mxu0 %v5157
    %5186 = vmatprep.subr.bf16.mxu0 0
    %5187 = vmatpush1.bf16.msra.mxu0 %v5156
    %5188 = vmatprep.subr.bf16.mxu0 0
    %5189 = vmatpush2.bf16.msra.mxu0 0
    %5190 = vmatprep.subr.bf16.mxu0 0
    %5191 = vmatpush2.bf16.msra.mxu0 0
    %5192 = vmatprep.subr.bf16.mxu0 0
    %5193 = vmatpush2.bf16.msra.mxu0 0
    %5194 = vmatprep.subr.bf16.mxu0 0
    %5195 = vmatpush2.bf16.msra.mxu0 0
    %5196 = vmatprep.subr.bf16.mxu0 0
    %5197 = vmatpush2.bf16.msra.mxu0 0
    %5198 = vmatprep.subr.bf16.mxu0 0
    %5199 = vmatpush2.bf16.msra.mxu0 0
    %5200 = vmatprep.subr.bf16.mxu0 0
    %5201 = vmatpush2.bf16.msra.mxu0 0
    %5202 = vmatprep.subr.bf16.mxu0 0
    %5203 = vmatpush2.bf16.msra.mxu0 0
    %5204 = vmatprep.mubr.bf16.mxu0 0
    %5205 = vmatmul.mubr.bf16.gmra.mxu0 %v5117
    %v5206 = vpop.f32.mrf.mxu0
    %v5207 = vadd.f32 %v5122, %v5206
    %v5208 = vpop.f32.mrf.mxu0
    %v5209 = vpop.f32.mrf.mxu0
    %v5210 = vpop.f32.mrf.mxu0
    %5211 = vdwg.mxu0
    %vm5212 = vcmp.gt.f32.partialorder %v5207, 0.0
    %v5213 = vmin.f32 %v5207, 0.0
    %v5214 = vmul.f32 %v5213, 1.442695
    %v5215 = vpow.pop %v5214
    %v5216 = vsub.f32 %v5215, 1.0
    %v5217 = vsel %vm5212, %v5207, %v5216
    %v5218 = vpack.c.bf16 %v5097, %v5097
    %5219 = vmatprep.subr.bf16.mxu0 0
    %5220 = vmatpush1.bf16.msra.mxu0 %v5163
    %5221 = vmatprep.subr.bf16.mxu0 0
    %5222 = vmatpush1.bf16.msra.mxu0 %v5162
    %5223 = vmatprep.subr.bf16.mxu0 0
    %5224 = vmatpush1.bf16.msra.mxu0 %v5161
    %5225 = vmatprep.subr.bf16.mxu0 0
    %5226 = vmatpush1.bf16.msra.mxu0 %v5160
    %5227 = vmatprep.subr.bf16.mxu0 0
    %5228 = vmatpush1.bf16.msra.mxu0 %v5159
    %5229 = vmatprep.subr.bf16.mxu0 0
    %5230 = vmatpush1.bf16.msra.mxu0 %v5158
    %5231 = vmatprep.subr.bf16.mxu0 0
    %5232 = vmatpush1.bf16.msra.mxu0 %v5157
    %5233 = vmatprep.subr.bf16.mxu0 0
    %5234 = vmatpush1.bf16.msra.mxu0 %v5156
    %5235 = vmatprep.subr.bf16.mxu0 0
    %5236 = vmatpush2.bf16.msra.mxu0 0
    %5237 = vmatprep.subr.bf16.mxu0 0
    %5238 = vmatpush2.bf16.msra.mxu0 0
    %5239 = vmatprep.subr.bf16.mxu0 0
    %5240 = vmatpush2.bf16.msra.mxu0 0
    %5241 = vmatprep.subr.bf16.mxu0 0
    %5242 = vmatpush2.bf16.msra.mxu0 0
    %5243 = vmatprep.subr.bf16.mxu0 0
    %5244 = vmatpush2.bf16.msra.mxu0 0
    %5245 = vmatprep.subr.bf16.mxu0 0
    %5246 = vmatpush2.bf16.msra.mxu0 0
    %5247 = vmatprep.subr.bf16.mxu0 0
    %5248 = vmatpush2.bf16.msra.mxu0 0
    %5249 = vmatprep.subr.bf16.mxu0 0
    %5250 = vmatpush2.bf16.msra.mxu0 0
    %5251 = vmatprep.mubr.bf16.mxu0 0
    %5252 = vmatmul.mubr.bf16.gmra.mxu0 %v5218
    %v5253 = vpop.f32.mrf.mxu0
    %v5254 = vadd.f32 %v5122, %v5253
    %v5255 = vpop.f32.mrf.mxu0
    %v5256 = vpop.f32.mrf.mxu0
    %v5257 = vpop.f32.mrf.mxu0
    %5258 = vdwg.mxu0
    %vm5259 = vcmp.gt.f32.partialorder %v5254, 0.0
    %v5260 = vmin.f32 %v5254, 0.0
    %v5261 = vmul.f32 %v5260, 1.442695
    %v5262 = vpow.pop %v5261
    %v5263 = vsub.f32 %v5262, 1.0
    %v5264 = vsel %vm5259, %v5254, %v5263
    %s5265 = scalar_lea.vmem [#allocation4], 960
    %v5266 = vld [vmem:[%s5265] sm:$0xf]
    %v5267 = vld [vmem:[%s5265 + $0x4] sm:$0xf]
    %v5268 = vld [vmem:[%s5265 + $0x8] sm:$0xf]
    %v5269 = vld [vmem:[%s5265 + $0xc] sm:$0xf]
    %v5270 = vld [vmem:[%s5265 + $0x10] sm:$0xf]
    %v5271 = vld [vmem:[%s5265 + $0x14] sm:$0xf]
    %v5272 = vld [vmem:[%s5265 + $0x18] sm:$0xf]
    %v5273 = vld [vmem:[%s5265 + $0x1c] sm:$0xf]
    %v5274 = vld [vmem:[%s5265 + $0x20] sm:$0xf]
    %v5275 = vld [vmem:[%s5265 + $0x24] sm:$0xf]
    %v5276 = vld [vmem:[%s5265 + $0x28] sm:$0xf]
    %v5277 = vld [vmem:[%s5265 + $0x2c] sm:$0xf]
    %v5278 = vld [vmem:[%s5265 + $0x30] sm:$0xf]
    %v5279 = vld [vmem:[%s5265 + $0x34] sm:$0xf]
    %v5280 = vld [vmem:[%s5265 + $0x38] sm:$0xf]
    %v5281 = vld [vmem:[%s5265 + $0x3c] sm:$0xf]
    %s5282 = scalar_lea.vmem %s4, 15
    %v5283 = vld [vmem:[%s5282] sm:$0x1]
    %v5284 = vpack.c.bf16 %v5217, %v5217
    %v5286 = vlaneseq
    %v5287 = vshrl.u32 %v5286, 7
    %v5288 = vsub.s32 0, %v5287
    %v5289 = vrot.slane %v5283, %v5288
    %v5307 = vunpack.c.l.b16 %v5266
    %v5308 = vunpack.c.l.b16 %v5267
    %v5309 = vunpack.c.l.b16 %v5268
    %v5310 = vunpack.c.l.b16 %v5269
    %v5311 = vunpack.c.l.b16 %v5270
    %v5312 = vunpack.c.l.b16 %v5271
    %v5313 = vunpack.c.l.b16 %v5272
    %v5314 = vunpack.c.l.b16 %v5273
    %v5315 = vunpack.c.l.b16 %v5274
    %v5316 = vunpack.c.l.b16 %v5275
    %v5317 = vunpack.c.l.b16 %v5276
    %v5318 = vunpack.c.l.b16 %v5277
    %v5319 = vunpack.c.l.b16 %v5278
    %v5320 = vunpack.c.l.b16 %v5279
    %v5321 = vunpack.c.l.b16 %v5280
    %v5322 = vunpack.c.l.b16 %v5281
    %v5323 = vpack.c.b16 %v5308, %v5307
    %v5324 = vpack.c.b16 %v5310, %v5309
    %v5325 = vpack.c.b16 %v5312, %v5311
    %v5326 = vpack.c.b16 %v5314, %v5313
    %v5327 = vpack.c.b16 %v5316, %v5315
    %v5328 = vpack.c.b16 %v5318, %v5317
    %v5329 = vpack.c.b16 %v5320, %v5319
    %v5330 = vpack.c.b16 %v5322, %v5321
    %5339 = vmatprep.subr.bf16.mxu0 0
    %5340 = vmatpush1.bf16.msra.mxu0 %v5330
    %5341 = vmatprep.subr.bf16.mxu0 0
    %5342 = vmatpush1.bf16.msra.mxu0 %v5329
    %5343 = vmatprep.subr.bf16.mxu0 0
    %5344 = vmatpush1.bf16.msra.mxu0 %v5328
    %5345 = vmatprep.subr.bf16.mxu0 0
    %5346 = vmatpush1.bf16.msra.mxu0 %v5327
    %5347 = vmatprep.subr.bf16.mxu0 0
    %5348 = vmatpush1.bf16.msra.mxu0 %v5326
    %5349 = vmatprep.subr.bf16.mxu0 0
    %5350 = vmatpush1.bf16.msra.mxu0 %v5325
    %5351 = vmatprep.subr.bf16.mxu0 0
    %5352 = vmatpush1.bf16.msra.mxu0 %v5324
    %5353 = vmatprep.subr.bf16.mxu0 0
    %5354 = vmatpush1.bf16.msra.mxu0 %v5323
    %5355 = vmatprep.subr.bf16.mxu0 0
    %5356 = vmatpush2.bf16.msra.mxu0 0
    %5357 = vmatprep.subr.bf16.mxu0 0
    %5358 = vmatpush2.bf16.msra.mxu0 0
    %5359 = vmatprep.subr.bf16.mxu0 0
    %5360 = vmatpush2.bf16.msra.mxu0 0
    %5361 = vmatprep.subr.bf16.mxu0 0
    %5362 = vmatpush2.bf16.msra.mxu0 0
    %5363 = vmatprep.subr.bf16.mxu0 0
    %5364 = vmatpush2.bf16.msra.mxu0 0
    %5365 = vmatprep.subr.bf16.mxu0 0
    %5366 = vmatpush2.bf16.msra.mxu0 0
    %5367 = vmatprep.subr.bf16.mxu0 0
    %5368 = vmatpush2.bf16.msra.mxu0 0
    %5369 = vmatprep.subr.bf16.mxu0 0
    %5370 = vmatpush2.bf16.msra.mxu0 0
    %5371 = vmatprep.mubr.bf16.mxu0 0
    %5372 = vmatmul.mubr.bf16.gmra.mxu0 %v5284
    %v5373 = vpop.f32.mrf.mxu0
    %v5374 = vadd.f32 %v5289, %v5373
    %v5375 = vpop.f32.mrf.mxu0
    %v5376 = vpop.f32.mrf.mxu0
    %v5377 = vpop.f32.mrf.mxu0
    %5378 = vdwg.mxu0
    %vm5379 = vcmp.gt.f32.partialorder %v5374, 0.0
    %v5380 = vmin.f32 %v5374, 0.0
    %v5381 = vmul.f32 %v5380, 1.442695
    %v5382 = vpow.pop %v5381
    %v5383 = vsub.f32 %v5382, 1.0
    %v5384 = vsel %vm5379, %v5374, %v5383
    %v5385 = vpack.c.bf16 %v5264, %v5264
    %5386 = vmatprep.subr.bf16.mxu0 0
    %5387 = vmatpush1.bf16.msra.mxu0 %v5330
    %5388 = vmatprep.subr.bf16.mxu0 0
    %5389 = vmatpush1.bf16.msra.mxu0 %v5329
    %5390 = vmatprep.subr.bf16.mxu0 0
    %5391 = vmatpush1.bf16.msra.mxu0 %v5328
    %5392 = vmatprep.subr.bf16.mxu0 0
    %5393 = vmatpush1.bf16.msra.mxu0 %v5327
    %5394 = vmatprep.subr.bf16.mxu0 0
    %5395 = vmatpush1.bf16.msra.mxu0 %v5326
    %5396 = vmatprep.subr.bf16.mxu0 0
    %5397 = vmatpush1.bf16.msra.mxu0 %v5325
    %5398 = vmatprep.subr.bf16.mxu0 0
    %5399 = vmatpush1.bf16.msra.mxu0 %v5324
    %5400 = vmatprep.subr.bf16.mxu0 0
    %5401 = vmatpush1.bf16.msra.mxu0 %v5323
    %5402 = vmatprep.subr.bf16.mxu0 0
    %5403 = vmatpush2.bf16.msra.mxu0 0
    %5404 = vmatprep.subr.bf16.mxu0 0
    %5405 = vmatpush2.bf16.msra.mxu0 0
    %5406 = vmatprep.subr.bf16.mxu0 0
    %5407 = vmatpush2.bf16.msra.mxu0 0
    %5408 = vmatprep.subr.bf16.mxu0 0
    %5409 = vmatpush2.bf16.msra.mxu0 0
    %5410 = vmatprep.subr.bf16.mxu0 0
    %5411 = vmatpush2.bf16.msra.mxu0 0
    %5412 = vmatprep.subr.bf16.mxu0 0
    %5413 = vmatpush2.bf16.msra.mxu0 0
    %5414 = vmatprep.subr.bf16.mxu0 0
    %5415 = vmatpush2.bf16.msra.mxu0 0
    %5416 = vmatprep.subr.bf16.mxu0 0
    %5417 = vmatpush2.bf16.msra.mxu0 0
    %5418 = vmatprep.mubr.bf16.mxu0 0
    %5419 = vmatmul.mubr.bf16.gmra.mxu0 %v5385
    %v5420 = vpop.f32.mrf.mxu0
    %v5421 = vadd.f32 %v5289, %v5420
    %v5422 = vpop.f32.mrf.mxu0
    %v5423 = vpop.f32.mrf.mxu0
    %v5424 = vpop.f32.mrf.mxu0
    %5425 = vdwg.mxu0
    %vm5426 = vcmp.gt.f32.partialorder %v5421, 0.0
    %v5427 = vmin.f32 %v5421, 0.0
    %v5428 = vmul.f32 %v5427, 1.442695
    %v5429 = vpow.pop %v5428
    %v5430 = vsub.f32 %v5429, 1.0
    %v5431 = vsel %vm5426, %v5421, %v5430
    %s5432 = scalar_lea.vmem [#allocation4], 1024
    %v5433 = vld [vmem:[%s5432] sm:$0xf]
    %v5434 = vld [vmem:[%s5432 + $0x4] sm:$0xf]
    %v5435 = vld [vmem:[%s5432 + $0x8] sm:$0xf]
    %v5436 = vld [vmem:[%s5432 + $0xc] sm:$0xf]
    %v5437 = vld [vmem:[%s5432 + $0x10] sm:$0xf]
    %v5438 = vld [vmem:[%s5432 + $0x14] sm:$0xf]
    %v5439 = vld [vmem:[%s5432 + $0x18] sm:$0xf]
    %v5440 = vld [vmem:[%s5432 + $0x1c] sm:$0xf]
    %v5441 = vld [vmem:[%s5432 + $0x20] sm:$0xf]
    %v5442 = vld [vmem:[%s5432 + $0x24] sm:$0xf]
    %v5443 = vld [vmem:[%s5432 + $0x28] sm:$0xf]
    %v5444 = vld [vmem:[%s5432 + $0x2c] sm:$0xf]
    %v5445 = vld [vmem:[%s5432 + $0x30] sm:$0xf]
    %v5446 = vld [vmem:[%s5432 + $0x34] sm:$0xf]
    %v5447 = vld [vmem:[%s5432 + $0x38] sm:$0xf]
    %v5448 = vld [vmem:[%s5432 + $0x3c] sm:$0xf]
    %s5449 = scalar_lea.vmem %s4, 16
    %v5450 = vld [vmem:[%s5449] sm:$0x1]
    %v5451 = vpack.c.bf16 %v5384, %v5384
    %v5453 = vlaneseq
    %v5454 = vshrl.u32 %v5453, 7
    %v5455 = vsub.s32 0, %v5454
    %v5456 = vrot.slane %v5450, %v5455
    %v5474 = vunpack.c.l.b16 %v5433
    %v5475 = vunpack.c.l.b16 %v5434
    %v5476 = vunpack.c.l.b16 %v5435
    %v5477 = vunpack.c.l.b16 %v5436
    %v5478 = vunpack.c.l.b16 %v5437
    %v5479 = vunpack.c.l.b16 %v5438
    %v5480 = vunpack.c.l.b16 %v5439
    %v5481 = vunpack.c.l.b16 %v5440
    %v5482 = vunpack.c.l.b16 %v5441
    %v5483 = vunpack.c.l.b16 %v5442
    %v5484 = vunpack.c.l.b16 %v5443
    %v5485 = vunpack.c.l.b16 %v5444
    %v5486 = vunpack.c.l.b16 %v5445
    %v5487 = vunpack.c.l.b16 %v5446
    %v5488 = vunpack.c.l.b16 %v5447
    %v5489 = vunpack.c.l.b16 %v5448
    %v5490 = vpack.c.b16 %v5475, %v5474
    %v5491 = vpack.c.b16 %v5477, %v5476
    %v5492 = vpack.c.b16 %v5479, %v5478
    %v5493 = vpack.c.b16 %v5481, %v5480
    %v5494 = vpack.c.b16 %v5483, %v5482
    %v5495 = vpack.c.b16 %v5485, %v5484
    %v5496 = vpack.c.b16 %v5487, %v5486
    %v5497 = vpack.c.b16 %v5489, %v5488
    %5506 = vmatprep.subr.bf16.mxu0 0
    %5507 = vmatpush1.bf16.msra.mxu0 %v5497
    %5508 = vmatprep.subr.bf16.mxu0 0
    %5509 = vmatpush1.bf16.msra.mxu0 %v5496
    %5510 = vmatprep.subr.bf16.mxu0 0
    %5511 = vmatpush1.bf16.msra.mxu0 %v5495
    %5512 = vmatprep.subr.bf16.mxu0 0
    %5513 = vmatpush1.bf16.msra.mxu0 %v5494
    %5514 = vmatprep.subr.bf16.mxu0 0
    %5515 = vmatpush1.bf16.msra.mxu0 %v5493
    %5516 = vmatprep.subr.bf16.mxu0 0
    %5517 = vmatpush1.bf16.msra.mxu0 %v5492
    %5518 = vmatprep.subr.bf16.mxu0 0
    %5519 = vmatpush1.bf16.msra.mxu0 %v5491
    %5520 = vmatprep.subr.bf16.mxu0 0
    %5521 = vmatpush1.bf16.msra.mxu0 %v5490
    %5522 = vmatprep.subr.bf16.mxu0 0
    %5523 = vmatpush2.bf16.msra.mxu0 0
    %5524 = vmatprep.subr.bf16.mxu0 0
    %5525 = vmatpush2.bf16.msra.mxu0 0
    %5526 = vmatprep.subr.bf16.mxu0 0
    %5527 = vmatpush2.bf16.msra.mxu0 0
    %5528 = vmatprep.subr.bf16.mxu0 0
    %5529 = vmatpush2.bf16.msra.mxu0 0
    %5530 = vmatprep.subr.bf16.mxu0 0
    %5531 = vmatpush2.bf16.msra.mxu0 0
    %5532 = vmatprep.subr.bf16.mxu0 0
    %5533 = vmatpush2.bf16.msra.mxu0 0
    %5534 = vmatprep.subr.bf16.mxu0 0
    %5535 = vmatpush2.bf16.msra.mxu0 0
    %5536 = vmatprep.subr.bf16.mxu0 0
    %5537 = vmatpush2.bf16.msra.mxu0 0
    %5538 = vmatprep.mubr.bf16.mxu0 0
    %5539 = vmatmul.mubr.bf16.gmra.mxu0 %v5451
    %v5540 = vpop.f32.mrf.mxu0
    %v5541 = vadd.f32 %v5456, %v5540
    %v5542 = vpop.f32.mrf.mxu0
    %v5543 = vpop.f32.mrf.mxu0
    %v5544 = vpop.f32.mrf.mxu0
    %5545 = vdwg.mxu0
    %vm5546 = vcmp.gt.f32.partialorder %v5541, 0.0
    %v5547 = vmin.f32 %v5541, 0.0
    %v5548 = vmul.f32 %v5547, 1.442695
    %v5549 = vpow.pop %v5548
    %v5550 = vsub.f32 %v5549, 1.0
    %v5551 = vsel %vm5546, %v5541, %v5550
    %v5552 = vpack.c.bf16 %v5431, %v5431
    %5553 = vmatprep.subr.bf16.mxu0 0
    %5554 = vmatpush1.bf16.msra.mxu0 %v5497
    %5555 = vmatprep.subr.bf16.mxu0 0
    %5556 = vmatpush1.bf16.msra.mxu0 %v5496
    %5557 = vmatprep.subr.bf16.mxu0 0
    %5558 = vmatpush1.bf16.msra.mxu0 %v5495
    %5559 = vmatprep.subr.bf16.mxu0 0
    %5560 = vmatpush1.bf16.msra.mxu0 %v5494
    %5561 = vmatprep.subr.bf16.mxu0 0
    %5562 = vmatpush1.bf16.msra.mxu0 %v5493
    %5563 = vmatprep.subr.bf16.mxu0 0
    %5564 = vmatpush1.bf16.msra.mxu0 %v5492
    %5565 = vmatprep.subr.bf16.mxu0 0
    %5566 = vmatpush1.bf16.msra.mxu0 %v5491
    %5567 = vmatprep.subr.bf16.mxu0 0
    %5568 = vmatpush1.bf16.msra.mxu0 %v5490
    %5569 = vmatprep.subr.bf16.mxu0 0
    %5570 = vmatpush2.bf16.msra.mxu0 0
    %5571 = vmatprep.subr.bf16.mxu0 0
    %5572 = vmatpush2.bf16.msra.mxu0 0
    %5573 = vmatprep.subr.bf16.mxu0 0
    %5574 = vmatpush2.bf16.msra.mxu0 0
    %5575 = vmatprep.subr.bf16.mxu0 0
    %5576 = vmatpush2.bf16.msra.mxu0 0
    %5577 = vmatprep.subr.bf16.mxu0 0
    %5578 = vmatpush2.bf16.msra.mxu0 0
    %5579 = vmatprep.subr.bf16.mxu0 0
    %5580 = vmatpush2.bf16.msra.mxu0 0
    %5581 = vmatprep.subr.bf16.mxu0 0
    %5582 = vmatpush2.bf16.msra.mxu0 0
    %5583 = vmatprep.subr.bf16.mxu0 0
    %5584 = vmatpush2.bf16.msra.mxu0 0
    %5585 = vmatprep.mubr.bf16.mxu0 0
    %5586 = vmatmul.mubr.bf16.gmra.mxu0 %v5552
    %v5587 = vpop.f32.mrf.mxu0
    %v5588 = vadd.f32 %v5456, %v5587
    %v5589 = vpop.f32.mrf.mxu0
    %v5590 = vpop.f32.mrf.mxu0
    %v5591 = vpop.f32.mrf.mxu0
    %5592 = vdwg.mxu0
    %vm5593 = vcmp.gt.f32.partialorder %v5588, 0.0
    %v5594 = vmin.f32 %v5588, 0.0
    %v5595 = vmul.f32 %v5594, 1.442695
    %v5596 = vpow.pop %v5595
    %v5597 = vsub.f32 %v5596, 1.0
    %v5598 = vsel %vm5593, %v5588, %v5597
    %s5599 = scalar_lea.vmem [#allocation4], 1088
    %v5600 = vld [vmem:[%s5599] sm:$0xf]
    %v5601 = vld [vmem:[%s5599 + $0x4] sm:$0xf]
    %v5602 = vld [vmem:[%s5599 + $0x8] sm:$0xf]
    %v5603 = vld [vmem:[%s5599 + $0xc] sm:$0xf]
    %v5604 = vld [vmem:[%s5599 + $0x10] sm:$0xf]
    %v5605 = vld [vmem:[%s5599 + $0x14] sm:$0xf]
    %v5606 = vld [vmem:[%s5599 + $0x18] sm:$0xf]
    %v5607 = vld [vmem:[%s5599 + $0x1c] sm:$0xf]
    %v5608 = vld [vmem:[%s5599 + $0x20] sm:$0xf]
    %v5609 = vld [vmem:[%s5599 + $0x24] sm:$0xf]
    %v5610 = vld [vmem:[%s5599 + $0x28] sm:$0xf]
    %v5611 = vld [vmem:[%s5599 + $0x2c] sm:$0xf]
    %v5612 = vld [vmem:[%s5599 + $0x30] sm:$0xf]
    %v5613 = vld [vmem:[%s5599 + $0x34] sm:$0xf]
    %v5614 = vld [vmem:[%s5599 + $0x38] sm:$0xf]
    %v5615 = vld [vmem:[%s5599 + $0x3c] sm:$0xf]
    %s5616 = scalar_lea.vmem %s4, 17
    %v5617 = vld [vmem:[%s5616] sm:$0x1]
    %v5618 = vpack.c.bf16 %v5551, %v5551
    %v5620 = vlaneseq
    %v5621 = vshrl.u32 %v5620, 7
    %v5622 = vsub.s32 0, %v5621
    %v5623 = vrot.slane %v5617, %v5622
    %v5641 = vunpack.c.l.b16 %v5600
    %v5642 = vunpack.c.l.b16 %v5601
    %v5643 = vunpack.c.l.b16 %v5602
    %v5644 = vunpack.c.l.b16 %v5603
    %v5645 = vunpack.c.l.b16 %v5604
    %v5646 = vunpack.c.l.b16 %v5605
    %v5647 = vunpack.c.l.b16 %v5606
    %v5648 = vunpack.c.l.b16 %v5607
    %v5649 = vunpack.c.l.b16 %v5608
    %v5650 = vunpack.c.l.b16 %v5609
    %v5651 = vunpack.c.l.b16 %v5610
    %v5652 = vunpack.c.l.b16 %v5611
    %v5653 = vunpack.c.l.b16 %v5612
    %v5654 = vunpack.c.l.b16 %v5613
    %v5655 = vunpack.c.l.b16 %v5614
    %v5656 = vunpack.c.l.b16 %v5615
    %v5657 = vpack.c.b16 %v5642, %v5641
    %v5658 = vpack.c.b16 %v5644, %v5643
    %v5659 = vpack.c.b16 %v5646, %v5645
    %v5660 = vpack.c.b16 %v5648, %v5647
    %v5661 = vpack.c.b16 %v5650, %v5649
    %v5662 = vpack.c.b16 %v5652, %v5651
    %v5663 = vpack.c.b16 %v5654, %v5653
    %v5664 = vpack.c.b16 %v5656, %v5655
    %5673 = vmatprep.subr.bf16.mxu0 0
    %5674 = vmatpush1.bf16.msra.mxu0 %v5664
    %5675 = vmatprep.subr.bf16.mxu0 0
    %5676 = vmatpush1.bf16.msra.mxu0 %v5663
    %5677 = vmatprep.subr.bf16.mxu0 0
    %5678 = vmatpush1.bf16.msra.mxu0 %v5662
    %5679 = vmatprep.subr.bf16.mxu0 0
    %5680 = vmatpush1.bf16.msra.mxu0 %v5661
    %5681 = vmatprep.subr.bf16.mxu0 0
    %5682 = vmatpush1.bf16.msra.mxu0 %v5660
    %5683 = vmatprep.subr.bf16.mxu0 0
    %5684 = vmatpush1.bf16.msra.mxu0 %v5659
    %5685 = vmatprep.subr.bf16.mxu0 0
    %5686 = vmatpush1.bf16.msra.mxu0 %v5658
    %5687 = vmatprep.subr.bf16.mxu0 0
    %5688 = vmatpush1.bf16.msra.mxu0 %v5657
    %5689 = vmatprep.subr.bf16.mxu0 0
    %5690 = vmatpush2.bf16.msra.mxu0 0
    %5691 = vmatprep.subr.bf16.mxu0 0
    %5692 = vmatpush2.bf16.msra.mxu0 0
    %5693 = vmatprep.subr.bf16.mxu0 0
    %5694 = vmatpush2.bf16.msra.mxu0 0
    %5695 = vmatprep.subr.bf16.mxu0 0
    %5696 = vmatpush2.bf16.msra.mxu0 0
    %5697 = vmatprep.subr.bf16.mxu0 0
    %5698 = vmatpush2.bf16.msra.mxu0 0
    %5699 = vmatprep.subr.bf16.mxu0 0
    %5700 = vmatpush2.bf16.msra.mxu0 0
    %5701 = vmatprep.subr.bf16.mxu0 0
    %5702 = vmatpush2.bf16.msra.mxu0 0
    %5703 = vmatprep.subr.bf16.mxu0 0
    %5704 = vmatpush2.bf16.msra.mxu0 0
    %5705 = vmatprep.mubr.bf16.mxu0 0
    %5706 = vmatmul.mubr.bf16.gmra.mxu0 %v5618
    %v5707 = vpop.f32.mrf.mxu0
    %v5708 = vadd.f32 %v5623, %v5707
    %v5709 = vpop.f32.mrf.mxu0
    %v5710 = vpop.f32.mrf.mxu0
    %v5711 = vpop.f32.mrf.mxu0
    %5712 = vdwg.mxu0
    %vm5713 = vcmp.gt.f32.partialorder %v5708, 0.0
    %v5714 = vmin.f32 %v5708, 0.0
    %v5715 = vmul.f32 %v5714, 1.442695
    %v5716 = vpow.pop %v5715
    %v5717 = vsub.f32 %v5716, 1.0
    %v5718 = vsel %vm5713, %v5708, %v5717
    %v5719 = vpack.c.bf16 %v5598, %v5598
    %5720 = vmatprep.subr.bf16.mxu0 0
    %5721 = vmatpush1.bf16.msra.mxu0 %v5664
    %5722 = vmatprep.subr.bf16.mxu0 0
    %5723 = vmatpush1.bf16.msra.mxu0 %v5663
    %5724 = vmatprep.subr.bf16.mxu0 0
    %5725 = vmatpush1.bf16.msra.mxu0 %v5662
    %5726 = vmatprep.subr.bf16.mxu0 0
    %5727 = vmatpush1.bf16.msra.mxu0 %v5661
    %5728 = vmatprep.subr.bf16.mxu0 0
    %5729 = vmatpush1.bf16.msra.mxu0 %v5660
    %5730 = vmatprep.subr.bf16.mxu0 0
    %5731 = vmatpush1.bf16.msra.mxu0 %v5659
    %5732 = vmatprep.subr.bf16.mxu0 0
    %5733 = vmatpush1.bf16.msra.mxu0 %v5658
    %5734 = vmatprep.subr.bf16.mxu0 0
    %5735 = vmatpush1.bf16.msra.mxu0 %v5657
    %5736 = vmatprep.subr.bf16.mxu0 0
    %5737 = vmatpush2.bf16.msra.mxu0 0
    %5738 = vmatprep.subr.bf16.mxu0 0
    %5739 = vmatpush2.bf16.msra.mxu0 0
    %5740 = vmatprep.subr.bf16.mxu0 0
    %5741 = vmatpush2.bf16.msra.mxu0 0
    %5742 = vmatprep.subr.bf16.mxu0 0
    %5743 = vmatpush2.bf16.msra.mxu0 0
    %5744 = vmatprep.subr.bf16.mxu0 0
    %5745 = vmatpush2.bf16.msra.mxu0 0
    %5746 = vmatprep.subr.bf16.mxu0 0
    %5747 = vmatpush2.bf16.msra.mxu0 0
    %5748 = vmatprep.subr.bf16.mxu0 0
    %5749 = vmatpush2.bf16.msra.mxu0 0
    %5750 = vmatprep.subr.bf16.mxu0 0
    %5751 = vmatpush2.bf16.msra.mxu0 0
    %5752 = vmatprep.mubr.bf16.mxu0 0
    %5753 = vmatmul.mubr.bf16.gmra.mxu0 %v5719
    %v5754 = vpop.f32.mrf.mxu0
    %v5755 = vadd.f32 %v5623, %v5754
    %v5756 = vpop.f32.mrf.mxu0
    %v5757 = vpop.f32.mrf.mxu0
    %v5758 = vpop.f32.mrf.mxu0
    %5759 = vdwg.mxu0
    %vm5760 = vcmp.gt.f32.partialorder %v5755, 0.0
    %v5761 = vmin.f32 %v5755, 0.0
    %v5762 = vmul.f32 %v5761, 1.442695
    %v5763 = vpow.pop %v5762
    %v5764 = vsub.f32 %v5763, 1.0
    %v5765 = vsel %vm5760, %v5755, %v5764
    %s5766 = scalar_lea.vmem [#allocation4], 1152
    %v5767 = vld [vmem:[%s5766] sm:$0xf]
    %v5768 = vld [vmem:[%s5766 + $0x4] sm:$0xf]
    %v5769 = vld [vmem:[%s5766 + $0x8] sm:$0xf]
    %v5770 = vld [vmem:[%s5766 + $0xc] sm:$0xf]
    %v5771 = vld [vmem:[%s5766 + $0x10] sm:$0xf]
    %v5772 = vld [vmem:[%s5766 + $0x14] sm:$0xf]
    %v5773 = vld [vmem:[%s5766 + $0x18] sm:$0xf]
    %v5774 = vld [vmem:[%s5766 + $0x1c] sm:$0xf]
    %v5775 = vld [vmem:[%s5766 + $0x20] sm:$0xf]
    %v5776 = vld [vmem:[%s5766 + $0x24] sm:$0xf]
    %v5777 = vld [vmem:[%s5766 + $0x28] sm:$0xf]
    %v5778 = vld [vmem:[%s5766 + $0x2c] sm:$0xf]
    %v5779 = vld [vmem:[%s5766 + $0x30] sm:$0xf]
    %v5780 = vld [vmem:[%s5766 + $0x34] sm:$0xf]
    %v5781 = vld [vmem:[%s5766 + $0x38] sm:$0xf]
    %v5782 = vld [vmem:[%s5766 + $0x3c] sm:$0xf]
    %s5783 = scalar_lea.vmem %s4, 18
    %v5784 = vld [vmem:[%s5783] sm:$0x1]
    %v5785 = vpack.c.bf16 %v5718, %v5718
    %v5787 = vlaneseq
    %v5788 = vshrl.u32 %v5787, 7
    %v5789 = vsub.s32 0, %v5788
    %v5790 = vrot.slane %v5784, %v5789
    %v5808 = vunpack.c.l.b16 %v5767
    %v5809 = vunpack.c.l.b16 %v5768
    %v5810 = vunpack.c.l.b16 %v5769
    %v5811 = vunpack.c.l.b16 %v5770
    %v5812 = vunpack.c.l.b16 %v5771
    %v5813 = vunpack.c.l.b16 %v5772
    %v5814 = vunpack.c.l.b16 %v5773
    %v5815 = vunpack.c.l.b16 %v5774
    %v5816 = vunpack.c.l.b16 %v5775
    %v5817 = vunpack.c.l.b16 %v5776
    %v5818 = vunpack.c.l.b16 %v5777
    %v5819 = vunpack.c.l.b16 %v5778
    %v5820 = vunpack.c.l.b16 %v5779
    %v5821 = vunpack.c.l.b16 %v5780
    %v5822 = vunpack.c.l.b16 %v5781
    %v5823 = vunpack.c.l.b16 %v5782
    %v5824 = vpack.c.b16 %v5809, %v5808
    %v5825 = vpack.c.b16 %v5811, %v5810
    %v5826 = vpack.c.b16 %v5813, %v5812
    %v5827 = vpack.c.b16 %v5815, %v5814
    %v5828 = vpack.c.b16 %v5817, %v5816
    %v5829 = vpack.c.b16 %v5819, %v5818
    %v5830 = vpack.c.b16 %v5821, %v5820
    %v5831 = vpack.c.b16 %v5823, %v5822
    %5840 = vmatprep.subr.bf16.mxu0 0
    %5841 = vmatpush1.bf16.msra.mxu0 %v5831
    %5842 = vmatprep.subr.bf16.mxu0 0
    %5843 = vmatpush1.bf16.msra.mxu0 %v5830
    %5844 = vmatprep.subr.bf16.mxu0 0
    %5845 = vmatpush1.bf16.msra.mxu0 %v5829
    %5846 = vmatprep.subr.bf16.mxu0 0
    %5847 = vmatpush1.bf16.msra.mxu0 %v5828
    %5848 = vmatprep.subr.bf16.mxu0 0
    %5849 = vmatpush1.bf16.msra.mxu0 %v5827
    %5850 = vmatprep.subr.bf16.mxu0 0
    %5851 = vmatpush1.bf16.msra.mxu0 %v5826
    %5852 = vmatprep.subr.bf16.mxu0 0
    %5853 = vmatpush1.bf16.msra.mxu0 %v5825
    %5854 = vmatprep.subr.bf16.mxu0 0
    %5855 = vmatpush1.bf16.msra.mxu0 %v5824
    %5856 = vmatprep.subr.bf16.mxu0 0
    %5857 = vmatpush2.bf16.msra.mxu0 0
    %5858 = vmatprep.subr.bf16.mxu0 0
    %5859 = vmatpush2.bf16.msra.mxu0 0
    %5860 = vmatprep.subr.bf16.mxu0 0
    %5861 = vmatpush2.bf16.msra.mxu0 0
    %5862 = vmatprep.subr.bf16.mxu0 0
    %5863 = vmatpush2.bf16.msra.mxu0 0
    %5864 = vmatprep.subr.bf16.mxu0 0
    %5865 = vmatpush2.bf16.msra.mxu0 0
    %5866 = vmatprep.subr.bf16.mxu0 0
    %5867 = vmatpush2.bf16.msra.mxu0 0
    %5868 = vmatprep.subr.bf16.mxu0 0
    %5869 = vmatpush2.bf16.msra.mxu0 0
    %5870 = vmatprep.subr.bf16.mxu0 0
    %5871 = vmatpush2.bf16.msra.mxu0 0
    %5872 = vmatprep.mubr.bf16.mxu0 0
    %5873 = vmatmul.mubr.bf16.gmra.mxu0 %v5785
    %v5874 = vpop.f32.mrf.mxu0
    %v5875 = vadd.f32 %v5790, %v5874
    %v5876 = vpop.f32.mrf.mxu0
    %v5877 = vpop.f32.mrf.mxu0
    %v5878 = vpop.f32.mrf.mxu0
    %5879 = vdwg.mxu0
    %vm5880 = vcmp.gt.f32.partialorder %v5875, 0.0
    %v5881 = vmin.f32 %v5875, 0.0
    %v5882 = vmul.f32 %v5881, 1.442695
    %v5883 = vpow.pop %v5882
    %v5884 = vsub.f32 %v5883, 1.0
    %v5885 = vsel %vm5880, %v5875, %v5884
    %v5886 = vpack.c.bf16 %v5765, %v5765
    %5887 = vmatprep.subr.bf16.mxu0 0
    %5888 = vmatpush1.bf16.msra.mxu0 %v5831
    %5889 = vmatprep.subr.bf16.mxu0 0
    %5890 = vmatpush1.bf16.msra.mxu0 %v5830
    %5891 = vmatprep.subr.bf16.mxu0 0
    %5892 = vmatpush1.bf16.msra.mxu0 %v5829
    %5893 = vmatprep.subr.bf16.mxu0 0
    %5894 = vmatpush1.bf16.msra.mxu0 %v5828
    %5895 = vmatprep.subr.bf16.mxu0 0
    %5896 = vmatpush1.bf16.msra.mxu0 %v5827
    %5897 = vmatprep.subr.bf16.mxu0 0
    %5898 = vmatpush1.bf16.msra.mxu0 %v5826
    %5899 = vmatprep.subr.bf16.mxu0 0
    %5900 = vmatpush1.bf16.msra.mxu0 %v5825
    %5901 = vmatprep.subr.bf16.mxu0 0
    %5902 = vmatpush1.bf16.msra.mxu0 %v5824
    %5903 = vmatprep.subr.bf16.mxu0 0
    %5904 = vmatpush2.bf16.msra.mxu0 0
    %5905 = vmatprep.subr.bf16.mxu0 0
    %5906 = vmatpush2.bf16.msra.mxu0 0
    %5907 = vmatprep.subr.bf16.mxu0 0
    %5908 = vmatpush2.bf16.msra.mxu0 0
    %5909 = vmatprep.subr.bf16.mxu0 0
    %5910 = vmatpush2.bf16.msra.mxu0 0
    %5911 = vmatprep.subr.bf16.mxu0 0
    %5912 = vmatpush2.bf16.msra.mxu0 0
    %5913 = vmatprep.subr.bf16.mxu0 0
    %5914 = vmatpush2.bf16.msra.mxu0 0
    %5915 = vmatprep.subr.bf16.mxu0 0
    %5916 = vmatpush2.bf16.msra.mxu0 0
    %5917 = vmatprep.subr.bf16.mxu0 0
    %5918 = vmatpush2.bf16.msra.mxu0 0
    %5919 = vmatprep.mubr.bf16.mxu0 0
    %5920 = vmatmul.mubr.bf16.gmra.mxu0 %v5886
    %v5921 = vpop.f32.mrf.mxu0
    %v5922 = vadd.f32 %v5790, %v5921
    %v5923 = vpop.f32.mrf.mxu0
    %v5924 = vpop.f32.mrf.mxu0
    %v5925 = vpop.f32.mrf.mxu0
    %5926 = vdwg.mxu0
    %vm5927 = vcmp.gt.f32.partialorder %v5922, 0.0
    %v5928 = vmin.f32 %v5922, 0.0
    %v5929 = vmul.f32 %v5928, 1.442695
    %v5930 = vpow.pop %v5929
    %v5931 = vsub.f32 %v5930, 1.0
    %v5932 = vsel %vm5927, %v5922, %v5931
    %v5933 = vld [vmem:[%s5] sm:$0xf]
    %v5934 = vld [vmem:[%s5 + $0x4] sm:$0xf]
    %v5935 = vld [vmem:[%s5 + $0x8] sm:$0xf]
    %v5936 = vld [vmem:[%s5 + $0xc] sm:$0xf]
    %v5937 = vld [vmem:[%s5 + $0x10] sm:$0xf]
    %v5938 = vld [vmem:[%s5 + $0x14] sm:$0xf]
    %v5939 = vld [vmem:[%s5 + $0x18] sm:$0xf]
    %v5940 = vld [vmem:[%s5 + $0x1c] sm:$0xf]
    %v5941 = vld [vmem:[%s5 + $0x20] sm:$0xf]
    %v5942 = vld [vmem:[%s5 + $0x24] sm:$0xf]
    %v5943 = vld [vmem:[%s5 + $0x28] sm:$0xf]
    %v5944 = vld [vmem:[%s5 + $0x2c] sm:$0xf]
    %v5945 = vld [vmem:[%s5 + $0x30] sm:$0xf]
    %v5946 = vld [vmem:[%s5 + $0x34] sm:$0xf]
    %v5947 = vld [vmem:[%s5 + $0x38] sm:$0xf]
    %v5948 = vld [vmem:[%s5 + $0x3c] sm:$0xf]
    %v5949 = vld [vmem:[%s6] sm:$0x1]
    %v5950 = vpack.c.bf16 %v5885, %v5885
    %v5952 = vlaneseq
    %v5953 = vshrl.u32 %v5952, 7
    %v5954 = vsub.s32 0, %v5953
    %v5955 = vrot.slane %v5949, %v5954
    %v5973 = vunpack.c.l.b16 %v5933
    %v5974 = vunpack.c.l.b16 %v5934
    %v5975 = vunpack.c.l.b16 %v5935
    %v5976 = vunpack.c.l.b16 %v5936
    %v5977 = vunpack.c.l.b16 %v5937
    %v5978 = vunpack.c.l.b16 %v5938
    %v5979 = vunpack.c.l.b16 %v5939
    %v5980 = vunpack.c.l.b16 %v5940
    %v5981 = vunpack.c.l.b16 %v5941
    %v5982 = vunpack.c.l.b16 %v5942
    %v5983 = vunpack.c.l.b16 %v5943
    %v5984 = vunpack.c.l.b16 %v5944
    %v5985 = vunpack.c.l.b16 %v5945
    %v5986 = vunpack.c.l.b16 %v5946
    %v5987 = vunpack.c.l.b16 %v5947
    %v5988 = vunpack.c.l.b16 %v5948
    %v5989 = vpack.c.b16 %v5974, %v5973
    %v5990 = vpack.c.b16 %v5976, %v5975
    %v5991 = vpack.c.b16 %v5978, %v5977
    %v5992 = vpack.c.b16 %v5980, %v5979
    %v5993 = vpack.c.b16 %v5982, %v5981
    %v5994 = vpack.c.b16 %v5984, %v5983
    %v5995 = vpack.c.b16 %v5986, %v5985
    %v5996 = vpack.c.b16 %v5988, %v5987
    %6005 = vmatprep.subr.bf16.mxu0 0
    %6006 = vmatpush1.bf16.msra.mxu0 %v5996
    %6007 = vmatprep.subr.bf16.mxu0 0
    %6008 = vmatpush1.bf16.msra.mxu0 %v5995
    %6009 = vmatprep.subr.bf16.mxu0 0
    %6010 = vmatpush1.bf16.msra.mxu0 %v5994
    %6011 = vmatprep.subr.bf16.mxu0 0
    %6012 = vmatpush1.bf16.msra.mxu0 %v5993
    %6013 = vmatprep.subr.bf16.mxu0 0
    %6014 = vmatpush1.bf16.msra.mxu0 %v5992
    %6015 = vmatprep.subr.bf16.mxu0 0
    %6016 = vmatpush1.bf16.msra.mxu0 %v5991
    %6017 = vmatprep.subr.bf16.mxu0 0
    %6018 = vmatpush1.bf16.msra.mxu0 %v5990
    %6019 = vmatprep.subr.bf16.mxu0 0
    %6020 = vmatpush1.bf16.msra.mxu0 %v5989
    %6021 = vmatprep.subr.bf16.mxu0 0
    %6022 = vmatpush2.bf16.msra.mxu0 0
    %6023 = vmatprep.subr.bf16.mxu0 0
    %6024 = vmatpush2.bf16.msra.mxu0 0
    %6025 = vmatprep.subr.bf16.mxu0 0
    %6026 = vmatpush2.bf16.msra.mxu0 0
    %6027 = vmatprep.subr.bf16.mxu0 0
    %6028 = vmatpush2.bf16.msra.mxu0 0
    %6029 = vmatprep.subr.bf16.mxu0 0
    %6030 = vmatpush2.bf16.msra.mxu0 0
    %6031 = vmatprep.subr.bf16.mxu0 0
    %6032 = vmatpush2.bf16.msra.mxu0 0
    %6033 = vmatprep.subr.bf16.mxu0 0
    %6034 = vmatpush2.bf16.msra.mxu0 0
    %6035 = vmatprep.subr.bf16.mxu0 0
    %6036 = vmatpush2.bf16.msra.mxu0 0
    %6037 = vmatprep.mubr.bf16.mxu0 0
    %6038 = vmatmul.mubr.bf16.gmra.mxu0 %v5950
    %v6039 = vpop.f32.mrf.mxu0
    %v6040 = vadd.f32 %v5955, %v6039
    %v6041 = vpop.f32.mrf.mxu0
    %v6042 = vpop.f32.mrf.mxu0
    %v6043 = vpop.f32.mrf.mxu0
    %6044 = vdwg.mxu0
    %v6045 = vlaneseq
    %v6046 = vand.u32 %v6045, 127
    %vm6047 = vcmp.lt.s32.totalorder %v6046, 10
    %v6048 = vsel %vm6047, %v6040, -inf
    %6049 = vmax.xlane.f32.xlu0 %v6048
    %v6050 = vpop.xlane.xlu0 %6049
    %v6051 = vsub.f32 %v6048, %v6050
    %v6052 = vmul.f32 %v6051, 1.442695
    %v6053 = vpow.pop %v6052
    %6054 = vadd.xlane.f32.xlu0 %v6053
    %v6055 = vpop.xlane.xlu0 %6054
    %v6056 = vrcp.pop %v6055
    %v6057 = vmul.f32 %v6053, %v6056
    %6058 = vst [vmem:[%s7] sm:$0xff] %v6057
    %v6059 = vpack.c.bf16 %v5932, %v5932
    %6060 = vmatprep.subr.bf16.mxu0 0
    %6061 = vmatpush1.bf16.msra.mxu0 %v5996
    %6062 = vmatprep.subr.bf16.mxu0 0
    %6063 = vmatpush1.bf16.msra.mxu0 %v5995
    %6064 = vmatprep.subr.bf16.mxu0 0
    %6065 = vmatpush1.bf16.msra.mxu0 %v5994
    %6066 = vmatprep.subr.bf16.mxu0 0
    %6067 = vmatpush1.bf16.msra.mxu0 %v5993
    %6068 = vmatprep.subr.bf16.mxu0 0
    %6069 = vmatpush1.bf16.msra.mxu0 %v5992
    %6070 = vmatprep.subr.bf16.mxu0 0
    %6071 = vmatpush1.bf16.msra.mxu0 %v5991
    %6072 = vmatprep.subr.bf16.mxu0 0
    %6073 = vmatpush1.bf16.msra.mxu0 %v5990
    %6074 = vmatprep.subr.bf16.mxu0 0
    %6075 = vmatpush1.bf16.msra.mxu0 %v5989
    %6076 = vmatprep.subr.bf16.mxu0 0
    %6077 = vmatpush2.bf16.msra.mxu0 0
    %6078 = vmatprep.subr.bf16.mxu0 0
    %6079 = vmatpush2.bf16.msra.mxu0 0
    %6080 = vmatprep.subr.bf16.mxu0 0
    %6081 = vmatpush2.bf16.msra.mxu0 0
    %6082 = vmatprep.subr.bf16.mxu0 0
    %6083 = vmatpush2.bf16.msra.mxu0 0
    %6084 = vmatprep.subr.bf16.mxu0 0
    %6085 = vmatpush2.bf16.msra.mxu0 0
    %6086 = vmatprep.subr.bf16.mxu0 0
    %6087 = vmatpush2.bf16.msra.mxu0 0
    %6088 = vmatprep.subr.bf16.mxu0 0
    %6089 = vmatpush2.bf16.msra.mxu0 0
    %6090 = vmatprep.subr.bf16.mxu0 0
    %6091 = vmatpush2.bf16.msra.mxu0 0
    %6092 = vmatprep.mubr.bf16.mxu0 0
    %6093 = vmatmul.mubr.bf16.gmra.mxu0 %v6059
    %v6094 = vpop.f32.mrf.mxu0
    %v6095 = vadd.f32 %v5955, %v6094
    %v6096 = vpop.f32.mrf.mxu0
    %v6097 = vpop.f32.mrf.mxu0
    %v6098 = vpop.f32.mrf.mxu0
    %6099 = vdwg.mxu0
    %v6100 = vsel %vm6047, %v6095, -inf
    %6101 = vmax.xlane.f32.xlu0 %v6100
    %v6102 = vpop.xlane.xlu0 %6101
    %v6103 = vsub.f32 %v6100, %v6102
    %v6104 = vmul.f32 %v6103, 1.442695
    %v6105 = vpow.pop %v6104
    %6106 = vadd.xlane.f32.xlu0 %v6105
    %v6107 = vpop.xlane.xlu0 %6106
    %v6108 = vrcp.pop %v6107
    %v6109 = vmul.f32 %v6105, %v6108
    %6110 = vst [vmem:[%s7 + $0x8] sm:$0xff] %v6109
    // Predicated region
    $region38: #{dnn_forward.1} parent=1 // pred_check
      _
    $region39: #{dnn_forward.1} parent=1 // pred_check_branch
      %6112 = sbr.rel (0) target = $region41
    $region40: #{dnn_forward.1} parent=1 // pred_region
      _
    $region41: #{dnn_forward.1} parent=1 // pred_fallthru
      _
    // Predicated region
    $region42: #{dnn_forward.1} parent=1 // pred_check
      _
    $region43: #{dnn_forward.1} parent=1 // pred_check_branch
      %6114 = sbr.rel (0) target = $region45
    $region44: #{dnn_forward.1} parent=1 // pred_region
      _
    $region45: #{dnn_forward.1} parent=1 // pred_fallthru
      _
    %6115 = vsyncpa [#allocation3], 1
    %6116 = vsyncpa [#allocation5], 1

</llo_original>
